<compile_context>
chip_gen: v7x
topology: tpu7x:2x2x1
jax: 0.10.0
libtpu: 0.0.40
codegen_flags: <defaults>
</compile_context>

<pallas_src>
import functools
import math

import jax
import jax.numpy as jnp
from jax import lax
from jax.experimental import pallas as pl
from jax.experimental.pallas import tpu as pltpu


# ============================================================================
# Kernel 1: KL-divergence term + batched self-attention maps (single call)
# ============================================================================
def _attn_kl_kernel(ys_ref, yt_ref, ys_att_ref, yt_att_ref, kl_ref, *, T):
    B, C, H, W = ys_ref.shape
    ys = ys_ref[...].astype(jnp.float32)
    yt = yt_ref[...].astype(jnp.float32)

    # ---- KL term over the channel axis (dim=1), log-sum-exp form ----
    inv_T = 1.0 / T
    ys_t = ys * inv_T
    yt_t = yt * inv_T
    ms = jnp.max(ys_t, axis=1, keepdims=True)
    lse_s = jnp.log(jnp.sum(jnp.exp(ys_t - ms), axis=1, keepdims=True)) + ms
    log_p_s = ys_t - lse_s + 1e-7                 # log_softmax(y_s/T) + 1e-7 (as in ref)
    mt = jnp.max(yt_t, axis=1, keepdims=True)
    lse_t = jnp.log(jnp.sum(jnp.exp(yt_t - mt), axis=1, keepdims=True)) + mt
    log_p_t = yt_t - lse_t
    p_t = jnp.exp(log_p_t)
    # F.kl_div(log_p_s, p_t, 'sum') with xlogy semantics: p_t==0 -> 0 * finite = 0
    kl_ref[0, 0] = jnp.sum(p_t * (log_p_t - log_p_s))

    # ---- batched self-attention: softmax(x @ x^T) @ x over trailing (H, W) ----
    xs = ys.reshape(B * C, H, W)                  # leading-dim merge only (layout-safe)
    xt = yt.reshape(B * C, H, W)

    def attn(x):
        s = jnp.einsum('bij,bkj->bik', x, x, preferred_element_type=jnp.float32)
        m = jnp.max(s, axis=-1, keepdims=True)
        e = jnp.exp(s - m)
        a = e / jnp.sum(e, axis=-1, keepdims=True)
        return jnp.einsum('bik,bkj->bij', a, x, preferred_element_type=jnp.float32)

    ys_att_ref[...] = attn(xs)
    yt_att_ref[...] = attn(xt)


# ============================================================================
# Kernel 2: fused 4x (3x3 conv via im2col + MXU matmul) + masked-MSE reduction
# ============================================================================
def _conv_mse_kernel(ysf_ref, ytf_ref,
                     wr_ref, br_ref, wd_ref, bd_ref,
                     wf_ref, bf_ref, wo_ref, bo_ref,
                     mse_ref, patches_ref, mm_ref, *, B, W):
    C = ysf_ref.shape[1]
    HW = ysf_ref.shape[2]

    # Lane masks for the left / right taps (hoisted out of all conv calls).
    col = lax.broadcasted_iota(jnp.int32, (1, HW), 1)
    wpos = (col & (W - 1)) if (W & (W - 1)) == 0 else (col % W)
    masks = {-1: (wpos >= 1).astype(jnp.float32),        # w-1 >= 0
             1: (wpos <= W - 2).astype(jnp.float32)}     # w+1 <  W

    wr = wr_ref[...]; br = br_ref[...]
    wd = wd_ref[...]; bd = bd_ref[...]
    wf = wf_ref[...]; bf = bf_ref[...]
    wo = wo_ref[...]; bo = bo_ref[...]

    def conv3x3(x, wmat, bias):
        """3x3 / stride 1 / pad 1 conv on a lane-dense (Cin, H*W) activation.

        Builds the (9*Cin, H*W) im2col patch matrix in a VMEM scratch via
        shifted, masked sub-window stores (padding handled by the pre-zeroed
        scratch + lane masks), then one MXU matmul with the reordered
        (Cout, 9*Cin) weight matrix.
        """
        cin = x.shape[0]
        rows = 9 * cin
        patches_ref[pl.ds(0, rows), :] = jnp.zeros((rows, HW), jnp.float32)
        t = 0
        for dh in (-1, 0, 1):
            for dw in (-1, 0, 1):
                d = dh * W + dw                   # flat shift on the H*W lane axis
                r0 = t * cin
                if d == 0:
                    patches_ref[pl.ds(r0, cin), :] = x
                elif d > 0:
                    v = x[:, d:]
                    if dw != 0:
                        v = v * masks[dw][:, 0:HW - d]
                    patches_ref[pl.ds(r0, cin), pl.ds(0, HW - d)] = v
                else:
                    v = x[:, :HW + d]
                    if dw != 0:
                        v = v * masks[dw][:, -d:HW]
                    patches_ref[pl.ds(r0, cin), pl.ds(-d, HW + d)] = v
                t += 1
        out = jnp.dot(wmat, patches_ref[pl.ds(0, rows), :],
                      preferred_element_type=jnp.float32)   # (Cout, H*W)
        return out + bias                                    # bias: (Cout, 1)

    total = jnp.float32(0.0)
    for b in range(B):                            # B is tiny & static -> unrolled
        xs = ysf_ref[b]                           # (C, H*W), lane-dense
        xt = ytf_ref[b]
        x_rgb = conv3x3(xs, wr, br)
        x_dep = conv3x3(xt, wd, bd)
        # mm_cat2 = cat([x_dep, x_rgb], dim=channel), assembled in VMEM scratch
        mm_ref[pl.ds(0, C), :] = x_dep
        mm_ref[pl.ds(C, C), :] = x_rgb
        h1 = conv3x3(mm_ref[...], wf, bf)
        cim = conv3x3(h1, wo, bo)
        diff = (xs - xt) * cim
        total = total + jnp.sum(diff * diff)
    mse_ref[0, 0] = total                          # sum of squares; /N in wrapper


# ============================================================================
# Wrapper (mirrors Dis.forward)
# ============================================================================
def _reorder_conv_weight(w):
    # (Cout, Cin, 3, 3) -> (Cout, 9*Cin), column index = (kh*3+kw)*Cin + ci
    cout, cin = w.shape[0], w.shape[1]
    return jnp.transpose(w.astype(jnp.float32), (0, 2, 3, 1)).reshape(cout, 9 * cin)


def dis_forward(y_s, y_t, params, *, T, alpha, return_parts=False):
    B, C, H, W = y_s.shape
    HW = H * W
    vmem = pl.BlockSpec(memory_space=pltpu.MemorySpace.VMEM)
    smem = pl.BlockSpec(memory_space=pltpu.MemorySpace.SMEM)

    # ---- pallas_call 1: attention maps for both inputs + raw KL sum ----
    ys_att, yt_att, kl = pl.pallas_call(
        functools.partial(_attn_kl_kernel, T=float(T)),
        out_shape=(jax.ShapeDtypeStruct((B * C, H, W), jnp.float32),
                   jax.ShapeDtypeStruct((B * C, H, W), jnp.float32),
                   jax.ShapeDtypeStruct((1, 1), jnp.float32)),
        in_specs=[vmem, vmem],
        out_specs=(vmem, vmem, smem),
    )(y_s, y_t)
    kl_loss = kl[0, 0] * (float(T) ** 2) / B

    # lane-dense (C, H*W) layout for the conv stack (contiguous XLA reshape)
    ysf = ys_att.reshape(B, C, HW)
    ytf = yt_att.reshape(B, C, HW)

    wr = _reorder_conv_weight(params["w_rgb"])
    wd = _reorder_conv_weight(params["w_dep"])
    wf = _reorder_conv_weight(params["w_ful2"])
    wo = _reorder_conv_weight(params["w_out"])
    br = params["b_rgb"].astype(jnp.float32).reshape(-1, 1)
    bd = params["b_dep"].astype(jnp.float32).reshape(-1, 1)
    bf = params["b_ful2"].astype(jnp.float32).reshape(-1, 1)
    bo = params["b_out"].astype(jnp.float32).reshape(-1, 1)

    # ---- pallas_call 2: fused conv stack + masked-MSE reduction ----
    mse_sum = pl.pallas_call(
        functools.partial(_conv_mse_kernel, B=B, W=W),
        out_shape=jax.ShapeDtypeStruct((1, 1), jnp.float32),
        in_specs=[vmem] * 10,
        out_specs=smem,
        scratch_shapes=[pltpu.VMEM((9 * 2 * C, HW), jnp.float32),   # im2col patches
                        pltpu.VMEM((2 * C, HW), jnp.float32)],      # mm_cat2
    )(ysf, ytf, wr, br, wd, bd, wf, bf, wo, bo)
    mse = mse_sum[0, 0] / float(B * C * H * W)

    # NOTE: WeightedFocalLoss in the source file is instantiated but never used
    # by Dis.forward, so it is intentionally not implemented here.
    loss = alpha * kl_loss + (1.0 - alpha) * mse     # .mean() in PyTorch is a no-op
    if return_parts:
        return loss, kl_loss, mse
    return loss


# ----------------------------------------------------------------------------
# deterministic parameter init (PyTorch Conv2d-like uniform bounds)
# ----------------------------------------------------------------------------
def init_params(key, c):
    keys = jax.random.split(key, 8)

    def conv_init(kw, kb, cout, cin):
        bound = 1.0 / math.sqrt(cin * 9.0)
        w = jax.random.uniform(kw, (cout, cin, 3, 3), jnp.float32, -bound, bound)
        b = jax.random.uniform(kb, (cout,), jnp.float32, -bound, bound)
        return w, b

    w_rgb, b_rgb = conv_init(keys[0], keys[1], c, c)
    w_dep, b_dep = conv_init(keys[2], keys[3], c, c)
    w_ful2, b_ful2 = conv_init(keys[4], keys[5], c, 2 * c)
    w_out, b_out = conv_init(keys[6], keys[7], c, c)
    return dict(w_rgb=w_rgb, b_rgb=b_rgb, w_dep=w_dep, b_dep=b_dep,
                w_ful2=w_ful2, b_ful2=b_ful2, w_out=w_out, b_out=b_out)


# ----------------------------------------------------------------------------
# pure-JAX reference (for correctness checking only)
# ----------------------------------------------------------------------------
def _reference_parts(y_s, y_t, params, T, alpha):
    B = y_s.shape[0]
    log_p_s = jax.nn.log_softmax(y_s / T, axis=1) + 1e-7
    log_p_t = jax.nn.log_softmax(y_t / T, axis=1)
    p_t = jnp.exp(log_p_t)
    kl = jnp.sum(p_t * (log_p_t - log_p_s)) * (T ** 2) / B

    def att(x):
        s = jnp.einsum('bchw,bcvw->bchv', x, x, precision=lax.Precision.HIGHEST)
        a = jax.nn.softmax(s, axis=-1)
        return jnp.einsum('bchv,bcvw->bchw', a, x, precision=lax.Precision.HIGHEST)

    def conv(x, w, b):
        y = lax.conv_general_dilated(x, w, (1, 1), ((1, 1), (1, 1)),
                                     dimension_numbers=('NCHW', 'OIHW', 'NCHW'),
                                     precision=lax.Precision.HIGHEST)
        return y + b.reshape(1, -1, 1, 1)

    ys_a = att(y_s)
    yt_a = att(y_t)
    x_rgb = conv(ys_a, params['w_rgb'], params['b_rgb'])
    x_dep = conv(yt_a, params['w_dep'], params['b_dep'])
    mm = jnp.concatenate([x_dep, x_rgb], axis=1)
    cim = conv(conv(mm, params['w_ful2'], params['b_ful2']),
               params['w_out'], params['b_out'])
    mse = jnp.mean(((ys_a - yt_a) * cim) ** 2)
    loss = alpha * kl + (1.0 - alpha) * mse
    return loss, kl, mse


if __name__ == "__main__":
    key = jax.random.PRNGKey(0)
    B, C, H, W = 2, 4, 16, 16        # in_dim = 4
    k1, k2, kp = jax.random.split(key, 3)
    y_s = jax.random.normal(k1, (B, C, H, W), jnp.float32)
    y_t = jax.random.normal(k2, (B, C, H, W), jnp.float32)
    params = init_params(kp, C)

    loss_fn = jax.jit(functools.partial(dis_forward, T=4.0, alpha=0.7,
                                        return_parts=True))
    loss, kl_v, mse_v = loss_fn(y_s, y_t, params)
    jax.block_until_ready(loss)

    ref_loss, ref_kl, ref_mse = _reference_parts(y_s, y_t, params, 4.0, 0.7)
    assert loss.shape == () and bool(jnp.isfinite(loss))
    assert jnp.allclose(kl_v, ref_kl, rtol=1e-3, atol=1e-5), (kl_v, ref_kl)
    assert jnp.allclose(mse_v, ref_mse, rtol=5e-2, atol=1e-5), (mse_v, ref_mse)
    assert jnp.allclose(loss, ref_loss, rtol=2e-2, atol=1e-4), (loss, ref_loss)
    print("KERNEL_OK")
</pallas_src>

<mosaic_0001>
module attributes {stable_mosaic.version = 11 : i64} {
  func.func @_attn_kl_kernel(%arg0: memref<2x4x16x16xf32, #tpu.memory_space<vmem>>, %arg1: memref<2x4x16x16xf32, #tpu.memory_space<vmem>>, %arg2: memref<8x16x16xf32, #tpu.memory_space<vmem>>, %arg3: memref<8x16x16xf32, #tpu.memory_space<vmem>>, %arg4: memref<1x1xf32, #tpu.memory_space<smem>>) attributes {dimension_semantics = [], scalar_prefetch = 0 : i64, scratch_operands = 0 : i64, tpu.core_type = #tpu.core_type<tc>} {
    %c0 = arith.constant 0 : index
    %c0_0 = arith.constant 0 : index
    %c0_1 = arith.constant 0 : index
    %c0_2 = arith.constant 0 : index
    %0 = vector.load %arg0[%c0, %c0_0, %c0_1, %c0_2] : memref<2x4x16x16xf32, #tpu.memory_space<vmem>>, vector<2x4x16x16xf32>
    %c0_3 = arith.constant 0 : index
    %c0_4 = arith.constant 0 : index
    %c0_5 = arith.constant 0 : index
    %c0_6 = arith.constant 0 : index
    %1 = vector.load %arg1[%c0_3, %c0_4, %c0_5, %c0_6] : memref<2x4x16x16xf32, #tpu.memory_space<vmem>>, vector<2x4x16x16xf32>
    %cst = arith.constant 2.500000e-01 : f32
    %2 = vector.broadcast %cst : f32 to vector<2x4x16x16xf32>
    %3 = arith.mulf %0, %2 : vector<2x4x16x16xf32>
    %cst_7 = arith.constant 2.500000e-01 : f32
    %4 = vector.broadcast %cst_7 : f32 to vector<2x4x16x16xf32>
    %5 = arith.mulf %1, %4 : vector<2x4x16x16xf32>
    %cst_8 = arith.constant dense<0xFF800000> : vector<2x16x16xf32>
    %6 = vector.multi_reduction <maximumf>, %3, %cst_8 [1] : vector<2x4x16x16xf32> to vector<2x16x16xf32>
    %7 = vector.shape_cast %6 : vector<2x16x16xf32> to vector<2x1x16x16xf32>
    %8 = vector.broadcast %7 : vector<2x1x16x16xf32> to vector<2x4x16x16xf32>
    %9 = arith.subf %3, %8 : vector<2x4x16x16xf32>
    %10 = math.exp %9 : vector<2x4x16x16xf32>
    %cst_9 = arith.constant dense<0.000000e+00> : vector<2x16x16xf32>
    %11 = vector.multi_reduction <add>, %10, %cst_9 [1] : vector<2x4x16x16xf32> to vector<2x16x16xf32>
    %12 = vector.shape_cast %11 : vector<2x16x16xf32> to vector<2x1x16x16xf32>
    %13 = math.log %12 : vector<2x1x16x16xf32>
    %14 = arith.addf %13, %7 : vector<2x1x16x16xf32>
    %15 = vector.broadcast %14 : vector<2x1x16x16xf32> to vector<2x4x16x16xf32>
    %16 = arith.subf %3, %15 : vector<2x4x16x16xf32>
    %cst_10 = arith.constant 1.000000e-07 : f32
    %17 = vector.broadcast %cst_10 : f32 to vector<2x4x16x16xf32>
    %18 = arith.addf %16, %17 : vector<2x4x16x16xf32>
    %cst_11 = arith.constant dense<0xFF800000> : vector<2x16x16xf32>
    %19 = vector.multi_reduction <maximumf>, %5, %cst_11 [1] : vector<2x4x16x16xf32> to vector<2x16x16xf32>
    %20 = vector.shape_cast %19 : vector<2x16x16xf32> to vector<2x1x16x16xf32>
    %21 = vector.broadcast %20 : vector<2x1x16x16xf32> to vector<2x4x16x16xf32>
    %22 = arith.subf %5, %21 : vector<2x4x16x16xf32>
    %23 = math.exp %22 : vector<2x4x16x16xf32>
    %cst_12 = arith.constant dense<0.000000e+00> : vector<2x16x16xf32>
    %24 = vector.multi_reduction <add>, %23, %cst_12 [1] : vector<2x4x16x16xf32> to vector<2x16x16xf32>
    %25 = vector.shape_cast %24 : vector<2x16x16xf32> to vector<2x1x16x16xf32>
    %26 = math.log %25 : vector<2x1x16x16xf32>
    %27 = arith.addf %26, %20 : vector<2x1x16x16xf32>
    %28 = vector.broadcast %27 : vector<2x1x16x16xf32> to vector<2x4x16x16xf32>
    %29 = arith.subf %5, %28 : vector<2x4x16x16xf32>
    %30 = math.exp %29 : vector<2x4x16x16xf32>
    %31 = arith.subf %29, %18 : vector<2x4x16x16xf32>
    %32 = arith.mulf %30, %31 : vector<2x4x16x16xf32>
    %33 = vector.shape_cast %32 : vector<2x4x16x16xf32> to vector<1x2x4x16x16xf32>
    %cst_13 = arith.constant dense<0.000000e+00> : vector<1xf32>
    %34 = vector.multi_reduction <add>, %33, %cst_13 [1, 2, 3, 4] : vector<1x2x4x16x16xf32> to vector<1xf32>
    %35 = vector.shape_cast %34 : vector<1xf32> to vector<1x1x1x1x1xf32>
    %36 = vector.extract %35[0, 0, 0, 0, 0] : f32 from vector<1x1x1x1x1xf32>
    %c0_14 = arith.constant 0 : index
    %c0_15 = arith.constant 0 : index
    %37 = memref.load %arg4[%c0_14, %c0_15] : memref<1x1xf32, #tpu.memory_space<smem>>
    memref.store %36, %arg4[%c0_14, %c0_15] : memref<1x1xf32, #tpu.memory_space<smem>>
    %38 = vector.shape_cast %0 : vector<2x4x16x16xf32> to vector<8x16x16xf32>
    %39 = vector.shape_cast %1 : vector<2x4x16x16xf32> to vector<8x16x16xf32>
    "tpu.trace_start"() <{level = 10 : i32, message = "bij,bkj->bik"}> : () -> ()
    %cst_16 = arith.constant dense<0.000000e+00> : vector<8x16x16xf32>
    %40 = tpu.matmul %38, %38, %cst_16 {dimension_numbers = #tpu.dot_dimension_numbers<[2], [2], [1], [1], [0, 0, 0, 1, 1, 1], [0], [0]>} : vector<8x16x16xf32>, vector<8x16x16xf32>, vector<8x16x16xf32> -> vector<8x16x16xf32>
    "tpu.trace_stop"() : () -> ()
    %cst_17 = arith.constant dense<0xFF800000> : vector<8x16xf32>
    %41 = vector.multi_reduction <maximumf>, %40, %cst_17 [2] : vector<8x16x16xf32> to vector<8x16xf32>
    %42 = vector.shape_cast %41 : vector<8x16xf32> to vector<8x16x1xf32>
    %43 = vector.broadcast %42 : vector<8x16x1xf32> to vector<8x16x16xf32>
    %44 = arith.subf %40, %43 : vector<8x16x16xf32>
    %45 = math.exp %44 : vector<8x16x16xf32>
    %cst_18 = arith.constant dense<0.000000e+00> : vector<8x16xf32>
    %46 = vector.multi_reduction <add>, %45, %cst_18 [2] : vector<8x16x16xf32> to vector<8x16xf32>
    %47 = vector.shape_cast %46 : vector<8x16xf32> to vector<8x16x1xf32>
    %48 = vector.broadcast %47 : vector<8x16x1xf32> to vector<8x16x16xf32>
    %49 = arith.divf %45, %48 : vector<8x16x16xf32>
    "tpu.trace_start"() <{level = 10 : i32, message = "bik,bkj->bij"}> : () -> ()
    %cst_19 = arith.constant dense<0.000000e+00> : vector<8x16x16xf32>
    %50 = tpu.matmul %49, %38, %cst_19 {dimension_numbers = #tpu.dot_dimension_numbers<[2], [1], [1], [2], [0, 0, 0, 1, 1, 2], [0], [0]>} : vector<8x16x16xf32>, vector<8x16x16xf32>, vector<8x16x16xf32> -> vector<8x16x16xf32>
    "tpu.trace_stop"() : () -> ()
    %c0_20 = arith.constant 0 : index
    %c0_21 = arith.constant 0 : index
    %c0_22 = arith.constant 0 : index
    %51 = vector.load %arg2[%c0_20, %c0_21, %c0_22] : memref<8x16x16xf32, #tpu.memory_space<vmem>>, vector<8x16x16xf32>
    tpu.vector_store %arg2[%c0_20, %c0_21, %c0_22], %50 {strides = array<i32>} : memref<8x16x16xf32, #tpu.memory_space<vmem>>, vector<8x16x16xf32>,
    "tpu.trace_start"() <{level = 10 : i32, message = "bij,bkj->bik"}> : () -> ()
    %cst_23 = arith.constant dense<0.000000e+00> : vector<8x16x16xf32>
    %52 = tpu.matmul %39, %39, %cst_23 {dimension_numbers = #tpu.dot_dimension_numbers<[2], [2], [1], [1], [0, 0, 0, 1, 1, 1], [0], [0]>} : vector<8x16x16xf32>, vector<8x16x16xf32>, vector<8x16x16xf32> -> vector<8x16x16xf32>
    "tpu.trace_stop"() : () -> ()
    %cst_24 = arith.constant dense<0xFF800000> : vector<8x16xf32>
    %53 = vector.multi_reduction <maximumf>, %52, %cst_24 [2] : vector<8x16x16xf32> to vector<8x16xf32>
    %54 = vector.shape_cast %53 : vector<8x16xf32> to vector<8x16x1xf32>
    %55 = vector.broadcast %54 : vector<8x16x1xf32> to vector<8x16x16xf32>
    %56 = arith.subf %52, %55 : vector<8x16x16xf32>
    %57 = math.exp %56 : vector<8x16x16xf32>
    %cst_25 = arith.constant dense<0.000000e+00> : vector<8x16xf32>
    %58 = vector.multi_reduction <add>, %57, %cst_25 [2] : vector<8x16x16xf32> to vector<8x16xf32>
    %59 = vector.shape_cast %58 : vector<8x16xf32> to vector<8x16x1xf32>
    %60 = vector.broadcast %59 : vector<8x16x1xf32> to vector<8x16x16xf32>
    %61 = arith.divf %57, %60 : vector<8x16x16xf32>
    "tpu.trace_start"() <{level = 10 : i32, message = "bik,bkj->bij"}> : () -> ()
    %cst_26 = arith.constant dense<0.000000e+00> : vector<8x16x16xf32>
    %62 = tpu.matmul %61, %39, %cst_26 {dimension_numbers = #tpu.dot_dimension_numbers<[2], [1], [1], [2], [0, 0, 0, 1, 1, 2], [0], [0]>} : vector<8x16x16xf32>, vector<8x16x16xf32>, vector<8x16x16xf32> -> vector<8x16x16xf32>
    "tpu.trace_stop"() : () -> ()
    %c0_27 = arith.constant 0 : index
    %c0_28 = arith.constant 0 : index
    %c0_29 = arith.constant 0 : index
    %63 = vector.load %arg3[%c0_27, %c0_28, %c0_29] : memref<8x16x16xf32, #tpu.memory_space<vmem>>, vector<8x16x16xf32>
    tpu.vector_store %arg3[%c0_27, %c0_28, %c0_29], %62 {strides = array<i32>} : memref<8x16x16xf32, #tpu.memory_space<vmem>>, vector<8x16x16xf32>,
    return
  }
}

module attributes {stable_mosaic.version = 11 : i64} {
  func.func @_conv_mse_kernel(%arg0: memref<2x4x256xf32, #tpu.memory_space<vmem>>, %arg1: memref<2x4x256xf32, #tpu.memory_space<vmem>>, %arg2: memref<4x36xf32, #tpu.memory_space<vmem>>, %arg3: memref<4x1xf32, #tpu.memory_space<vmem>>, %arg4: memref<4x36xf32, #tpu.memory_space<vmem>>, %arg5: memref<4x1xf32, #tpu.memory_space<vmem>>, %arg6: memref<4x72xf32, #tpu.memory_space<vmem>>, %arg7: memref<4x1xf32, #tpu.memory_space<vmem>>, %arg8: memref<4x36xf32, #tpu.memory_space<vmem>>, %arg9: memref<4x1xf32, #tpu.memory_space<vmem>>, %arg10: memref<1x1xf32, #tpu.memory_space<smem>>, %arg11: memref<72x256xf32, #tpu.memory_space<vmem>>, %arg12: memref<8x256xf32, #tpu.memory_space<vmem>>) attributes {dimension_semantics = [], scalar_prefetch = 0 : i64, scratch_operands = 2 : i64, tpu.core_type = #tpu.core_type<tc>} {
    %0 = tpu.iota {dimensions = array<i32: 1>} : vector<1x256xi32>
    %c15_i32 = arith.constant 15 : i32
    %1 = vector.broadcast %c15_i32 : i32 to vector<1x256xi32>
    %2 = arith.andi %0, %1 : vector<1x256xi32>
    %c1_i32 = arith.constant 1 : i32
    %3 = vector.broadcast %c1_i32 : i32 to vector<1x256xi32>
    %4 = arith.cmpi sge, %2, %3 : vector<1x256xi32>
    %5 = arith.extui %4 : vector<1x256xi1> to vector<1x256xi32>
    %6 = arith.sitofp %5 : vector<1x256xi32> to vector<1x256xf32>
    %c14_i32 = arith.constant 14 : i32
    %7 = vector.broadcast %c14_i32 : i32 to vector<1x256xi32>
    %8 = arith.cmpi sle, %2, %7 : vector<1x256xi32>
    %9 = arith.extui %8 : vector<1x256xi1> to vector<1x256xi32>
    %10 = arith.sitofp %9 : vector<1x256xi32> to vector<1x256xf32>
    %c0 = arith.constant 0 : index
    %c0_0 = arith.constant 0 : index
    %11 = vector.load %arg2[%c0, %c0_0] : memref<4x36xf32, #tpu.memory_space<vmem>>, vector<4x36xf32>
    %c0_1 = arith.constant 0 : index
    %c0_2 = arith.constant 0 : index
    %12 = vector.load %arg3[%c0_1, %c0_2] : memref<4x1xf32, #tpu.memory_space<vmem>>, vector<4x1xf32>
    %c0_3 = arith.constant 0 : index
    %c0_4 = arith.constant 0 : index
    %13 = vector.load %arg4[%c0_3, %c0_4] : memref<4x36xf32, #tpu.memory_space<vmem>>, vector<4x36xf32>
    %c0_5 = arith.constant 0 : index
    %c0_6 = arith.constant 0 : index
    %14 = vector.load %arg5[%c0_5, %c0_6] : memref<4x1xf32, #tpu.memory_space<vmem>>, vector<4x1xf32>
    %c0_7 = arith.constant 0 : index
    %c0_8 = arith.constant 0 : index
    %15 = vector.load %arg6[%c0_7, %c0_8] : memref<4x72xf32, #tpu.memory_space<vmem>>, vector<4x72xf32>
    %c0_9 = arith.constant 0 : index
    %c0_10 = arith.constant 0 : index
    %16 = vector.load %arg7[%c0_9, %c0_10] : memref<4x1xf32, #tpu.memory_space<vmem>>, vector<4x1xf32>
    %c0_11 = arith.constant 0 : index
    %c0_12 = arith.constant 0 : index
    %17 = vector.load %arg8[%c0_11, %c0_12] : memref<4x36xf32, #tpu.memory_space<vmem>>, vector<4x36xf32>
    %c0_13 = arith.constant 0 : index
    %c0_14 = arith.constant 0 : index
    %18 = vector.load %arg9[%c0_13, %c0_14] : memref<4x1xf32, #tpu.memory_space<vmem>>, vector<4x1xf32>
    %c0_15 = arith.constant 0 : index
    %c0_16 = arith.constant 0 : index
    %c0_17 = arith.constant 0 : index
    %19 = vector.load %arg0[%c0_15, %c0_16, %c0_17] : memref<2x4x256xf32, #tpu.memory_space<vmem>>, vector<1x4x256xf32>
    %20 = vector.shape_cast %19 : vector<1x4x256xf32> to vector<4x256xf32>
    %c0_18 = arith.constant 0 : index
    %c0_19 = arith.constant 0 : index
    %c0_20 = arith.constant 0 : index
    %21 = vector.load %arg1[%c0_18, %c0_19, %c0_20] : memref<2x4x256xf32, #tpu.memory_space<vmem>>, vector<1x4x256xf32>
    %22 = vector.shape_cast %21 : vector<1x4x256xf32> to vector<4x256xf32>
    %cst = arith.constant 0.000000e+00 : f32
    %23 = vector.broadcast %cst : f32 to vector<36x256xf32>
    %c0_21 = arith.constant 0 : index
    %c0_22 = arith.constant 0 : index
    %24 = vector.load %arg11[%c0_21, %c0_22] : memref<72x256xf32, #tpu.memory_space<vmem>>, vector<36x256xf32>
    tpu.vector_store %arg11[%c0_21, %c0_22], %23 {strides = array<i32>} : memref<72x256xf32, #tpu.memory_space<vmem>>, vector<36x256xf32>,
    %25 = vector.extract_strided_slice %20 {offsets = [0, 0], sizes = [4, 239], strides = [1, 1]} : vector<4x256xf32> to vector<4x239xf32>
    %26 = vector.extract_strided_slice %6 {offsets = [0, 17], sizes = [1, 239], strides = [1, 1]} : vector<1x256xf32> to vector<1x239xf32>
    %27 = vector.broadcast %26 : vector<1x239xf32> to vector<4x239xf32>
    %28 = arith.mulf %25, %27 : vector<4x239xf32>
    %c0_23 = arith.constant 0 : index
    %c17 = arith.constant 17 : index
    %29 = vector.load %arg11[%c0_23, %c17] : memref<72x256xf32, #tpu.memory_space<vmem>>, vector<4x239xf32>
    tpu.vector_store %arg11[%c0_23, %c17], %28 {strides = array<i32>} : memref<72x256xf32, #tpu.memory_space<vmem>>, vector<4x239xf32>,
    %30 = vector.extract_strided_slice %20 {offsets = [0, 0], sizes = [4, 240], strides = [1, 1]} : vector<4x256xf32> to vector<4x240xf32>
    %c4 = arith.constant 4 : index
    %c16 = arith.constant 16 : index
    %31 = vector.load %arg11[%c4, %c16] : memref<72x256xf32, #tpu.memory_space<vmem>>, vector<4x240xf32>
    tpu.vector_store %arg11[%c4, %c16], %30 {strides = array<i32>} : memref<72x256xf32, #tpu.memory_space<vmem>>, vector<4x240xf32>,
    %32 = vector.extract_strided_slice %20 {offsets = [0, 0], sizes = [4, 241], strides = [1, 1]} : vector<4x256xf32> to vector<4x241xf32>
    %33 = vector.extract_strided_slice %10 {offsets = [0, 15], sizes = [1, 241], strides = [1, 1]} : vector<1x256xf32> to vector<1x241xf32>
    %34 = vector.broadcast %33 : vector<1x241xf32> to vector<4x241xf32>
    %35 = arith.mulf %32, %34 : vector<4x241xf32>
    %c8 = arith.constant 8 : index
    %c15 = arith.constant 15 : index
    %36 = vector.load %arg11[%c8, %c15] : memref<72x256xf32, #tpu.memory_space<vmem>>, vector<4x241xf32>
    tpu.vector_store %arg11[%c8, %c15], %35 {strides = array<i32>} : memref<72x256xf32, #tpu.memory_space<vmem>>, vector<4x241xf32>,
    %37 = vector.extract_strided_slice %20 {offsets = [0, 0], sizes = [4, 255], strides = [1, 1]} : vector<4x256xf32> to vector<4x255xf32>
    %38 = vector.extract_strided_slice %6 {offsets = [0, 1], sizes = [1, 255], strides = [1, 1]} : vector<1x256xf32> to vector<1x255xf32>
    %39 = vector.broadcast %38 : vector<1x255xf32> to vector<4x255xf32>
    %40 = arith.mulf %37, %39 : vector<4x255xf32>
    %c12 = arith.constant 12 : index
    %c1 = arith.constant 1 : index
    %41 = vector.load %arg11[%c12, %c1] : memref<72x256xf32, #tpu.memory_space<vmem>>, vector<4x255xf32>
    tpu.vector_store %arg11[%c12, %c1], %40 {strides = array<i32>} : memref<72x256xf32, #tpu.memory_space<vmem>>, vector<4x255xf32>,
    %c16_24 = arith.constant 16 : index
    %c0_25 = arith.constant 0 : index
    %42 = vector.load %arg11[%c16_24, %c0_25] : memref<72x256xf32, #tpu.memory_space<vmem>>, vector<4x256xf32>
    tpu.vector_store %arg11[%c16_24, %c0_25], %20 {strides = array<i32>} : memref<72x256xf32, #tpu.memory_space<vmem>>, vector<4x256xf32>,
    %43 = vector.extract_strided_slice %20 {offsets = [0, 1], sizes = [4, 255], strides = [1, 1]} : vector<4x256xf32> to vector<4x255xf32>
    %44 = vector.extract_strided_slice %10 {offsets = [0, 0], sizes = [1, 255], strides = [1, 1]} : vector<1x256xf32> to vector<1x255xf32>
    %45 = vector.broadcast %44 : vector<1x255xf32> to vector<4x255xf32>
    %46 = arith.mulf %43, %45 : vector<4x255xf32>
    %c20 = arith.constant 20 : index
    %c0_26 = arith.constant 0 : index
    %47 = vector.load %arg11[%c20, %c0_26] : memref<72x256xf32, #tpu.memory_space<vmem>>, vector<4x255xf32>
    tpu.vector_store %arg11[%c20, %c0_26], %46 {strides = array<i32>} : memref<72x256xf32, #tpu.memory_space<vmem>>, vector<4x255xf32>,
    %48 = vector.extract_strided_slice %20 {offsets = [0, 15], sizes = [4, 241], strides = [1, 1]} : vector<4x256xf32> to vector<4x241xf32>
    %49 = vector.extract_strided_slice %6 {offsets = [0, 0], sizes = [1, 241], strides = [1, 1]} : vector<1x256xf32> to vector<1x241xf32>
    %50 = vector.broadcast %49 : vector<1x241xf32> to vector<4x241xf32>
    %51 = arith.mulf %48, %50 : vector<4x241xf32>
    %c24 = arith.constant 24 : index
    %c0_27 = arith.constant 0 : index
    %52 = vector.load %arg11[%c24, %c0_27] : memref<72x256xf32, #tpu.memory_space<vmem>>, vector<4x241xf32>
    tpu.vector_store %arg11[%c24, %c0_27], %51 {strides = array<i32>} : memref<72x256xf32, #tpu.memory_space<vmem>>, vector<4x241xf32>,
    %53 = vector.extract_strided_slice %20 {offsets = [0, 16], sizes = [4, 240], strides = [1, 1]} : vector<4x256xf32> to vector<4x240xf32>
    %c28 = arith.constant 28 : index
    %c0_28 = arith.constant 0 : index
    %54 = vector.load %arg11[%c28, %c0_28] : memref<72x256xf32, #tpu.memory_space<vmem>>, vector<4x240xf32>
    tpu.vector_store %arg11[%c28, %c0_28], %53 {strides = array<i32>} : memref<72x256xf32, #tpu.memory_space<vmem>>, vector<4x240xf32>,
    %55 = vector.extract_strided_slice %20 {offsets = [0, 17], sizes = [4, 239], strides = [1, 1]} : vector<4x256xf32> to vector<4x239xf32>
    %56 = vector.extract_strided_slice %10 {offsets = [0, 0], sizes = [1, 239], strides = [1, 1]} : vector<1x256xf32> to vector<1x239xf32>
    %57 = vector.broadcast %56 : vector<1x239xf32> to vector<4x239xf32>
    %58 = arith.mulf %55, %57 : vector<4x239xf32>
    %c32 = arith.constant 32 : index
    %c0_29 = arith.constant 0 : index
    %59 = vector.load %arg11[%c32, %c0_29] : memref<72x256xf32, #tpu.memory_space<vmem>>, vector<4x239xf32>
    tpu.vector_store %arg11[%c32, %c0_29], %58 {strides = array<i32>} : memref<72x256xf32, #tpu.memory_space<vmem>>, vector<4x239xf32>,
    %c0_30 = arith.constant 0 : index
    %c0_31 = arith.constant 0 : index
    %60 = vector.load %arg11[%c0_30, %c0_31] : memref<72x256xf32, #tpu.memory_space<vmem>>, vector<36x256xf32>
    %cst_32 = arith.constant dense<0.000000e+00> : vector<4x256xf32>
    %61 = tpu.matmul %11, %60, %cst_32 {dimension_numbers = #tpu.dot_dimension_numbers<[1], [0], [0], [1], [0, 0, 1, 1], [], []>} : vector<4x36xf32>, vector<36x256xf32>, vector<4x256xf32> -> vector<4x256xf32>
    %62 = vector.broadcast %12 : vector<4x1xf32> to vector<4x256xf32>
    %63 = arith.addf %61, %62 : vector<4x256xf32>
    %cst_33 = arith.constant 0.000000e+00 : f32
    %64 = vector.broadcast %cst_33 : f32 to vector<36x256xf32>
    %c0_34 = arith.constant 0 : index
    %c0_35 = arith.constant 0 : index
    %65 = vector.load %arg11[%c0_34, %c0_35] : memref<72x256xf32, #tpu.memory_space<vmem>>, vector<36x256xf32>
    tpu.vector_store %arg11[%c0_34, %c0_35], %64 {strides = array<i32>} : memref<72x256xf32, #tpu.memory_space<vmem>>, vector<36x256xf32>,
    %66 = vector.extract_strided_slice %22 {offsets = [0, 0], sizes = [4, 239], strides = [1, 1]} : vector<4x256xf32> to vector<4x239xf32>
    %67 = vector.extract_strided_slice %6 {offsets = [0, 17], sizes = [1, 239], strides = [1, 1]} : vector<1x256xf32> to vector<1x239xf32>
    %68 = vector.broadcast %67 : vector<1x239xf32> to vector<4x239xf32>
    %69 = arith.mulf %66, %68 : vector<4x239xf32>
    %c0_36 = arith.constant 0 : index
    %c17_37 = arith.constant 17 : index
    %70 = vector.load %arg11[%c0_36, %c17_37] : memref<72x256xf32, #tpu.memory_space<vmem>>, vector<4x239xf32>
    tpu.vector_store %arg11[%c0_36, %c17_37], %69 {strides = array<i32>} : memref<72x256xf32, #tpu.memory_space<vmem>>, vector<4x239xf32>,
    %71 = vector.extract_strided_slice %22 {offsets = [0, 0], sizes = [4, 240], strides = [1, 1]} : vector<4x256xf32> to vector<4x240xf32>
    %c4_38 = arith.constant 4 : index
    %c16_39 = arith.constant 16 : index
    %72 = vector.load %arg11[%c4_38, %c16_39] : memref<72x256xf32, #tpu.memory_space<vmem>>, vector<4x240xf32>
    tpu.vector_store %arg11[%c4_38, %c16_39], %71 {strides = array<i32>} : memref<72x256xf32, #tpu.memory_space<vmem>>, vector<4x240xf32>,
    %73 = vector.extract_strided_slice %22 {offsets = [0, 0], sizes = [4, 241], strides = [1, 1]} : vector<4x256xf32> to vector<4x241xf32>
    %74 = vector.extract_strided_slice %10 {offsets = [0, 15], sizes = [1, 241], strides = [1, 1]} : vector<1x256xf32> to vector<1x241xf32>
    %75 = vector.broadcast %74 : vector<1x241xf32> to vector<4x241xf32>
    %76 = arith.mulf %73, %75 : vector<4x241xf32>
    %c8_40 = arith.constant 8 : index
    %c15_41 = arith.constant 15 : index
    %77 = vector.load %arg11[%c8_40, %c15_41] : memref<72x256xf32, #tpu.memory_space<vmem>>, vector<4x241xf32>
    tpu.vector_store %arg11[%c8_40, %c15_41], %76 {strides = array<i32>} : memref<72x256xf32, #tpu.memory_space<vmem>>, vector<4x241xf32>,
    %78 = vector.extract_strided_slice %22 {offsets = [0, 0], sizes = [4, 255], strides = [1, 1]} : vector<4x256xf32> to vector<4x255xf32>
    %79 = vector.extract_strided_slice %6 {offsets = [0, 1], sizes = [1, 255], strides = [1, 1]} : vector<1x256xf32> to vector<1x255xf32>
    %80 = vector.broadcast %79 : vector<1x255xf32> to vector<4x255xf32>
    %81 = arith.mulf %78, %80 : vector<4x255xf32>
    %c12_42 = arith.constant 12 : index
    %c1_43 = arith.constant 1 : index
    %82 = vector.load %arg11[%c12_42, %c1_43] : memref<72x256xf32, #tpu.memory_space<vmem>>, vector<4x255xf32>
    tpu.vector_store %arg11[%c12_42, %c1_43], %81 {strides = array<i32>} : memref<72x256xf32, #tpu.memory_space<vmem>>, vector<4x255xf32>,
    %c16_44 = arith.constant 16 : index
    %c0_45 = arith.constant 0 : index
    %83 = vector.load %arg11[%c16_44, %c0_45] : memref<72x256xf32, #tpu.memory_space<vmem>>, vector<4x256xf32>
    tpu.vector_store %arg11[%c16_44, %c0_45], %22 {strides = array<i32>} : memref<72x256xf32, #tpu.memory_space<vmem>>, vector<4x256xf32>,
    %84 = vector.extract_strided_slice %22 {offsets = [0, 1], sizes = [4, 255], strides = [1, 1]} : vector<4x256xf32> to vector<4x255xf32>
    %85 = vector.extract_strided_slice %10 {offsets = [0, 0], sizes = [1, 255], strides = [1, 1]} : vector<1x256xf32> to vector<1x255xf32>
    %86 = vector.broadcast %85 : vector<1x255xf32> to vector<4x255xf32>
    %87 = arith.mulf %84, %86 : vector<4x255xf32>
    %c20_46 = arith.constant 20 : index
    %c0_47 = arith.constant 0 : index
    %88 = vector.load %arg11[%c20_46, %c0_47] : memref<72x256xf32, #tpu.memory_space<vmem>>, vector<4x255xf32>
    tpu.vector_store %arg11[%c20_46, %c0_47], %87 {strides = array<i32>} : memref<72x256xf32, #tpu.memory_space<vmem>>, vector<4x255xf32>,
    %89 = vector.extract_strided_slice %22 {offsets = [0, 15], sizes = [4, 241], strides = [1, 1]} : vector<4x256xf32> to vector<4x241xf32>
    %90 = vector.extract_strided_slice %6 {offsets = [0, 0], sizes = [1, 241], strides = [1, 1]} : vector<1x256xf32> to vector<1x241xf32>
    %91 = vector.broadcast %90 : vector<1x241xf32> to vector<4x241xf32>
    %92 = arith.mulf %89, %91 : vector<4x241xf32>
    %c24_48 = arith.constant 24 : index
    %c0_49 = arith.constant 0 : index
    %93 = vector.load %arg11[%c24_48, %c0_49] : memref<72x256xf32, #tpu.memory_space<vmem>>, vector<4x241xf32>
    tpu.vector_store %arg11[%c24_48, %c0_49], %92 {strides = array<i32>} : memref<72x256xf32, #tpu.memory_space<vmem>>, vector<4x241xf32>,
    %94 = vector.extract_strided_slice %22 {offsets = [0, 16], sizes = [4, 240], strides = [1, 1]} : vector<4x256xf32> to vector<4x240xf32>
    %c28_50 = arith.constant 28 : index
    %c0_51 = arith.constant 0 : index
    %95 = vector.load %arg11[%c28_50, %c0_51] : memref<72x256xf32, #tpu.memory_space<vmem>>, vector<4x240xf32>
    tpu.vector_store %arg11[%c28_50, %c0_51], %94 {strides = array<i32>} : memref<72x256xf32, #tpu.memory_space<vmem>>, vector<4x240xf32>,
    %96 = vector.extract_strided_slice %22 {offsets = [0, 17], sizes = [4, 239], strides = [1, 1]} : vector<4x256xf32> to vector<4x239xf32>
    %97 = vector.extract_strided_slice %10 {offsets = [0, 0], sizes = [1, 239], strides = [1, 1]} : vector<1x256xf32> to vector<1x239xf32>
    %98 = vector.broadcast %97 : vector<1x239xf32> to vector<4x239xf32>
    %99 = arith.mulf %96, %98 : vector<4x239xf32>
    %c32_52 = arith.constant 32 : index
    %c0_53 = arith.constant 0 : index
    %100 = vector.load %arg11[%c32_52, %c0_53] : memref<72x256xf32, #tpu.memory_space<vmem>>, vector<4x239xf32>
    tpu.vector_store %arg11[%c32_52, %c0_53], %99 {strides = array<i32>} : memref<72x256xf32, #tpu.memory_space<vmem>>, vector<4x239xf32>,
    %c0_54 = arith.constant 0 : index
    %c0_55 = arith.constant 0 : index
    %101 = vector.load %arg11[%c0_54, %c0_55] : memref<72x256xf32, #tpu.memory_space<vmem>>, vector<36x256xf32>
    %cst_56 = arith.constant dense<0.000000e+00> : vector<4x256xf32>
    %102 = tpu.matmul %13, %101, %cst_56 {dimension_numbers = #tpu.dot_dimension_numbers<[1], [0], [0], [1], [0, 0, 1, 1], [], []>} : vector<4x36xf32>, vector<36x256xf32>, vector<4x256xf32> -> vector<4x256xf32>
    %103 = vector.broadcast %14 : vector<4x1xf32> to vector<4x256xf32>
    %104 = arith.addf %102, %103 : vector<4x256xf32>
    %c0_57 = arith.constant 0 : index
    %c0_58 = arith.constant 0 : index
    %105 = vector.load %arg12[%c0_57, %c0_58] : memref<8x256xf32, #tpu.memory_space<vmem>>, vector<4x256xf32>
    tpu.vector_store %arg12[%c0_57, %c0_58], %104 {strides = array<i32>} : memref<8x256xf32, #tpu.memory_space<vmem>>, vector<4x256xf32>,
    %c4_59 = arith.constant 4 : index
    %c0_60 = arith.constant 0 : index
    %106 = vector.load %arg12[%c4_59, %c0_60] : memref<8x256xf32, #tpu.memory_space<vmem>>, vector<4x256xf32>
    tpu.vector_store %arg12[%c4_59, %c0_60], %63 {strides = array<i32>} : memref<8x256xf32, #tpu.memory_space<vmem>>, vector<4x256xf32>,
    %c0_61 = arith.constant 0 : index
    %c0_62 = arith.constant 0 : index
    %107 = vector.load %arg12[%c0_61, %c0_62] : memref<8x256xf32, #tpu.memory_space<vmem>>, vector<8x256xf32>
    %cst_63 = arith.constant 0.000000e+00 : f32
    %108 = vector.broadcast %cst_63 : f32 to vector<72x256xf32>
    %c0_64 = arith.constant 0 : index
    %c0_65 = arith.constant 0 : index
    %109 = vector.load %arg11[%c0_64, %c0_65] : memref<72x256xf32, #tpu.memory_space<vmem>>, vector<72x256xf32>
    tpu.vector_store %arg11[%c0_64, %c0_65], %108 {strides = array<i32>} : memref<72x256xf32, #tpu.memory_space<vmem>>, vector<72x256xf32>,
    %110 = vector.extract_strided_slice %107 {offsets = [0, 0], sizes = [8, 239], strides = [1, 1]} : vector<8x256xf32> to vector<8x239xf32>
    %111 = vector.extract_strided_slice %6 {offsets = [0, 17], sizes = [1, 239], strides = [1, 1]} : vector<1x256xf32> to vector<1x239xf32>
    %112 = vector.broadcast %111 : vector<1x239xf32> to vector<8x239xf32>
    %113 = arith.mulf %110, %112 : vector<8x239xf32>
    %c0_66 = arith.constant 0 : index
    %c17_67 = arith.constant 17 : index
    %114 = vector.load %arg11[%c0_66, %c17_67] : memref<72x256xf32, #tpu.memory_space<vmem>>, vector<8x239xf32>
    tpu.vector_store %arg11[%c0_66, %c17_67], %113 {strides = array<i32>} : memref<72x256xf32, #tpu.memory_space<vmem>>, vector<8x239xf32>,
    %115 = vector.extract_strided_slice %107 {offsets = [0, 0], sizes = [8, 240], strides = [1, 1]} : vector<8x256xf32> to vector<8x240xf32>
    %c8_68 = arith.constant 8 : index
    %c16_69 = arith.constant 16 : index
    %116 = vector.load %arg11[%c8_68, %c16_69] : memref<72x256xf32, #tpu.memory_space<vmem>>, vector<8x240xf32>
    tpu.vector_store %arg11[%c8_68, %c16_69], %115 {strides = array<i32>} : memref<72x256xf32, #tpu.memory_space<vmem>>, vector<8x240xf32>,
    %117 = vector.extract_strided_slice %107 {offsets = [0, 0], sizes = [8, 241], strides = [1, 1]} : vector<8x256xf32> to vector<8x241xf32>
    %118 = vector.extract_strided_slice %10 {offsets = [0, 15], sizes = [1, 241], strides = [1, 1]} : vector<1x256xf32> to vector<1x241xf32>
    %119 = vector.broadcast %118 : vector<1x241xf32> to vector<8x241xf32>
    %120 = arith.mulf %117, %119 : vector<8x241xf32>
    %c16_70 = arith.constant 16 : index
    %c15_71 = arith.constant 15 : index
    %121 = vector.load %arg11[%c16_70, %c15_71] : memref<72x256xf32, #tpu.memory_space<vmem>>, vector<8x241xf32>
    tpu.vector_store %arg11[%c16_70, %c15_71], %120 {strides = array<i32>} : memref<72x256xf32, #tpu.memory_space<vmem>>, vector<8x241xf32>,
    %122 = vector.extract_strided_slice %107 {offsets = [0, 0], sizes = [8, 255], strides = [1, 1]} : vector<8x256xf32> to vector<8x255xf32>
    %123 = vector.extract_strided_slice %6 {offsets = [0, 1], sizes = [1, 255], strides = [1, 1]} : vector<1x256xf32> to vector<1x255xf32>
    %124 = vector.broadcast %123 : vector<1x255xf32> to vector<8x255xf32>
    %125 = arith.mulf %122, %124 : vector<8x255xf32>
    %c24_72 = arith.constant 24 : index
    %c1_73 = arith.constant 1 : index
    %126 = vector.load %arg11[%c24_72, %c1_73] : memref<72x256xf32, #tpu.memory_space<vmem>>, vector<8x255xf32>
    tpu.vector_store %arg11[%c24_72, %c1_73], %125 {strides = array<i32>} : memref<72x256xf32, #tpu.memory_space<vmem>>, vector<8x255xf32>,
    %c32_74 = arith.constant 32 : index
    %c0_75 = arith.constant 0 : index
    %127 = vector.load %arg11[%c32_74, %c0_75] : memref<72x256xf32, #tpu.memory_space<vmem>>, vector<8x256xf32>
    tpu.vector_store %arg11[%c32_74, %c0_75], %107 {strides = array<i32>} : memref<72x256xf32, #tpu.memory_space<vmem>>, vector<8x256xf32>,
    %128 = vector.extract_strided_slice %107 {offsets = [0, 1], sizes = [8, 255], strides = [1, 1]} : vector<8x256xf32> to vector<8x255xf32>
    %129 = vector.extract_strided_slice %10 {offsets = [0, 0], sizes = [1, 255], strides = [1, 1]} : vector<1x256xf32> to vector<1x255xf32>
    %130 = vector.broadcast %129 : vector<1x255xf32> to vector<8x255xf32>
    %131 = arith.mulf %128, %130 : vector<8x255xf32>
    %c40 = arith.constant 40 : index
    %c0_76 = arith.constant 0 : index
    %132 = vector.load %arg11[%c40, %c0_76] : memref<72x256xf32, #tpu.memory_space<vmem>>, vector<8x255xf32>
    tpu.vector_store %arg11[%c40, %c0_76], %131 {strides = array<i32>} : memref<72x256xf32, #tpu.memory_space<vmem>>, vector<8x255xf32>,
    %133 = vector.extract_strided_slice %107 {offsets = [0, 15], sizes = [8, 241], strides = [1, 1]} : vector<8x256xf32> to vector<8x241xf32>
    %134 = vector.extract_strided_slice %6 {offsets = [0, 0], sizes = [1, 241], strides = [1, 1]} : vector<1x256xf32> to vector<1x241xf32>
    %135 = vector.broadcast %134 : vector<1x241xf32> to vector<8x241xf32>
    %136 = arith.mulf %133, %135 : vector<8x241xf32>
    %c48 = arith.constant 48 : index
    %c0_77 = arith.constant 0 : index
    %137 = vector.load %arg11[%c48, %c0_77] : memref<72x256xf32, #tpu.memory_space<vmem>>, vector<8x241xf32>
    tpu.vector_store %arg11[%c48, %c0_77], %136 {strides = array<i32>} : memref<72x256xf32, #tpu.memory_space<vmem>>, vector<8x241xf32>,
    %138 = vector.extract_strided_slice %107 {offsets = [0, 16], sizes = [8, 240], strides = [1, 1]} : vector<8x256xf32> to vector<8x240xf32>
    %c56 = arith.constant 56 : index
    %c0_78 = arith.constant 0 : index
    %139 = vector.load %arg11[%c56, %c0_78] : memref<72x256xf32, #tpu.memory_space<vmem>>, vector<8x240xf32>
    tpu.vector_store %arg11[%c56, %c0_78], %138 {strides = array<i32>} : memref<72x256xf32, #tpu.memory_space<vmem>>, vector<8x240xf32>,
    %140 = vector.extract_strided_slice %107 {offsets = [0, 17], sizes = [8, 239], strides = [1, 1]} : vector<8x256xf32> to vector<8x239xf32>
    %141 = vector.extract_strided_slice %10 {offsets = [0, 0], sizes = [1, 239], strides = [1, 1]} : vector<1x256xf32> to vector<1x239xf32>
    %142 = vector.broadcast %141 : vector<1x239xf32> to vector<8x239xf32>
    %143 = arith.mulf %140, %142 : vector<8x239xf32>
    %c64 = arith.constant 64 : index
    %c0_79 = arith.constant 0 : index
    %144 = vector.load %arg11[%c64, %c0_79] : memref<72x256xf32, #tpu.memory_space<vmem>>, vector<8x239xf32>
    tpu.vector_store %arg11[%c64, %c0_79], %143 {strides = array<i32>} : memref<72x256xf32, #tpu.memory_space<vmem>>, vector<8x239xf32>,
    %c0_80 = arith.constant 0 : index
    %c0_81 = arith.constant 0 : index
    %145 = vector.load %arg11[%c0_80, %c0_81] : memref<72x256xf32, #tpu.memory_space<vmem>>, vector<72x256xf32>
    %cst_82 = arith.constant dense<0.000000e+00> : vector<4x256xf32>
    %146 = tpu.matmul %15, %145, %cst_82 {dimension_numbers = #tpu.dot_dimension_numbers<[1], [0], [0], [1], [0, 0, 1, 1], [], []>} : vector<4x72xf32>, vector<72x256xf32>, vector<4x256xf32> -> vector<4x256xf32>
    %147 = vector.broadcast %16 : vector<4x1xf32> to vector<4x256xf32>
    %148 = arith.addf %146, %147 : vector<4x256xf32>
    %cst_83 = arith.constant 0.000000e+00 : f32
    %149 = vector.broadcast %cst_83 : f32 to vector<36x256xf32>
    %c0_84 = arith.constant 0 : index
    %c0_85 = arith.constant 0 : index
    %150 = vector.load %arg11[%c0_84, %c0_85] : memref<72x256xf32, #tpu.memory_space<vmem>>, vector<36x256xf32>
    tpu.vector_store %arg11[%c0_84, %c0_85], %149 {strides = array<i32>} : memref<72x256xf32, #tpu.memory_space<vmem>>, vector<36x256xf32>,
    %151 = vector.extract_strided_slice %148 {offsets = [0, 0], sizes = [4, 239], strides = [1, 1]} : vector<4x256xf32> to vector<4x239xf32>
    %152 = vector.extract_strided_slice %6 {offsets = [0, 17], sizes = [1, 239], strides = [1, 1]} : vector<1x256xf32> to vector<1x239xf32>
    %153 = vector.broadcast %152 : vector<1x239xf32> to vector<4x239xf32>
    %154 = arith.mulf %151, %153 : vector<4x239xf32>
    %c0_86 = arith.constant 0 : index
    %c17_87 = arith.constant 17 : index
    %155 = vector.load %arg11[%c0_86, %c17_87] : memref<72x256xf32, #tpu.memory_space<vmem>>, vector<4x239xf32>
    tpu.vector_store %arg11[%c0_86, %c17_87], %154 {strides = array<i32>} : memref<72x256xf32, #tpu.memory_space<vmem>>, vector<4x239xf32>,
    %156 = vector.extract_strided_slice %148 {offsets = [0, 0], sizes = [4, 240], strides = [1, 1]} : vector<4x256xf32> to vector<4x240xf32>
    %c4_88 = arith.constant 4 : index
    %c16_89 = arith.constant 16 : index
    %157 = vector.load %arg11[%c4_88, %c16_89] : memref<72x256xf32, #tpu.memory_space<vmem>>, vector<4x240xf32>
    tpu.vector_store %arg11[%c4_88, %c16_89], %156 {strides = array<i32>} : memref<72x256xf32, #tpu.memory_space<vmem>>, vector<4x240xf32>,
    %158 = vector.extract_strided_slice %148 {offsets = [0, 0], sizes = [4, 241], strides = [1, 1]} : vector<4x256xf32> to vector<4x241xf32>
    %159 = vector.extract_strided_slice %10 {offsets = [0, 15], sizes = [1, 241], strides = [1, 1]} : vector<1x256xf32> to vector<1x241xf32>
    %160 = vector.broadcast %159 : vector<1x241xf32> to vector<4x241xf32>
    %161 = arith.mulf %158, %160 : vector<4x241xf32>
    %c8_90 = arith.constant 8 : index
    %c15_91 = arith.constant 15 : index
    %162 = vector.load %arg11[%c8_90, %c15_91] : memref<72x256xf32, #tpu.memory_space<vmem>>, vector<4x241xf32>
    tpu.vector_store %arg11[%c8_90, %c15_91], %161 {strides = array<i32>} : memref<72x256xf32, #tpu.memory_space<vmem>>, vector<4x241xf32>,
    %163 = vector.extract_strided_slice %148 {offsets = [0, 0], sizes = [4, 255], strides = [1, 1]} : vector<4x256xf32> to vector<4x255xf32>
    %164 = vector.extract_strided_slice %6 {offsets = [0, 1], sizes = [1, 255], strides = [1, 1]} : vector<1x256xf32> to vector<1x255xf32>
    %165 = vector.broadcast %164 : vector<1x255xf32> to vector<4x255xf32>
    %166 = arith.mulf %163, %165 : vector<4x255xf32>
    %c12_92 = arith.constant 12 : index
    %c1_93 = arith.constant 1 : index
    %167 = vector.load %arg11[%c12_92, %c1_93] : memref<72x256xf32, #tpu.memory_space<vmem>>, vector<4x255xf32>
    tpu.vector_store %arg11[%c12_92, %c1_93], %166 {strides = array<i32>} : memref<72x256xf32, #tpu.memory_space<vmem>>, vector<4x255xf32>,
    %c16_94 = arith.constant 16 : index
    %c0_95 = arith.constant 0 : index
    %168 = vector.load %arg11[%c16_94, %c0_95] : memref<72x256xf32, #tpu.memory_space<vmem>>, vector<4x256xf32>
    tpu.vector_store %arg11[%c16_94, %c0_95], %148 {strides = array<i32>} : memref<72x256xf32, #tpu.memory_space<vmem>>, vector<4x256xf32>,
    %169 = vector.extract_strided_slice %148 {offsets = [0, 1], sizes = [4, 255], strides = [1, 1]} : vector<4x256xf32> to vector<4x255xf32>
    %170 = vector.extract_strided_slice %10 {offsets = [0, 0], sizes = [1, 255], strides = [1, 1]} : vector<1x256xf32> to vector<1x255xf32>
    %171 = vector.broadcast %170 : vector<1x255xf32> to vector<4x255xf32>
    %172 = arith.mulf %169, %171 : vector<4x255xf32>
    %c20_96 = arith.constant 20 : index
    %c0_97 = arith.constant 0 : index
    %173 = vector.load %arg11[%c20_96, %c0_97] : memref<72x256xf32, #tpu.memory_space<vmem>>, vector<4x255xf32>
    tpu.vector_store %arg11[%c20_96, %c0_97], %172 {strides = array<i32>} : memref<72x256xf32, #tpu.memory_space<vmem>>, vector<4x255xf32>,
    %174 = vector.extract_strided_slice %148 {offsets = [0, 15], sizes = [4, 241], strides = [1, 1]} : vector<4x256xf32> to vector<4x241xf32>
    %175 = vector.extract_strided_slice %6 {offsets = [0, 0], sizes = [1, 241], strides = [1, 1]} : vector<1x256xf32> to vector<1x241xf32>
    %176 = vector.broadcast %175 : vector<1x241xf32> to vector<4x241xf32>
    %177 = arith.mulf %174, %176 : vector<4x241xf32>
    %c24_98 = arith.constant 24 : index
    %c0_99 = arith.constant 0 : index
    %178 = vector.load %arg11[%c24_98, %c0_99] : memref<72x256xf32, #tpu.memory_space<vmem>>, vector<4x241xf32>
    tpu.vector_store %arg11[%c24_98, %c0_99], %177 {strides = array<i32>} : memref<72x256xf32, #tpu.memory_space<vmem>>, vector<4x241xf32>,
    %179 = vector.extract_strided_slice %148 {offsets = [0, 16], sizes = [4, 240], strides = [1, 1]} : vector<4x256xf32> to vector<4x240xf32>
    %c28_100 = arith.constant 28 : index
    %c0_101 = arith.constant 0 : index
    %180 = vector.load %arg11[%c28_100, %c0_101] : memref<72x256xf32, #tpu.memory_space<vmem>>, vector<4x240xf32>
    tpu.vector_store %arg11[%c28_100, %c0_101], %179 {strides = array<i32>} : memref<72x256xf32, #tpu.memory_space<vmem>>, vector<4x240xf32>,
    %181 = vector.extract_strided_slice %148 {offsets = [0, 17], sizes = [4, 239], strides = [1, 1]} : vector<4x256xf32> to vector<4x239xf32>
    %182 = vector.extract_strided_slice %10 {offsets = [0, 0], sizes = [1, 239], strides = [1, 1]} : vector<1x256xf32> to vector<1x239xf32>
    %183 = vector.broadcast %182 : vector<1x239xf32> to vector<4x239xf32>
    %184 = arith.mulf %181, %183 : vector<4x239xf32>
    %c32_102 = arith.constant 32 : index
    %c0_103 = arith.constant 0 : index
    %185 = vector.load %arg11[%c32_102, %c0_103] : memref<72x256xf32, #tpu.memory_space<vmem>>, vector<4x239xf32>
    tpu.vector_store %arg11[%c32_102, %c0_103], %184 {strides = array<i32>} : memref<72x256xf32, #tpu.memory_space<vmem>>, vector<4x239xf32>,
    %c0_104 = arith.constant 0 : index
    %c0_105 = arith.constant 0 : index
    %186 = vector.load %arg11[%c0_104, %c0_105] : memref<72x256xf32, #tpu.memory_space<vmem>>, vector<36x256xf32>
    %cst_106 = arith.constant dense<0.000000e+00> : vector<4x256xf32>
    %187 = tpu.matmul %17, %186, %cst_106 {dimension_numbers = #tpu.dot_dimension_numbers<[1], [0], [0], [1], [0, 0, 1, 1], [], []>} : vector<4x36xf32>, vector<36x256xf32>, vector<4x256xf32> -> vector<4x256xf32>
    %188 = vector.broadcast %18 : vector<4x1xf32> to vector<4x256xf32>
    %189 = arith.addf %187, %188 : vector<4x256xf32>
    %190 = arith.subf %20, %22 : vector<4x256xf32>
    %191 = arith.mulf %190, %189 : vector<4x256xf32>
    %192 = arith.mulf %191, %191 : vector<4x256xf32>
    %193 = vector.shape_cast %192 : vector<4x256xf32> to vector<1x4x256xf32>
    %cst_107 = arith.constant dense<0.000000e+00> : vector<1xf32>
    %194 = vector.multi_reduction <add>, %193, %cst_107 [1, 2] : vector<1x4x256xf32> to vector<1xf32>
    %195 = vector.shape_cast %194 : vector<1xf32> to vector<1x1x1xf32>
    %196 = vector.extract %195[0, 0, 0] : f32 from vector<1x1x1xf32>
    %cst_108 = arith.constant 0.000000e+00 : f32
    %197 = arith.addf %cst_108, %196 : f32
    %c1_109 = arith.constant 1 : index
    %c0_110 = arith.constant 0 : index
    %c0_111 = arith.constant 0 : index
    %198 = vector.load %arg0[%c1_109, %c0_110, %c0_111] : memref<2x4x256xf32, #tpu.memory_space<vmem>>, vector<1x4x256xf32>
    %199 = vector.shape_cast %198 : vector<1x4x256xf32> to vector<4x256xf32>
    %c1_112 = arith.constant 1 : index
    %c0_113 = arith.constant 0 : index
    %c0_114 = arith.constant 0 : index
    %200 = vector.load %arg1[%c1_112, %c0_113, %c0_114] : memref<2x4x256xf32, #tpu.memory_space<vmem>>, vector<1x4x256xf32>
    %201 = vector.shape_cast %200 : vector<1x4x256xf32> to vector<4x256xf32>
    %cst_115 = arith.constant 0.000000e+00 : f32
    %202 = vector.broadcast %cst_115 : f32 to vector<36x256xf32>
    %c0_116 = arith.constant 0 : index
    %c0_117 = arith.constant 0 : index
    %203 = vector.load %arg11[%c0_116, %c0_117] : memref<72x256xf32, #tpu.memory_space<vmem>>, vector<36x256xf32>
    tpu.vector_store %arg11[%c0_116, %c0_117], %202 {strides = array<i32>} : memref<72x256xf32, #tpu.memory_space<vmem>>, vector<36x256xf32>,
    %204 = vector.extract_strided_slice %199 {offsets = [0, 0], sizes = [4, 239], strides = [1, 1]} : vector<4x256xf32> to vector<4x239xf32>
    %205 = vector.extract_strided_slice %6 {offsets = [0, 17], sizes = [1, 239], strides = [1, 1]} : vector<1x256xf32> to vector<1x239xf32>
    %206 = vector.broadcast %205 : vector<1x239xf32> to vector<4x239xf32>
    %207 = arith.mulf %204, %206 : vector<4x239xf32>
    %c0_118 = arith.constant 0 : index
    %c17_119 = arith.constant 17 : index
    %208 = vector.load %arg11[%c0_118, %c17_119] : memref<72x256xf32, #tpu.memory_space<vmem>>, vector<4x239xf32>
    tpu.vector_store %arg11[%c0_118, %c17_119], %207 {strides = array<i32>} : memref<72x256xf32, #tpu.memory_space<vmem>>, vector<4x239xf32>,
    %209 = vector.extract_strided_slice %199 {offsets = [0, 0], sizes = [4, 240], strides = [1, 1]} : vector<4x256xf32> to vector<4x240xf32>
    %c4_120 = arith.constant 4 : index
    %c16_121 = arith.constant 16 : index
    %210 = vector.load %arg11[%c4_120, %c16_121] : memref<72x256xf32, #tpu.memory_space<vmem>>, vector<4x240xf32>
    tpu.vector_store %arg11[%c4_120, %c16_121], %209 {strides = array<i32>} : memref<72x256xf32, #tpu.memory_space<vmem>>, vector<4x240xf32>,
    %211 = vector.extract_strided_slice %199 {offsets = [0, 0], sizes = [4, 241], strides = [1, 1]} : vector<4x256xf32> to vector<4x241xf32>
    %212 = vector.extract_strided_slice %10 {offsets = [0, 15], sizes = [1, 241], strides = [1, 1]} : vector<1x256xf32> to vector<1x241xf32>
    %213 = vector.broadcast %212 : vector<1x241xf32> to vector<4x241xf32>
    %214 = arith.mulf %211, %213 : vector<4x241xf32>
    %c8_122 = arith.constant 8 : index
    %c15_123 = arith.constant 15 : index
    %215 = vector.load %arg11[%c8_122, %c15_123] : memref<72x256xf32, #tpu.memory_space<vmem>>, vector<4x241xf32>
    tpu.vector_store %arg11[%c8_122, %c15_123], %214 {strides = array<i32>} : memref<72x256xf32, #tpu.memory_space<vmem>>, vector<4x241xf32>,
    %216 = vector.extract_strided_slice %199 {offsets = [0, 0], sizes = [4, 255], strides = [1, 1]} : vector<4x256xf32> to vector<4x255xf32>
    %217 = vector.extract_strided_slice %6 {offsets = [0, 1], sizes = [1, 255], strides = [1, 1]} : vector<1x256xf32> to vector<1x255xf32>
    %218 = vector.broadcast %217 : vector<1x255xf32> to vector<4x255xf32>
    %219 = arith.mulf %216, %218 : vector<4x255xf32>
    %c12_124 = arith.constant 12 : index
    %c1_125 = arith.constant 1 : index
    %220 = vector.load %arg11[%c12_124, %c1_125] : memref<72x256xf32, #tpu.memory_space<vmem>>, vector<4x255xf32>
    tpu.vector_store %arg11[%c12_124, %c1_125], %219 {strides = array<i32>} : memref<72x256xf32, #tpu.memory_space<vmem>>, vector<4x255xf32>,
    %c16_126 = arith.constant 16 : index
    %c0_127 = arith.constant 0 : index
    %221 = vector.load %arg11[%c16_126, %c0_127] : memref<72x256xf32, #tpu.memory_space<vmem>>, vector<4x256xf32>
    tpu.vector_store %arg11[%c16_126, %c0_127], %199 {strides = array<i32>} : memref<72x256xf32, #tpu.memory_space<vmem>>, vector<4x256xf32>,
    %222 = vector.extract_strided_slice %199 {offsets = [0, 1], sizes = [4, 255], strides = [1, 1]} : vector<4x256xf32> to vector<4x255xf32>
    %223 = vector.extract_strided_slice %10 {offsets = [0, 0], sizes = [1, 255], strides = [1, 1]} : vector<1x256xf32> to vector<1x255xf32>
    %224 = vector.broadcast %223 : vector<1x255xf32> to vector<4x255xf32>
    %225 = arith.mulf %222, %224 : vector<4x255xf32>
    %c20_128 = arith.constant 20 : index
    %c0_129 = arith.constant 0 : index
    %226 = vector.load %arg11[%c20_128, %c0_129] : memref<72x256xf32, #tpu.memory_space<vmem>>, vector<4x255xf32>
    tpu.vector_store %arg11[%c20_128, %c0_129], %225 {strides = array<i32>} : memref<72x256xf32, #tpu.memory_space<vmem>>, vector<4x255xf32>,
    %227 = vector.extract_strided_slice %199 {offsets = [0, 15], sizes = [4, 241], strides = [1, 1]} : vector<4x256xf32> to vector<4x241xf32>
    %228 = vector.extract_strided_slice %6 {offsets = [0, 0], sizes = [1, 241], strides = [1, 1]} : vector<1x256xf32> to vector<1x241xf32>
    %229 = vector.broadcast %228 : vector<1x241xf32> to vector<4x241xf32>
    %230 = arith.mulf %227, %229 : vector<4x241xf32>
    %c24_130 = arith.constant 24 : index
    %c0_131 = arith.constant 0 : index
    %231 = vector.load %arg11[%c24_130, %c0_131] : memref<72x256xf32, #tpu.memory_space<vmem>>, vector<4x241xf32>
    tpu.vector_store %arg11[%c24_130, %c0_131], %230 {strides = array<i32>} : memref<72x256xf32, #tpu.memory_space<vmem>>, vector<4x241xf32>,
    %232 = vector.extract_strided_slice %199 {offsets = [0, 16], sizes = [4, 240], strides = [1, 1]} : vector<4x256xf32> to vector<4x240xf32>
    %c28_132 = arith.constant 28 : index
    %c0_133 = arith.constant 0 : index
    %233 = vector.load %arg11[%c28_132, %c0_133] : memref<72x256xf32, #tpu.memory_space<vmem>>, vector<4x240xf32>
    tpu.vector_store %arg11[%c28_132, %c0_133], %232 {strides = array<i32>} : memref<72x256xf32, #tpu.memory_space<vmem>>, vector<4x240xf32>,
    %234 = vector.extract_strided_slice %199 {offsets = [0, 17], sizes = [4, 239], strides = [1, 1]} : vector<4x256xf32> to vector<4x239xf32>
    %235 = vector.extract_strided_slice %10 {offsets = [0, 0], sizes = [1, 239], strides = [1, 1]} : vector<1x256xf32> to vector<1x239xf32>
    %236 = vector.broadcast %235 : vector<1x239xf32> to vector<4x239xf32>
    %237 = arith.mulf %234, %236 : vector<4x239xf32>
    %c32_134 = arith.constant 32 : index
    %c0_135 = arith.constant 0 : index
    %238 = vector.load %arg11[%c32_134, %c0_135] : memref<72x256xf32, #tpu.memory_space<vmem>>, vector<4x239xf32>
    tpu.vector_store %arg11[%c32_134, %c0_135], %237 {strides = array<i32>} : memref<72x256xf32, #tpu.memory_space<vmem>>, vector<4x239xf32>,
    %c0_136 = arith.constant 0 : index
    %c0_137 = arith.constant 0 : index
    %239 = vector.load %arg11[%c0_136, %c0_137] : memref<72x256xf32, #tpu.memory_space<vmem>>, vector<36x256xf32>
    %cst_138 = arith.constant dense<0.000000e+00> : vector<4x256xf32>
    %240 = tpu.matmul %11, %239, %cst_138 {dimension_numbers = #tpu.dot_dimension_numbers<[1], [0], [0], [1], [0, 0, 1, 1], [], []>} : vector<4x36xf32>, vector<36x256xf32>, vector<4x256xf32> -> vector<4x256xf32>
    %241 = vector.broadcast %12 : vector<4x1xf32> to vector<4x256xf32>
    %242 = arith.addf %240, %241 : vector<4x256xf32>
    %cst_139 = arith.constant 0.000000e+00 : f32
    %243 = vector.broadcast %cst_139 : f32 to vector<36x256xf32>
    %c0_140 = arith.constant 0 : index
    %c0_141 = arith.constant 0 : index
    %244 = vector.load %arg11[%c0_140, %c0_141] : memref<72x256xf32, #tpu.memory_space<vmem>>, vector<36x256xf32>
    tpu.vector_store %arg11[%c0_140, %c0_141], %243 {strides = array<i32>} : memref<72x256xf32, #tpu.memory_space<vmem>>, vector<36x256xf32>,
    %245 = vector.extract_strided_slice %201 {offsets = [0, 0], sizes = [4, 239], strides = [1, 1]} : vector<4x256xf32> to vector<4x239xf32>
    %246 = vector.extract_strided_slice %6 {offsets = [0, 17], sizes = [1, 239], strides = [1, 1]} : vector<1x256xf32> to vector<1x239xf32>
    %247 = vector.broadcast %246 : vector<1x239xf32> to vector<4x239xf32>
    %248 = arith.mulf %245, %247 : vector<4x239xf32>
    %c0_142 = arith.constant 0 : index
    %c17_143 = arith.constant 17 : index
    %249 = vector.load %arg11[%c0_142, %c17_143] : memref<72x256xf32, #tpu.memory_space<vmem>>, vector<4x239xf32>
    tpu.vector_store %arg11[%c0_142, %c17_143], %248 {strides = array<i32>} : memref<72x256xf32, #tpu.memory_space<vmem>>, vector<4x239xf32>,
    %250 = vector.extract_strided_slice %201 {offsets = [0, 0], sizes = [4, 240], strides = [1, 1]} : vector<4x256xf32> to vector<4x240xf32>
    %c4_144 = arith.constant 4 : index
    %c16_145 = arith.constant 16 : index
    %251 = vector.load %arg11[%c4_144, %c16_145] : memref<72x256xf32, #tpu.memory_space<vmem>>, vector<4x240xf32>
    tpu.vector_store %arg11[%c4_144, %c16_145], %250 {strides = array<i32>} : memref<72x256xf32, #tpu.memory_space<vmem>>, vector<4x240xf32>,
    %252 = vector.extract_strided_slice %201 {offsets = [0, 0], sizes = [4, 241], strides = [1, 1]} : vector<4x256xf32> to vector<4x241xf32>
    %253 = vector.extract_strided_slice %10 {offsets = [0, 15], sizes = [1, 241], strides = [1, 1]} : vector<1x256xf32> to vector<1x241xf32>
    %254 = vector.broadcast %253 : vector<1x241xf32> to vector<4x241xf32>
    %255 = arith.mulf %252, %254 : vector<4x241xf32>
    %c8_146 = arith.constant 8 : index
    %c15_147 = arith.constant 15 : index
    %256 = vector.load %arg11[%c8_146, %c15_147] : memref<72x256xf32, #tpu.memory_space<vmem>>, vector<4x241xf32>
    tpu.vector_store %arg11[%c8_146, %c15_147], %255 {strides = array<i32>} : memref<72x256xf32, #tpu.memory_space<vmem>>, vector<4x241xf32>,
    %257 = vector.extract_strided_slice %201 {offsets = [0, 0], sizes = [4, 255], strides = [1, 1]} : vector<4x256xf32> to vector<4x255xf32>
    %258 = vector.extract_strided_slice %6 {offsets = [0, 1], sizes = [1, 255], strides = [1, 1]} : vector<1x256xf32> to vector<1x255xf32>
    %259 = vector.broadcast %258 : vector<1x255xf32> to vector<4x255xf32>
    %260 = arith.mulf %257, %259 : vector<4x255xf32>
    %c12_148 = arith.constant 12 : index
    %c1_149 = arith.constant 1 : index
    %261 = vector.load %arg11[%c12_148, %c1_149] : memref<72x256xf32, #tpu.memory_space<vmem>>, vector<4x255xf32>
    tpu.vector_store %arg11[%c12_148, %c1_149], %260 {strides = array<i32>} : memref<72x256xf32, #tpu.memory_space<vmem>>, vector<4x255xf32>,
    %c16_150 = arith.constant 16 : index
    %c0_151 = arith.constant 0 : index
    %262 = vector.load %arg11[%c16_150, %c0_151] : memref<72x256xf32, #tpu.memory_space<vmem>>, vector<4x256xf32>
    tpu.vector_store %arg11[%c16_150, %c0_151], %201 {strides = array<i32>} : memref<72x256xf32, #tpu.memory_space<vmem>>, vector<4x256xf32>,
    %263 = vector.extract_strided_slice %201 {offsets = [0, 1], sizes = [4, 255], strides = [1, 1]} : vector<4x256xf32> to vector<4x255xf32>
    %264 = vector.extract_strided_slice %10 {offsets = [0, 0], sizes = [1, 255], strides = [1, 1]} : vector<1x256xf32> to vector<1x255xf32>
    %265 = vector.broadcast %264 : vector<1x255xf32> to vector<4x255xf32>
    %266 = arith.mulf %263, %265 : vector<4x255xf32>
    %c20_152 = arith.constant 20 : index
    %c0_153 = arith.constant 0 : index
    %267 = vector.load %arg11[%c20_152, %c0_153] : memref<72x256xf32, #tpu.memory_space<vmem>>, vector<4x255xf32>
    tpu.vector_store %arg11[%c20_152, %c0_153], %266 {strides = array<i32>} : memref<72x256xf32, #tpu.memory_space<vmem>>, vector<4x255xf32>,
    %268 = vector.extract_strided_slice %201 {offsets = [0, 15], sizes = [4, 241], strides = [1, 1]} : vector<4x256xf32> to vector<4x241xf32>
    %269 = vector.extract_strided_slice %6 {offsets = [0, 0], sizes = [1, 241], strides = [1, 1]} : vector<1x256xf32> to vector<1x241xf32>
    %270 = vector.broadcast %269 : vector<1x241xf32> to vector<4x241xf32>
    %271 = arith.mulf %268, %270 : vector<4x241xf32>
    %c24_154 = arith.constant 24 : index
    %c0_155 = arith.constant 0 : index
    %272 = vector.load %arg11[%c24_154, %c0_155] : memref<72x256xf32, #tpu.memory_space<vmem>>, vector<4x241xf32>
    tpu.vector_store %arg11[%c24_154, %c0_155], %271 {strides = array<i32>} : memref<72x256xf32, #tpu.memory_space<vmem>>, vector<4x241xf32>,
    %273 = vector.extract_strided_slice %201 {offsets = [0, 16], sizes = [4, 240], strides = [1, 1]} : vector<4x256xf32> to vector<4x240xf32>
    %c28_156 = arith.constant 28 : index
    %c0_157 = arith.constant 0 : index
    %274 = vector.load %arg11[%c28_156, %c0_157] : memref<72x256xf32, #tpu.memory_space<vmem>>, vector<4x240xf32>
    tpu.vector_store %arg11[%c28_156, %c0_157], %273 {strides = array<i32>} : memref<72x256xf32, #tpu.memory_space<vmem>>, vector<4x240xf32>,
    %275 = vector.extract_strided_slice %201 {offsets = [0, 17], sizes = [4, 239], strides = [1, 1]} : vector<4x256xf32> to vector<4x239xf32>
    %276 = vector.extract_strided_slice %10 {offsets = [0, 0], sizes = [1, 239], strides = [1, 1]} : vector<1x256xf32> to vector<1x239xf32>
    %277 = vector.broadcast %276 : vector<1x239xf32> to vector<4x239xf32>
    %278 = arith.mulf %275, %277 : vector<4x239xf32>
    %c32_158 = arith.constant 32 : index
    %c0_159 = arith.constant 0 : index
    %279 = vector.load %arg11[%c32_158, %c0_159] : memref<72x256xf32, #tpu.memory_space<vmem>>, vector<4x239xf32>
    tpu.vector_store %arg11[%c32_158, %c0_159], %278 {strides = array<i32>} : memref<72x256xf32, #tpu.memory_space<vmem>>, vector<4x239xf32>,
    %c0_160 = arith.constant 0 : index
    %c0_161 = arith.constant 0 : index
    %280 = vector.load %arg11[%c0_160, %c0_161] : memref<72x256xf32, #tpu.memory_space<vmem>>, vector<36x256xf32>
    %cst_162 = arith.constant dense<0.000000e+00> : vector<4x256xf32>
    %281 = tpu.matmul %13, %280, %cst_162 {dimension_numbers = #tpu.dot_dimension_numbers<[1], [0], [0], [1], [0, 0, 1, 1], [], []>} : vector<4x36xf32>, vector<36x256xf32>, vector<4x256xf32> -> vector<4x256xf32>
    %282 = vector.broadcast %14 : vector<4x1xf32> to vector<4x256xf32>
    %283 = arith.addf %281, %282 : vector<4x256xf32>
    %c0_163 = arith.constant 0 : index
    %c0_164 = arith.constant 0 : index
    %284 = vector.load %arg12[%c0_163, %c0_164] : memref<8x256xf32, #tpu.memory_space<vmem>>, vector<4x256xf32>
    tpu.vector_store %arg12[%c0_163, %c0_164], %283 {strides = array<i32>} : memref<8x256xf32, #tpu.memory_space<vmem>>, vector<4x256xf32>,
    %c4_165 = arith.constant 4 : index
    %c0_166 = arith.constant 0 : index
    %285 = vector.load %arg12[%c4_165, %c0_166] : memref<8x256xf32, #tpu.memory_space<vmem>>, vector<4x256xf32>
    tpu.vector_store %arg12[%c4_165, %c0_166], %242 {strides = array<i32>} : memref<8x256xf32, #tpu.memory_space<vmem>>, vector<4x256xf32>,
    %c0_167 = arith.constant 0 : index
    %c0_168 = arith.constant 0 : index
    %286 = vector.load %arg12[%c0_167, %c0_168] : memref<8x256xf32, #tpu.memory_space<vmem>>, vector<8x256xf32>
    %cst_169 = arith.constant 0.000000e+00 : f32
    %287 = vector.broadcast %cst_169 : f32 to vector<72x256xf32>
    %c0_170 = arith.constant 0 : index
    %c0_171 = arith.constant 0 : index
    %288 = vector.load %arg11[%c0_170, %c0_171] : memref<72x256xf32, #tpu.memory_space<vmem>>, vector<72x256xf32>
    tpu.vector_store %arg11[%c0_170, %c0_171], %287 {strides = array<i32>} : memref<72x256xf32, #tpu.memory_space<vmem>>, vector<72x256xf32>,
    %289 = vector.extract_strided_slice %286 {offsets = [0, 0], sizes = [8, 239], strides = [1, 1]} : vector<8x256xf32> to vector<8x239xf32>
    %290 = vector.extract_strided_slice %6 {offsets = [0, 17], sizes = [1, 239], strides = [1, 1]} : vector<1x256xf32> to vector<1x239xf32>
    %291 = vector.broadcast %290 : vector<1x239xf32> to vector<8x239xf32>
    %292 = arith.mulf %289, %291 : vector<8x239xf32>
    %c0_172 = arith.constant 0 : index
    %c17_173 = arith.constant 17 : index
    %293 = vector.load %arg11[%c0_172, %c17_173] : memref<72x256xf32, #tpu.memory_space<vmem>>, vector<8x239xf32>
    tpu.vector_store %arg11[%c0_172, %c17_173], %292 {strides = array<i32>} : memref<72x256xf32, #tpu.memory_space<vmem>>, vector<8x239xf32>,
    %294 = vector.extract_strided_slice %286 {offsets = [0, 0], sizes = [8, 240], strides = [1, 1]} : vector<8x256xf32> to vector<8x240xf32>
    %c8_174 = arith.constant 8 : index
    %c16_175 = arith.constant 16 : index
    %295 = vector.load %arg11[%c8_174, %c16_175] : memref<72x256xf32, #tpu.memory_space<vmem>>, vector<8x240xf32>
    tpu.vector_store %arg11[%c8_174, %c16_175], %294 {strides = array<i32>} : memref<72x256xf32, #tpu.memory_space<vmem>>, vector<8x240xf32>,
    %296 = vector.extract_strided_slice %286 {offsets = [0, 0], sizes = [8, 241], strides = [1, 1]} : vector<8x256xf32> to vector<8x241xf32>
    %297 = vector.extract_strided_slice %10 {offsets = [0, 15], sizes = [1, 241], strides = [1, 1]} : vector<1x256xf32> to vector<1x241xf32>
    %298 = vector.broadcast %297 : vector<1x241xf32> to vector<8x241xf32>
    %299 = arith.mulf %296, %298 : vector<8x241xf32>
    %c16_176 = arith.constant 16 : index
    %c15_177 = arith.constant 15 : index
    %300 = vector.load %arg11[%c16_176, %c15_177] : memref<72x256xf32, #tpu.memory_space<vmem>>, vector<8x241xf32>
    tpu.vector_store %arg11[%c16_176, %c15_177], %299 {strides = array<i32>} : memref<72x256xf32, #tpu.memory_space<vmem>>, vector<8x241xf32>,
    %301 = vector.extract_strided_slice %286 {offsets = [0, 0], sizes = [8, 255], strides = [1, 1]} : vector<8x256xf32> to vector<8x255xf32>
    %302 = vector.extract_strided_slice %6 {offsets = [0, 1], sizes = [1, 255], strides = [1, 1]} : vector<1x256xf32> to vector<1x255xf32>
    %303 = vector.broadcast %302 : vector<1x255xf32> to vector<8x255xf32>
    %304 = arith.mulf %301, %303 : vector<8x255xf32>
    %c24_178 = arith.constant 24 : index
    %c1_179 = arith.constant 1 : index
    %305 = vector.load %arg11[%c24_178, %c1_179] : memref<72x256xf32, #tpu.memory_space<vmem>>, vector<8x255xf32>
    tpu.vector_store %arg11[%c24_178, %c1_179], %304 {strides = array<i32>} : memref<72x256xf32, #tpu.memory_space<vmem>>, vector<8x255xf32>,
    %c32_180 = arith.constant 32 : index
    %c0_181 = arith.constant 0 : index
    %306 = vector.load %arg11[%c32_180, %c0_181] : memref<72x256xf32, #tpu.memory_space<vmem>>, vector<8x256xf32>
    tpu.vector_store %arg11[%c32_180, %c0_181], %286 {strides = array<i32>} : memref<72x256xf32, #tpu.memory_space<vmem>>, vector<8x256xf32>,
    %307 = vector.extract_strided_slice %286 {offsets = [0, 1], sizes = [8, 255], strides = [1, 1]} : vector<8x256xf32> to vector<8x255xf32>
    %308 = vector.extract_strided_slice %10 {offsets = [0, 0], sizes = [1, 255], strides = [1, 1]} : vector<1x256xf32> to vector<1x255xf32>
    %309 = vector.broadcast %308 : vector<1x255xf32> to vector<8x255xf32>
    %310 = arith.mulf %307, %309 : vector<8x255xf32>
    %c40_182 = arith.constant 40 : index
    %c0_183 = arith.constant 0 : index
    %311 = vector.load %arg11[%c40_182, %c0_183] : memref<72x256xf32, #tpu.memory_space<vmem>>, vector<8x255xf32>
    tpu.vector_store %arg11[%c40_182, %c0_183], %310 {strides = array<i32>} : memref<72x256xf32, #tpu.memory_space<vmem>>, vector<8x255xf32>,
    %312 = vector.extract_strided_slice %286 {offsets = [0, 15], sizes = [8, 241], strides = [1, 1]} : vector<8x256xf32> to vector<8x241xf32>
    %313 = vector.extract_strided_slice %6 {offsets = [0, 0], sizes = [1, 241], strides = [1, 1]} : vector<1x256xf32> to vector<1x241xf32>
    %314 = vector.broadcast %313 : vector<1x241xf32> to vector<8x241xf32>
    %315 = arith.mulf %312, %314 : vector<8x241xf32>
    %c48_184 = arith.constant 48 : index
    %c0_185 = arith.constant 0 : index
    %316 = vector.load %arg11[%c48_184, %c0_185] : memref<72x256xf32, #tpu.memory_space<vmem>>, vector<8x241xf32>
    tpu.vector_store %arg11[%c48_184, %c0_185], %315 {strides = array<i32>} : memref<72x256xf32, #tpu.memory_space<vmem>>, vector<8x241xf32>,
    %317 = vector.extract_strided_slice %286 {offsets = [0, 16], sizes = [8, 240], strides = [1, 1]} : vector<8x256xf32> to vector<8x240xf32>
    %c56_186 = arith.constant 56 : index
    %c0_187 = arith.constant 0 : index
    %318 = vector.load %arg11[%c56_186, %c0_187] : memref<72x256xf32, #tpu.memory_space<vmem>>, vector<8x240xf32>
    tpu.vector_store %arg11[%c56_186, %c0_187], %317 {strides = array<i32>} : memref<72x256xf32, #tpu.memory_space<vmem>>, vector<8x240xf32>,
    %319 = vector.extract_strided_slice %286 {offsets = [0, 17], sizes = [8, 239], strides = [1, 1]} : vector<8x256xf32> to vector<8x239xf32>
    %320 = vector.extract_strided_slice %10 {offsets = [0, 0], sizes = [1, 239], strides = [1, 1]} : vector<1x256xf32> to vector<1x239xf32>
    %321 = vector.broadcast %320 : vector<1x239xf32> to vector<8x239xf32>
    %322 = arith.mulf %319, %321 : vector<8x239xf32>
    %c64_188 = arith.constant 64 : index
    %c0_189 = arith.constant 0 : index
    %323 = vector.load %arg11[%c64_188, %c0_189] : memref<72x256xf32, #tpu.memory_space<vmem>>, vector<8x239xf32>
    tpu.vector_store %arg11[%c64_188, %c0_189], %322 {strides = array<i32>} : memref<72x256xf32, #tpu.memory_space<vmem>>, vector<8x239xf32>,
    %c0_190 = arith.constant 0 : index
    %c0_191 = arith.constant 0 : index
    %324 = vector.load %arg11[%c0_190, %c0_191] : memref<72x256xf32, #tpu.memory_space<vmem>>, vector<72x256xf32>
    %cst_192 = arith.constant dense<0.000000e+00> : vector<4x256xf32>
    %325 = tpu.matmul %15, %324, %cst_192 {dimension_numbers = #tpu.dot_dimension_numbers<[1], [0], [0], [1], [0, 0, 1, 1], [], []>} : vector<4x72xf32>, vector<72x256xf32>, vector<4x256xf32> -> vector<4x256xf32>
    %326 = vector.broadcast %16 : vector<4x1xf32> to vector<4x256xf32>
    %327 = arith.addf %325, %326 : vector<4x256xf32>
    %cst_193 = arith.constant 0.000000e+00 : f32
    %328 = vector.broadcast %cst_193 : f32 to vector<36x256xf32>
    %c0_194 = arith.constant 0 : index
    %c0_195 = arith.constant 0 : index
    %329 = vector.load %arg11[%c0_194, %c0_195] : memref<72x256xf32, #tpu.memory_space<vmem>>, vector<36x256xf32>
    tpu.vector_store %arg11[%c0_194, %c0_195], %328 {strides = array<i32>} : memref<72x256xf32, #tpu.memory_space<vmem>>, vector<36x256xf32>,
    %330 = vector.extract_strided_slice %327 {offsets = [0, 0], sizes = [4, 239], strides = [1, 1]} : vector<4x256xf32> to vector<4x239xf32>
    %331 = vector.extract_strided_slice %6 {offsets = [0, 17], sizes = [1, 239], strides = [1, 1]} : vector<1x256xf32> to vector<1x239xf32>
    %332 = vector.broadcast %331 : vector<1x239xf32> to vector<4x239xf32>
    %333 = arith.mulf %330, %332 : vector<4x239xf32>
    %c0_196 = arith.constant 0 : index
    %c17_197 = arith.constant 17 : index
    %334 = vector.load %arg11[%c0_196, %c17_197] : memref<72x256xf32, #tpu.memory_space<vmem>>, vector<4x239xf32>
    tpu.vector_store %arg11[%c0_196, %c17_197], %333 {strides = array<i32>} : memref<72x256xf32, #tpu.memory_space<vmem>>, vector<4x239xf32>,
    %335 = vector.extract_strided_slice %327 {offsets = [0, 0], sizes = [4, 240], strides = [1, 1]} : vector<4x256xf32> to vector<4x240xf32>
    %c4_198 = arith.constant 4 : index
    %c16_199 = arith.constant 16 : index
    %336 = vector.load %arg11[%c4_198, %c16_199] : memref<72x256xf32, #tpu.memory_space<vmem>>, vector<4x240xf32>
    tpu.vector_store %arg11[%c4_198, %c16_199], %335 {strides = array<i32>} : memref<72x256xf32, #tpu.memory_space<vmem>>, vector<4x240xf32>,
    %337 = vector.extract_strided_slice %327 {offsets = [0, 0], sizes = [4, 241], strides = [1, 1]} : vector<4x256xf32> to vector<4x241xf32>
    %338 = vector.extract_strided_slice %10 {offsets = [0, 15], sizes = [1, 241], strides = [1, 1]} : vector<1x256xf32> to vector<1x241xf32>
    %339 = vector.broadcast %338 : vector<1x241xf32> to vector<4x241xf32>
    %340 = arith.mulf %337, %339 : vector<4x241xf32>
    %c8_200 = arith.constant 8 : index
    %c15_201 = arith.constant 15 : index
    %341 = vector.load %arg11[%c8_200, %c15_201] : memref<72x256xf32, #tpu.memory_space<vmem>>, vector<4x241xf32>
    tpu.vector_store %arg11[%c8_200, %c15_201], %340 {strides = array<i32>} : memref<72x256xf32, #tpu.memory_space<vmem>>, vector<4x241xf32>,
    %342 = vector.extract_strided_slice %327 {offsets = [0, 0], sizes = [4, 255], strides = [1, 1]} : vector<4x256xf32> to vector<4x255xf32>
    %343 = vector.extract_strided_slice %6 {offsets = [0, 1], sizes = [1, 255], strides = [1, 1]} : vector<1x256xf32> to vector<1x255xf32>
    %344 = vector.broadcast %343 : vector<1x255xf32> to vector<4x255xf32>
    %345 = arith.mulf %342, %344 : vector<4x255xf32>
    %c12_202 = arith.constant 12 : index
    %c1_203 = arith.constant 1 : index
    %346 = vector.load %arg11[%c12_202, %c1_203] : memref<72x256xf32, #tpu.memory_space<vmem>>, vector<4x255xf32>
    tpu.vector_store %arg11[%c12_202, %c1_203], %345 {strides = array<i32>} : memref<72x256xf32, #tpu.memory_space<vmem>>, vector<4x255xf32>,
    %c16_204 = arith.constant 16 : index
    %c0_205 = arith.constant 0 : index
    %347 = vector.load %arg11[%c16_204, %c0_205] : memref<72x256xf32, #tpu.memory_space<vmem>>, vector<4x256xf32>
    tpu.vector_store %arg11[%c16_204, %c0_205], %327 {strides = array<i32>} : memref<72x256xf32, #tpu.memory_space<vmem>>, vector<4x256xf32>,
    %348 = vector.extract_strided_slice %327 {offsets = [0, 1], sizes = [4, 255], strides = [1, 1]} : vector<4x256xf32> to vector<4x255xf32>
    %349 = vector.extract_strided_slice %10 {offsets = [0, 0], sizes = [1, 255], strides = [1, 1]} : vector<1x256xf32> to vector<1x255xf32>
    %350 = vector.broadcast %349 : vector<1x255xf32> to vector<4x255xf32>
    %351 = arith.mulf %348, %350 : vector<4x255xf32>
    %c20_206 = arith.constant 20 : index
    %c0_207 = arith.constant 0 : index
    %352 = vector.load %arg11[%c20_206, %c0_207] : memref<72x256xf32, #tpu.memory_space<vmem>>, vector<4x255xf32>
    tpu.vector_store %arg11[%c20_206, %c0_207], %351 {strides = array<i32>} : memref<72x256xf32, #tpu.memory_space<vmem>>, vector<4x255xf32>,
    %353 = vector.extract_strided_slice %327 {offsets = [0, 15], sizes = [4, 241], strides = [1, 1]} : vector<4x256xf32> to vector<4x241xf32>
    %354 = vector.extract_strided_slice %6 {offsets = [0, 0], sizes = [1, 241], strides = [1, 1]} : vector<1x256xf32> to vector<1x241xf32>
    %355 = vector.broadcast %354 : vector<1x241xf32> to vector<4x241xf32>
    %356 = arith.mulf %353, %355 : vector<4x241xf32>
    %c24_208 = arith.constant 24 : index
    %c0_209 = arith.constant 0 : index
    %357 = vector.load %arg11[%c24_208, %c0_209] : memref<72x256xf32, #tpu.memory_space<vmem>>, vector<4x241xf32>
    tpu.vector_store %arg11[%c24_208, %c0_209], %356 {strides = array<i32>} : memref<72x256xf32, #tpu.memory_space<vmem>>, vector<4x241xf32>,
    %358 = vector.extract_strided_slice %327 {offsets = [0, 16], sizes = [4, 240], strides = [1, 1]} : vector<4x256xf32> to vector<4x240xf32>
    %c28_210 = arith.constant 28 : index
    %c0_211 = arith.constant 0 : index
    %359 = vector.load %arg11[%c28_210, %c0_211] : memref<72x256xf32, #tpu.memory_space<vmem>>, vector<4x240xf32>
    tpu.vector_store %arg11[%c28_210, %c0_211], %358 {strides = array<i32>} : memref<72x256xf32, #tpu.memory_space<vmem>>, vector<4x240xf32>,
    %360 = vector.extract_strided_slice %327 {offsets = [0, 17], sizes = [4, 239], strides = [1, 1]} : vector<4x256xf32> to vector<4x239xf32>
    %361 = vector.extract_strided_slice %10 {offsets = [0, 0], sizes = [1, 239], strides = [1, 1]} : vector<1x256xf32> to vector<1x239xf32>
    %362 = vector.broadcast %361 : vector<1x239xf32> to vector<4x239xf32>
    %363 = arith.mulf %360, %362 : vector<4x239xf32>
    %c32_212 = arith.constant 32 : index
    %c0_213 = arith.constant 0 : index
    %364 = vector.load %arg11[%c32_212, %c0_213] : memref<72x256xf32, #tpu.memory_space<vmem>>, vector<4x239xf32>
    tpu.vector_store %arg11[%c32_212, %c0_213], %363 {strides = array<i32>} : memref<72x256xf32, #tpu.memory_space<vmem>>, vector<4x239xf32>,
    %c0_214 = arith.constant 0 : index
    %c0_215 = arith.constant 0 : index
    %365 = vector.load %arg11[%c0_214, %c0_215] : memref<72x256xf32, #tpu.memory_space<vmem>>, vector<36x256xf32>
    %cst_216 = arith.constant dense<0.000000e+00> : vector<4x256xf32>
    %366 = tpu.matmul %17, %365, %cst_216 {dimension_numbers = #tpu.dot_dimension_numbers<[1], [0], [0], [1], [0, 0, 1, 1], [], []>} : vector<4x36xf32>, vector<36x256xf32>, vector<4x256xf32> -> vector<4x256xf32>
    %367 = vector.broadcast %18 : vector<4x1xf32> to vector<4x256xf32>
    %368 = arith.addf %366, %367 : vector<4x256xf32>
    %369 = arith.subf %199, %201 : vector<4x256xf32>
    %370 = arith.mulf %369, %368 : vector<4x256xf32>
    %371 = arith.mulf %370, %370 : vector<4x256xf32>
    %372 = vector.shape_cast %371 : vector<4x256xf32> to vector<1x4x256xf32>
    %cst_217 = arith.constant dense<0.000000e+00> : vector<1xf32>
    %373 = vector.multi_reduction <add>, %372, %cst_217 [1, 2] : vector<1x4x256xf32> to vector<1xf32>
    %374 = vector.shape_cast %373 : vector<1xf32> to vector<1x1x1xf32>
    %375 = vector.extract %374[0, 0, 0] : f32 from vector<1x1x1xf32>
    %376 = arith.addf %197, %375 : f32
    %c0_218 = arith.constant 0 : index
    %c0_219 = arith.constant 0 : index
    %377 = memref.load %arg10[%c0_218, %c0_219] : memref<1x1xf32, #tpu.memory_space<smem>>
    memref.store %376, %arg10[%c0_218, %c0_219] : memref<1x1xf32, #tpu.memory_space<smem>>
    return
  }
}

</mosaic_0001>

<llo_original>
// kernel: dis_forward.2
$region0: #{dis_forward.2}
  #allocation0 [shape = 'u32[]', space=smem, size = 0x4, offset = 0x4, fixed_abs, tag = 'smem constant byte address 0x4 - core index']
  #allocation1 [shape = 'u32[144,128]{1,0:T(1,128)}', space=vmem, size = 0x12000, scoped, tag = 'internal scratch']
  %s0 = inlined_call_operand.hbm [shape: f32[2,4,16,16], index: 0, kind: input, shape index: {}]
  %s1 = inlined_call_operand.hbm [shape: f32[2,4,16,16], index: 1, kind: input, shape index: {}]
  %s2 = inlined_call_operand.vmem [shape: f32[8,16,16], index: 2, kind: output, shape index: {0}]
  %s3 = inlined_call_operand.vmem [shape: f32[8,16,16], index: 3, kind: output, shape index: {1}]
  %s4 = inlined_call_operand.hbm [shape: f32[1,1], index: 4, kind: output, shape index: {2}]
  %5 = xla_tuple %s2, %s3, %s4
  %s6 = sld [smem:[#allocation0]]
  $region42: #{dis_forward.2} parent=0
    _
  %s8 = ssub.s32 1, %s6
  %s9 = scalar_select 0, %s8, %s6
  $region1: #{dis_forward.2} parent=0
    #allocation2 [shape = 'u8[65536]{0}', space=vmem, size = 0x10000, scoped, tag = 'input window, operand 0, single buffered']
    #allocation3 [shape = 's32[1]{0}', space=sflag, size = 0x4, scoped, tag = 'scoped memory for dis_forward.2']
    #allocation4 [shape = 's32[1]{0}', space=sflag, size = 0x4, scoped, tag = 'scoped memory for dis_forward.2']
    #allocation5 [shape = 'u8[65536]{0}', space=vmem, size = 0x10000, scoped, tag = 'input window, operand 1, single buffered']
    #allocation6 [shape = 's32[1]{0}', space=sflag, size = 0x4, scoped, tag = 'scoped memory for dis_forward.2']
    #allocation7 [shape = 'u8[512]{0}', space=smem, size = 0x200, scoped, tag = 'output window, operand 2, single buffered']
    %10 = vsyncpa [#allocation3], 0
    %11 = vsyncpa [#allocation6], 0
    %12 = vsyncpa [#allocation4], 0
    // Predicated region
    $region2: #{dis_forward.2} parent=1 // pred_check
      _
    $region3: #{dis_forward.2} parent=1 // pred_check_branch
      %14 = sbr.rel (0) target = $region5
    $region4: #{dis_forward.2} parent=1 // pred_region
      %s16 = ssub.s32 2048, 2048
      %17 = vsyncadd [#allocation3], %s16
      %s18 = sshll.u32 [#allocation2], 4
      %s19 = int_to_ptr.vmem [resolvable:$true] %s18
      %24 = dma.hbm_to_vmem [thread:$0]  %s0, 2048, %s19, [#allocation3], 128, 128, 8
    $region5: #{dis_forward.2} parent=1 // pred_fallthru
      _
    // Predicated region
    $region6: #{dis_forward.2} parent=1 // pred_check
      _
    $region7: #{dis_forward.2} parent=1 // pred_check_branch
      %26 = sbr.rel (0) target = $region9
    $region8: #{dis_forward.2} parent=1 // pred_region
      %s28 = ssub.s32 2048, 2048
      %29 = vsyncadd [#allocation6], %s28
      %s30 = sshll.u32 [#allocation5], 4
      %s31 = int_to_ptr.vmem [resolvable:$true] %s30
      %36 = dma.hbm_to_vmem [thread:$0]  %s1, 2048, %s31, [#allocation6], 128, 128, 8
    $region9: #{dis_forward.2} parent=1 // pred_fallthru
      _
    // Predicated region
    $region10: #{dis_forward.2} parent=1 // pred_check
      _
    $region11: #{dis_forward.2} parent=1 // pred_check_branch
      %38 = sbr.rel (0) target = $region13
    $region12: #{dis_forward.2} parent=1 // pred_region
      %39 = dma.done [#allocation3], 2048
    $region13: #{dis_forward.2} parent=1 // pred_fallthru
      _
    // Predicated region
    $region14: #{dis_forward.2} parent=1 // pred_check
      _
    $region15: #{dis_forward.2} parent=1 // pred_check_branch
      %41 = sbr.rel (0) target = $region17
    $region16: #{dis_forward.2} parent=1 // pred_region
      %42 = dma.done [#allocation6], 2048
    $region17: #{dis_forward.2} parent=1 // pred_fallthru
      _
    %v43 = vld [vmem:[#allocation2] sm:$0xff]
    %v44 = vld [vmem:[#allocation2 + $0x8] sm:$0xff]
    %v45 = vld [vmem:[#allocation2 + $0x10] sm:$0xff]
    %v46 = vld [vmem:[#allocation2 + $0x18] sm:$0xff]
    %v47 = vld [vmem:[#allocation2 + $0x20] sm:$0xff]
    %v48 = vld [vmem:[#allocation2 + $0x28] sm:$0xff]
    %v49 = vld [vmem:[#allocation2 + $0x30] sm:$0xff]
    %v50 = vld [vmem:[#allocation2 + $0x38] sm:$0xff]
    %v51 = vld [vmem:[#allocation2 + $0x40] sm:$0xff]
    %v52 = vld [vmem:[#allocation2 + $0x48] sm:$0xff]
    %v53 = vld [vmem:[#allocation2 + $0x50] sm:$0xff]
    %v54 = vld [vmem:[#allocation2 + $0x58] sm:$0xff]
    %v55 = vld [vmem:[#allocation2 + $0x60] sm:$0xff]
    %v56 = vld [vmem:[#allocation2 + $0x68] sm:$0xff]
    %v57 = vld [vmem:[#allocation2 + $0x70] sm:$0xff]
    %v58 = vld [vmem:[#allocation2 + $0x78] sm:$0xff]
    %v59 = vld [vmem:[#allocation5] sm:$0xff]
    %v60 = vld [vmem:[#allocation5 + $0x8] sm:$0xff]
    %v61 = vld [vmem:[#allocation5 + $0x10] sm:$0xff]
    %v62 = vld [vmem:[#allocation5 + $0x18] sm:$0xff]
    %v63 = vld [vmem:[#allocation5 + $0x20] sm:$0xff]
    %v64 = vld [vmem:[#allocation5 + $0x28] sm:$0xff]
    %v65 = vld [vmem:[#allocation5 + $0x30] sm:$0xff]
    %v66 = vld [vmem:[#allocation5 + $0x38] sm:$0xff]
    %v67 = vld [vmem:[#allocation5 + $0x40] sm:$0xff]
    %v68 = vld [vmem:[#allocation5 + $0x48] sm:$0xff]
    %v69 = vld [vmem:[#allocation5 + $0x50] sm:$0xff]
    %v70 = vld [vmem:[#allocation5 + $0x58] sm:$0xff]
    %v71 = vld [vmem:[#allocation5 + $0x60] sm:$0xff]
    %v72 = vld [vmem:[#allocation5 + $0x68] sm:$0xff]
    %v73 = vld [vmem:[#allocation5 + $0x70] sm:$0xff]
    %v74 = vld [vmem:[#allocation5 + $0x78] sm:$0xff]
    %v75 = vmul.f32 %v43, 0.25
    %v76 = vmul.f32 %v44, 0.25
    %v77 = vmul.f32 %v45, 0.25
    %v78 = vmul.f32 %v46, 0.25
    %v79 = vmul.f32 %v47, 0.25
    %v80 = vmul.f32 %v48, 0.25
    %v81 = vmul.f32 %v49, 0.25
    %v82 = vmul.f32 %v50, 0.25
    %v83 = vmul.f32 %v51, 0.25
    %v84 = vmul.f32 %v52, 0.25
    %v85 = vmul.f32 %v53, 0.25
    %v86 = vmul.f32 %v54, 0.25
    %v87 = vmul.f32 %v55, 0.25
    %v88 = vmul.f32 %v56, 0.25
    %v89 = vmul.f32 %v57, 0.25
    %v90 = vmul.f32 %v58, 0.25
    %v91 = vmul.f32 %v59, 0.25
    %v92 = vmul.f32 %v60, 0.25
    %v93 = vmul.f32 %v61, 0.25
    %v94 = vmul.f32 %v62, 0.25
    %v95 = vmul.f32 %v63, 0.25
    %v96 = vmul.f32 %v64, 0.25
    %v97 = vmul.f32 %v65, 0.25
    %v98 = vmul.f32 %v66, 0.25
    %v99 = vmul.f32 %v67, 0.25
    %v100 = vmul.f32 %v68, 0.25
    %v101 = vmul.f32 %v69, 0.25
    %v102 = vmul.f32 %v70, 0.25
    %v103 = vmul.f32 %v71, 0.25
    %v104 = vmul.f32 %v72, 0.25
    %v105 = vmul.f32 %v73, 0.25
    %v106 = vmul.f32 %v74, 0.25
    %vm107 = vcmask 130048
    %v108 = vsel %vm107, %v75, -inf
    %v109 = vsel %vm107, %v77, -inf
    %v110 = vmax.f32 %v108, %v109
    %v111 = vsel %vm107, %v79, -inf
    %v112 = vmax.f32 %v110, %v111
    %v113 = vsel %vm107, %v81, -inf
    %v114 = vmax.f32 %v112, %v113
    %v115 = vsel %vm107, %v76, -inf
    %v116 = vsel %vm107, %v78, -inf
    %v117 = vmax.f32 %v115, %v116
    %v118 = vsel %vm107, %v80, -inf
    %v119 = vmax.f32 %v117, %v118
    %v120 = vsel %vm107, %v82, -inf
    %v121 = vmax.f32 %v119, %v120
    %v122 = vsel %vm107, %v83, -inf
    %v123 = vsel %vm107, %v85, -inf
    %v124 = vmax.f32 %v122, %v123
    %v125 = vsel %vm107, %v87, -inf
    %v126 = vmax.f32 %v124, %v125
    %v127 = vsel %vm107, %v89, -inf
    %v128 = vmax.f32 %v126, %v127
    %v129 = vsel %vm107, %v84, -inf
    %v130 = vsel %vm107, %v86, -inf
    %v131 = vmax.f32 %v129, %v130
    %v132 = vsel %vm107, %v88, -inf
    %v133 = vmax.f32 %v131, %v132
    %v134 = vsel %vm107, %v90, -inf
    %v135 = vmax.f32 %v133, %v134
    %v136 = vsub.f32 %v75, %v114
    %v137 = vsub.f32 %v76, %v121
    %v138 = vsub.f32 %v77, %v114
    %v139 = vsub.f32 %v78, %v121
    %v140 = vsub.f32 %v79, %v114
    %v141 = vsub.f32 %v80, %v121
    %v142 = vsub.f32 %v81, %v114
    %v143 = vsub.f32 %v82, %v121
    %v144 = vsub.f32 %v83, %v128
    %v145 = vsub.f32 %v84, %v135
    %v146 = vsub.f32 %v85, %v128
    %v147 = vsub.f32 %v86, %v135
    %v148 = vsub.f32 %v87, %v128
    %v149 = vsub.f32 %v88, %v135
    %v150 = vsub.f32 %v89, %v128
    %v151 = vsub.f32 %v90, %v135
    %v152 = vmul.f32 %v136, 1.442695
    %v153 = vpow.pop %v152
    %v154 = vmul.f32 %v137, 1.442695
    %v155 = vpow.pop %v154
    %v156 = vmul.f32 %v138, 1.442695
    %v157 = vpow.pop %v156
    %v158 = vmul.f32 %v139, 1.442695
    %v159 = vpow.pop %v158
    %v160 = vmul.f32 %v140, 1.442695
    %v161 = vpow.pop %v160
    %v162 = vmul.f32 %v141, 1.442695
    %v163 = vpow.pop %v162
    %v164 = vmul.f32 %v142, 1.442695
    %v165 = vpow.pop %v164
    %v166 = vmul.f32 %v143, 1.442695
    %v167 = vpow.pop %v166
    %v168 = vmul.f32 %v144, 1.442695
    %v169 = vpow.pop %v168
    %v170 = vmul.f32 %v145, 1.442695
    %v171 = vpow.pop %v170
    %v172 = vmul.f32 %v146, 1.442695
    %v173 = vpow.pop %v172
    %v174 = vmul.f32 %v147, 1.442695
    %v175 = vpow.pop %v174
    %v176 = vmul.f32 %v148, 1.442695
    %v177 = vpow.pop %v176
    %v178 = vmul.f32 %v149, 1.442695
    %v179 = vpow.pop %v178
    %v180 = vmul.f32 %v150, 1.442695
    %v181 = vpow.pop %v180
    %v182 = vmul.f32 %v151, 1.442695
    %v183 = vpow.pop %v182
    %v184 = vsel %vm107, %v153, 0.0
    %v185 = vsel %vm107, %v157, 0.0
    %v186 = vadd.f32 %v184, %v185
    %v187 = vsel %vm107, %v161, 0.0
    %v188 = vadd.f32 %v186, %v187
    %v189 = vsel %vm107, %v165, 0.0
    %v190 = vadd.f32 %v188, %v189
    %v191 = vsel %vm107, %v155, 0.0
    %v192 = vsel %vm107, %v159, 0.0
    %v193 = vadd.f32 %v191, %v192
    %v194 = vsel %vm107, %v163, 0.0
    %v195 = vadd.f32 %v193, %v194
    %v196 = vsel %vm107, %v167, 0.0
    %v197 = vadd.f32 %v195, %v196
    %v198 = vsel %vm107, %v169, 0.0
    %v199 = vsel %vm107, %v173, 0.0
    %v200 = vadd.f32 %v198, %v199
    %v201 = vsel %vm107, %v177, 0.0
    %v202 = vadd.f32 %v200, %v201
    %v203 = vsel %vm107, %v181, 0.0
    %v204 = vadd.f32 %v202, %v203
    %v205 = vsel %vm107, %v171, 0.0
    %v206 = vsel %vm107, %v175, 0.0
    %v207 = vadd.f32 %v205, %v206
    %v208 = vsel %vm107, %v179, 0.0
    %v209 = vadd.f32 %v207, %v208
    %v210 = vsel %vm107, %v183, 0.0
    %v211 = vadd.f32 %v209, %v210
    %v212 = vlog2.pop %v190
    %v213 = vmul.f32 %v212, 0.6931472
    %v214 = vlog2.pop %v197
    %v215 = vmul.f32 %v214, 0.6931472
    %v216 = vlog2.pop %v204
    %v217 = vmul.f32 %v216, 0.6931472
    %v218 = vlog2.pop %v211
    %v219 = vmul.f32 %v218, 0.6931472
    %v220 = vadd.f32 %v213, %v114
    %v221 = vadd.f32 %v215, %v121
    %v222 = vadd.f32 %v217, %v128
    %v223 = vadd.f32 %v219, %v135
    %v224 = vsub.f32 %v75, %v220
    %v225 = vsub.f32 %v76, %v221
    %v226 = vsub.f32 %v77, %v220
    %v227 = vsub.f32 %v78, %v221
    %v228 = vsub.f32 %v79, %v220
    %v229 = vsub.f32 %v80, %v221
    %v230 = vsub.f32 %v81, %v220
    %v231 = vsub.f32 %v82, %v221
    %v232 = vsub.f32 %v83, %v222
    %v233 = vsub.f32 %v84, %v223
    %v234 = vsub.f32 %v85, %v222
    %v235 = vsub.f32 %v86, %v223
    %v236 = vsub.f32 %v87, %v222
    %v237 = vsub.f32 %v88, %v223
    %v238 = vsub.f32 %v89, %v222
    %v239 = vsub.f32 %v90, %v223
    %v240 = vadd.f32 %v224, 1e-07
    %v241 = vadd.f32 %v225, 1e-07
    %v242 = vadd.f32 %v226, 1e-07
    %v243 = vadd.f32 %v227, 1e-07
    %v244 = vadd.f32 %v228, 1e-07
    %v245 = vadd.f32 %v229, 1e-07
    %v246 = vadd.f32 %v230, 1e-07
    %v247 = vadd.f32 %v231, 1e-07
    %v248 = vadd.f32 %v232, 1e-07
    %v249 = vadd.f32 %v233, 1e-07
    %v250 = vadd.f32 %v234, 1e-07
    %v251 = vadd.f32 %v235, 1e-07
    %v252 = vadd.f32 %v236, 1e-07
    %v253 = vadd.f32 %v237, 1e-07
    %v254 = vadd.f32 %v238, 1e-07
    %v255 = vadd.f32 %v239, 1e-07
    %v256 = vsel %vm107, %v91, -inf
    %v257 = vsel %vm107, %v93, -inf
    %v258 = vmax.f32 %v256, %v257
    %v259 = vsel %vm107, %v95, -inf
    %v260 = vmax.f32 %v258, %v259
    %v261 = vsel %vm107, %v97, -inf
    %v262 = vmax.f32 %v260, %v261
    %v263 = vsel %vm107, %v92, -inf
    %v264 = vsel %vm107, %v94, -inf
    %v265 = vmax.f32 %v263, %v264
    %v266 = vsel %vm107, %v96, -inf
    %v267 = vmax.f32 %v265, %v266
    %v268 = vsel %vm107, %v98, -inf
    %v269 = vmax.f32 %v267, %v268
    %v270 = vsel %vm107, %v99, -inf
    %v271 = vsel %vm107, %v101, -inf
    %v272 = vmax.f32 %v270, %v271
    %v273 = vsel %vm107, %v103, -inf
    %v274 = vmax.f32 %v272, %v273
    %v275 = vsel %vm107, %v105, -inf
    %v276 = vmax.f32 %v274, %v275
    %v277 = vsel %vm107, %v100, -inf
    %v278 = vsel %vm107, %v102, -inf
    %v279 = vmax.f32 %v277, %v278
    %v280 = vsel %vm107, %v104, -inf
    %v281 = vmax.f32 %v279, %v280
    %v282 = vsel %vm107, %v106, -inf
    %v283 = vmax.f32 %v281, %v282
    %v284 = vsub.f32 %v91, %v262
    %v285 = vsub.f32 %v92, %v269
    %v286 = vsub.f32 %v93, %v262
    %v287 = vsub.f32 %v94, %v269
    %v288 = vsub.f32 %v95, %v262
    %v289 = vsub.f32 %v96, %v269
    %v290 = vsub.f32 %v97, %v262
    %v291 = vsub.f32 %v98, %v269
    %v292 = vsub.f32 %v99, %v276
    %v293 = vsub.f32 %v100, %v283
    %v294 = vsub.f32 %v101, %v276
    %v295 = vsub.f32 %v102, %v283
    %v296 = vsub.f32 %v103, %v276
    %v297 = vsub.f32 %v104, %v283
    %v298 = vsub.f32 %v105, %v276
    %v299 = vsub.f32 %v106, %v283
    %v300 = vmul.f32 %v284, 1.442695
    %v301 = vpow.pop %v300
    %v302 = vmul.f32 %v285, 1.442695
    %v303 = vpow.pop %v302
    %v304 = vmul.f32 %v286, 1.442695
    %v305 = vpow.pop %v304
    %v306 = vmul.f32 %v287, 1.442695
    %v307 = vpow.pop %v306
    %v308 = vmul.f32 %v288, 1.442695
    %v309 = vpow.pop %v308
    %v310 = vmul.f32 %v289, 1.442695
    %v311 = vpow.pop %v310
    %v312 = vmul.f32 %v290, 1.442695
    %v313 = vpow.pop %v312
    %v314 = vmul.f32 %v291, 1.442695
    %v315 = vpow.pop %v314
    %v316 = vmul.f32 %v292, 1.442695
    %v317 = vpow.pop %v316
    %v318 = vmul.f32 %v293, 1.442695
    %v319 = vpow.pop %v318
    %v320 = vmul.f32 %v294, 1.442695
    %v321 = vpow.pop %v320
    %v322 = vmul.f32 %v295, 1.442695
    %v323 = vpow.pop %v322
    %v324 = vmul.f32 %v296, 1.442695
    %v325 = vpow.pop %v324
    %v326 = vmul.f32 %v297, 1.442695
    %v327 = vpow.pop %v326
    %v328 = vmul.f32 %v298, 1.442695
    %v329 = vpow.pop %v328
    %v330 = vmul.f32 %v299, 1.442695
    %v331 = vpow.pop %v330
    %v332 = vsel %vm107, %v301, 0.0
    %v333 = vsel %vm107, %v305, 0.0
    %v334 = vadd.f32 %v332, %v333
    %v335 = vsel %vm107, %v309, 0.0
    %v336 = vadd.f32 %v334, %v335
    %v337 = vsel %vm107, %v313, 0.0
    %v338 = vadd.f32 %v336, %v337
    %v339 = vsel %vm107, %v303, 0.0
    %v340 = vsel %vm107, %v307, 0.0
    %v341 = vadd.f32 %v339, %v340
    %v342 = vsel %vm107, %v311, 0.0
    %v343 = vadd.f32 %v341, %v342
    %v344 = vsel %vm107, %v315, 0.0
    %v345 = vadd.f32 %v343, %v344
    %v346 = vsel %vm107, %v317, 0.0
    %v347 = vsel %vm107, %v321, 0.0
    %v348 = vadd.f32 %v346, %v347
    %v349 = vsel %vm107, %v325, 0.0
    %v350 = vadd.f32 %v348, %v349
    %v351 = vsel %vm107, %v329, 0.0
    %v352 = vadd.f32 %v350, %v351
    %v353 = vsel %vm107, %v319, 0.0
    %v354 = vsel %vm107, %v323, 0.0
    %v355 = vadd.f32 %v353, %v354
    %v356 = vsel %vm107, %v327, 0.0
    %v357 = vadd.f32 %v355, %v356
    %v358 = vsel %vm107, %v331, 0.0
    %v359 = vadd.f32 %v357, %v358
    %v360 = vlog2.pop %v338
    %v361 = vmul.f32 %v360, 0.6931472
    %v362 = vlog2.pop %v345
    %v363 = vmul.f32 %v362, 0.6931472
    %v364 = vlog2.pop %v352
    %v365 = vmul.f32 %v364, 0.6931472
    %v366 = vlog2.pop %v359
    %v367 = vmul.f32 %v366, 0.6931472
    %v368 = vadd.f32 %v361, %v262
    %v369 = vadd.f32 %v363, %v269
    %v370 = vadd.f32 %v365, %v276
    %v371 = vadd.f32 %v367, %v283
    %v372 = vsub.f32 %v91, %v368
    %v373 = vsub.f32 %v92, %v369
    %v374 = vsub.f32 %v93, %v368
    %v375 = vsub.f32 %v94, %v369
    %v376 = vsub.f32 %v95, %v368
    %v377 = vsub.f32 %v96, %v369
    %v378 = vsub.f32 %v97, %v368
    %v379 = vsub.f32 %v98, %v369
    %v380 = vsub.f32 %v99, %v370
    %v381 = vsub.f32 %v100, %v371
    %v382 = vsub.f32 %v101, %v370
    %v383 = vsub.f32 %v102, %v371
    %v384 = vsub.f32 %v103, %v370
    %v385 = vsub.f32 %v104, %v371
    %v386 = vsub.f32 %v105, %v370
    %v387 = vsub.f32 %v106, %v371
    %v388 = vmul.f32 %v372, 1.442695
    %v389 = vpow.pop %v388
    %v390 = vmul.f32 %v373, 1.442695
    %v391 = vpow.pop %v390
    %v392 = vmul.f32 %v374, 1.442695
    %v393 = vpow.pop %v392
    %v394 = vmul.f32 %v375, 1.442695
    %v395 = vpow.pop %v394
    %v396 = vmul.f32 %v376, 1.442695
    %v397 = vpow.pop %v396
    %v398 = vmul.f32 %v377, 1.442695
    %v399 = vpow.pop %v398
    %v400 = vmul.f32 %v378, 1.442695
    %v401 = vpow.pop %v400
    %v402 = vmul.f32 %v379, 1.442695
    %v403 = vpow.pop %v402
    %v404 = vmul.f32 %v380, 1.442695
    %v405 = vpow.pop %v404
    %v406 = vmul.f32 %v381, 1.442695
    %v407 = vpow.pop %v406
    %v408 = vmul.f32 %v382, 1.442695
    %v409 = vpow.pop %v408
    %v410 = vmul.f32 %v383, 1.442695
    %v411 = vpow.pop %v410
    %v412 = vmul.f32 %v384, 1.442695
    %v413 = vpow.pop %v412
    %v414 = vmul.f32 %v385, 1.442695
    %v415 = vpow.pop %v414
    %v416 = vmul.f32 %v386, 1.442695
    %v417 = vpow.pop %v416
    %v418 = vmul.f32 %v387, 1.442695
    %v419 = vpow.pop %v418
    %v420 = vsub.f32 %v372, %v240
    %v421 = vsub.f32 %v373, %v241
    %v422 = vsub.f32 %v374, %v242
    %v423 = vsub.f32 %v375, %v243
    %v424 = vsub.f32 %v376, %v244
    %v425 = vsub.f32 %v377, %v245
    %v426 = vsub.f32 %v378, %v246
    %v427 = vsub.f32 %v379, %v247
    %v428 = vsub.f32 %v380, %v248
    %v429 = vsub.f32 %v381, %v249
    %v430 = vsub.f32 %v382, %v250
    %v431 = vsub.f32 %v383, %v251
    %v432 = vsub.f32 %v384, %v252
    %v433 = vsub.f32 %v385, %v253
    %v434 = vsub.f32 %v386, %v254
    %v435 = vsub.f32 %v387, %v255
    %v436 = vmul.f32 %v389, %v420
    %v437 = vmul.f32 %v391, %v421
    %v438 = vmul.f32 %v393, %v422
    %v439 = vmul.f32 %v395, %v423
    %v440 = vmul.f32 %v397, %v424
    %v441 = vmul.f32 %v399, %v425
    %v442 = vmul.f32 %v401, %v426
    %v443 = vmul.f32 %v403, %v427
    %v444 = vmul.f32 %v405, %v428
    %v445 = vmul.f32 %v407, %v429
    %v446 = vmul.f32 %v409, %v430
    %v447 = vmul.f32 %v411, %v431
    %v448 = vmul.f32 %v413, %v432
    %v449 = vmul.f32 %v415, %v433
    %v450 = vmul.f32 %v417, %v434
    %v451 = vmul.f32 %v419, %v435
    %v452 = vsel %vm107, %v436, 0.0
    %v453 = vsel %vm107, %v437, 0.0
    %v454 = vadd.f32 %v452, %v453
    %v455 = vsel %vm107, %v438, 0.0
    %v456 = vadd.f32 %v454, %v455
    %v457 = vsel %vm107, %v439, 0.0
    %v458 = vadd.f32 %v456, %v457
    %v459 = vsel %vm107, %v440, 0.0
    %v460 = vadd.f32 %v458, %v459
    %v461 = vsel %vm107, %v441, 0.0
    %v462 = vadd.f32 %v460, %v461
    %v463 = vsel %vm107, %v442, 0.0
    %v464 = vadd.f32 %v462, %v463
    %v465 = vsel %vm107, %v443, 0.0
    %v466 = vadd.f32 %v464, %v465
    %v467 = vsel %vm107, %v444, 0.0
    %v468 = vadd.f32 %v466, %v467
    %v469 = vsel %vm107, %v445, 0.0
    %v470 = vadd.f32 %v468, %v469
    %v471 = vsel %vm107, %v446, 0.0
    %v472 = vadd.f32 %v470, %v471
    %v473 = vsel %vm107, %v447, 0.0
    %v474 = vadd.f32 %v472, %v473
    %v475 = vsel %vm107, %v448, 0.0
    %v476 = vadd.f32 %v474, %v475
    %v477 = vsel %vm107, %v449, 0.0
    %v478 = vadd.f32 %v476, %v477
    %v479 = vsel %vm107, %v450, 0.0
    %v480 = vadd.f32 %v478, %v479
    %v481 = vsel %vm107, %v451, 0.0
    %v482 = vadd.f32 %v480, %v481
    %483 = vadd.xlane.f32.xlu0 %v482
    %v484 = vpop.xlane.xlu0 %483
    %v485 = vrot.slane %v484, 4
    %v486 = vadd.f32 %v484, %v485
    %v487 = vrot.slane %v486, 2
    %v488 = vadd.f32 %v486, %v487
    %v489 = vrot.slane %v488, 1
    %v490 = vadd.f32 %v488, %v489
    %s491 = vtos %v490
    %s492 = scalar_lea.smem [#allocation7], 0
    %493 = sst [smem:[%s492]] %s491
    %v495 = vsel %vm107, %v43, 0
    %v498 = vsel %vm107, %v44, 0
    %500 = vmatprep.subr.mxu0 0.0
    %501 = vmatpush1.xpose.msra.mxu0 %v495
    %502 = vmatprep.subr.mxu0 0.0
    %503 = vmatpush1.xpose.msra.mxu0 %v498
    %504 = vmatprep.subr.mxu0 0.0
    %505 = vmatpush1.xpose.msra.mxu0 0.0
    %506 = vmatprep.subr.mxu0 0.0
    %507 = vmatpush1.xpose.msra.mxu0 0.0
    %508 = vmatprep.subr.mxu0 0.0
    %509 = vmatpush1.xpose.msra.mxu0 0.0
    %510 = vmatprep.subr.mxu0 0.0
    %511 = vmatpush1.xpose.msra.mxu0 0.0
    %512 = vmatprep.subr.mxu0 0.0
    %513 = vmatpush1.xpose.msra.mxu0 0.0
    %514 = vmatprep.subr.mxu0 0.0
    %515 = vmatpush1.xpose.msra.mxu0 0.0
    %516 = vmatprep.subr.mxu0 0.0
    %517 = vmatpush1.xpose.msra.mxu0 0.0
    %518 = vmatprep.subr.mxu0 0.0
    %519 = vmatpush1.xpose.msra.mxu0 0.0
    %520 = vmatprep.subr.mxu0 0.0
    %521 = vmatpush1.xpose.msra.mxu0 0.0
    %522 = vmatprep.subr.mxu0 0.0
    %523 = vmatpush1.xpose.msra.mxu0 0.0
    %524 = vmatprep.subr.mxu0 0.0
    %525 = vmatpush1.xpose.msra.mxu0 0.0
    %526 = vmatprep.subr.mxu0 0.0
    %527 = vmatpush1.xpose.msra.mxu0 0.0
    %528 = vmatprep.subr.mxu0 0.0
    %529 = vmatpush1.xpose.msra.mxu0 0.0
    %530 = vmatprep.subr.mxu0 0.0
    %531 = vmatpush1.xpose.msra.mxu0 0.0
    %532 = vmatprep.subr.mxu0 0.0
    %533 = vmatpush1.xpose.msra.mxu0 0.0
    %534 = vmatprep.subr.mxu0 0.0
    %535 = vmatpush1.xpose.msra.mxu0 0.0
    %536 = vmatprep.subr.mxu0 0.0
    %537 = vmatpush1.xpose.msra.mxu0 0.0
    %538 = vmatprep.subr.mxu0 0.0
    %539 = vmatpush1.xpose.msra.mxu0 0.0
    %540 = vmatprep.subr.mxu0 0.0
    %541 = vmatpush1.xpose.msra.mxu0 0.0
    %542 = vmatprep.subr.mxu0 0.0
    %543 = vmatpush1.xpose.msra.mxu0 0.0
    %544 = vmatprep.subr.mxu0 0.0
    %545 = vmatpush1.xpose.msra.mxu0 0.0
    %546 = vmatprep.subr.mxu0 0.0
    %547 = vmatpush1.xpose.msra.mxu0 0.0
    %548 = vmatprep.subr.mxu0 0.0
    %549 = vmatpush1.xpose.msra.mxu0 0.0
    %550 = vmatprep.subr.mxu0 0.0
    %551 = vmatpush1.xpose.msra.mxu0 0.0
    %552 = vmatprep.subr.mxu0 0.0
    %553 = vmatpush1.xpose.msra.mxu0 0.0
    %554 = vmatprep.subr.mxu0 0.0
    %555 = vmatpush1.xpose.msra.mxu0 0.0
    %556 = vmatprep.subr.mxu0 0.0
    %557 = vmatpush1.xpose.msra.mxu0 0.0
    %558 = vmatprep.subr.mxu0 0.0
    %559 = vmatpush1.xpose.msra.mxu0 0.0
    %560 = vmatprep.subr.mxu0 0.0
    %561 = vmatpush1.xpose.msra.mxu0 0.0
    %562 = vmatprep.subr.mxu0 0.0
    %563 = vmatpush1.xpose.msra.mxu0 0.0
    %564 = vmatprep.mubr.f32.mxu0 0.0
    %565 = vmatmul.mubr.f32.gmra.mrb[0].mxu0 %v495
    %v566 = vpop.f32.mrb[0].mxu0
    %v567 = vadd.f32 0.0, %v566
    %v568 = vpop.f32.mrb[0].mxu0
    %569 = vmatprep.mubr.f32.mxu0 0.0
    %570 = vmatmul.mubr.f32.gmra.mrb[0].mxu0 %v498
    %v571 = vpop.f32.mrb[0].mxu0
    %v572 = vadd.f32 0.0, %v571
    %v573 = vpop.f32.mrb[0].mxu0
    %574 = vdwg.mxu0
    %v576 = vsel %vm107, %v45, 0
    %v579 = vsel %vm107, %v46, 0
    %581 = vmatprep.subr.mxu0 0.0
    %582 = vmatpush1.xpose.msra.mxu0 %v576
    %583 = vmatprep.subr.mxu0 0.0
    %584 = vmatpush1.xpose.msra.mxu0 %v579
    %585 = vmatprep.subr.mxu0 0.0
    %586 = vmatpush1.xpose.msra.mxu0 0.0
    %587 = vmatprep.subr.mxu0 0.0
    %588 = vmatpush1.xpose.msra.mxu0 0.0
    %589 = vmatprep.subr.mxu0 0.0
    %590 = vmatpush1.xpose.msra.mxu0 0.0
    %591 = vmatprep.subr.mxu0 0.0
    %592 = vmatpush1.xpose.msra.mxu0 0.0
    %593 = vmatprep.subr.mxu0 0.0
    %594 = vmatpush1.xpose.msra.mxu0 0.0
    %595 = vmatprep.subr.mxu0 0.0
    %596 = vmatpush1.xpose.msra.mxu0 0.0
    %597 = vmatprep.subr.mxu0 0.0
    %598 = vmatpush1.xpose.msra.mxu0 0.0
    %599 = vmatprep.subr.mxu0 0.0
    %600 = vmatpush1.xpose.msra.mxu0 0.0
    %601 = vmatprep.subr.mxu0 0.0
    %602 = vmatpush1.xpose.msra.mxu0 0.0
    %603 = vmatprep.subr.mxu0 0.0
    %604 = vmatpush1.xpose.msra.mxu0 0.0
    %605 = vmatprep.subr.mxu0 0.0
    %606 = vmatpush1.xpose.msra.mxu0 0.0
    %607 = vmatprep.subr.mxu0 0.0
    %608 = vmatpush1.xpose.msra.mxu0 0.0
    %609 = vmatprep.subr.mxu0 0.0
    %610 = vmatpush1.xpose.msra.mxu0 0.0
    %611 = vmatprep.subr.mxu0 0.0
    %612 = vmatpush1.xpose.msra.mxu0 0.0
    %613 = vmatprep.subr.mxu0 0.0
    %614 = vmatpush1.xpose.msra.mxu0 0.0
    %615 = vmatprep.subr.mxu0 0.0
    %616 = vmatpush1.xpose.msra.mxu0 0.0
    %617 = vmatprep.subr.mxu0 0.0
    %618 = vmatpush1.xpose.msra.mxu0 0.0
    %619 = vmatprep.subr.mxu0 0.0
    %620 = vmatpush1.xpose.msra.mxu0 0.0
    %621 = vmatprep.subr.mxu0 0.0
    %622 = vmatpush1.xpose.msra.mxu0 0.0
    %623 = vmatprep.subr.mxu0 0.0
    %624 = vmatpush1.xpose.msra.mxu0 0.0
    %625 = vmatprep.subr.mxu0 0.0
    %626 = vmatpush1.xpose.msra.mxu0 0.0
    %627 = vmatprep.subr.mxu0 0.0
    %628 = vmatpush1.xpose.msra.mxu0 0.0
    %629 = vmatprep.subr.mxu0 0.0
    %630 = vmatpush1.xpose.msra.mxu0 0.0
    %631 = vmatprep.subr.mxu0 0.0
    %632 = vmatpush1.xpose.msra.mxu0 0.0
    %633 = vmatprep.subr.mxu0 0.0
    %634 = vmatpush1.xpose.msra.mxu0 0.0
    %635 = vmatprep.subr.mxu0 0.0
    %636 = vmatpush1.xpose.msra.mxu0 0.0
    %637 = vmatprep.subr.mxu0 0.0
    %638 = vmatpush1.xpose.msra.mxu0 0.0
    %639 = vmatprep.subr.mxu0 0.0
    %640 = vmatpush1.xpose.msra.mxu0 0.0
    %641 = vmatprep.subr.mxu0 0.0
    %642 = vmatpush1.xpose.msra.mxu0 0.0
    %643 = vmatprep.subr.mxu0 0.0
    %644 = vmatpush1.xpose.msra.mxu0 0.0
    %645 = vmatprep.mubr.f32.mxu0 0.0
    %646 = vmatmul.mubr.f32.gmra.mrb[0].mxu0 %v576
    %v647 = vpop.f32.mrb[0].mxu0
    %v648 = vadd.f32 0.0, %v647
    %v649 = vpop.f32.mrb[0].mxu0
    %650 = vmatprep.mubr.f32.mxu0 0.0
    %651 = vmatmul.mubr.f32.gmra.mrb[0].mxu0 %v579
    %v652 = vpop.f32.mrb[0].mxu0
    %v653 = vadd.f32 0.0, %v652
    %v654 = vpop.f32.mrb[0].mxu0
    %655 = vdwg.mxu0
    %v657 = vsel %vm107, %v47, 0
    %v660 = vsel %vm107, %v48, 0
    %662 = vmatprep.subr.mxu0 0.0
    %663 = vmatpush1.xpose.msra.mxu0 %v657
    %664 = vmatprep.subr.mxu0 0.0
    %665 = vmatpush1.xpose.msra.mxu0 %v660
    %666 = vmatprep.subr.mxu0 0.0
    %667 = vmatpush1.xpose.msra.mxu0 0.0
    %668 = vmatprep.subr.mxu0 0.0
    %669 = vmatpush1.xpose.msra.mxu0 0.0
    %670 = vmatprep.subr.mxu0 0.0
    %671 = vmatpush1.xpose.msra.mxu0 0.0
    %672 = vmatprep.subr.mxu0 0.0
    %673 = vmatpush1.xpose.msra.mxu0 0.0
    %674 = vmatprep.subr.mxu0 0.0
    %675 = vmatpush1.xpose.msra.mxu0 0.0
    %676 = vmatprep.subr.mxu0 0.0
    %677 = vmatpush1.xpose.msra.mxu0 0.0
    %678 = vmatprep.subr.mxu0 0.0
    %679 = vmatpush1.xpose.msra.mxu0 0.0
    %680 = vmatprep.subr.mxu0 0.0
    %681 = vmatpush1.xpose.msra.mxu0 0.0
    %682 = vmatprep.subr.mxu0 0.0
    %683 = vmatpush1.xpose.msra.mxu0 0.0
    %684 = vmatprep.subr.mxu0 0.0
    %685 = vmatpush1.xpose.msra.mxu0 0.0
    %686 = vmatprep.subr.mxu0 0.0
    %687 = vmatpush1.xpose.msra.mxu0 0.0
    %688 = vmatprep.subr.mxu0 0.0
    %689 = vmatpush1.xpose.msra.mxu0 0.0
    %690 = vmatprep.subr.mxu0 0.0
    %691 = vmatpush1.xpose.msra.mxu0 0.0
    %692 = vmatprep.subr.mxu0 0.0
    %693 = vmatpush1.xpose.msra.mxu0 0.0
    %694 = vmatprep.subr.mxu0 0.0
    %695 = vmatpush1.xpose.msra.mxu0 0.0
    %696 = vmatprep.subr.mxu0 0.0
    %697 = vmatpush1.xpose.msra.mxu0 0.0
    %698 = vmatprep.subr.mxu0 0.0
    %699 = vmatpush1.xpose.msra.mxu0 0.0
    %700 = vmatprep.subr.mxu0 0.0
    %701 = vmatpush1.xpose.msra.mxu0 0.0
    %702 = vmatprep.subr.mxu0 0.0
    %703 = vmatpush1.xpose.msra.mxu0 0.0
    %704 = vmatprep.subr.mxu0 0.0
    %705 = vmatpush1.xpose.msra.mxu0 0.0
    %706 = vmatprep.subr.mxu0 0.0
    %707 = vmatpush1.xpose.msra.mxu0 0.0
    %708 = vmatprep.subr.mxu0 0.0
    %709 = vmatpush1.xpose.msra.mxu0 0.0
    %710 = vmatprep.subr.mxu0 0.0
    %711 = vmatpush1.xpose.msra.mxu0 0.0
    %712 = vmatprep.subr.mxu0 0.0
    %713 = vmatpush1.xpose.msra.mxu0 0.0
    %714 = vmatprep.subr.mxu0 0.0
    %715 = vmatpush1.xpose.msra.mxu0 0.0
    %716 = vmatprep.subr.mxu0 0.0
    %717 = vmatpush1.xpose.msra.mxu0 0.0
    %718 = vmatprep.subr.mxu0 0.0
    %719 = vmatpush1.xpose.msra.mxu0 0.0
    %720 = vmatprep.subr.mxu0 0.0
    %721 = vmatpush1.xpose.msra.mxu0 0.0
    %722 = vmatprep.subr.mxu0 0.0
    %723 = vmatpush1.xpose.msra.mxu0 0.0
    %724 = vmatprep.subr.mxu0 0.0
    %725 = vmatpush1.xpose.msra.mxu0 0.0
    %726 = vmatprep.mubr.f32.mxu0 0.0
    %727 = vmatmul.mubr.f32.gmra.mrb[0].mxu0 %v657
    %v728 = vpop.f32.mrb[0].mxu0
    %v729 = vadd.f32 0.0, %v728
    %v730 = vpop.f32.mrb[0].mxu0
    %731 = vmatprep.mubr.f32.mxu0 0.0
    %732 = vmatmul.mubr.f32.gmra.mrb[0].mxu0 %v660
    %v733 = vpop.f32.mrb[0].mxu0
    %v734 = vadd.f32 0.0, %v733
    %v735 = vpop.f32.mrb[0].mxu0
    %736 = vdwg.mxu0
    %v738 = vsel %vm107, %v49, 0
    %v741 = vsel %vm107, %v50, 0
    %743 = vmatprep.subr.mxu0 0.0
    %744 = vmatpush1.xpose.msra.mxu0 %v738
    %745 = vmatprep.subr.mxu0 0.0
    %746 = vmatpush1.xpose.msra.mxu0 %v741
    %747 = vmatprep.subr.mxu0 0.0
    %748 = vmatpush1.xpose.msra.mxu0 0.0
    %749 = vmatprep.subr.mxu0 0.0
    %750 = vmatpush1.xpose.msra.mxu0 0.0
    %751 = vmatprep.subr.mxu0 0.0
    %752 = vmatpush1.xpose.msra.mxu0 0.0
    %753 = vmatprep.subr.mxu0 0.0
    %754 = vmatpush1.xpose.msra.mxu0 0.0
    %755 = vmatprep.subr.mxu0 0.0
    %756 = vmatpush1.xpose.msra.mxu0 0.0
    %757 = vmatprep.subr.mxu0 0.0
    %758 = vmatpush1.xpose.msra.mxu0 0.0
    %759 = vmatprep.subr.mxu0 0.0
    %760 = vmatpush1.xpose.msra.mxu0 0.0
    %761 = vmatprep.subr.mxu0 0.0
    %762 = vmatpush1.xpose.msra.mxu0 0.0
    %763 = vmatprep.subr.mxu0 0.0
    %764 = vmatpush1.xpose.msra.mxu0 0.0
    %765 = vmatprep.subr.mxu0 0.0
    %766 = vmatpush1.xpose.msra.mxu0 0.0
    %767 = vmatprep.subr.mxu0 0.0
    %768 = vmatpush1.xpose.msra.mxu0 0.0
    %769 = vmatprep.subr.mxu0 0.0
    %770 = vmatpush1.xpose.msra.mxu0 0.0
    %771 = vmatprep.subr.mxu0 0.0
    %772 = vmatpush1.xpose.msra.mxu0 0.0
    %773 = vmatprep.subr.mxu0 0.0
    %774 = vmatpush1.xpose.msra.mxu0 0.0
    %775 = vmatprep.subr.mxu0 0.0
    %776 = vmatpush1.xpose.msra.mxu0 0.0
    %777 = vmatprep.subr.mxu0 0.0
    %778 = vmatpush1.xpose.msra.mxu0 0.0
    %779 = vmatprep.subr.mxu0 0.0
    %780 = vmatpush1.xpose.msra.mxu0 0.0
    %781 = vmatprep.subr.mxu0 0.0
    %782 = vmatpush1.xpose.msra.mxu0 0.0
    %783 = vmatprep.subr.mxu0 0.0
    %784 = vmatpush1.xpose.msra.mxu0 0.0
    %785 = vmatprep.subr.mxu0 0.0
    %786 = vmatpush1.xpose.msra.mxu0 0.0
    %787 = vmatprep.subr.mxu0 0.0
    %788 = vmatpush1.xpose.msra.mxu0 0.0
    %789 = vmatprep.subr.mxu0 0.0
    %790 = vmatpush1.xpose.msra.mxu0 0.0
    %791 = vmatprep.subr.mxu0 0.0
    %792 = vmatpush1.xpose.msra.mxu0 0.0
    %793 = vmatprep.subr.mxu0 0.0
    %794 = vmatpush1.xpose.msra.mxu0 0.0
    %795 = vmatprep.subr.mxu0 0.0
    %796 = vmatpush1.xpose.msra.mxu0 0.0
    %797 = vmatprep.subr.mxu0 0.0
    %798 = vmatpush1.xpose.msra.mxu0 0.0
    %799 = vmatprep.subr.mxu0 0.0
    %800 = vmatpush1.xpose.msra.mxu0 0.0
    %801 = vmatprep.subr.mxu0 0.0
    %802 = vmatpush1.xpose.msra.mxu0 0.0
    %803 = vmatprep.subr.mxu0 0.0
    %804 = vmatpush1.xpose.msra.mxu0 0.0
    %805 = vmatprep.subr.mxu0 0.0
    %806 = vmatpush1.xpose.msra.mxu0 0.0
    %807 = vmatprep.mubr.f32.mxu0 0.0
    %808 = vmatmul.mubr.f32.gmra.mrb[0].mxu0 %v738
    %v809 = vpop.f32.mrb[0].mxu0
    %v810 = vadd.f32 0.0, %v809
    %v811 = vpop.f32.mrb[0].mxu0
    %812 = vmatprep.mubr.f32.mxu0 0.0
    %813 = vmatmul.mubr.f32.gmra.mrb[0].mxu0 %v741
    %v814 = vpop.f32.mrb[0].mxu0
    %v815 = vadd.f32 0.0, %v814
    %v816 = vpop.f32.mrb[0].mxu0
    %817 = vdwg.mxu0
    %v819 = vsel %vm107, %v51, 0
    %v822 = vsel %vm107, %v52, 0
    %824 = vmatprep.subr.mxu0 0.0
    %825 = vmatpush1.xpose.msra.mxu0 %v819
    %826 = vmatprep.subr.mxu0 0.0
    %827 = vmatpush1.xpose.msra.mxu0 %v822
    %828 = vmatprep.subr.mxu0 0.0
    %829 = vmatpush1.xpose.msra.mxu0 0.0
    %830 = vmatprep.subr.mxu0 0.0
    %831 = vmatpush1.xpose.msra.mxu0 0.0
    %832 = vmatprep.subr.mxu0 0.0
    %833 = vmatpush1.xpose.msra.mxu0 0.0
    %834 = vmatprep.subr.mxu0 0.0
    %835 = vmatpush1.xpose.msra.mxu0 0.0
    %836 = vmatprep.subr.mxu0 0.0
    %837 = vmatpush1.xpose.msra.mxu0 0.0
    %838 = vmatprep.subr.mxu0 0.0
    %839 = vmatpush1.xpose.msra.mxu0 0.0
    %840 = vmatprep.subr.mxu0 0.0
    %841 = vmatpush1.xpose.msra.mxu0 0.0
    %842 = vmatprep.subr.mxu0 0.0
    %843 = vmatpush1.xpose.msra.mxu0 0.0
    %844 = vmatprep.subr.mxu0 0.0
    %845 = vmatpush1.xpose.msra.mxu0 0.0
    %846 = vmatprep.subr.mxu0 0.0
    %847 = vmatpush1.xpose.msra.mxu0 0.0
    %848 = vmatprep.subr.mxu0 0.0
    %849 = vmatpush1.xpose.msra.mxu0 0.0
    %850 = vmatprep.subr.mxu0 0.0
    %851 = vmatpush1.xpose.msra.mxu0 0.0
    %852 = vmatprep.subr.mxu0 0.0
    %853 = vmatpush1.xpose.msra.mxu0 0.0
    %854 = vmatprep.subr.mxu0 0.0
    %855 = vmatpush1.xpose.msra.mxu0 0.0
    %856 = vmatprep.subr.mxu0 0.0
    %857 = vmatpush1.xpose.msra.mxu0 0.0
    %858 = vmatprep.subr.mxu0 0.0
    %859 = vmatpush1.xpose.msra.mxu0 0.0
    %860 = vmatprep.subr.mxu0 0.0
    %861 = vmatpush1.xpose.msra.mxu0 0.0
    %862 = vmatprep.subr.mxu0 0.0
    %863 = vmatpush1.xpose.msra.mxu0 0.0
    %864 = vmatprep.subr.mxu0 0.0
    %865 = vmatpush1.xpose.msra.mxu0 0.0
    %866 = vmatprep.subr.mxu0 0.0
    %867 = vmatpush1.xpose.msra.mxu0 0.0
    %868 = vmatprep.subr.mxu0 0.0
    %869 = vmatpush1.xpose.msra.mxu0 0.0
    %870 = vmatprep.subr.mxu0 0.0
    %871 = vmatpush1.xpose.msra.mxu0 0.0
    %872 = vmatprep.subr.mxu0 0.0
    %873 = vmatpush1.xpose.msra.mxu0 0.0
    %874 = vmatprep.subr.mxu0 0.0
    %875 = vmatpush1.xpose.msra.mxu0 0.0
    %876 = vmatprep.subr.mxu0 0.0
    %877 = vmatpush1.xpose.msra.mxu0 0.0
    %878 = vmatprep.subr.mxu0 0.0
    %879 = vmatpush1.xpose.msra.mxu0 0.0
    %880 = vmatprep.subr.mxu0 0.0
    %881 = vmatpush1.xpose.msra.mxu0 0.0
    %882 = vmatprep.subr.mxu0 0.0
    %883 = vmatpush1.xpose.msra.mxu0 0.0
    %884 = vmatprep.subr.mxu0 0.0
    %885 = vmatpush1.xpose.msra.mxu0 0.0
    %886 = vmatprep.subr.mxu0 0.0
    %887 = vmatpush1.xpose.msra.mxu0 0.0
    %888 = vmatprep.mubr.f32.mxu0 0.0
    %889 = vmatmul.mubr.f32.gmra.mrb[0].mxu0 %v819
    %v890 = vpop.f32.mrb[0].mxu0
    %v891 = vadd.f32 0.0, %v890
    %v892 = vpop.f32.mrb[0].mxu0
    %893 = vmatprep.mubr.f32.mxu0 0.0
    %894 = vmatmul.mubr.f32.gmra.mrb[0].mxu0 %v822
    %v895 = vpop.f32.mrb[0].mxu0
    %v896 = vadd.f32 0.0, %v895
    %v897 = vpop.f32.mrb[0].mxu0
    %898 = vdwg.mxu0
    %v900 = vsel %vm107, %v53, 0
    %v903 = vsel %vm107, %v54, 0
    %905 = vmatprep.subr.mxu0 0.0
    %906 = vmatpush1.xpose.msra.mxu0 %v900
    %907 = vmatprep.subr.mxu0 0.0
    %908 = vmatpush1.xpose.msra.mxu0 %v903
    %909 = vmatprep.subr.mxu0 0.0
    %910 = vmatpush1.xpose.msra.mxu0 0.0
    %911 = vmatprep.subr.mxu0 0.0
    %912 = vmatpush1.xpose.msra.mxu0 0.0
    %913 = vmatprep.subr.mxu0 0.0
    %914 = vmatpush1.xpose.msra.mxu0 0.0
    %915 = vmatprep.subr.mxu0 0.0
    %916 = vmatpush1.xpose.msra.mxu0 0.0
    %917 = vmatprep.subr.mxu0 0.0
    %918 = vmatpush1.xpose.msra.mxu0 0.0
    %919 = vmatprep.subr.mxu0 0.0
    %920 = vmatpush1.xpose.msra.mxu0 0.0
    %921 = vmatprep.subr.mxu0 0.0
    %922 = vmatpush1.xpose.msra.mxu0 0.0
    %923 = vmatprep.subr.mxu0 0.0
    %924 = vmatpush1.xpose.msra.mxu0 0.0
    %925 = vmatprep.subr.mxu0 0.0
    %926 = vmatpush1.xpose.msra.mxu0 0.0
    %927 = vmatprep.subr.mxu0 0.0
    %928 = vmatpush1.xpose.msra.mxu0 0.0
    %929 = vmatprep.subr.mxu0 0.0
    %930 = vmatpush1.xpose.msra.mxu0 0.0
    %931 = vmatprep.subr.mxu0 0.0
    %932 = vmatpush1.xpose.msra.mxu0 0.0
    %933 = vmatprep.subr.mxu0 0.0
    %934 = vmatpush1.xpose.msra.mxu0 0.0
    %935 = vmatprep.subr.mxu0 0.0
    %936 = vmatpush1.xpose.msra.mxu0 0.0
    %937 = vmatprep.subr.mxu0 0.0
    %938 = vmatpush1.xpose.msra.mxu0 0.0
    %939 = vmatprep.subr.mxu0 0.0
    %940 = vmatpush1.xpose.msra.mxu0 0.0
    %941 = vmatprep.subr.mxu0 0.0
    %942 = vmatpush1.xpose.msra.mxu0 0.0
    %943 = vmatprep.subr.mxu0 0.0
    %944 = vmatpush1.xpose.msra.mxu0 0.0
    %945 = vmatprep.subr.mxu0 0.0
    %946 = vmatpush1.xpose.msra.mxu0 0.0
    %947 = vmatprep.subr.mxu0 0.0
    %948 = vmatpush1.xpose.msra.mxu0 0.0
    %949 = vmatprep.subr.mxu0 0.0
    %950 = vmatpush1.xpose.msra.mxu0 0.0
    %951 = vmatprep.subr.mxu0 0.0
    %952 = vmatpush1.xpose.msra.mxu0 0.0
    %953 = vmatprep.subr.mxu0 0.0
    %954 = vmatpush1.xpose.msra.mxu0 0.0
    %955 = vmatprep.subr.mxu0 0.0
    %956 = vmatpush1.xpose.msra.mxu0 0.0
    %957 = vmatprep.subr.mxu0 0.0
    %958 = vmatpush1.xpose.msra.mxu0 0.0
    %959 = vmatprep.subr.mxu0 0.0
    %960 = vmatpush1.xpose.msra.mxu0 0.0
    %961 = vmatprep.subr.mxu0 0.0
    %962 = vmatpush1.xpose.msra.mxu0 0.0
    %963 = vmatprep.subr.mxu0 0.0
    %964 = vmatpush1.xpose.msra.mxu0 0.0
    %965 = vmatprep.subr.mxu0 0.0
    %966 = vmatpush1.xpose.msra.mxu0 0.0
    %967 = vmatprep.subr.mxu0 0.0
    %968 = vmatpush1.xpose.msra.mxu0 0.0
    %969 = vmatprep.mubr.f32.mxu0 0.0
    %970 = vmatmul.mubr.f32.gmra.mrb[0].mxu0 %v900
    %v971 = vpop.f32.mrb[0].mxu0
    %v972 = vadd.f32 0.0, %v971
    %v973 = vpop.f32.mrb[0].mxu0
    %974 = vmatprep.mubr.f32.mxu0 0.0
    %975 = vmatmul.mubr.f32.gmra.mrb[0].mxu0 %v903
    %v976 = vpop.f32.mrb[0].mxu0
    %v977 = vadd.f32 0.0, %v976
    %v978 = vpop.f32.mrb[0].mxu0
    %979 = vdwg.mxu0
    %v981 = vsel %vm107, %v55, 0
    %v984 = vsel %vm107, %v56, 0
    %986 = vmatprep.subr.mxu0 0.0
    %987 = vmatpush1.xpose.msra.mxu0 %v981
    %988 = vmatprep.subr.mxu0 0.0
    %989 = vmatpush1.xpose.msra.mxu0 %v984
    %990 = vmatprep.subr.mxu0 0.0
    %991 = vmatpush1.xpose.msra.mxu0 0.0
    %992 = vmatprep.subr.mxu0 0.0
    %993 = vmatpush1.xpose.msra.mxu0 0.0
    %994 = vmatprep.subr.mxu0 0.0
    %995 = vmatpush1.xpose.msra.mxu0 0.0
    %996 = vmatprep.subr.mxu0 0.0
    %997 = vmatpush1.xpose.msra.mxu0 0.0
    %998 = vmatprep.subr.mxu0 0.0
    %999 = vmatpush1.xpose.msra.mxu0 0.0
    %1000 = vmatprep.subr.mxu0 0.0
    %1001 = vmatpush1.xpose.msra.mxu0 0.0
    %1002 = vmatprep.subr.mxu0 0.0
    %1003 = vmatpush1.xpose.msra.mxu0 0.0
    %1004 = vmatprep.subr.mxu0 0.0
    %1005 = vmatpush1.xpose.msra.mxu0 0.0
    %1006 = vmatprep.subr.mxu0 0.0
    %1007 = vmatpush1.xpose.msra.mxu0 0.0
    %1008 = vmatprep.subr.mxu0 0.0
    %1009 = vmatpush1.xpose.msra.mxu0 0.0
    %1010 = vmatprep.subr.mxu0 0.0
    %1011 = vmatpush1.xpose.msra.mxu0 0.0
    %1012 = vmatprep.subr.mxu0 0.0
    %1013 = vmatpush1.xpose.msra.mxu0 0.0
    %1014 = vmatprep.subr.mxu0 0.0
    %1015 = vmatpush1.xpose.msra.mxu0 0.0
    %1016 = vmatprep.subr.mxu0 0.0
    %1017 = vmatpush1.xpose.msra.mxu0 0.0
    %1018 = vmatprep.subr.mxu0 0.0
    %1019 = vmatpush1.xpose.msra.mxu0 0.0
    %1020 = vmatprep.subr.mxu0 0.0
    %1021 = vmatpush1.xpose.msra.mxu0 0.0
    %1022 = vmatprep.subr.mxu0 0.0
    %1023 = vmatpush1.xpose.msra.mxu0 0.0
    %1024 = vmatprep.subr.mxu0 0.0
    %1025 = vmatpush1.xpose.msra.mxu0 0.0
    %1026 = vmatprep.subr.mxu0 0.0
    %1027 = vmatpush1.xpose.msra.mxu0 0.0
    %1028 = vmatprep.subr.mxu0 0.0
    %1029 = vmatpush1.xpose.msra.mxu0 0.0
    %1030 = vmatprep.subr.mxu0 0.0
    %1031 = vmatpush1.xpose.msra.mxu0 0.0
    %1032 = vmatprep.subr.mxu0 0.0
    %1033 = vmatpush1.xpose.msra.mxu0 0.0
    %1034 = vmatprep.subr.mxu0 0.0
    %1035 = vmatpush1.xpose.msra.mxu0 0.0
    %1036 = vmatprep.subr.mxu0 0.0
    %1037 = vmatpush1.xpose.msra.mxu0 0.0
    %1038 = vmatprep.subr.mxu0 0.0
    %1039 = vmatpush1.xpose.msra.mxu0 0.0
    %1040 = vmatprep.subr.mxu0 0.0
    %1041 = vmatpush1.xpose.msra.mxu0 0.0
    %1042 = vmatprep.subr.mxu0 0.0
    %1043 = vmatpush1.xpose.msra.mxu0 0.0
    %1044 = vmatprep.subr.mxu0 0.0
    %1045 = vmatpush1.xpose.msra.mxu0 0.0
    %1046 = vmatprep.subr.mxu0 0.0
    %1047 = vmatpush1.xpose.msra.mxu0 0.0
    %1048 = vmatprep.subr.mxu0 0.0
    %1049 = vmatpush1.xpose.msra.mxu0 0.0
    %1050 = vmatprep.mubr.f32.mxu0 0.0
    %1051 = vmatmul.mubr.f32.gmra.mrb[0].mxu0 %v981
    %v1052 = vpop.f32.mrb[0].mxu0
    %v1053 = vadd.f32 0.0, %v1052
    %v1054 = vpop.f32.mrb[0].mxu0
    %1055 = vmatprep.mubr.f32.mxu0 0.0
    %1056 = vmatmul.mubr.f32.gmra.mrb[0].mxu0 %v984
    %v1057 = vpop.f32.mrb[0].mxu0
    %v1058 = vadd.f32 0.0, %v1057
    %v1059 = vpop.f32.mrb[0].mxu0
    %1060 = vdwg.mxu0
    %v1062 = vsel %vm107, %v57, 0
    %v1065 = vsel %vm107, %v58, 0
    %1067 = vmatprep.subr.mxu0 0.0
    %1068 = vmatpush1.xpose.msra.mxu0 %v1062
    %1069 = vmatprep.subr.mxu0 0.0
    %1070 = vmatpush1.xpose.msra.mxu0 %v1065
    %1071 = vmatprep.subr.mxu0 0.0
    %1072 = vmatpush1.xpose.msra.mxu0 0.0
    %1073 = vmatprep.subr.mxu0 0.0
    %1074 = vmatpush1.xpose.msra.mxu0 0.0
    %1075 = vmatprep.subr.mxu0 0.0
    %1076 = vmatpush1.xpose.msra.mxu0 0.0
    %1077 = vmatprep.subr.mxu0 0.0
    %1078 = vmatpush1.xpose.msra.mxu0 0.0
    %1079 = vmatprep.subr.mxu0 0.0
    %1080 = vmatpush1.xpose.msra.mxu0 0.0
    %1081 = vmatprep.subr.mxu0 0.0
    %1082 = vmatpush1.xpose.msra.mxu0 0.0
    %1083 = vmatprep.subr.mxu0 0.0
    %1084 = vmatpush1.xpose.msra.mxu0 0.0
    %1085 = vmatprep.subr.mxu0 0.0
    %1086 = vmatpush1.xpose.msra.mxu0 0.0
    %1087 = vmatprep.subr.mxu0 0.0
    %1088 = vmatpush1.xpose.msra.mxu0 0.0
    %1089 = vmatprep.subr.mxu0 0.0
    %1090 = vmatpush1.xpose.msra.mxu0 0.0
    %1091 = vmatprep.subr.mxu0 0.0
    %1092 = vmatpush1.xpose.msra.mxu0 0.0
    %1093 = vmatprep.subr.mxu0 0.0
    %1094 = vmatpush1.xpose.msra.mxu0 0.0
    %1095 = vmatprep.subr.mxu0 0.0
    %1096 = vmatpush1.xpose.msra.mxu0 0.0
    %1097 = vmatprep.subr.mxu0 0.0
    %1098 = vmatpush1.xpose.msra.mxu0 0.0
    %1099 = vmatprep.subr.mxu0 0.0
    %1100 = vmatpush1.xpose.msra.mxu0 0.0
    %1101 = vmatprep.subr.mxu0 0.0
    %1102 = vmatpush1.xpose.msra.mxu0 0.0
    %1103 = vmatprep.subr.mxu0 0.0
    %1104 = vmatpush1.xpose.msra.mxu0 0.0
    %1105 = vmatprep.subr.mxu0 0.0
    %1106 = vmatpush1.xpose.msra.mxu0 0.0
    %1107 = vmatprep.subr.mxu0 0.0
    %1108 = vmatpush1.xpose.msra.mxu0 0.0
    %1109 = vmatprep.subr.mxu0 0.0
    %1110 = vmatpush1.xpose.msra.mxu0 0.0
    %1111 = vmatprep.subr.mxu0 0.0
    %1112 = vmatpush1.xpose.msra.mxu0 0.0
    %1113 = vmatprep.subr.mxu0 0.0
    %1114 = vmatpush1.xpose.msra.mxu0 0.0
    %1115 = vmatprep.subr.mxu0 0.0
    %1116 = vmatpush1.xpose.msra.mxu0 0.0
    %1117 = vmatprep.subr.mxu0 0.0
    %1118 = vmatpush1.xpose.msra.mxu0 0.0
    %1119 = vmatprep.subr.mxu0 0.0
    %1120 = vmatpush1.xpose.msra.mxu0 0.0
    %1121 = vmatprep.subr.mxu0 0.0
    %1122 = vmatpush1.xpose.msra.mxu0 0.0
    %1123 = vmatprep.subr.mxu0 0.0
    %1124 = vmatpush1.xpose.msra.mxu0 0.0
    %1125 = vmatprep.subr.mxu0 0.0
    %1126 = vmatpush1.xpose.msra.mxu0 0.0
    %1127 = vmatprep.subr.mxu0 0.0
    %1128 = vmatpush1.xpose.msra.mxu0 0.0
    %1129 = vmatprep.subr.mxu0 0.0
    %1130 = vmatpush1.xpose.msra.mxu0 0.0
    %1131 = vmatprep.mubr.f32.mxu0 0.0
    %1132 = vmatmul.mubr.f32.gmra.mrb[0].mxu0 %v1062
    %v1133 = vpop.f32.mrb[0].mxu0
    %v1134 = vadd.f32 0.0, %v1133
    %v1135 = vpop.f32.mrb[0].mxu0
    %1136 = vmatprep.mubr.f32.mxu0 0.0
    %1137 = vmatmul.mubr.f32.gmra.mrb[0].mxu0 %v1065
    %v1138 = vpop.f32.mrb[0].mxu0
    %v1139 = vadd.f32 0.0, %v1138
    %v1140 = vpop.f32.mrb[0].mxu0
    %1141 = vdwg.mxu0
    %v1142 = vsel %vm107, %v567, -inf
    %1143 = vmax.xlane.f32.xlu0 %v1142
    %v1144 = vpop.xlane.xlu0 %1143
    %v1145 = vsel %vm107, %v572, -inf
    %1146 = vmax.xlane.f32.xlu0 %v1145
    %v1147 = vpop.xlane.xlu0 %1146
    %v1148 = vsel %vm107, %v648, -inf
    %1149 = vmax.xlane.f32.xlu0 %v1148
    %v1150 = vpop.xlane.xlu0 %1149
    %v1151 = vsel %vm107, %v653, -inf
    %1152 = vmax.xlane.f32.xlu0 %v1151
    %v1153 = vpop.xlane.xlu0 %1152
    %v1154 = vsel %vm107, %v729, -inf
    %1155 = vmax.xlane.f32.xlu0 %v1154
    %v1156 = vpop.xlane.xlu0 %1155
    %v1157 = vsel %vm107, %v734, -inf
    %1158 = vmax.xlane.f32.xlu0 %v1157
    %v1159 = vpop.xlane.xlu0 %1158
    %v1160 = vsel %vm107, %v810, -inf
    %1161 = vmax.xlane.f32.xlu0 %v1160
    %v1162 = vpop.xlane.xlu0 %1161
    %v1163 = vsel %vm107, %v815, -inf
    %1164 = vmax.xlane.f32.xlu0 %v1163
    %v1165 = vpop.xlane.xlu0 %1164
    %v1166 = vsel %vm107, %v891, -inf
    %1167 = vmax.xlane.f32.xlu0 %v1166
    %v1168 = vpop.xlane.xlu0 %1167
    %v1169 = vsel %vm107, %v896, -inf
    %1170 = vmax.xlane.f32.xlu0 %v1169
    %v1171 = vpop.xlane.xlu0 %1170
    %v1172 = vsel %vm107, %v972, -inf
    %1173 = vmax.xlane.f32.xlu0 %v1172
    %v1174 = vpop.xlane.xlu0 %1173
    %v1175 = vsel %vm107, %v977, -inf
    %1176 = vmax.xlane.f32.xlu0 %v1175
    %v1177 = vpop.xlane.xlu0 %1176
    %v1178 = vsel %vm107, %v1053, -inf
    %1179 = vmax.xlane.f32.xlu0 %v1178
    %v1180 = vpop.xlane.xlu0 %1179
    %v1181 = vsel %vm107, %v1058, -inf
    %1182 = vmax.xlane.f32.xlu0 %v1181
    %v1183 = vpop.xlane.xlu0 %1182
    %v1184 = vsel %vm107, %v1134, -inf
    %1185 = vmax.xlane.f32.xlu0 %v1184
    %v1186 = vpop.xlane.xlu0 %1185
    %v1187 = vsel %vm107, %v1139, -inf
    %1188 = vmax.xlane.f32.xlu0 %v1187
    %v1189 = vpop.xlane.xlu0 %1188
    %v1190 = vsub.f32 %v567, %v1144
    %v1191 = vsub.f32 %v572, %v1147
    %v1192 = vsub.f32 %v648, %v1150
    %v1193 = vsub.f32 %v653, %v1153
    %v1194 = vsub.f32 %v729, %v1156
    %v1195 = vsub.f32 %v734, %v1159
    %v1196 = vsub.f32 %v810, %v1162
    %v1197 = vsub.f32 %v815, %v1165
    %v1198 = vsub.f32 %v891, %v1168
    %v1199 = vsub.f32 %v896, %v1171
    %v1200 = vsub.f32 %v972, %v1174
    %v1201 = vsub.f32 %v977, %v1177
    %v1202 = vsub.f32 %v1053, %v1180
    %v1203 = vsub.f32 %v1058, %v1183
    %v1204 = vsub.f32 %v1134, %v1186
    %v1205 = vsub.f32 %v1139, %v1189
    %v1206 = vmul.f32 %v1190, 1.442695
    %v1207 = vpow.pop %v1206
    %v1208 = vmul.f32 %v1191, 1.442695
    %v1209 = vpow.pop %v1208
    %v1210 = vmul.f32 %v1192, 1.442695
    %v1211 = vpow.pop %v1210
    %v1212 = vmul.f32 %v1193, 1.442695
    %v1213 = vpow.pop %v1212
    %v1214 = vmul.f32 %v1194, 1.442695
    %v1215 = vpow.pop %v1214
    %v1216 = vmul.f32 %v1195, 1.442695
    %v1217 = vpow.pop %v1216
    %v1218 = vmul.f32 %v1196, 1.442695
    %v1219 = vpow.pop %v1218
    %v1220 = vmul.f32 %v1197, 1.442695
    %v1221 = vpow.pop %v1220
    %v1222 = vmul.f32 %v1198, 1.442695
    %v1223 = vpow.pop %v1222
    %v1224 = vmul.f32 %v1199, 1.442695
    %v1225 = vpow.pop %v1224
    %v1226 = vmul.f32 %v1200, 1.442695
    %v1227 = vpow.pop %v1226
    %v1228 = vmul.f32 %v1201, 1.442695
    %v1229 = vpow.pop %v1228
    %v1230 = vmul.f32 %v1202, 1.442695
    %v1231 = vpow.pop %v1230
    %v1232 = vmul.f32 %v1203, 1.442695
    %v1233 = vpow.pop %v1232
    %v1234 = vmul.f32 %v1204, 1.442695
    %v1235 = vpow.pop %v1234
    %v1236 = vmul.f32 %v1205, 1.442695
    %v1237 = vpow.pop %v1236
    %v1238 = vsel %vm107, %v1207, 0.0
    %1239 = vadd.xlane.f32.xlu0 %v1238
    %v1240 = vpop.xlane.xlu0 %1239
    %v1241 = vsel %vm107, %v1209, 0.0
    %1242 = vadd.xlane.f32.xlu0 %v1241
    %v1243 = vpop.xlane.xlu0 %1242
    %v1244 = vsel %vm107, %v1211, 0.0
    %1245 = vadd.xlane.f32.xlu0 %v1244
    %v1246 = vpop.xlane.xlu0 %1245
    %v1247 = vsel %vm107, %v1213, 0.0
    %1248 = vadd.xlane.f32.xlu0 %v1247
    %v1249 = vpop.xlane.xlu0 %1248
    %v1250 = vsel %vm107, %v1215, 0.0
    %1251 = vadd.xlane.f32.xlu0 %v1250
    %v1252 = vpop.xlane.xlu0 %1251
    %v1253 = vsel %vm107, %v1217, 0.0
    %1254 = vadd.xlane.f32.xlu0 %v1253
    %v1255 = vpop.xlane.xlu0 %1254
    %v1256 = vsel %vm107, %v1219, 0.0
    %1257 = vadd.xlane.f32.xlu0 %v1256
    %v1258 = vpop.xlane.xlu0 %1257
    %v1259 = vsel %vm107, %v1221, 0.0
    %1260 = vadd.xlane.f32.xlu0 %v1259
    %v1261 = vpop.xlane.xlu0 %1260
    %v1262 = vsel %vm107, %v1223, 0.0
    %1263 = vadd.xlane.f32.xlu0 %v1262
    %v1264 = vpop.xlane.xlu0 %1263
    %v1265 = vsel %vm107, %v1225, 0.0
    %1266 = vadd.xlane.f32.xlu0 %v1265
    %v1267 = vpop.xlane.xlu0 %1266
    %v1268 = vsel %vm107, %v1227, 0.0
    %1269 = vadd.xlane.f32.xlu0 %v1268
    %v1270 = vpop.xlane.xlu0 %1269
    %v1271 = vsel %vm107, %v1229, 0.0
    %1272 = vadd.xlane.f32.xlu0 %v1271
    %v1273 = vpop.xlane.xlu0 %1272
    %v1274 = vsel %vm107, %v1231, 0.0
    %1275 = vadd.xlane.f32.xlu0 %v1274
    %v1276 = vpop.xlane.xlu0 %1275
    %v1277 = vsel %vm107, %v1233, 0.0
    %1278 = vadd.xlane.f32.xlu0 %v1277
    %v1279 = vpop.xlane.xlu0 %1278
    %v1280 = vsel %vm107, %v1235, 0.0
    %1281 = vadd.xlane.f32.xlu0 %v1280
    %v1282 = vpop.xlane.xlu0 %1281
    %v1283 = vsel %vm107, %v1237, 0.0
    %1284 = vadd.xlane.f32.xlu0 %v1283
    %v1285 = vpop.xlane.xlu0 %1284
    %v1286 = vrcp.pop %v1240
    %v1287 = vmul.f32 %v1207, %v1286
    %v1288 = vrcp.pop %v1243
    %v1289 = vmul.f32 %v1209, %v1288
    %v1290 = vrcp.pop %v1246
    %v1291 = vmul.f32 %v1211, %v1290
    %v1292 = vrcp.pop %v1249
    %v1293 = vmul.f32 %v1213, %v1292
    %v1294 = vrcp.pop %v1252
    %v1295 = vmul.f32 %v1215, %v1294
    %v1296 = vrcp.pop %v1255
    %v1297 = vmul.f32 %v1217, %v1296
    %v1298 = vrcp.pop %v1258
    %v1299 = vmul.f32 %v1219, %v1298
    %v1300 = vrcp.pop %v1261
    %v1301 = vmul.f32 %v1221, %v1300
    %v1302 = vrcp.pop %v1264
    %v1303 = vmul.f32 %v1223, %v1302
    %v1304 = vrcp.pop %v1267
    %v1305 = vmul.f32 %v1225, %v1304
    %v1306 = vrcp.pop %v1270
    %v1307 = vmul.f32 %v1227, %v1306
    %v1308 = vrcp.pop %v1273
    %v1309 = vmul.f32 %v1229, %v1308
    %v1310 = vrcp.pop %v1276
    %v1311 = vmul.f32 %v1231, %v1310
    %v1312 = vrcp.pop %v1279
    %v1313 = vmul.f32 %v1233, %v1312
    %v1314 = vrcp.pop %v1282
    %v1315 = vmul.f32 %v1235, %v1314
    %v1316 = vrcp.pop %v1285
    %v1317 = vmul.f32 %v1237, %v1316
    %v1319 = vsel %vm107, %v1287, 0
    %v1322 = vsel %vm107, %v1289, 0
    %1324 = vmatprep.subr.mxu0 0.0
    %1325 = vmatpush1.msra.mxu0 %v43
    %1326 = vmatprep.subr.mxu0 0.0
    %1327 = vmatpush1.msra.mxu0 %v44
    %1328 = vmatprep.subr.mxu0 0.0
    %1329 = vmatpush1.msra.mxu0 0.0
    %1330 = vmatprep.subr.mxu0 0.0
    %1331 = vmatpush1.msra.mxu0 0.0
    %1332 = vmatprep.subr.mxu0 0.0
    %1333 = vmatpush1.msra.mxu0 0.0
    %1334 = vmatprep.subr.mxu0 0.0
    %1335 = vmatpush1.msra.mxu0 0.0
    %1336 = vmatprep.subr.mxu0 0.0
    %1337 = vmatpush1.msra.mxu0 0.0
    %1338 = vmatprep.subr.mxu0 0.0
    %1339 = vmatpush1.msra.mxu0 0.0
    %1340 = vmatprep.subr.mxu0 0.0
    %1341 = vmatpush1.msra.mxu0 0.0
    %1342 = vmatprep.subr.mxu0 0.0
    %1343 = vmatpush1.msra.mxu0 0.0
    %1344 = vmatprep.subr.mxu0 0.0
    %1345 = vmatpush1.msra.mxu0 0.0
    %1346 = vmatprep.subr.mxu0 0.0
    %1347 = vmatpush1.msra.mxu0 0.0
    %1348 = vmatprep.subr.mxu0 0.0
    %1349 = vmatpush1.msra.mxu0 0.0
    %1350 = vmatprep.subr.mxu0 0.0
    %1351 = vmatpush1.msra.mxu0 0.0
    %1352 = vmatprep.subr.mxu0 0.0
    %1353 = vmatpush1.msra.mxu0 0.0
    %1354 = vmatprep.subr.mxu0 0.0
    %1355 = vmatpush1.msra.mxu0 0.0
    %1356 = vmatprep.subr.mxu0 0.0
    %1357 = vmatpush1.msra.mxu0 0.0
    %1358 = vmatprep.subr.mxu0 0.0
    %1359 = vmatpush1.msra.mxu0 0.0
    %1360 = vmatprep.subr.mxu0 0.0
    %1361 = vmatpush1.msra.mxu0 0.0
    %1362 = vmatprep.subr.mxu0 0.0
    %1363 = vmatpush1.msra.mxu0 0.0
    %1364 = vmatprep.subr.mxu0 0.0
    %1365 = vmatpush1.msra.mxu0 0.0
    %1366 = vmatprep.subr.mxu0 0.0
    %1367 = vmatpush1.msra.mxu0 0.0
    %1368 = vmatprep.subr.mxu0 0.0
    %1369 = vmatpush1.msra.mxu0 0.0
    %1370 = vmatprep.subr.mxu0 0.0
    %1371 = vmatpush1.msra.mxu0 0.0
    %1372 = vmatprep.subr.mxu0 0.0
    %1373 = vmatpush1.msra.mxu0 0.0
    %1374 = vmatprep.subr.mxu0 0.0
    %1375 = vmatpush1.msra.mxu0 0.0
    %1376 = vmatprep.subr.mxu0 0.0
    %1377 = vmatpush1.msra.mxu0 0.0
    %1378 = vmatprep.subr.mxu0 0.0
    %1379 = vmatpush1.msra.mxu0 0.0
    %1380 = vmatprep.subr.mxu0 0.0
    %1381 = vmatpush1.msra.mxu0 0.0
    %1382 = vmatprep.subr.mxu0 0.0
    %1383 = vmatpush1.msra.mxu0 0.0
    %1384 = vmatprep.subr.mxu0 0.0
    %1385 = vmatpush1.msra.mxu0 0.0
    %1386 = vmatprep.subr.mxu0 0.0
    %1387 = vmatpush1.msra.mxu0 0.0
    %1388 = vmatprep.mubr.f32.mxu0 0.0
    %1389 = vmatmul.mubr.f32.gmra.mrb[0].mxu0 %v1319
    %v1390 = vpop.f32.mrb[0].mxu0
    %v1391 = vadd.f32 0.0, %v1390
    %v1392 = vpop.f32.mrb[0].mxu0
    %1393 = vmatprep.mubr.f32.mxu0 0.0
    %1394 = vmatmul.mubr.f32.gmra.mrb[0].mxu0 %v1322
    %v1395 = vpop.f32.mrb[0].mxu0
    %v1396 = vadd.f32 0.0, %v1395
    %v1397 = vpop.f32.mrb[0].mxu0
    %1398 = vdwg.mxu0
    %v1400 = vsel %vm107, %v1291, 0
    %v1403 = vsel %vm107, %v1293, 0
    %1405 = vmatprep.subr.mxu0 0.0
    %1406 = vmatpush1.msra.mxu0 %v45
    %1407 = vmatprep.subr.mxu0 0.0
    %1408 = vmatpush1.msra.mxu0 %v46
    %1409 = vmatprep.subr.mxu0 0.0
    %1410 = vmatpush1.msra.mxu0 0.0
    %1411 = vmatprep.subr.mxu0 0.0
    %1412 = vmatpush1.msra.mxu0 0.0
    %1413 = vmatprep.subr.mxu0 0.0
    %1414 = vmatpush1.msra.mxu0 0.0
    %1415 = vmatprep.subr.mxu0 0.0
    %1416 = vmatpush1.msra.mxu0 0.0
    %1417 = vmatprep.subr.mxu0 0.0
    %1418 = vmatpush1.msra.mxu0 0.0
    %1419 = vmatprep.subr.mxu0 0.0
    %1420 = vmatpush1.msra.mxu0 0.0
    %1421 = vmatprep.subr.mxu0 0.0
    %1422 = vmatpush1.msra.mxu0 0.0
    %1423 = vmatprep.subr.mxu0 0.0
    %1424 = vmatpush1.msra.mxu0 0.0
    %1425 = vmatprep.subr.mxu0 0.0
    %1426 = vmatpush1.msra.mxu0 0.0
    %1427 = vmatprep.subr.mxu0 0.0
    %1428 = vmatpush1.msra.mxu0 0.0
    %1429 = vmatprep.subr.mxu0 0.0
    %1430 = vmatpush1.msra.mxu0 0.0
    %1431 = vmatprep.subr.mxu0 0.0
    %1432 = vmatpush1.msra.mxu0 0.0
    %1433 = vmatprep.subr.mxu0 0.0
    %1434 = vmatpush1.msra.mxu0 0.0
    %1435 = vmatprep.subr.mxu0 0.0
    %1436 = vmatpush1.msra.mxu0 0.0
    %1437 = vmatprep.subr.mxu0 0.0
    %1438 = vmatpush1.msra.mxu0 0.0
    %1439 = vmatprep.subr.mxu0 0.0
    %1440 = vmatpush1.msra.mxu0 0.0
    %1441 = vmatprep.subr.mxu0 0.0
    %1442 = vmatpush1.msra.mxu0 0.0
    %1443 = vmatprep.subr.mxu0 0.0
    %1444 = vmatpush1.msra.mxu0 0.0
    %1445 = vmatprep.subr.mxu0 0.0
    %1446 = vmatpush1.msra.mxu0 0.0
    %1447 = vmatprep.subr.mxu0 0.0
    %1448 = vmatpush1.msra.mxu0 0.0
    %1449 = vmatprep.subr.mxu0 0.0
    %1450 = vmatpush1.msra.mxu0 0.0
    %1451 = vmatprep.subr.mxu0 0.0
    %1452 = vmatpush1.msra.mxu0 0.0
    %1453 = vmatprep.subr.mxu0 0.0
    %1454 = vmatpush1.msra.mxu0 0.0
    %1455 = vmatprep.subr.mxu0 0.0
    %1456 = vmatpush1.msra.mxu0 0.0
    %1457 = vmatprep.subr.mxu0 0.0
    %1458 = vmatpush1.msra.mxu0 0.0
    %1459 = vmatprep.subr.mxu0 0.0
    %1460 = vmatpush1.msra.mxu0 0.0
    %1461 = vmatprep.subr.mxu0 0.0
    %1462 = vmatpush1.msra.mxu0 0.0
    %1463 = vmatprep.subr.mxu0 0.0
    %1464 = vmatpush1.msra.mxu0 0.0
    %1465 = vmatprep.subr.mxu0 0.0
    %1466 = vmatpush1.msra.mxu0 0.0
    %1467 = vmatprep.subr.mxu0 0.0
    %1468 = vmatpush1.msra.mxu0 0.0
    %1469 = vmatprep.mubr.f32.mxu0 0.0
    %1470 = vmatmul.mubr.f32.gmra.mrb[0].mxu0 %v1400
    %v1471 = vpop.f32.mrb[0].mxu0
    %v1472 = vadd.f32 0.0, %v1471
    %v1473 = vpop.f32.mrb[0].mxu0
    %1474 = vmatprep.mubr.f32.mxu0 0.0
    %1475 = vmatmul.mubr.f32.gmra.mrb[0].mxu0 %v1403
    %v1476 = vpop.f32.mrb[0].mxu0
    %v1477 = vadd.f32 0.0, %v1476
    %v1478 = vpop.f32.mrb[0].mxu0
    %1479 = vdwg.mxu0
    %v1481 = vsel %vm107, %v1295, 0
    %v1484 = vsel %vm107, %v1297, 0
    %1486 = vmatprep.subr.mxu0 0.0
    %1487 = vmatpush1.msra.mxu0 %v47
    %1488 = vmatprep.subr.mxu0 0.0
    %1489 = vmatpush1.msra.mxu0 %v48
    %1490 = vmatprep.subr.mxu0 0.0
    %1491 = vmatpush1.msra.mxu0 0.0
    %1492 = vmatprep.subr.mxu0 0.0
    %1493 = vmatpush1.msra.mxu0 0.0
    %1494 = vmatprep.subr.mxu0 0.0
    %1495 = vmatpush1.msra.mxu0 0.0
    %1496 = vmatprep.subr.mxu0 0.0
    %1497 = vmatpush1.msra.mxu0 0.0
    %1498 = vmatprep.subr.mxu0 0.0
    %1499 = vmatpush1.msra.mxu0 0.0
    %1500 = vmatprep.subr.mxu0 0.0
    %1501 = vmatpush1.msra.mxu0 0.0
    %1502 = vmatprep.subr.mxu0 0.0
    %1503 = vmatpush1.msra.mxu0 0.0
    %1504 = vmatprep.subr.mxu0 0.0
    %1505 = vmatpush1.msra.mxu0 0.0
    %1506 = vmatprep.subr.mxu0 0.0
    %1507 = vmatpush1.msra.mxu0 0.0
    %1508 = vmatprep.subr.mxu0 0.0
    %1509 = vmatpush1.msra.mxu0 0.0
    %1510 = vmatprep.subr.mxu0 0.0
    %1511 = vmatpush1.msra.mxu0 0.0
    %1512 = vmatprep.subr.mxu0 0.0
    %1513 = vmatpush1.msra.mxu0 0.0
    %1514 = vmatprep.subr.mxu0 0.0
    %1515 = vmatpush1.msra.mxu0 0.0
    %1516 = vmatprep.subr.mxu0 0.0
    %1517 = vmatpush1.msra.mxu0 0.0
    %1518 = vmatprep.subr.mxu0 0.0
    %1519 = vmatpush1.msra.mxu0 0.0
    %1520 = vmatprep.subr.mxu0 0.0
    %1521 = vmatpush1.msra.mxu0 0.0
    %1522 = vmatprep.subr.mxu0 0.0
    %1523 = vmatpush1.msra.mxu0 0.0
    %1524 = vmatprep.subr.mxu0 0.0
    %1525 = vmatpush1.msra.mxu0 0.0
    %1526 = vmatprep.subr.mxu0 0.0
    %1527 = vmatpush1.msra.mxu0 0.0
    %1528 = vmatprep.subr.mxu0 0.0
    %1529 = vmatpush1.msra.mxu0 0.0
    %1530 = vmatprep.subr.mxu0 0.0
    %1531 = vmatpush1.msra.mxu0 0.0
    %1532 = vmatprep.subr.mxu0 0.0
    %1533 = vmatpush1.msra.mxu0 0.0
    %1534 = vmatprep.subr.mxu0 0.0
    %1535 = vmatpush1.msra.mxu0 0.0
    %1536 = vmatprep.subr.mxu0 0.0
    %1537 = vmatpush1.msra.mxu0 0.0
    %1538 = vmatprep.subr.mxu0 0.0
    %1539 = vmatpush1.msra.mxu0 0.0
    %1540 = vmatprep.subr.mxu0 0.0
    %1541 = vmatpush1.msra.mxu0 0.0
    %1542 = vmatprep.subr.mxu0 0.0
    %1543 = vmatpush1.msra.mxu0 0.0
    %1544 = vmatprep.subr.mxu0 0.0
    %1545 = vmatpush1.msra.mxu0 0.0
    %1546 = vmatprep.subr.mxu0 0.0
    %1547 = vmatpush1.msra.mxu0 0.0
    %1548 = vmatprep.subr.mxu0 0.0
    %1549 = vmatpush1.msra.mxu0 0.0
    %1550 = vmatprep.mubr.f32.mxu0 0.0
    %1551 = vmatmul.mubr.f32.gmra.mrb[0].mxu0 %v1481
    %v1552 = vpop.f32.mrb[0].mxu0
    %v1553 = vadd.f32 0.0, %v1552
    %v1554 = vpop.f32.mrb[0].mxu0
    %1555 = vmatprep.mubr.f32.mxu0 0.0
    %1556 = vmatmul.mubr.f32.gmra.mrb[0].mxu0 %v1484
    %v1557 = vpop.f32.mrb[0].mxu0
    %v1558 = vadd.f32 0.0, %v1557
    %v1559 = vpop.f32.mrb[0].mxu0
    %1560 = vdwg.mxu0
    %v1562 = vsel %vm107, %v1299, 0
    %v1565 = vsel %vm107, %v1301, 0
    %1567 = vmatprep.subr.mxu0 0.0
    %1568 = vmatpush1.msra.mxu0 %v49
    %1569 = vmatprep.subr.mxu0 0.0
    %1570 = vmatpush1.msra.mxu0 %v50
    %1571 = vmatprep.subr.mxu0 0.0
    %1572 = vmatpush1.msra.mxu0 0.0
    %1573 = vmatprep.subr.mxu0 0.0
    %1574 = vmatpush1.msra.mxu0 0.0
    %1575 = vmatprep.subr.mxu0 0.0
    %1576 = vmatpush1.msra.mxu0 0.0
    %1577 = vmatprep.subr.mxu0 0.0
    %1578 = vmatpush1.msra.mxu0 0.0
    %1579 = vmatprep.subr.mxu0 0.0
    %1580 = vmatpush1.msra.mxu0 0.0
    %1581 = vmatprep.subr.mxu0 0.0
    %1582 = vmatpush1.msra.mxu0 0.0
    %1583 = vmatprep.subr.mxu0 0.0
    %1584 = vmatpush1.msra.mxu0 0.0
    %1585 = vmatprep.subr.mxu0 0.0
    %1586 = vmatpush1.msra.mxu0 0.0
    %1587 = vmatprep.subr.mxu0 0.0
    %1588 = vmatpush1.msra.mxu0 0.0
    %1589 = vmatprep.subr.mxu0 0.0
    %1590 = vmatpush1.msra.mxu0 0.0
    %1591 = vmatprep.subr.mxu0 0.0
    %1592 = vmatpush1.msra.mxu0 0.0
    %1593 = vmatprep.subr.mxu0 0.0
    %1594 = vmatpush1.msra.mxu0 0.0
    %1595 = vmatprep.subr.mxu0 0.0
    %1596 = vmatpush1.msra.mxu0 0.0
    %1597 = vmatprep.subr.mxu0 0.0
    %1598 = vmatpush1.msra.mxu0 0.0
    %1599 = vmatprep.subr.mxu0 0.0
    %1600 = vmatpush1.msra.mxu0 0.0
    %1601 = vmatprep.subr.mxu0 0.0
    %1602 = vmatpush1.msra.mxu0 0.0
    %1603 = vmatprep.subr.mxu0 0.0
    %1604 = vmatpush1.msra.mxu0 0.0
    %1605 = vmatprep.subr.mxu0 0.0
    %1606 = vmatpush1.msra.mxu0 0.0
    %1607 = vmatprep.subr.mxu0 0.0
    %1608 = vmatpush1.msra.mxu0 0.0
    %1609 = vmatprep.subr.mxu0 0.0
    %1610 = vmatpush1.msra.mxu0 0.0
    %1611 = vmatprep.subr.mxu0 0.0
    %1612 = vmatpush1.msra.mxu0 0.0
    %1613 = vmatprep.subr.mxu0 0.0
    %1614 = vmatpush1.msra.mxu0 0.0
    %1615 = vmatprep.subr.mxu0 0.0
    %1616 = vmatpush1.msra.mxu0 0.0
    %1617 = vmatprep.subr.mxu0 0.0
    %1618 = vmatpush1.msra.mxu0 0.0
    %1619 = vmatprep.subr.mxu0 0.0
    %1620 = vmatpush1.msra.mxu0 0.0
    %1621 = vmatprep.subr.mxu0 0.0
    %1622 = vmatpush1.msra.mxu0 0.0
    %1623 = vmatprep.subr.mxu0 0.0
    %1624 = vmatpush1.msra.mxu0 0.0
    %1625 = vmatprep.subr.mxu0 0.0
    %1626 = vmatpush1.msra.mxu0 0.0
    %1627 = vmatprep.subr.mxu0 0.0
    %1628 = vmatpush1.msra.mxu0 0.0
    %1629 = vmatprep.subr.mxu0 0.0
    %1630 = vmatpush1.msra.mxu0 0.0
    %1631 = vmatprep.mubr.f32.mxu0 0.0
    %1632 = vmatmul.mubr.f32.gmra.mrb[0].mxu0 %v1562
    %v1633 = vpop.f32.mrb[0].mxu0
    %v1634 = vadd.f32 0.0, %v1633
    %v1635 = vpop.f32.mrb[0].mxu0
    %1636 = vmatprep.mubr.f32.mxu0 0.0
    %1637 = vmatmul.mubr.f32.gmra.mrb[0].mxu0 %v1565
    %v1638 = vpop.f32.mrb[0].mxu0
    %v1639 = vadd.f32 0.0, %v1638
    %v1640 = vpop.f32.mrb[0].mxu0
    %1641 = vdwg.mxu0
    %v1643 = vsel %vm107, %v1303, 0
    %v1646 = vsel %vm107, %v1305, 0
    %1648 = vmatprep.subr.mxu0 0.0
    %1649 = vmatpush1.msra.mxu0 %v51
    %1650 = vmatprep.subr.mxu0 0.0
    %1651 = vmatpush1.msra.mxu0 %v52
    %1652 = vmatprep.subr.mxu0 0.0
    %1653 = vmatpush1.msra.mxu0 0.0
    %1654 = vmatprep.subr.mxu0 0.0
    %1655 = vmatpush1.msra.mxu0 0.0
    %1656 = vmatprep.subr.mxu0 0.0
    %1657 = vmatpush1.msra.mxu0 0.0
    %1658 = vmatprep.subr.mxu0 0.0
    %1659 = vmatpush1.msra.mxu0 0.0
    %1660 = vmatprep.subr.mxu0 0.0
    %1661 = vmatpush1.msra.mxu0 0.0
    %1662 = vmatprep.subr.mxu0 0.0
    %1663 = vmatpush1.msra.mxu0 0.0
    %1664 = vmatprep.subr.mxu0 0.0
    %1665 = vmatpush1.msra.mxu0 0.0
    %1666 = vmatprep.subr.mxu0 0.0
    %1667 = vmatpush1.msra.mxu0 0.0
    %1668 = vmatprep.subr.mxu0 0.0
    %1669 = vmatpush1.msra.mxu0 0.0
    %1670 = vmatprep.subr.mxu0 0.0
    %1671 = vmatpush1.msra.mxu0 0.0
    %1672 = vmatprep.subr.mxu0 0.0
    %1673 = vmatpush1.msra.mxu0 0.0
    %1674 = vmatprep.subr.mxu0 0.0
    %1675 = vmatpush1.msra.mxu0 0.0
    %1676 = vmatprep.subr.mxu0 0.0
    %1677 = vmatpush1.msra.mxu0 0.0
    %1678 = vmatprep.subr.mxu0 0.0
    %1679 = vmatpush1.msra.mxu0 0.0
    %1680 = vmatprep.subr.mxu0 0.0
    %1681 = vmatpush1.msra.mxu0 0.0
    %1682 = vmatprep.subr.mxu0 0.0
    %1683 = vmatpush1.msra.mxu0 0.0
    %1684 = vmatprep.subr.mxu0 0.0
    %1685 = vmatpush1.msra.mxu0 0.0
    %1686 = vmatprep.subr.mxu0 0.0
    %1687 = vmatpush1.msra.mxu0 0.0
    %1688 = vmatprep.subr.mxu0 0.0
    %1689 = vmatpush1.msra.mxu0 0.0
    %1690 = vmatprep.subr.mxu0 0.0
    %1691 = vmatpush1.msra.mxu0 0.0
    %1692 = vmatprep.subr.mxu0 0.0
    %1693 = vmatpush1.msra.mxu0 0.0
    %1694 = vmatprep.subr.mxu0 0.0
    %1695 = vmatpush1.msra.mxu0 0.0
    %1696 = vmatprep.subr.mxu0 0.0
    %1697 = vmatpush1.msra.mxu0 0.0
    %1698 = vmatprep.subr.mxu0 0.0
    %1699 = vmatpush1.msra.mxu0 0.0
    %1700 = vmatprep.subr.mxu0 0.0
    %1701 = vmatpush1.msra.mxu0 0.0
    %1702 = vmatprep.subr.mxu0 0.0
    %1703 = vmatpush1.msra.mxu0 0.0
    %1704 = vmatprep.subr.mxu0 0.0
    %1705 = vmatpush1.msra.mxu0 0.0
    %1706 = vmatprep.subr.mxu0 0.0
    %1707 = vmatpush1.msra.mxu0 0.0
    %1708 = vmatprep.subr.mxu0 0.0
    %1709 = vmatpush1.msra.mxu0 0.0
    %1710 = vmatprep.subr.mxu0 0.0
    %1711 = vmatpush1.msra.mxu0 0.0
    %1712 = vmatprep.mubr.f32.mxu0 0.0
    %1713 = vmatmul.mubr.f32.gmra.mrb[0].mxu0 %v1643
    %v1714 = vpop.f32.mrb[0].mxu0
    %v1715 = vadd.f32 0.0, %v1714
    %v1716 = vpop.f32.mrb[0].mxu0
    %1717 = vmatprep.mubr.f32.mxu0 0.0
    %1718 = vmatmul.mubr.f32.gmra.mrb[0].mxu0 %v1646
    %v1719 = vpop.f32.mrb[0].mxu0
    %v1720 = vadd.f32 0.0, %v1719
    %v1721 = vpop.f32.mrb[0].mxu0
    %1722 = vdwg.mxu0
    %v1724 = vsel %vm107, %v1307, 0
    %v1727 = vsel %vm107, %v1309, 0
    %1729 = vmatprep.subr.mxu0 0.0
    %1730 = vmatpush1.msra.mxu0 %v53
    %1731 = vmatprep.subr.mxu0 0.0
    %1732 = vmatpush1.msra.mxu0 %v54
    %1733 = vmatprep.subr.mxu0 0.0
    %1734 = vmatpush1.msra.mxu0 0.0
    %1735 = vmatprep.subr.mxu0 0.0
    %1736 = vmatpush1.msra.mxu0 0.0
    %1737 = vmatprep.subr.mxu0 0.0
    %1738 = vmatpush1.msra.mxu0 0.0
    %1739 = vmatprep.subr.mxu0 0.0
    %1740 = vmatpush1.msra.mxu0 0.0
    %1741 = vmatprep.subr.mxu0 0.0
    %1742 = vmatpush1.msra.mxu0 0.0
    %1743 = vmatprep.subr.mxu0 0.0
    %1744 = vmatpush1.msra.mxu0 0.0
    %1745 = vmatprep.subr.mxu0 0.0
    %1746 = vmatpush1.msra.mxu0 0.0
    %1747 = vmatprep.subr.mxu0 0.0
    %1748 = vmatpush1.msra.mxu0 0.0
    %1749 = vmatprep.subr.mxu0 0.0
    %1750 = vmatpush1.msra.mxu0 0.0
    %1751 = vmatprep.subr.mxu0 0.0
    %1752 = vmatpush1.msra.mxu0 0.0
    %1753 = vmatprep.subr.mxu0 0.0
    %1754 = vmatpush1.msra.mxu0 0.0
    %1755 = vmatprep.subr.mxu0 0.0
    %1756 = vmatpush1.msra.mxu0 0.0
    %1757 = vmatprep.subr.mxu0 0.0
    %1758 = vmatpush1.msra.mxu0 0.0
    %1759 = vmatprep.subr.mxu0 0.0
    %1760 = vmatpush1.msra.mxu0 0.0
    %1761 = vmatprep.subr.mxu0 0.0
    %1762 = vmatpush1.msra.mxu0 0.0
    %1763 = vmatprep.subr.mxu0 0.0
    %1764 = vmatpush1.msra.mxu0 0.0
    %1765 = vmatprep.subr.mxu0 0.0
    %1766 = vmatpush1.msra.mxu0 0.0
    %1767 = vmatprep.subr.mxu0 0.0
    %1768 = vmatpush1.msra.mxu0 0.0
    %1769 = vmatprep.subr.mxu0 0.0
    %1770 = vmatpush1.msra.mxu0 0.0
    %1771 = vmatprep.subr.mxu0 0.0
    %1772 = vmatpush1.msra.mxu0 0.0
    %1773 = vmatprep.subr.mxu0 0.0
    %1774 = vmatpush1.msra.mxu0 0.0
    %1775 = vmatprep.subr.mxu0 0.0
    %1776 = vmatpush1.msra.mxu0 0.0
    %1777 = vmatprep.subr.mxu0 0.0
    %1778 = vmatpush1.msra.mxu0 0.0
    %1779 = vmatprep.subr.mxu0 0.0
    %1780 = vmatpush1.msra.mxu0 0.0
    %1781 = vmatprep.subr.mxu0 0.0
    %1782 = vmatpush1.msra.mxu0 0.0
    %1783 = vmatprep.subr.mxu0 0.0
    %1784 = vmatpush1.msra.mxu0 0.0
    %1785 = vmatprep.subr.mxu0 0.0
    %1786 = vmatpush1.msra.mxu0 0.0
    %1787 = vmatprep.subr.mxu0 0.0
    %1788 = vmatpush1.msra.mxu0 0.0
    %1789 = vmatprep.subr.mxu0 0.0
    %1790 = vmatpush1.msra.mxu0 0.0
    %1791 = vmatprep.subr.mxu0 0.0
    %1792 = vmatpush1.msra.mxu0 0.0
    %1793 = vmatprep.mubr.f32.mxu0 0.0
    %1794 = vmatmul.mubr.f32.gmra.mrb[0].mxu0 %v1724
    %v1795 = vpop.f32.mrb[0].mxu0
    %v1796 = vadd.f32 0.0, %v1795
    %v1797 = vpop.f32.mrb[0].mxu0
    %1798 = vmatprep.mubr.f32.mxu0 0.0
    %1799 = vmatmul.mubr.f32.gmra.mrb[0].mxu0 %v1727
    %v1800 = vpop.f32.mrb[0].mxu0
    %v1801 = vadd.f32 0.0, %v1800
    %v1802 = vpop.f32.mrb[0].mxu0
    %1803 = vdwg.mxu0
    %v1805 = vsel %vm107, %v1311, 0
    %v1808 = vsel %vm107, %v1313, 0
    %1810 = vmatprep.subr.mxu0 0.0
    %1811 = vmatpush1.msra.mxu0 %v55
    %1812 = vmatprep.subr.mxu0 0.0
    %1813 = vmatpush1.msra.mxu0 %v56
    %1814 = vmatprep.subr.mxu0 0.0
    %1815 = vmatpush1.msra.mxu0 0.0
    %1816 = vmatprep.subr.mxu0 0.0
    %1817 = vmatpush1.msra.mxu0 0.0
    %1818 = vmatprep.subr.mxu0 0.0
    %1819 = vmatpush1.msra.mxu0 0.0
    %1820 = vmatprep.subr.mxu0 0.0
    %1821 = vmatpush1.msra.mxu0 0.0
    %1822 = vmatprep.subr.mxu0 0.0
    %1823 = vmatpush1.msra.mxu0 0.0
    %1824 = vmatprep.subr.mxu0 0.0
    %1825 = vmatpush1.msra.mxu0 0.0
    %1826 = vmatprep.subr.mxu0 0.0
    %1827 = vmatpush1.msra.mxu0 0.0
    %1828 = vmatprep.subr.mxu0 0.0
    %1829 = vmatpush1.msra.mxu0 0.0
    %1830 = vmatprep.subr.mxu0 0.0
    %1831 = vmatpush1.msra.mxu0 0.0
    %1832 = vmatprep.subr.mxu0 0.0
    %1833 = vmatpush1.msra.mxu0 0.0
    %1834 = vmatprep.subr.mxu0 0.0
    %1835 = vmatpush1.msra.mxu0 0.0
    %1836 = vmatprep.subr.mxu0 0.0
    %1837 = vmatpush1.msra.mxu0 0.0
    %1838 = vmatprep.subr.mxu0 0.0
    %1839 = vmatpush1.msra.mxu0 0.0
    %1840 = vmatprep.subr.mxu0 0.0
    %1841 = vmatpush1.msra.mxu0 0.0
    %1842 = vmatprep.subr.mxu0 0.0
    %1843 = vmatpush1.msra.mxu0 0.0
    %1844 = vmatprep.subr.mxu0 0.0
    %1845 = vmatpush1.msra.mxu0 0.0
    %1846 = vmatprep.subr.mxu0 0.0
    %1847 = vmatpush1.msra.mxu0 0.0
    %1848 = vmatprep.subr.mxu0 0.0
    %1849 = vmatpush1.msra.mxu0 0.0
    %1850 = vmatprep.subr.mxu0 0.0
    %1851 = vmatpush1.msra.mxu0 0.0
    %1852 = vmatprep.subr.mxu0 0.0
    %1853 = vmatpush1.msra.mxu0 0.0
    %1854 = vmatprep.subr.mxu0 0.0
    %1855 = vmatpush1.msra.mxu0 0.0
    %1856 = vmatprep.subr.mxu0 0.0
    %1857 = vmatpush1.msra.mxu0 0.0
    %1858 = vmatprep.subr.mxu0 0.0
    %1859 = vmatpush1.msra.mxu0 0.0
    %1860 = vmatprep.subr.mxu0 0.0
    %1861 = vmatpush1.msra.mxu0 0.0
    %1862 = vmatprep.subr.mxu0 0.0
    %1863 = vmatpush1.msra.mxu0 0.0
    %1864 = vmatprep.subr.mxu0 0.0
    %1865 = vmatpush1.msra.mxu0 0.0
    %1866 = vmatprep.subr.mxu0 0.0
    %1867 = vmatpush1.msra.mxu0 0.0
    %1868 = vmatprep.subr.mxu0 0.0
    %1869 = vmatpush1.msra.mxu0 0.0
    %1870 = vmatprep.subr.mxu0 0.0
    %1871 = vmatpush1.msra.mxu0 0.0
    %1872 = vmatprep.subr.mxu0 0.0
    %1873 = vmatpush1.msra.mxu0 0.0
    %1874 = vmatprep.mubr.f32.mxu0 0.0
    %1875 = vmatmul.mubr.f32.gmra.mrb[0].mxu0 %v1805
    %v1876 = vpop.f32.mrb[0].mxu0
    %v1877 = vadd.f32 0.0, %v1876
    %v1878 = vpop.f32.mrb[0].mxu0
    %1879 = vmatprep.mubr.f32.mxu0 0.0
    %1880 = vmatmul.mubr.f32.gmra.mrb[0].mxu0 %v1808
    %v1881 = vpop.f32.mrb[0].mxu0
    %v1882 = vadd.f32 0.0, %v1881
    %v1883 = vpop.f32.mrb[0].mxu0
    %1884 = vdwg.mxu0
    %v1886 = vsel %vm107, %v1315, 0
    %v1889 = vsel %vm107, %v1317, 0
    %1891 = vmatprep.subr.mxu0 0.0
    %1892 = vmatpush1.msra.mxu0 %v57
    %1893 = vmatprep.subr.mxu0 0.0
    %1894 = vmatpush1.msra.mxu0 %v58
    %1895 = vmatprep.subr.mxu0 0.0
    %1896 = vmatpush1.msra.mxu0 0.0
    %1897 = vmatprep.subr.mxu0 0.0
    %1898 = vmatpush1.msra.mxu0 0.0
    %1899 = vmatprep.subr.mxu0 0.0
    %1900 = vmatpush1.msra.mxu0 0.0
    %1901 = vmatprep.subr.mxu0 0.0
    %1902 = vmatpush1.msra.mxu0 0.0
    %1903 = vmatprep.subr.mxu0 0.0
    %1904 = vmatpush1.msra.mxu0 0.0
    %1905 = vmatprep.subr.mxu0 0.0
    %1906 = vmatpush1.msra.mxu0 0.0
    %1907 = vmatprep.subr.mxu0 0.0
    %1908 = vmatpush1.msra.mxu0 0.0
    %1909 = vmatprep.subr.mxu0 0.0
    %1910 = vmatpush1.msra.mxu0 0.0
    %1911 = vmatprep.subr.mxu0 0.0
    %1912 = vmatpush1.msra.mxu0 0.0
    %1913 = vmatprep.subr.mxu0 0.0
    %1914 = vmatpush1.msra.mxu0 0.0
    %1915 = vmatprep.subr.mxu0 0.0
    %1916 = vmatpush1.msra.mxu0 0.0
    %1917 = vmatprep.subr.mxu0 0.0
    %1918 = vmatpush1.msra.mxu0 0.0
    %1919 = vmatprep.subr.mxu0 0.0
    %1920 = vmatpush1.msra.mxu0 0.0
    %1921 = vmatprep.subr.mxu0 0.0
    %1922 = vmatpush1.msra.mxu0 0.0
    %1923 = vmatprep.subr.mxu0 0.0
    %1924 = vmatpush1.msra.mxu0 0.0
    %1925 = vmatprep.subr.mxu0 0.0
    %1926 = vmatpush1.msra.mxu0 0.0
    %1927 = vmatprep.subr.mxu0 0.0
    %1928 = vmatpush1.msra.mxu0 0.0
    %1929 = vmatprep.subr.mxu0 0.0
    %1930 = vmatpush1.msra.mxu0 0.0
    %1931 = vmatprep.subr.mxu0 0.0
    %1932 = vmatpush1.msra.mxu0 0.0
    %1933 = vmatprep.subr.mxu0 0.0
    %1934 = vmatpush1.msra.mxu0 0.0
    %1935 = vmatprep.subr.mxu0 0.0
    %1936 = vmatpush1.msra.mxu0 0.0
    %1937 = vmatprep.subr.mxu0 0.0
    %1938 = vmatpush1.msra.mxu0 0.0
    %1939 = vmatprep.subr.mxu0 0.0
    %1940 = vmatpush1.msra.mxu0 0.0
    %1941 = vmatprep.subr.mxu0 0.0
    %1942 = vmatpush1.msra.mxu0 0.0
    %1943 = vmatprep.subr.mxu0 0.0
    %1944 = vmatpush1.msra.mxu0 0.0
    %1945 = vmatprep.subr.mxu0 0.0
    %1946 = vmatpush1.msra.mxu0 0.0
    %1947 = vmatprep.subr.mxu0 0.0
    %1948 = vmatpush1.msra.mxu0 0.0
    %1949 = vmatprep.subr.mxu0 0.0
    %1950 = vmatpush1.msra.mxu0 0.0
    %1951 = vmatprep.subr.mxu0 0.0
    %1952 = vmatpush1.msra.mxu0 0.0
    %1953 = vmatprep.subr.mxu0 0.0
    %1954 = vmatpush1.msra.mxu0 0.0
    %1955 = vmatprep.mubr.f32.mxu0 0.0
    %1956 = vmatmul.mubr.f32.gmra.mrb[0].mxu0 %v1886
    %v1957 = vpop.f32.mrb[0].mxu0
    %v1958 = vadd.f32 0.0, %v1957
    %v1959 = vpop.f32.mrb[0].mxu0
    %1960 = vmatprep.mubr.f32.mxu0 0.0
    %1961 = vmatmul.mubr.f32.gmra.mrb[0].mxu0 %v1889
    %v1962 = vpop.f32.mrb[0].mxu0
    %v1963 = vadd.f32 0.0, %v1962
    %v1964 = vpop.f32.mrb[0].mxu0
    %1965 = vdwg.mxu0
    %1966 = vst.msk [vmem:[%s2] sm:$0xff] %vm107, %v1391
    %1967 = vst.msk [vmem:[%s2 + $0x8] sm:$0xff] %vm107, %v1396
    %1968 = vst.msk [vmem:[%s2 + $0x10] sm:$0xff] %vm107, %v1472
    %1969 = vst.msk [vmem:[%s2 + $0x18] sm:$0xff] %vm107, %v1477
    %1970 = vst.msk [vmem:[%s2 + $0x20] sm:$0xff] %vm107, %v1553
    %1971 = vst.msk [vmem:[%s2 + $0x28] sm:$0xff] %vm107, %v1558
    %1972 = vst.msk [vmem:[%s2 + $0x30] sm:$0xff] %vm107, %v1634
    %1973 = vst.msk [vmem:[%s2 + $0x38] sm:$0xff] %vm107, %v1639
    %1974 = vst.msk [vmem:[%s2 + $0x40] sm:$0xff] %vm107, %v1715
    %1975 = vst.msk [vmem:[%s2 + $0x48] sm:$0xff] %vm107, %v1720
    %1976 = vst.msk [vmem:[%s2 + $0x50] sm:$0xff] %vm107, %v1796
    %1977 = vst.msk [vmem:[%s2 + $0x58] sm:$0xff] %vm107, %v1801
    %1978 = vst.msk [vmem:[%s2 + $0x60] sm:$0xff] %vm107, %v1877
    %1979 = vst.msk [vmem:[%s2 + $0x68] sm:$0xff] %vm107, %v1882
    %1980 = vst.msk [vmem:[%s2 + $0x70] sm:$0xff] %vm107, %v1958
    %1981 = vst.msk [vmem:[%s2 + $0x78] sm:$0xff] %vm107, %v1963
    %v1983 = vsel %vm107, %v59, 0
    %v1986 = vsel %vm107, %v60, 0
    %1988 = vmatprep.subr.mxu0 0.0
    %1989 = vmatpush1.xpose.msra.mxu0 %v1983
    %1990 = vmatprep.subr.mxu0 0.0
    %1991 = vmatpush1.xpose.msra.mxu0 %v1986
    %1992 = vmatprep.subr.mxu0 0.0
    %1993 = vmatpush1.xpose.msra.mxu0 0.0
    %1994 = vmatprep.subr.mxu0 0.0
    %1995 = vmatpush1.xpose.msra.mxu0 0.0
    %1996 = vmatprep.subr.mxu0 0.0
    %1997 = vmatpush1.xpose.msra.mxu0 0.0
    %1998 = vmatprep.subr.mxu0 0.0
    %1999 = vmatpush1.xpose.msra.mxu0 0.0
    %2000 = vmatprep.subr.mxu0 0.0
    %2001 = vmatpush1.xpose.msra.mxu0 0.0
    %2002 = vmatprep.subr.mxu0 0.0
    %2003 = vmatpush1.xpose.msra.mxu0 0.0
    %2004 = vmatprep.subr.mxu0 0.0
    %2005 = vmatpush1.xpose.msra.mxu0 0.0
    %2006 = vmatprep.subr.mxu0 0.0
    %2007 = vmatpush1.xpose.msra.mxu0 0.0
    %2008 = vmatprep.subr.mxu0 0.0
    %2009 = vmatpush1.xpose.msra.mxu0 0.0
    %2010 = vmatprep.subr.mxu0 0.0
    %2011 = vmatpush1.xpose.msra.mxu0 0.0
    %2012 = vmatprep.subr.mxu0 0.0
    %2013 = vmatpush1.xpose.msra.mxu0 0.0
    %2014 = vmatprep.subr.mxu0 0.0
    %2015 = vmatpush1.xpose.msra.mxu0 0.0
    %2016 = vmatprep.subr.mxu0 0.0
    %2017 = vmatpush1.xpose.msra.mxu0 0.0
    %2018 = vmatprep.subr.mxu0 0.0
    %2019 = vmatpush1.xpose.msra.mxu0 0.0
    %2020 = vmatprep.subr.mxu0 0.0
    %2021 = vmatpush1.xpose.msra.mxu0 0.0
    %2022 = vmatprep.subr.mxu0 0.0
    %2023 = vmatpush1.xpose.msra.mxu0 0.0
    %2024 = vmatprep.subr.mxu0 0.0
    %2025 = vmatpush1.xpose.msra.mxu0 0.0
    %2026 = vmatprep.subr.mxu0 0.0
    %2027 = vmatpush1.xpose.msra.mxu0 0.0
    %2028 = vmatprep.subr.mxu0 0.0
    %2029 = vmatpush1.xpose.msra.mxu0 0.0
    %2030 = vmatprep.subr.mxu0 0.0
    %2031 = vmatpush1.xpose.msra.mxu0 0.0
    %2032 = vmatprep.subr.mxu0 0.0
    %2033 = vmatpush1.xpose.msra.mxu0 0.0
    %2034 = vmatprep.subr.mxu0 0.0
    %2035 = vmatpush1.xpose.msra.mxu0 0.0
    %2036 = vmatprep.subr.mxu0 0.0
    %2037 = vmatpush1.xpose.msra.mxu0 0.0
    %2038 = vmatprep.subr.mxu0 0.0
    %2039 = vmatpush1.xpose.msra.mxu0 0.0
    %2040 = vmatprep.subr.mxu0 0.0
    %2041 = vmatpush1.xpose.msra.mxu0 0.0
    %2042 = vmatprep.subr.mxu0 0.0
    %2043 = vmatpush1.xpose.msra.mxu0 0.0
    %2044 = vmatprep.subr.mxu0 0.0
    %2045 = vmatpush1.xpose.msra.mxu0 0.0
    %2046 = vmatprep.subr.mxu0 0.0
    %2047 = vmatpush1.xpose.msra.mxu0 0.0
    %2048 = vmatprep.subr.mxu0 0.0
    %2049 = vmatpush1.xpose.msra.mxu0 0.0
    %2050 = vmatprep.subr.mxu0 0.0
    %2051 = vmatpush1.xpose.msra.mxu0 0.0
    %2052 = vmatprep.mubr.f32.mxu0 0.0
    %2053 = vmatmul.mubr.f32.gmra.mrb[0].mxu0 %v1983
    %v2054 = vpop.f32.mrb[0].mxu0
    %v2055 = vadd.f32 0.0, %v2054
    %v2056 = vpop.f32.mrb[0].mxu0
    %2057 = vmatprep.mubr.f32.mxu0 0.0
    %2058 = vmatmul.mubr.f32.gmra.mrb[0].mxu0 %v1986
    %v2059 = vpop.f32.mrb[0].mxu0
    %v2060 = vadd.f32 0.0, %v2059
    %v2061 = vpop.f32.mrb[0].mxu0
    %2062 = vdwg.mxu0
    %v2064 = vsel %vm107, %v61, 0
    %v2067 = vsel %vm107, %v62, 0
    %2069 = vmatprep.subr.mxu0 0.0
    %2070 = vmatpush1.xpose.msra.mxu0 %v2064
    %2071 = vmatprep.subr.mxu0 0.0
    %2072 = vmatpush1.xpose.msra.mxu0 %v2067
    %2073 = vmatprep.subr.mxu0 0.0
    %2074 = vmatpush1.xpose.msra.mxu0 0.0
    %2075 = vmatprep.subr.mxu0 0.0
    %2076 = vmatpush1.xpose.msra.mxu0 0.0
    %2077 = vmatprep.subr.mxu0 0.0
    %2078 = vmatpush1.xpose.msra.mxu0 0.0
    %2079 = vmatprep.subr.mxu0 0.0
    %2080 = vmatpush1.xpose.msra.mxu0 0.0
    %2081 = vmatprep.subr.mxu0 0.0
    %2082 = vmatpush1.xpose.msra.mxu0 0.0
    %2083 = vmatprep.subr.mxu0 0.0
    %2084 = vmatpush1.xpose.msra.mxu0 0.0
    %2085 = vmatprep.subr.mxu0 0.0
    %2086 = vmatpush1.xpose.msra.mxu0 0.0
    %2087 = vmatprep.subr.mxu0 0.0
    %2088 = vmatpush1.xpose.msra.mxu0 0.0
    %2089 = vmatprep.subr.mxu0 0.0
    %2090 = vmatpush1.xpose.msra.mxu0 0.0
    %2091 = vmatprep.subr.mxu0 0.0
    %2092 = vmatpush1.xpose.msra.mxu0 0.0
    %2093 = vmatprep.subr.mxu0 0.0
    %2094 = vmatpush1.xpose.msra.mxu0 0.0
    %2095 = vmatprep.subr.mxu0 0.0
    %2096 = vmatpush1.xpose.msra.mxu0 0.0
    %2097 = vmatprep.subr.mxu0 0.0
    %2098 = vmatpush1.xpose.msra.mxu0 0.0
    %2099 = vmatprep.subr.mxu0 0.0
    %2100 = vmatpush1.xpose.msra.mxu0 0.0
    %2101 = vmatprep.subr.mxu0 0.0
    %2102 = vmatpush1.xpose.msra.mxu0 0.0
    %2103 = vmatprep.subr.mxu0 0.0
    %2104 = vmatpush1.xpose.msra.mxu0 0.0
    %2105 = vmatprep.subr.mxu0 0.0
    %2106 = vmatpush1.xpose.msra.mxu0 0.0
    %2107 = vmatprep.subr.mxu0 0.0
    %2108 = vmatpush1.xpose.msra.mxu0 0.0
    %2109 = vmatprep.subr.mxu0 0.0
    %2110 = vmatpush1.xpose.msra.mxu0 0.0
    %2111 = vmatprep.subr.mxu0 0.0
    %2112 = vmatpush1.xpose.msra.mxu0 0.0
    %2113 = vmatprep.subr.mxu0 0.0
    %2114 = vmatpush1.xpose.msra.mxu0 0.0
    %2115 = vmatprep.subr.mxu0 0.0
    %2116 = vmatpush1.xpose.msra.mxu0 0.0
    %2117 = vmatprep.subr.mxu0 0.0
    %2118 = vmatpush1.xpose.msra.mxu0 0.0
    %2119 = vmatprep.subr.mxu0 0.0
    %2120 = vmatpush1.xpose.msra.mxu0 0.0
    %2121 = vmatprep.subr.mxu0 0.0
    %2122 = vmatpush1.xpose.msra.mxu0 0.0
    %2123 = vmatprep.subr.mxu0 0.0
    %2124 = vmatpush1.xpose.msra.mxu0 0.0
    %2125 = vmatprep.subr.mxu0 0.0
    %2126 = vmatpush1.xpose.msra.mxu0 0.0
    %2127 = vmatprep.subr.mxu0 0.0
    %2128 = vmatpush1.xpose.msra.mxu0 0.0
    %2129 = vmatprep.subr.mxu0 0.0
    %2130 = vmatpush1.xpose.msra.mxu0 0.0
    %2131 = vmatprep.subr.mxu0 0.0
    %2132 = vmatpush1.xpose.msra.mxu0 0.0
    %2133 = vmatprep.mubr.f32.mxu0 0.0
    %2134 = vmatmul.mubr.f32.gmra.mrb[0].mxu0 %v2064
    %v2135 = vpop.f32.mrb[0].mxu0
    %v2136 = vadd.f32 0.0, %v2135
    %v2137 = vpop.f32.mrb[0].mxu0
    %2138 = vmatprep.mubr.f32.mxu0 0.0
    %2139 = vmatmul.mubr.f32.gmra.mrb[0].mxu0 %v2067
    %v2140 = vpop.f32.mrb[0].mxu0
    %v2141 = vadd.f32 0.0, %v2140
    %v2142 = vpop.f32.mrb[0].mxu0
    %2143 = vdwg.mxu0
    %v2145 = vsel %vm107, %v63, 0
    %v2148 = vsel %vm107, %v64, 0
    %2150 = vmatprep.subr.mxu0 0.0
    %2151 = vmatpush1.xpose.msra.mxu0 %v2145
    %2152 = vmatprep.subr.mxu0 0.0
    %2153 = vmatpush1.xpose.msra.mxu0 %v2148
    %2154 = vmatprep.subr.mxu0 0.0
    %2155 = vmatpush1.xpose.msra.mxu0 0.0
    %2156 = vmatprep.subr.mxu0 0.0
    %2157 = vmatpush1.xpose.msra.mxu0 0.0
    %2158 = vmatprep.subr.mxu0 0.0
    %2159 = vmatpush1.xpose.msra.mxu0 0.0
    %2160 = vmatprep.subr.mxu0 0.0
    %2161 = vmatpush1.xpose.msra.mxu0 0.0
    %2162 = vmatprep.subr.mxu0 0.0
    %2163 = vmatpush1.xpose.msra.mxu0 0.0
    %2164 = vmatprep.subr.mxu0 0.0
    %2165 = vmatpush1.xpose.msra.mxu0 0.0
    %2166 = vmatprep.subr.mxu0 0.0
    %2167 = vmatpush1.xpose.msra.mxu0 0.0
    %2168 = vmatprep.subr.mxu0 0.0
    %2169 = vmatpush1.xpose.msra.mxu0 0.0
    %2170 = vmatprep.subr.mxu0 0.0
    %2171 = vmatpush1.xpose.msra.mxu0 0.0
    %2172 = vmatprep.subr.mxu0 0.0
    %2173 = vmatpush1.xpose.msra.mxu0 0.0
    %2174 = vmatprep.subr.mxu0 0.0
    %2175 = vmatpush1.xpose.msra.mxu0 0.0
    %2176 = vmatprep.subr.mxu0 0.0
    %2177 = vmatpush1.xpose.msra.mxu0 0.0
    %2178 = vmatprep.subr.mxu0 0.0
    %2179 = vmatpush1.xpose.msra.mxu0 0.0
    %2180 = vmatprep.subr.mxu0 0.0
    %2181 = vmatpush1.xpose.msra.mxu0 0.0
    %2182 = vmatprep.subr.mxu0 0.0
    %2183 = vmatpush1.xpose.msra.mxu0 0.0
    %2184 = vmatprep.subr.mxu0 0.0
    %2185 = vmatpush1.xpose.msra.mxu0 0.0
    %2186 = vmatprep.subr.mxu0 0.0
    %2187 = vmatpush1.xpose.msra.mxu0 0.0
    %2188 = vmatprep.subr.mxu0 0.0
    %2189 = vmatpush1.xpose.msra.mxu0 0.0
    %2190 = vmatprep.subr.mxu0 0.0
    %2191 = vmatpush1.xpose.msra.mxu0 0.0
    %2192 = vmatprep.subr.mxu0 0.0
    %2193 = vmatpush1.xpose.msra.mxu0 0.0
    %2194 = vmatprep.subr.mxu0 0.0
    %2195 = vmatpush1.xpose.msra.mxu0 0.0
    %2196 = vmatprep.subr.mxu0 0.0
    %2197 = vmatpush1.xpose.msra.mxu0 0.0
    %2198 = vmatprep.subr.mxu0 0.0
    %2199 = vmatpush1.xpose.msra.mxu0 0.0
    %2200 = vmatprep.subr.mxu0 0.0
    %2201 = vmatpush1.xpose.msra.mxu0 0.0
    %2202 = vmatprep.subr.mxu0 0.0
    %2203 = vmatpush1.xpose.msra.mxu0 0.0
    %2204 = vmatprep.subr.mxu0 0.0
    %2205 = vmatpush1.xpose.msra.mxu0 0.0
    %2206 = vmatprep.subr.mxu0 0.0
    %2207 = vmatpush1.xpose.msra.mxu0 0.0
    %2208 = vmatprep.subr.mxu0 0.0
    %2209 = vmatpush1.xpose.msra.mxu0 0.0
    %2210 = vmatprep.subr.mxu0 0.0
    %2211 = vmatpush1.xpose.msra.mxu0 0.0
    %2212 = vmatprep.subr.mxu0 0.0
    %2213 = vmatpush1.xpose.msra.mxu0 0.0
    %2214 = vmatprep.mubr.f32.mxu0 0.0
    %2215 = vmatmul.mubr.f32.gmra.mrb[0].mxu0 %v2145
    %v2216 = vpop.f32.mrb[0].mxu0
    %v2217 = vadd.f32 0.0, %v2216
    %v2218 = vpop.f32.mrb[0].mxu0
    %2219 = vmatprep.mubr.f32.mxu0 0.0
    %2220 = vmatmul.mubr.f32.gmra.mrb[0].mxu0 %v2148
    %v2221 = vpop.f32.mrb[0].mxu0
    %v2222 = vadd.f32 0.0, %v2221
    %v2223 = vpop.f32.mrb[0].mxu0
    %2224 = vdwg.mxu0
    %v2226 = vsel %vm107, %v65, 0
    %v2229 = vsel %vm107, %v66, 0
    %2231 = vmatprep.subr.mxu0 0.0
    %2232 = vmatpush1.xpose.msra.mxu0 %v2226
    %2233 = vmatprep.subr.mxu0 0.0
    %2234 = vmatpush1.xpose.msra.mxu0 %v2229
    %2235 = vmatprep.subr.mxu0 0.0
    %2236 = vmatpush1.xpose.msra.mxu0 0.0
    %2237 = vmatprep.subr.mxu0 0.0
    %2238 = vmatpush1.xpose.msra.mxu0 0.0
    %2239 = vmatprep.subr.mxu0 0.0
    %2240 = vmatpush1.xpose.msra.mxu0 0.0
    %2241 = vmatprep.subr.mxu0 0.0
    %2242 = vmatpush1.xpose.msra.mxu0 0.0
    %2243 = vmatprep.subr.mxu0 0.0
    %2244 = vmatpush1.xpose.msra.mxu0 0.0
    %2245 = vmatprep.subr.mxu0 0.0
    %2246 = vmatpush1.xpose.msra.mxu0 0.0
    %2247 = vmatprep.subr.mxu0 0.0
    %2248 = vmatpush1.xpose.msra.mxu0 0.0
    %2249 = vmatprep.subr.mxu0 0.0
    %2250 = vmatpush1.xpose.msra.mxu0 0.0
    %2251 = vmatprep.subr.mxu0 0.0
    %2252 = vmatpush1.xpose.msra.mxu0 0.0
    %2253 = vmatprep.subr.mxu0 0.0
    %2254 = vmatpush1.xpose.msra.mxu0 0.0
    %2255 = vmatprep.subr.mxu0 0.0
    %2256 = vmatpush1.xpose.msra.mxu0 0.0
    %2257 = vmatprep.subr.mxu0 0.0
    %2258 = vmatpush1.xpose.msra.mxu0 0.0
    %2259 = vmatprep.subr.mxu0 0.0
    %2260 = vmatpush1.xpose.msra.mxu0 0.0
    %2261 = vmatprep.subr.mxu0 0.0
    %2262 = vmatpush1.xpose.msra.mxu0 0.0
    %2263 = vmatprep.subr.mxu0 0.0
    %2264 = vmatpush1.xpose.msra.mxu0 0.0
    %2265 = vmatprep.subr.mxu0 0.0
    %2266 = vmatpush1.xpose.msra.mxu0 0.0
    %2267 = vmatprep.subr.mxu0 0.0
    %2268 = vmatpush1.xpose.msra.mxu0 0.0
    %2269 = vmatprep.subr.mxu0 0.0
    %2270 = vmatpush1.xpose.msra.mxu0 0.0
    %2271 = vmatprep.subr.mxu0 0.0
    %2272 = vmatpush1.xpose.msra.mxu0 0.0
    %2273 = vmatprep.subr.mxu0 0.0
    %2274 = vmatpush1.xpose.msra.mxu0 0.0
    %2275 = vmatprep.subr.mxu0 0.0
    %2276 = vmatpush1.xpose.msra.mxu0 0.0
    %2277 = vmatprep.subr.mxu0 0.0
    %2278 = vmatpush1.xpose.msra.mxu0 0.0
    %2279 = vmatprep.subr.mxu0 0.0
    %2280 = vmatpush1.xpose.msra.mxu0 0.0
    %2281 = vmatprep.subr.mxu0 0.0
    %2282 = vmatpush1.xpose.msra.mxu0 0.0
    %2283 = vmatprep.subr.mxu0 0.0
    %2284 = vmatpush1.xpose.msra.mxu0 0.0
    %2285 = vmatprep.subr.mxu0 0.0
    %2286 = vmatpush1.xpose.msra.mxu0 0.0
    %2287 = vmatprep.subr.mxu0 0.0
    %2288 = vmatpush1.xpose.msra.mxu0 0.0
    %2289 = vmatprep.subr.mxu0 0.0
    %2290 = vmatpush1.xpose.msra.mxu0 0.0
    %2291 = vmatprep.subr.mxu0 0.0
    %2292 = vmatpush1.xpose.msra.mxu0 0.0
    %2293 = vmatprep.subr.mxu0 0.0
    %2294 = vmatpush1.xpose.msra.mxu0 0.0
    %2295 = vmatprep.mubr.f32.mxu0 0.0
    %2296 = vmatmul.mubr.f32.gmra.mrb[0].mxu0 %v2226
    %v2297 = vpop.f32.mrb[0].mxu0
    %v2298 = vadd.f32 0.0, %v2297
    %v2299 = vpop.f32.mrb[0].mxu0
    %2300 = vmatprep.mubr.f32.mxu0 0.0
    %2301 = vmatmul.mubr.f32.gmra.mrb[0].mxu0 %v2229
    %v2302 = vpop.f32.mrb[0].mxu0
    %v2303 = vadd.f32 0.0, %v2302
    %v2304 = vpop.f32.mrb[0].mxu0
    %2305 = vdwg.mxu0
    %v2307 = vsel %vm107, %v67, 0
    %v2310 = vsel %vm107, %v68, 0
    %2312 = vmatprep.subr.mxu0 0.0
    %2313 = vmatpush1.xpose.msra.mxu0 %v2307
    %2314 = vmatprep.subr.mxu0 0.0
    %2315 = vmatpush1.xpose.msra.mxu0 %v2310
    %2316 = vmatprep.subr.mxu0 0.0
    %2317 = vmatpush1.xpose.msra.mxu0 0.0
    %2318 = vmatprep.subr.mxu0 0.0
    %2319 = vmatpush1.xpose.msra.mxu0 0.0
    %2320 = vmatprep.subr.mxu0 0.0
    %2321 = vmatpush1.xpose.msra.mxu0 0.0
    %2322 = vmatprep.subr.mxu0 0.0
    %2323 = vmatpush1.xpose.msra.mxu0 0.0
    %2324 = vmatprep.subr.mxu0 0.0
    %2325 = vmatpush1.xpose.msra.mxu0 0.0
    %2326 = vmatprep.subr.mxu0 0.0
    %2327 = vmatpush1.xpose.msra.mxu0 0.0
    %2328 = vmatprep.subr.mxu0 0.0
    %2329 = vmatpush1.xpose.msra.mxu0 0.0
    %2330 = vmatprep.subr.mxu0 0.0
    %2331 = vmatpush1.xpose.msra.mxu0 0.0
    %2332 = vmatprep.subr.mxu0 0.0
    %2333 = vmatpush1.xpose.msra.mxu0 0.0
    %2334 = vmatprep.subr.mxu0 0.0
    %2335 = vmatpush1.xpose.msra.mxu0 0.0
    %2336 = vmatprep.subr.mxu0 0.0
    %2337 = vmatpush1.xpose.msra.mxu0 0.0
    %2338 = vmatprep.subr.mxu0 0.0
    %2339 = vmatpush1.xpose.msra.mxu0 0.0
    %2340 = vmatprep.subr.mxu0 0.0
    %2341 = vmatpush1.xpose.msra.mxu0 0.0
    %2342 = vmatprep.subr.mxu0 0.0
    %2343 = vmatpush1.xpose.msra.mxu0 0.0
    %2344 = vmatprep.subr.mxu0 0.0
    %2345 = vmatpush1.xpose.msra.mxu0 0.0
    %2346 = vmatprep.subr.mxu0 0.0
    %2347 = vmatpush1.xpose.msra.mxu0 0.0
    %2348 = vmatprep.subr.mxu0 0.0
    %2349 = vmatpush1.xpose.msra.mxu0 0.0
    %2350 = vmatprep.subr.mxu0 0.0
    %2351 = vmatpush1.xpose.msra.mxu0 0.0
    %2352 = vmatprep.subr.mxu0 0.0
    %2353 = vmatpush1.xpose.msra.mxu0 0.0
    %2354 = vmatprep.subr.mxu0 0.0
    %2355 = vmatpush1.xpose.msra.mxu0 0.0
    %2356 = vmatprep.subr.mxu0 0.0
    %2357 = vmatpush1.xpose.msra.mxu0 0.0
    %2358 = vmatprep.subr.mxu0 0.0
    %2359 = vmatpush1.xpose.msra.mxu0 0.0
    %2360 = vmatprep.subr.mxu0 0.0
    %2361 = vmatpush1.xpose.msra.mxu0 0.0
    %2362 = vmatprep.subr.mxu0 0.0
    %2363 = vmatpush1.xpose.msra.mxu0 0.0
    %2364 = vmatprep.subr.mxu0 0.0
    %2365 = vmatpush1.xpose.msra.mxu0 0.0
    %2366 = vmatprep.subr.mxu0 0.0
    %2367 = vmatpush1.xpose.msra.mxu0 0.0
    %2368 = vmatprep.subr.mxu0 0.0
    %2369 = vmatpush1.xpose.msra.mxu0 0.0
    %2370 = vmatprep.subr.mxu0 0.0
    %2371 = vmatpush1.xpose.msra.mxu0 0.0
    %2372 = vmatprep.subr.mxu0 0.0
    %2373 = vmatpush1.xpose.msra.mxu0 0.0
    %2374 = vmatprep.subr.mxu0 0.0
    %2375 = vmatpush1.xpose.msra.mxu0 0.0
    %2376 = vmatprep.mubr.f32.mxu0 0.0
    %2377 = vmatmul.mubr.f32.gmra.mrb[0].mxu0 %v2307
    %v2378 = vpop.f32.mrb[0].mxu0
    %v2379 = vadd.f32 0.0, %v2378
    %v2380 = vpop.f32.mrb[0].mxu0
    %2381 = vmatprep.mubr.f32.mxu0 0.0
    %2382 = vmatmul.mubr.f32.gmra.mrb[0].mxu0 %v2310
    %v2383 = vpop.f32.mrb[0].mxu0
    %v2384 = vadd.f32 0.0, %v2383
    %v2385 = vpop.f32.mrb[0].mxu0
    %2386 = vdwg.mxu0
    %v2388 = vsel %vm107, %v69, 0
    %v2391 = vsel %vm107, %v70, 0
    %2393 = vmatprep.subr.mxu0 0.0
    %2394 = vmatpush1.xpose.msra.mxu0 %v2388
    %2395 = vmatprep.subr.mxu0 0.0
    %2396 = vmatpush1.xpose.msra.mxu0 %v2391
    %2397 = vmatprep.subr.mxu0 0.0
    %2398 = vmatpush1.xpose.msra.mxu0 0.0
    %2399 = vmatprep.subr.mxu0 0.0
    %2400 = vmatpush1.xpose.msra.mxu0 0.0
    %2401 = vmatprep.subr.mxu0 0.0
    %2402 = vmatpush1.xpose.msra.mxu0 0.0
    %2403 = vmatprep.subr.mxu0 0.0
    %2404 = vmatpush1.xpose.msra.mxu0 0.0
    %2405 = vmatprep.subr.mxu0 0.0
    %2406 = vmatpush1.xpose.msra.mxu0 0.0
    %2407 = vmatprep.subr.mxu0 0.0
    %2408 = vmatpush1.xpose.msra.mxu0 0.0
    %2409 = vmatprep.subr.mxu0 0.0
    %2410 = vmatpush1.xpose.msra.mxu0 0.0
    %2411 = vmatprep.subr.mxu0 0.0
    %2412 = vmatpush1.xpose.msra.mxu0 0.0
    %2413 = vmatprep.subr.mxu0 0.0
    %2414 = vmatpush1.xpose.msra.mxu0 0.0
    %2415 = vmatprep.subr.mxu0 0.0
    %2416 = vmatpush1.xpose.msra.mxu0 0.0
    %2417 = vmatprep.subr.mxu0 0.0
    %2418 = vmatpush1.xpose.msra.mxu0 0.0
    %2419 = vmatprep.subr.mxu0 0.0
    %2420 = vmatpush1.xpose.msra.mxu0 0.0
    %2421 = vmatprep.subr.mxu0 0.0
    %2422 = vmatpush1.xpose.msra.mxu0 0.0
    %2423 = vmatprep.subr.mxu0 0.0
    %2424 = vmatpush1.xpose.msra.mxu0 0.0
    %2425 = vmatprep.subr.mxu0 0.0
    %2426 = vmatpush1.xpose.msra.mxu0 0.0
    %2427 = vmatprep.subr.mxu0 0.0
    %2428 = vmatpush1.xpose.msra.mxu0 0.0
    %2429 = vmatprep.subr.mxu0 0.0
    %2430 = vmatpush1.xpose.msra.mxu0 0.0
    %2431 = vmatprep.subr.mxu0 0.0
    %2432 = vmatpush1.xpose.msra.mxu0 0.0
    %2433 = vmatprep.subr.mxu0 0.0
    %2434 = vmatpush1.xpose.msra.mxu0 0.0
    %2435 = vmatprep.subr.mxu0 0.0
    %2436 = vmatpush1.xpose.msra.mxu0 0.0
    %2437 = vmatprep.subr.mxu0 0.0
    %2438 = vmatpush1.xpose.msra.mxu0 0.0
    %2439 = vmatprep.subr.mxu0 0.0
    %2440 = vmatpush1.xpose.msra.mxu0 0.0
    %2441 = vmatprep.subr.mxu0 0.0
    %2442 = vmatpush1.xpose.msra.mxu0 0.0
    %2443 = vmatprep.subr.mxu0 0.0
    %2444 = vmatpush1.xpose.msra.mxu0 0.0
    %2445 = vmatprep.subr.mxu0 0.0
    %2446 = vmatpush1.xpose.msra.mxu0 0.0
    %2447 = vmatprep.subr.mxu0 0.0
    %2448 = vmatpush1.xpose.msra.mxu0 0.0
    %2449 = vmatprep.subr.mxu0 0.0
    %2450 = vmatpush1.xpose.msra.mxu0 0.0
    %2451 = vmatprep.subr.mxu0 0.0
    %2452 = vmatpush1.xpose.msra.mxu0 0.0
    %2453 = vmatprep.subr.mxu0 0.0
    %2454 = vmatpush1.xpose.msra.mxu0 0.0
    %2455 = vmatprep.subr.mxu0 0.0
    %2456 = vmatpush1.xpose.msra.mxu0 0.0
    %2457 = vmatprep.mubr.f32.mxu0 0.0
    %2458 = vmatmul.mubr.f32.gmra.mrb[0].mxu0 %v2388
    %v2459 = vpop.f32.mrb[0].mxu0
    %v2460 = vadd.f32 0.0, %v2459
    %v2461 = vpop.f32.mrb[0].mxu0
    %2462 = vmatprep.mubr.f32.mxu0 0.0
    %2463 = vmatmul.mubr.f32.gmra.mrb[0].mxu0 %v2391
    %v2464 = vpop.f32.mrb[0].mxu0
    %v2465 = vadd.f32 0.0, %v2464
    %v2466 = vpop.f32.mrb[0].mxu0
    %2467 = vdwg.mxu0
    %v2469 = vsel %vm107, %v71, 0
    %v2472 = vsel %vm107, %v72, 0
    %2474 = vmatprep.subr.mxu0 0.0
    %2475 = vmatpush1.xpose.msra.mxu0 %v2469
    %2476 = vmatprep.subr.mxu0 0.0
    %2477 = vmatpush1.xpose.msra.mxu0 %v2472
    %2478 = vmatprep.subr.mxu0 0.0
    %2479 = vmatpush1.xpose.msra.mxu0 0.0
    %2480 = vmatprep.subr.mxu0 0.0
    %2481 = vmatpush1.xpose.msra.mxu0 0.0
    %2482 = vmatprep.subr.mxu0 0.0
    %2483 = vmatpush1.xpose.msra.mxu0 0.0
    %2484 = vmatprep.subr.mxu0 0.0
    %2485 = vmatpush1.xpose.msra.mxu0 0.0
    %2486 = vmatprep.subr.mxu0 0.0
    %2487 = vmatpush1.xpose.msra.mxu0 0.0
    %2488 = vmatprep.subr.mxu0 0.0
    %2489 = vmatpush1.xpose.msra.mxu0 0.0
    %2490 = vmatprep.subr.mxu0 0.0
    %2491 = vmatpush1.xpose.msra.mxu0 0.0
    %2492 = vmatprep.subr.mxu0 0.0
    %2493 = vmatpush1.xpose.msra.mxu0 0.0
    %2494 = vmatprep.subr.mxu0 0.0
    %2495 = vmatpush1.xpose.msra.mxu0 0.0
    %2496 = vmatprep.subr.mxu0 0.0
    %2497 = vmatpush1.xpose.msra.mxu0 0.0
    %2498 = vmatprep.subr.mxu0 0.0
    %2499 = vmatpush1.xpose.msra.mxu0 0.0
    %2500 = vmatprep.subr.mxu0 0.0
    %2501 = vmatpush1.xpose.msra.mxu0 0.0
    %2502 = vmatprep.subr.mxu0 0.0
    %2503 = vmatpush1.xpose.msra.mxu0 0.0
    %2504 = vmatprep.subr.mxu0 0.0
    %2505 = vmatpush1.xpose.msra.mxu0 0.0
    %2506 = vmatprep.subr.mxu0 0.0
    %2507 = vmatpush1.xpose.msra.mxu0 0.0
    %2508 = vmatprep.subr.mxu0 0.0
    %2509 = vmatpush1.xpose.msra.mxu0 0.0
    %2510 = vmatprep.subr.mxu0 0.0
    %2511 = vmatpush1.xpose.msra.mxu0 0.0
    %2512 = vmatprep.subr.mxu0 0.0
    %2513 = vmatpush1.xpose.msra.mxu0 0.0
    %2514 = vmatprep.subr.mxu0 0.0
    %2515 = vmatpush1.xpose.msra.mxu0 0.0
    %2516 = vmatprep.subr.mxu0 0.0
    %2517 = vmatpush1.xpose.msra.mxu0 0.0
    %2518 = vmatprep.subr.mxu0 0.0
    %2519 = vmatpush1.xpose.msra.mxu0 0.0
    %2520 = vmatprep.subr.mxu0 0.0
    %2521 = vmatpush1.xpose.msra.mxu0 0.0
    %2522 = vmatprep.subr.mxu0 0.0
    %2523 = vmatpush1.xpose.msra.mxu0 0.0
    %2524 = vmatprep.subr.mxu0 0.0
    %2525 = vmatpush1.xpose.msra.mxu0 0.0
    %2526 = vmatprep.subr.mxu0 0.0
    %2527 = vmatpush1.xpose.msra.mxu0 0.0
    %2528 = vmatprep.subr.mxu0 0.0
    %2529 = vmatpush1.xpose.msra.mxu0 0.0
    %2530 = vmatprep.subr.mxu0 0.0
    %2531 = vmatpush1.xpose.msra.mxu0 0.0
    %2532 = vmatprep.subr.mxu0 0.0
    %2533 = vmatpush1.xpose.msra.mxu0 0.0
    %2534 = vmatprep.subr.mxu0 0.0
    %2535 = vmatpush1.xpose.msra.mxu0 0.0
    %2536 = vmatprep.subr.mxu0 0.0
    %2537 = vmatpush1.xpose.msra.mxu0 0.0
    %2538 = vmatprep.mubr.f32.mxu0 0.0
    %2539 = vmatmul.mubr.f32.gmra.mrb[0].mxu0 %v2469
    %v2540 = vpop.f32.mrb[0].mxu0
    %v2541 = vadd.f32 0.0, %v2540
    %v2542 = vpop.f32.mrb[0].mxu0
    %2543 = vmatprep.mubr.f32.mxu0 0.0
    %2544 = vmatmul.mubr.f32.gmra.mrb[0].mxu0 %v2472
    %v2545 = vpop.f32.mrb[0].mxu0
    %v2546 = vadd.f32 0.0, %v2545
    %v2547 = vpop.f32.mrb[0].mxu0
    %2548 = vdwg.mxu0
    %v2550 = vsel %vm107, %v73, 0
    %v2553 = vsel %vm107, %v74, 0
    %2555 = vmatprep.subr.mxu0 0.0
    %2556 = vmatpush1.xpose.msra.mxu0 %v2550
    %2557 = vmatprep.subr.mxu0 0.0
    %2558 = vmatpush1.xpose.msra.mxu0 %v2553
    %2559 = vmatprep.subr.mxu0 0.0
    %2560 = vmatpush1.xpose.msra.mxu0 0.0
    %2561 = vmatprep.subr.mxu0 0.0
    %2562 = vmatpush1.xpose.msra.mxu0 0.0
    %2563 = vmatprep.subr.mxu0 0.0
    %2564 = vmatpush1.xpose.msra.mxu0 0.0
    %2565 = vmatprep.subr.mxu0 0.0
    %2566 = vmatpush1.xpose.msra.mxu0 0.0
    %2567 = vmatprep.subr.mxu0 0.0
    %2568 = vmatpush1.xpose.msra.mxu0 0.0
    %2569 = vmatprep.subr.mxu0 0.0
    %2570 = vmatpush1.xpose.msra.mxu0 0.0
    %2571 = vmatprep.subr.mxu0 0.0
    %2572 = vmatpush1.xpose.msra.mxu0 0.0
    %2573 = vmatprep.subr.mxu0 0.0
    %2574 = vmatpush1.xpose.msra.mxu0 0.0
    %2575 = vmatprep.subr.mxu0 0.0
    %2576 = vmatpush1.xpose.msra.mxu0 0.0
    %2577 = vmatprep.subr.mxu0 0.0
    %2578 = vmatpush1.xpose.msra.mxu0 0.0
    %2579 = vmatprep.subr.mxu0 0.0
    %2580 = vmatpush1.xpose.msra.mxu0 0.0
    %2581 = vmatprep.subr.mxu0 0.0
    %2582 = vmatpush1.xpose.msra.mxu0 0.0
    %2583 = vmatprep.subr.mxu0 0.0
    %2584 = vmatpush1.xpose.msra.mxu0 0.0
    %2585 = vmatprep.subr.mxu0 0.0
    %2586 = vmatpush1.xpose.msra.mxu0 0.0
    %2587 = vmatprep.subr.mxu0 0.0
    %2588 = vmatpush1.xpose.msra.mxu0 0.0
    %2589 = vmatprep.subr.mxu0 0.0
    %2590 = vmatpush1.xpose.msra.mxu0 0.0
    %2591 = vmatprep.subr.mxu0 0.0
    %2592 = vmatpush1.xpose.msra.mxu0 0.0
    %2593 = vmatprep.subr.mxu0 0.0
    %2594 = vmatpush1.xpose.msra.mxu0 0.0
    %2595 = vmatprep.subr.mxu0 0.0
    %2596 = vmatpush1.xpose.msra.mxu0 0.0
    %2597 = vmatprep.subr.mxu0 0.0
    %2598 = vmatpush1.xpose.msra.mxu0 0.0
    %2599 = vmatprep.subr.mxu0 0.0
    %2600 = vmatpush1.xpose.msra.mxu0 0.0
    %2601 = vmatprep.subr.mxu0 0.0
    %2602 = vmatpush1.xpose.msra.mxu0 0.0
    %2603 = vmatprep.subr.mxu0 0.0
    %2604 = vmatpush1.xpose.msra.mxu0 0.0
    %2605 = vmatprep.subr.mxu0 0.0
    %2606 = vmatpush1.xpose.msra.mxu0 0.0
    %2607 = vmatprep.subr.mxu0 0.0
    %2608 = vmatpush1.xpose.msra.mxu0 0.0
    %2609 = vmatprep.subr.mxu0 0.0
    %2610 = vmatpush1.xpose.msra.mxu0 0.0
    %2611 = vmatprep.subr.mxu0 0.0
    %2612 = vmatpush1.xpose.msra.mxu0 0.0
    %2613 = vmatprep.subr.mxu0 0.0
    %2614 = vmatpush1.xpose.msra.mxu0 0.0
    %2615 = vmatprep.subr.mxu0 0.0
    %2616 = vmatpush1.xpose.msra.mxu0 0.0
    %2617 = vmatprep.subr.mxu0 0.0
    %2618 = vmatpush1.xpose.msra.mxu0 0.0
    %2619 = vmatprep.mubr.f32.mxu0 0.0
    %2620 = vmatmul.mubr.f32.gmra.mrb[0].mxu0 %v2550
    %v2621 = vpop.f32.mrb[0].mxu0
    %v2622 = vadd.f32 0.0, %v2621
    %v2623 = vpop.f32.mrb[0].mxu0
    %2624 = vmatprep.mubr.f32.mxu0 0.0
    %2625 = vmatmul.mubr.f32.gmra.mrb[0].mxu0 %v2553
    %v2626 = vpop.f32.mrb[0].mxu0
    %v2627 = vadd.f32 0.0, %v2626
    %v2628 = vpop.f32.mrb[0].mxu0
    %2629 = vdwg.mxu0
    %v2630 = vsel %vm107, %v2055, -inf
    %2631 = vmax.xlane.f32.xlu0 %v2630
    %v2632 = vpop.xlane.xlu0 %2631
    %v2633 = vsel %vm107, %v2060, -inf
    %2634 = vmax.xlane.f32.xlu0 %v2633
    %v2635 = vpop.xlane.xlu0 %2634
    %v2636 = vsel %vm107, %v2136, -inf
    %2637 = vmax.xlane.f32.xlu0 %v2636
    %v2638 = vpop.xlane.xlu0 %2637
    %v2639 = vsel %vm107, %v2141, -inf
    %2640 = vmax.xlane.f32.xlu0 %v2639
    %v2641 = vpop.xlane.xlu0 %2640
    %v2642 = vsel %vm107, %v2217, -inf
    %2643 = vmax.xlane.f32.xlu0 %v2642
    %v2644 = vpop.xlane.xlu0 %2643
    %v2645 = vsel %vm107, %v2222, -inf
    %2646 = vmax.xlane.f32.xlu0 %v2645
    %v2647 = vpop.xlane.xlu0 %2646
    %v2648 = vsel %vm107, %v2298, -inf
    %2649 = vmax.xlane.f32.xlu0 %v2648
    %v2650 = vpop.xlane.xlu0 %2649
    %v2651 = vsel %vm107, %v2303, -inf
    %2652 = vmax.xlane.f32.xlu0 %v2651
    %v2653 = vpop.xlane.xlu0 %2652
    %v2654 = vsel %vm107, %v2379, -inf
    %2655 = vmax.xlane.f32.xlu0 %v2654
    %v2656 = vpop.xlane.xlu0 %2655
    %v2657 = vsel %vm107, %v2384, -inf
    %2658 = vmax.xlane.f32.xlu0 %v2657
    %v2659 = vpop.xlane.xlu0 %2658
    %v2660 = vsel %vm107, %v2460, -inf
    %2661 = vmax.xlane.f32.xlu0 %v2660
    %v2662 = vpop.xlane.xlu0 %2661
    %v2663 = vsel %vm107, %v2465, -inf
    %2664 = vmax.xlane.f32.xlu0 %v2663
    %v2665 = vpop.xlane.xlu0 %2664
    %v2666 = vsel %vm107, %v2541, -inf
    %2667 = vmax.xlane.f32.xlu0 %v2666
    %v2668 = vpop.xlane.xlu0 %2667
    %v2669 = vsel %vm107, %v2546, -inf
    %2670 = vmax.xlane.f32.xlu0 %v2669
    %v2671 = vpop.xlane.xlu0 %2670
    %v2672 = vsel %vm107, %v2622, -inf
    %2673 = vmax.xlane.f32.xlu0 %v2672
    %v2674 = vpop.xlane.xlu0 %2673
    %v2675 = vsel %vm107, %v2627, -inf
    %2676 = vmax.xlane.f32.xlu0 %v2675
    %v2677 = vpop.xlane.xlu0 %2676
    %v2678 = vsub.f32 %v2055, %v2632
    %v2679 = vsub.f32 %v2060, %v2635
    %v2680 = vsub.f32 %v2136, %v2638
    %v2681 = vsub.f32 %v2141, %v2641
    %v2682 = vsub.f32 %v2217, %v2644
    %v2683 = vsub.f32 %v2222, %v2647
    %v2684 = vsub.f32 %v2298, %v2650
    %v2685 = vsub.f32 %v2303, %v2653
    %v2686 = vsub.f32 %v2379, %v2656
    %v2687 = vsub.f32 %v2384, %v2659
    %v2688 = vsub.f32 %v2460, %v2662
    %v2689 = vsub.f32 %v2465, %v2665
    %v2690 = vsub.f32 %v2541, %v2668
    %v2691 = vsub.f32 %v2546, %v2671
    %v2692 = vsub.f32 %v2622, %v2674
    %v2693 = vsub.f32 %v2627, %v2677
    %v2694 = vmul.f32 %v2678, 1.442695
    %v2695 = vpow.pop %v2694
    %v2696 = vmul.f32 %v2679, 1.442695
    %v2697 = vpow.pop %v2696
    %v2698 = vmul.f32 %v2680, 1.442695
    %v2699 = vpow.pop %v2698
    %v2700 = vmul.f32 %v2681, 1.442695
    %v2701 = vpow.pop %v2700
    %v2702 = vmul.f32 %v2682, 1.442695
    %v2703 = vpow.pop %v2702
    %v2704 = vmul.f32 %v2683, 1.442695
    %v2705 = vpow.pop %v2704
    %v2706 = vmul.f32 %v2684, 1.442695
    %v2707 = vpow.pop %v2706
    %v2708 = vmul.f32 %v2685, 1.442695
    %v2709 = vpow.pop %v2708
    %v2710 = vmul.f32 %v2686, 1.442695
    %v2711 = vpow.pop %v2710
    %v2712 = vmul.f32 %v2687, 1.442695
    %v2713 = vpow.pop %v2712
    %v2714 = vmul.f32 %v2688, 1.442695
    %v2715 = vpow.pop %v2714
    %v2716 = vmul.f32 %v2689, 1.442695
    %v2717 = vpow.pop %v2716
    %v2718 = vmul.f32 %v2690, 1.442695
    %v2719 = vpow.pop %v2718
    %v2720 = vmul.f32 %v2691, 1.442695
    %v2721 = vpow.pop %v2720
    %v2722 = vmul.f32 %v2692, 1.442695
    %v2723 = vpow.pop %v2722
    %v2724 = vmul.f32 %v2693, 1.442695
    %v2725 = vpow.pop %v2724
    %v2726 = vsel %vm107, %v2695, 0.0
    %2727 = vadd.xlane.f32.xlu0 %v2726
    %v2728 = vpop.xlane.xlu0 %2727
    %v2729 = vsel %vm107, %v2697, 0.0
    %2730 = vadd.xlane.f32.xlu0 %v2729
    %v2731 = vpop.xlane.xlu0 %2730
    %v2732 = vsel %vm107, %v2699, 0.0
    %2733 = vadd.xlane.f32.xlu0 %v2732
    %v2734 = vpop.xlane.xlu0 %2733
    %v2735 = vsel %vm107, %v2701, 0.0
    %2736 = vadd.xlane.f32.xlu0 %v2735
    %v2737 = vpop.xlane.xlu0 %2736
    %v2738 = vsel %vm107, %v2703, 0.0
    %2739 = vadd.xlane.f32.xlu0 %v2738
    %v2740 = vpop.xlane.xlu0 %2739
    %v2741 = vsel %vm107, %v2705, 0.0
    %2742 = vadd.xlane.f32.xlu0 %v2741
    %v2743 = vpop.xlane.xlu0 %2742
    %v2744 = vsel %vm107, %v2707, 0.0
    %2745 = vadd.xlane.f32.xlu0 %v2744
    %v2746 = vpop.xlane.xlu0 %2745
    %v2747 = vsel %vm107, %v2709, 0.0
    %2748 = vadd.xlane.f32.xlu0 %v2747
    %v2749 = vpop.xlane.xlu0 %2748
    %v2750 = vsel %vm107, %v2711, 0.0
    %2751 = vadd.xlane.f32.xlu0 %v2750
    %v2752 = vpop.xlane.xlu0 %2751
    %v2753 = vsel %vm107, %v2713, 0.0
    %2754 = vadd.xlane.f32.xlu0 %v2753
    %v2755 = vpop.xlane.xlu0 %2754
    %v2756 = vsel %vm107, %v2715, 0.0
    %2757 = vadd.xlane.f32.xlu0 %v2756
    %v2758 = vpop.xlane.xlu0 %2757
    %v2759 = vsel %vm107, %v2717, 0.0
    %2760 = vadd.xlane.f32.xlu0 %v2759
    %v2761 = vpop.xlane.xlu0 %2760
    %v2762 = vsel %vm107, %v2719, 0.0
    %2763 = vadd.xlane.f32.xlu0 %v2762
    %v2764 = vpop.xlane.xlu0 %2763
    %v2765 = vsel %vm107, %v2721, 0.0
    %2766 = vadd.xlane.f32.xlu0 %v2765
    %v2767 = vpop.xlane.xlu0 %2766
    %v2768 = vsel %vm107, %v2723, 0.0
    %2769 = vadd.xlane.f32.xlu0 %v2768
    %v2770 = vpop.xlane.xlu0 %2769
    %v2771 = vsel %vm107, %v2725, 0.0
    %2772 = vadd.xlane.f32.xlu0 %v2771
    %v2773 = vpop.xlane.xlu0 %2772
    %v2774 = vrcp.pop %v2728
    %v2775 = vmul.f32 %v2695, %v2774
    %v2776 = vrcp.pop %v2731
    %v2777 = vmul.f32 %v2697, %v2776
    %v2778 = vrcp.pop %v2734
    %v2779 = vmul.f32 %v2699, %v2778
    %v2780 = vrcp.pop %v2737
    %v2781 = vmul.f32 %v2701, %v2780
    %v2782 = vrcp.pop %v2740
    %v2783 = vmul.f32 %v2703, %v2782
    %v2784 = vrcp.pop %v2743
    %v2785 = vmul.f32 %v2705, %v2784
    %v2786 = vrcp.pop %v2746
    %v2787 = vmul.f32 %v2707, %v2786
    %v2788 = vrcp.pop %v2749
    %v2789 = vmul.f32 %v2709, %v2788
    %v2790 = vrcp.pop %v2752
    %v2791 = vmul.f32 %v2711, %v2790
    %v2792 = vrcp.pop %v2755
    %v2793 = vmul.f32 %v2713, %v2792
    %v2794 = vrcp.pop %v2758
    %v2795 = vmul.f32 %v2715, %v2794
    %v2796 = vrcp.pop %v2761
    %v2797 = vmul.f32 %v2717, %v2796
    %v2798 = vrcp.pop %v2764
    %v2799 = vmul.f32 %v2719, %v2798
    %v2800 = vrcp.pop %v2767
    %v2801 = vmul.f32 %v2721, %v2800
    %v2802 = vrcp.pop %v2770
    %v2803 = vmul.f32 %v2723, %v2802
    %v2804 = vrcp.pop %v2773
    %v2805 = vmul.f32 %v2725, %v2804
    %v2807 = vsel %vm107, %v2775, 0
    %v2810 = vsel %vm107, %v2777, 0
    %2812 = vmatprep.subr.mxu0 0.0
    %2813 = vmatpush1.msra.mxu0 %v59
    %2814 = vmatprep.subr.mxu0 0.0
    %2815 = vmatpush1.msra.mxu0 %v60
    %2816 = vmatprep.subr.mxu0 0.0
    %2817 = vmatpush1.msra.mxu0 0.0
    %2818 = vmatprep.subr.mxu0 0.0
    %2819 = vmatpush1.msra.mxu0 0.0
    %2820 = vmatprep.subr.mxu0 0.0
    %2821 = vmatpush1.msra.mxu0 0.0
    %2822 = vmatprep.subr.mxu0 0.0
    %2823 = vmatpush1.msra.mxu0 0.0
    %2824 = vmatprep.subr.mxu0 0.0
    %2825 = vmatpush1.msra.mxu0 0.0
    %2826 = vmatprep.subr.mxu0 0.0
    %2827 = vmatpush1.msra.mxu0 0.0
    %2828 = vmatprep.subr.mxu0 0.0
    %2829 = vmatpush1.msra.mxu0 0.0
    %2830 = vmatprep.subr.mxu0 0.0
    %2831 = vmatpush1.msra.mxu0 0.0
    %2832 = vmatprep.subr.mxu0 0.0
    %2833 = vmatpush1.msra.mxu0 0.0
    %2834 = vmatprep.subr.mxu0 0.0
    %2835 = vmatpush1.msra.mxu0 0.0
    %2836 = vmatprep.subr.mxu0 0.0
    %2837 = vmatpush1.msra.mxu0 0.0
    %2838 = vmatprep.subr.mxu0 0.0
    %2839 = vmatpush1.msra.mxu0 0.0
    %2840 = vmatprep.subr.mxu0 0.0
    %2841 = vmatpush1.msra.mxu0 0.0
    %2842 = vmatprep.subr.mxu0 0.0
    %2843 = vmatpush1.msra.mxu0 0.0
    %2844 = vmatprep.subr.mxu0 0.0
    %2845 = vmatpush1.msra.mxu0 0.0
    %2846 = vmatprep.subr.mxu0 0.0
    %2847 = vmatpush1.msra.mxu0 0.0
    %2848 = vmatprep.subr.mxu0 0.0
    %2849 = vmatpush1.msra.mxu0 0.0
    %2850 = vmatprep.subr.mxu0 0.0
    %2851 = vmatpush1.msra.mxu0 0.0
    %2852 = vmatprep.subr.mxu0 0.0
    %2853 = vmatpush1.msra.mxu0 0.0
    %2854 = vmatprep.subr.mxu0 0.0
    %2855 = vmatpush1.msra.mxu0 0.0
    %2856 = vmatprep.subr.mxu0 0.0
    %2857 = vmatpush1.msra.mxu0 0.0
    %2858 = vmatprep.subr.mxu0 0.0
    %2859 = vmatpush1.msra.mxu0 0.0
    %2860 = vmatprep.subr.mxu0 0.0
    %2861 = vmatpush1.msra.mxu0 0.0
    %2862 = vmatprep.subr.mxu0 0.0
    %2863 = vmatpush1.msra.mxu0 0.0
    %2864 = vmatprep.subr.mxu0 0.0
    %2865 = vmatpush1.msra.mxu0 0.0
    %2866 = vmatprep.subr.mxu0 0.0
    %2867 = vmatpush1.msra.mxu0 0.0
    %2868 = vmatprep.subr.mxu0 0.0
    %2869 = vmatpush1.msra.mxu0 0.0
    %2870 = vmatprep.subr.mxu0 0.0
    %2871 = vmatpush1.msra.mxu0 0.0
    %2872 = vmatprep.subr.mxu0 0.0
    %2873 = vmatpush1.msra.mxu0 0.0
    %2874 = vmatprep.subr.mxu0 0.0
    %2875 = vmatpush1.msra.mxu0 0.0
    %2876 = vmatprep.mubr.f32.mxu0 0.0
    %2877 = vmatmul.mubr.f32.gmra.mrb[0].mxu0 %v2807
    %v2878 = vpop.f32.mrb[0].mxu0
    %v2879 = vadd.f32 0.0, %v2878
    %v2880 = vpop.f32.mrb[0].mxu0
    %2881 = vmatprep.mubr.f32.mxu0 0.0
    %2882 = vmatmul.mubr.f32.gmra.mrb[0].mxu0 %v2810
    %v2883 = vpop.f32.mrb[0].mxu0
    %v2884 = vadd.f32 0.0, %v2883
    %v2885 = vpop.f32.mrb[0].mxu0
    %2886 = vdwg.mxu0
    %v2888 = vsel %vm107, %v2779, 0
    %v2891 = vsel %vm107, %v2781, 0
    %2893 = vmatprep.subr.mxu0 0.0
    %2894 = vmatpush1.msra.mxu0 %v61
    %2895 = vmatprep.subr.mxu0 0.0
    %2896 = vmatpush1.msra.mxu0 %v62
    %2897 = vmatprep.subr.mxu0 0.0
    %2898 = vmatpush1.msra.mxu0 0.0
    %2899 = vmatprep.subr.mxu0 0.0
    %2900 = vmatpush1.msra.mxu0 0.0
    %2901 = vmatprep.subr.mxu0 0.0
    %2902 = vmatpush1.msra.mxu0 0.0
    %2903 = vmatprep.subr.mxu0 0.0
    %2904 = vmatpush1.msra.mxu0 0.0
    %2905 = vmatprep.subr.mxu0 0.0
    %2906 = vmatpush1.msra.mxu0 0.0
    %2907 = vmatprep.subr.mxu0 0.0
    %2908 = vmatpush1.msra.mxu0 0.0
    %2909 = vmatprep.subr.mxu0 0.0
    %2910 = vmatpush1.msra.mxu0 0.0
    %2911 = vmatprep.subr.mxu0 0.0
    %2912 = vmatpush1.msra.mxu0 0.0
    %2913 = vmatprep.subr.mxu0 0.0
    %2914 = vmatpush1.msra.mxu0 0.0
    %2915 = vmatprep.subr.mxu0 0.0
    %2916 = vmatpush1.msra.mxu0 0.0
    %2917 = vmatprep.subr.mxu0 0.0
    %2918 = vmatpush1.msra.mxu0 0.0
    %2919 = vmatprep.subr.mxu0 0.0
    %2920 = vmatpush1.msra.mxu0 0.0
    %2921 = vmatprep.subr.mxu0 0.0
    %2922 = vmatpush1.msra.mxu0 0.0
    %2923 = vmatprep.subr.mxu0 0.0
    %2924 = vmatpush1.msra.mxu0 0.0
    %2925 = vmatprep.subr.mxu0 0.0
    %2926 = vmatpush1.msra.mxu0 0.0
    %2927 = vmatprep.subr.mxu0 0.0
    %2928 = vmatpush1.msra.mxu0 0.0
    %2929 = vmatprep.subr.mxu0 0.0
    %2930 = vmatpush1.msra.mxu0 0.0
    %2931 = vmatprep.subr.mxu0 0.0
    %2932 = vmatpush1.msra.mxu0 0.0
    %2933 = vmatprep.subr.mxu0 0.0
    %2934 = vmatpush1.msra.mxu0 0.0
    %2935 = vmatprep.subr.mxu0 0.0
    %2936 = vmatpush1.msra.mxu0 0.0
    %2937 = vmatprep.subr.mxu0 0.0
    %2938 = vmatpush1.msra.mxu0 0.0
    %2939 = vmatprep.subr.mxu0 0.0
    %2940 = vmatpush1.msra.mxu0 0.0
    %2941 = vmatprep.subr.mxu0 0.0
    %2942 = vmatpush1.msra.mxu0 0.0
    %2943 = vmatprep.subr.mxu0 0.0
    %2944 = vmatpush1.msra.mxu0 0.0
    %2945 = vmatprep.subr.mxu0 0.0
    %2946 = vmatpush1.msra.mxu0 0.0
    %2947 = vmatprep.subr.mxu0 0.0
    %2948 = vmatpush1.msra.mxu0 0.0
    %2949 = vmatprep.subr.mxu0 0.0
    %2950 = vmatpush1.msra.mxu0 0.0
    %2951 = vmatprep.subr.mxu0 0.0
    %2952 = vmatpush1.msra.mxu0 0.0
    %2953 = vmatprep.subr.mxu0 0.0
    %2954 = vmatpush1.msra.mxu0 0.0
    %2955 = vmatprep.subr.mxu0 0.0
    %2956 = vmatpush1.msra.mxu0 0.0
    %2957 = vmatprep.mubr.f32.mxu0 0.0
    %2958 = vmatmul.mubr.f32.gmra.mrb[0].mxu0 %v2888
    %v2959 = vpop.f32.mrb[0].mxu0
    %v2960 = vadd.f32 0.0, %v2959
    %v2961 = vpop.f32.mrb[0].mxu0
    %2962 = vmatprep.mubr.f32.mxu0 0.0
    %2963 = vmatmul.mubr.f32.gmra.mrb[0].mxu0 %v2891
    %v2964 = vpop.f32.mrb[0].mxu0
    %v2965 = vadd.f32 0.0, %v2964
    %v2966 = vpop.f32.mrb[0].mxu0
    %2967 = vdwg.mxu0
    %v2969 = vsel %vm107, %v2783, 0
    %v2972 = vsel %vm107, %v2785, 0
    %2974 = vmatprep.subr.mxu0 0.0
    %2975 = vmatpush1.msra.mxu0 %v63
    %2976 = vmatprep.subr.mxu0 0.0
    %2977 = vmatpush1.msra.mxu0 %v64
    %2978 = vmatprep.subr.mxu0 0.0
    %2979 = vmatpush1.msra.mxu0 0.0
    %2980 = vmatprep.subr.mxu0 0.0
    %2981 = vmatpush1.msra.mxu0 0.0
    %2982 = vmatprep.subr.mxu0 0.0
    %2983 = vmatpush1.msra.mxu0 0.0
    %2984 = vmatprep.subr.mxu0 0.0
    %2985 = vmatpush1.msra.mxu0 0.0
    %2986 = vmatprep.subr.mxu0 0.0
    %2987 = vmatpush1.msra.mxu0 0.0
    %2988 = vmatprep.subr.mxu0 0.0
    %2989 = vmatpush1.msra.mxu0 0.0
    %2990 = vmatprep.subr.mxu0 0.0
    %2991 = vmatpush1.msra.mxu0 0.0
    %2992 = vmatprep.subr.mxu0 0.0
    %2993 = vmatpush1.msra.mxu0 0.0
    %2994 = vmatprep.subr.mxu0 0.0
    %2995 = vmatpush1.msra.mxu0 0.0
    %2996 = vmatprep.subr.mxu0 0.0
    %2997 = vmatpush1.msra.mxu0 0.0
    %2998 = vmatprep.subr.mxu0 0.0
    %2999 = vmatpush1.msra.mxu0 0.0
    %3000 = vmatprep.subr.mxu0 0.0
    %3001 = vmatpush1.msra.mxu0 0.0
    %3002 = vmatprep.subr.mxu0 0.0
    %3003 = vmatpush1.msra.mxu0 0.0
    %3004 = vmatprep.subr.mxu0 0.0
    %3005 = vmatpush1.msra.mxu0 0.0
    %3006 = vmatprep.subr.mxu0 0.0
    %3007 = vmatpush1.msra.mxu0 0.0
    %3008 = vmatprep.subr.mxu0 0.0
    %3009 = vmatpush1.msra.mxu0 0.0
    %3010 = vmatprep.subr.mxu0 0.0
    %3011 = vmatpush1.msra.mxu0 0.0
    %3012 = vmatprep.subr.mxu0 0.0
    %3013 = vmatpush1.msra.mxu0 0.0
    %3014 = vmatprep.subr.mxu0 0.0
    %3015 = vmatpush1.msra.mxu0 0.0
    %3016 = vmatprep.subr.mxu0 0.0
    %3017 = vmatpush1.msra.mxu0 0.0
    %3018 = vmatprep.subr.mxu0 0.0
    %3019 = vmatpush1.msra.mxu0 0.0
    %3020 = vmatprep.subr.mxu0 0.0
    %3021 = vmatpush1.msra.mxu0 0.0
    %3022 = vmatprep.subr.mxu0 0.0
    %3023 = vmatpush1.msra.mxu0 0.0
    %3024 = vmatprep.subr.mxu0 0.0
    %3025 = vmatpush1.msra.mxu0 0.0
    %3026 = vmatprep.subr.mxu0 0.0
    %3027 = vmatpush1.msra.mxu0 0.0
    %3028 = vmatprep.subr.mxu0 0.0
    %3029 = vmatpush1.msra.mxu0 0.0
    %3030 = vmatprep.subr.mxu0 0.0
    %3031 = vmatpush1.msra.mxu0 0.0
    %3032 = vmatprep.subr.mxu0 0.0
    %3033 = vmatpush1.msra.mxu0 0.0
    %3034 = vmatprep.subr.mxu0 0.0
    %3035 = vmatpush1.msra.mxu0 0.0
    %3036 = vmatprep.subr.mxu0 0.0
    %3037 = vmatpush1.msra.mxu0 0.0
    %3038 = vmatprep.mubr.f32.mxu0 0.0
    %3039 = vmatmul.mubr.f32.gmra.mrb[0].mxu0 %v2969
    %v3040 = vpop.f32.mrb[0].mxu0
    %v3041 = vadd.f32 0.0, %v3040
    %v3042 = vpop.f32.mrb[0].mxu0
    %3043 = vmatprep.mubr.f32.mxu0 0.0
    %3044 = vmatmul.mubr.f32.gmra.mrb[0].mxu0 %v2972
    %v3045 = vpop.f32.mrb[0].mxu0
    %v3046 = vadd.f32 0.0, %v3045
    %v3047 = vpop.f32.mrb[0].mxu0
    %3048 = vdwg.mxu0
    %v3050 = vsel %vm107, %v2787, 0
    %v3053 = vsel %vm107, %v2789, 0
    %3055 = vmatprep.subr.mxu0 0.0
    %3056 = vmatpush1.msra.mxu0 %v65
    %3057 = vmatprep.subr.mxu0 0.0
    %3058 = vmatpush1.msra.mxu0 %v66
    %3059 = vmatprep.subr.mxu0 0.0
    %3060 = vmatpush1.msra.mxu0 0.0
    %3061 = vmatprep.subr.mxu0 0.0
    %3062 = vmatpush1.msra.mxu0 0.0
    %3063 = vmatprep.subr.mxu0 0.0
    %3064 = vmatpush1.msra.mxu0 0.0
    %3065 = vmatprep.subr.mxu0 0.0
    %3066 = vmatpush1.msra.mxu0 0.0
    %3067 = vmatprep.subr.mxu0 0.0
    %3068 = vmatpush1.msra.mxu0 0.0
    %3069 = vmatprep.subr.mxu0 0.0
    %3070 = vmatpush1.msra.mxu0 0.0
    %3071 = vmatprep.subr.mxu0 0.0
    %3072 = vmatpush1.msra.mxu0 0.0
    %3073 = vmatprep.subr.mxu0 0.0
    %3074 = vmatpush1.msra.mxu0 0.0
    %3075 = vmatprep.subr.mxu0 0.0
    %3076 = vmatpush1.msra.mxu0 0.0
    %3077 = vmatprep.subr.mxu0 0.0
    %3078 = vmatpush1.msra.mxu0 0.0
    %3079 = vmatprep.subr.mxu0 0.0
    %3080 = vmatpush1.msra.mxu0 0.0
    %3081 = vmatprep.subr.mxu0 0.0
    %3082 = vmatpush1.msra.mxu0 0.0
    %3083 = vmatprep.subr.mxu0 0.0
    %3084 = vmatpush1.msra.mxu0 0.0
    %3085 = vmatprep.subr.mxu0 0.0
    %3086 = vmatpush1.msra.mxu0 0.0
    %3087 = vmatprep.subr.mxu0 0.0
    %3088 = vmatpush1.msra.mxu0 0.0
    %3089 = vmatprep.subr.mxu0 0.0
    %3090 = vmatpush1.msra.mxu0 0.0
    %3091 = vmatprep.subr.mxu0 0.0
    %3092 = vmatpush1.msra.mxu0 0.0
    %3093 = vmatprep.subr.mxu0 0.0
    %3094 = vmatpush1.msra.mxu0 0.0
    %3095 = vmatprep.subr.mxu0 0.0
    %3096 = vmatpush1.msra.mxu0 0.0
    %3097 = vmatprep.subr.mxu0 0.0
    %3098 = vmatpush1.msra.mxu0 0.0
    %3099 = vmatprep.subr.mxu0 0.0
    %3100 = vmatpush1.msra.mxu0 0.0
    %3101 = vmatprep.subr.mxu0 0.0
    %3102 = vmatpush1.msra.mxu0 0.0
    %3103 = vmatprep.subr.mxu0 0.0
    %3104 = vmatpush1.msra.mxu0 0.0
    %3105 = vmatprep.subr.mxu0 0.0
    %3106 = vmatpush1.msra.mxu0 0.0
    %3107 = vmatprep.subr.mxu0 0.0
    %3108 = vmatpush1.msra.mxu0 0.0
    %3109 = vmatprep.subr.mxu0 0.0
    %3110 = vmatpush1.msra.mxu0 0.0
    %3111 = vmatprep.subr.mxu0 0.0
    %3112 = vmatpush1.msra.mxu0 0.0
    %3113 = vmatprep.subr.mxu0 0.0
    %3114 = vmatpush1.msra.mxu0 0.0
    %3115 = vmatprep.subr.mxu0 0.0
    %3116 = vmatpush1.msra.mxu0 0.0
    %3117 = vmatprep.subr.mxu0 0.0
    %3118 = vmatpush1.msra.mxu0 0.0
    %3119 = vmatprep.mubr.f32.mxu0 0.0
    %3120 = vmatmul.mubr.f32.gmra.mrb[0].mxu0 %v3050
    %v3121 = vpop.f32.mrb[0].mxu0
    %v3122 = vadd.f32 0.0, %v3121
    %v3123 = vpop.f32.mrb[0].mxu0
    %3124 = vmatprep.mubr.f32.mxu0 0.0
    %3125 = vmatmul.mubr.f32.gmra.mrb[0].mxu0 %v3053
    %v3126 = vpop.f32.mrb[0].mxu0
    %v3127 = vadd.f32 0.0, %v3126
    %v3128 = vpop.f32.mrb[0].mxu0
    %3129 = vdwg.mxu0
    %v3131 = vsel %vm107, %v2791, 0
    %v3134 = vsel %vm107, %v2793, 0
    %3136 = vmatprep.subr.mxu0 0.0
    %3137 = vmatpush1.msra.mxu0 %v67
    %3138 = vmatprep.subr.mxu0 0.0
    %3139 = vmatpush1.msra.mxu0 %v68
    %3140 = vmatprep.subr.mxu0 0.0
    %3141 = vmatpush1.msra.mxu0 0.0
    %3142 = vmatprep.subr.mxu0 0.0
    %3143 = vmatpush1.msra.mxu0 0.0
    %3144 = vmatprep.subr.mxu0 0.0
    %3145 = vmatpush1.msra.mxu0 0.0
    %3146 = vmatprep.subr.mxu0 0.0
    %3147 = vmatpush1.msra.mxu0 0.0
    %3148 = vmatprep.subr.mxu0 0.0
    %3149 = vmatpush1.msra.mxu0 0.0
    %3150 = vmatprep.subr.mxu0 0.0
    %3151 = vmatpush1.msra.mxu0 0.0
    %3152 = vmatprep.subr.mxu0 0.0
    %3153 = vmatpush1.msra.mxu0 0.0
    %3154 = vmatprep.subr.mxu0 0.0
    %3155 = vmatpush1.msra.mxu0 0.0
    %3156 = vmatprep.subr.mxu0 0.0
    %3157 = vmatpush1.msra.mxu0 0.0
    %3158 = vmatprep.subr.mxu0 0.0
    %3159 = vmatpush1.msra.mxu0 0.0
    %3160 = vmatprep.subr.mxu0 0.0
    %3161 = vmatpush1.msra.mxu0 0.0
    %3162 = vmatprep.subr.mxu0 0.0
    %3163 = vmatpush1.msra.mxu0 0.0
    %3164 = vmatprep.subr.mxu0 0.0
    %3165 = vmatpush1.msra.mxu0 0.0
    %3166 = vmatprep.subr.mxu0 0.0
    %3167 = vmatpush1.msra.mxu0 0.0
    %3168 = vmatprep.subr.mxu0 0.0
    %3169 = vmatpush1.msra.mxu0 0.0
    %3170 = vmatprep.subr.mxu0 0.0
    %3171 = vmatpush1.msra.mxu0 0.0
    %3172 = vmatprep.subr.mxu0 0.0
    %3173 = vmatpush1.msra.mxu0 0.0
    %3174 = vmatprep.subr.mxu0 0.0
    %3175 = vmatpush1.msra.mxu0 0.0
    %3176 = vmatprep.subr.mxu0 0.0
    %3177 = vmatpush1.msra.mxu0 0.0
    %3178 = vmatprep.subr.mxu0 0.0
    %3179 = vmatpush1.msra.mxu0 0.0
    %3180 = vmatprep.subr.mxu0 0.0
    %3181 = vmatpush1.msra.mxu0 0.0
    %3182 = vmatprep.subr.mxu0 0.0
    %3183 = vmatpush1.msra.mxu0 0.0
    %3184 = vmatprep.subr.mxu0 0.0
    %3185 = vmatpush1.msra.mxu0 0.0
    %3186 = vmatprep.subr.mxu0 0.0
    %3187 = vmatpush1.msra.mxu0 0.0
    %3188 = vmatprep.subr.mxu0 0.0
    %3189 = vmatpush1.msra.mxu0 0.0
    %3190 = vmatprep.subr.mxu0 0.0
    %3191 = vmatpush1.msra.mxu0 0.0
    %3192 = vmatprep.subr.mxu0 0.0
    %3193 = vmatpush1.msra.mxu0 0.0
    %3194 = vmatprep.subr.mxu0 0.0
    %3195 = vmatpush1.msra.mxu0 0.0
    %3196 = vmatprep.subr.mxu0 0.0
    %3197 = vmatpush1.msra.mxu0 0.0
    %3198 = vmatprep.subr.mxu0 0.0
    %3199 = vmatpush1.msra.mxu0 0.0
    %3200 = vmatprep.mubr.f32.mxu0 0.0
    %3201 = vmatmul.mubr.f32.gmra.mrb[0].mxu0 %v3131
    %v3202 = vpop.f32.mrb[0].mxu0
    %v3203 = vadd.f32 0.0, %v3202
    %v3204 = vpop.f32.mrb[0].mxu0
    %3205 = vmatprep.mubr.f32.mxu0 0.0
    %3206 = vmatmul.mubr.f32.gmra.mrb[0].mxu0 %v3134
    %v3207 = vpop.f32.mrb[0].mxu0
    %v3208 = vadd.f32 0.0, %v3207
    %v3209 = vpop.f32.mrb[0].mxu0
    %3210 = vdwg.mxu0
    %v3212 = vsel %vm107, %v2795, 0
    %v3215 = vsel %vm107, %v2797, 0
    %3217 = vmatprep.subr.mxu0 0.0
    %3218 = vmatpush1.msra.mxu0 %v69
    %3219 = vmatprep.subr.mxu0 0.0
    %3220 = vmatpush1.msra.mxu0 %v70
    %3221 = vmatprep.subr.mxu0 0.0
    %3222 = vmatpush1.msra.mxu0 0.0
    %3223 = vmatprep.subr.mxu0 0.0
    %3224 = vmatpush1.msra.mxu0 0.0
    %3225 = vmatprep.subr.mxu0 0.0
    %3226 = vmatpush1.msra.mxu0 0.0
    %3227 = vmatprep.subr.mxu0 0.0
    %3228 = vmatpush1.msra.mxu0 0.0
    %3229 = vmatprep.subr.mxu0 0.0
    %3230 = vmatpush1.msra.mxu0 0.0
    %3231 = vmatprep.subr.mxu0 0.0
    %3232 = vmatpush1.msra.mxu0 0.0
    %3233 = vmatprep.subr.mxu0 0.0
    %3234 = vmatpush1.msra.mxu0 0.0
    %3235 = vmatprep.subr.mxu0 0.0
    %3236 = vmatpush1.msra.mxu0 0.0
    %3237 = vmatprep.subr.mxu0 0.0
    %3238 = vmatpush1.msra.mxu0 0.0
    %3239 = vmatprep.subr.mxu0 0.0
    %3240 = vmatpush1.msra.mxu0 0.0
    %3241 = vmatprep.subr.mxu0 0.0
    %3242 = vmatpush1.msra.mxu0 0.0
    %3243 = vmatprep.subr.mxu0 0.0
    %3244 = vmatpush1.msra.mxu0 0.0
    %3245 = vmatprep.subr.mxu0 0.0
    %3246 = vmatpush1.msra.mxu0 0.0
    %3247 = vmatprep.subr.mxu0 0.0
    %3248 = vmatpush1.msra.mxu0 0.0
    %3249 = vmatprep.subr.mxu0 0.0
    %3250 = vmatpush1.msra.mxu0 0.0
    %3251 = vmatprep.subr.mxu0 0.0
    %3252 = vmatpush1.msra.mxu0 0.0
    %3253 = vmatprep.subr.mxu0 0.0
    %3254 = vmatpush1.msra.mxu0 0.0
    %3255 = vmatprep.subr.mxu0 0.0
    %3256 = vmatpush1.msra.mxu0 0.0
    %3257 = vmatprep.subr.mxu0 0.0
    %3258 = vmatpush1.msra.mxu0 0.0
    %3259 = vmatprep.subr.mxu0 0.0
    %3260 = vmatpush1.msra.mxu0 0.0
    %3261 = vmatprep.subr.mxu0 0.0
    %3262 = vmatpush1.msra.mxu0 0.0
    %3263 = vmatprep.subr.mxu0 0.0
    %3264 = vmatpush1.msra.mxu0 0.0
    %3265 = vmatprep.subr.mxu0 0.0
    %3266 = vmatpush1.msra.mxu0 0.0
    %3267 = vmatprep.subr.mxu0 0.0
    %3268 = vmatpush1.msra.mxu0 0.0
    %3269 = vmatprep.subr.mxu0 0.0
    %3270 = vmatpush1.msra.mxu0 0.0
    %3271 = vmatprep.subr.mxu0 0.0
    %3272 = vmatpush1.msra.mxu0 0.0
    %3273 = vmatprep.subr.mxu0 0.0
    %3274 = vmatpush1.msra.mxu0 0.0
    %3275 = vmatprep.subr.mxu0 0.0
    %3276 = vmatpush1.msra.mxu0 0.0
    %3277 = vmatprep.subr.mxu0 0.0
    %3278 = vmatpush1.msra.mxu0 0.0
    %3279 = vmatprep.subr.mxu0 0.0
    %3280 = vmatpush1.msra.mxu0 0.0
    %3281 = vmatprep.mubr.f32.mxu0 0.0
    %3282 = vmatmul.mubr.f32.gmra.mrb[0].mxu0 %v3212
    %v3283 = vpop.f32.mrb[0].mxu0
    %v3284 = vadd.f32 0.0, %v3283
    %v3285 = vpop.f32.mrb[0].mxu0
    %3286 = vmatprep.mubr.f32.mxu0 0.0
    %3287 = vmatmul.mubr.f32.gmra.mrb[0].mxu0 %v3215
    %v3288 = vpop.f32.mrb[0].mxu0
    %v3289 = vadd.f32 0.0, %v3288
    %v3290 = vpop.f32.mrb[0].mxu0
    %3291 = vdwg.mxu0
    %v3293 = vsel %vm107, %v2799, 0
    %v3296 = vsel %vm107, %v2801, 0
    %3298 = vmatprep.subr.mxu0 0.0
    %3299 = vmatpush1.msra.mxu0 %v71
    %3300 = vmatprep.subr.mxu0 0.0
    %3301 = vmatpush1.msra.mxu0 %v72
    %3302 = vmatprep.subr.mxu0 0.0
    %3303 = vmatpush1.msra.mxu0 0.0
    %3304 = vmatprep.subr.mxu0 0.0
    %3305 = vmatpush1.msra.mxu0 0.0
    %3306 = vmatprep.subr.mxu0 0.0
    %3307 = vmatpush1.msra.mxu0 0.0
    %3308 = vmatprep.subr.mxu0 0.0
    %3309 = vmatpush1.msra.mxu0 0.0
    %3310 = vmatprep.subr.mxu0 0.0
    %3311 = vmatpush1.msra.mxu0 0.0
    %3312 = vmatprep.subr.mxu0 0.0
    %3313 = vmatpush1.msra.mxu0 0.0
    %3314 = vmatprep.subr.mxu0 0.0
    %3315 = vmatpush1.msra.mxu0 0.0
    %3316 = vmatprep.subr.mxu0 0.0
    %3317 = vmatpush1.msra.mxu0 0.0
    %3318 = vmatprep.subr.mxu0 0.0
    %3319 = vmatpush1.msra.mxu0 0.0
    %3320 = vmatprep.subr.mxu0 0.0
    %3321 = vmatpush1.msra.mxu0 0.0
    %3322 = vmatprep.subr.mxu0 0.0
    %3323 = vmatpush1.msra.mxu0 0.0
    %3324 = vmatprep.subr.mxu0 0.0
    %3325 = vmatpush1.msra.mxu0 0.0
    %3326 = vmatprep.subr.mxu0 0.0
    %3327 = vmatpush1.msra.mxu0 0.0
    %3328 = vmatprep.subr.mxu0 0.0
    %3329 = vmatpush1.msra.mxu0 0.0
    %3330 = vmatprep.subr.mxu0 0.0
    %3331 = vmatpush1.msra.mxu0 0.0
    %3332 = vmatprep.subr.mxu0 0.0
    %3333 = vmatpush1.msra.mxu0 0.0
    %3334 = vmatprep.subr.mxu0 0.0
    %3335 = vmatpush1.msra.mxu0 0.0
    %3336 = vmatprep.subr.mxu0 0.0
    %3337 = vmatpush1.msra.mxu0 0.0
    %3338 = vmatprep.subr.mxu0 0.0
    %3339 = vmatpush1.msra.mxu0 0.0
    %3340 = vmatprep.subr.mxu0 0.0
    %3341 = vmatpush1.msra.mxu0 0.0
    %3342 = vmatprep.subr.mxu0 0.0
    %3343 = vmatpush1.msra.mxu0 0.0
    %3344 = vmatprep.subr.mxu0 0.0
    %3345 = vmatpush1.msra.mxu0 0.0
    %3346 = vmatprep.subr.mxu0 0.0
    %3347 = vmatpush1.msra.mxu0 0.0
    %3348 = vmatprep.subr.mxu0 0.0
    %3349 = vmatpush1.msra.mxu0 0.0
    %3350 = vmatprep.subr.mxu0 0.0
    %3351 = vmatpush1.msra.mxu0 0.0
    %3352 = vmatprep.subr.mxu0 0.0
    %3353 = vmatpush1.msra.mxu0 0.0
    %3354 = vmatprep.subr.mxu0 0.0
    %3355 = vmatpush1.msra.mxu0 0.0
    %3356 = vmatprep.subr.mxu0 0.0
    %3357 = vmatpush1.msra.mxu0 0.0
    %3358 = vmatprep.subr.mxu0 0.0
    %3359 = vmatpush1.msra.mxu0 0.0
    %3360 = vmatprep.subr.mxu0 0.0
    %3361 = vmatpush1.msra.mxu0 0.0
    %3362 = vmatprep.mubr.f32.mxu0 0.0
    %3363 = vmatmul.mubr.f32.gmra.mrb[0].mxu0 %v3293
    %v3364 = vpop.f32.mrb[0].mxu0
    %v3365 = vadd.f32 0.0, %v3364
    %v3366 = vpop.f32.mrb[0].mxu0
    %3367 = vmatprep.mubr.f32.mxu0 0.0
    %3368 = vmatmul.mubr.f32.gmra.mrb[0].mxu0 %v3296
    %v3369 = vpop.f32.mrb[0].mxu0
    %v3370 = vadd.f32 0.0, %v3369
    %v3371 = vpop.f32.mrb[0].mxu0
    %3372 = vdwg.mxu0
    %v3374 = vsel %vm107, %v2803, 0
    %v3377 = vsel %vm107, %v2805, 0
    %3379 = vmatprep.subr.mxu0 0.0
    %3380 = vmatpush1.msra.mxu0 %v73
    %3381 = vmatprep.subr.mxu0 0.0
    %3382 = vmatpush1.msra.mxu0 %v74
    %3383 = vmatprep.subr.mxu0 0.0
    %3384 = vmatpush1.msra.mxu0 0.0
    %3385 = vmatprep.subr.mxu0 0.0
    %3386 = vmatpush1.msra.mxu0 0.0
    %3387 = vmatprep.subr.mxu0 0.0
    %3388 = vmatpush1.msra.mxu0 0.0
    %3389 = vmatprep.subr.mxu0 0.0
    %3390 = vmatpush1.msra.mxu0 0.0
    %3391 = vmatprep.subr.mxu0 0.0
    %3392 = vmatpush1.msra.mxu0 0.0
    %3393 = vmatprep.subr.mxu0 0.0
    %3394 = vmatpush1.msra.mxu0 0.0
    %3395 = vmatprep.subr.mxu0 0.0
    %3396 = vmatpush1.msra.mxu0 0.0
    %3397 = vmatprep.subr.mxu0 0.0
    %3398 = vmatpush1.msra.mxu0 0.0
    %3399 = vmatprep.subr.mxu0 0.0
    %3400 = vmatpush1.msra.mxu0 0.0
    %3401 = vmatprep.subr.mxu0 0.0
    %3402 = vmatpush1.msra.mxu0 0.0
    %3403 = vmatprep.subr.mxu0 0.0
    %3404 = vmatpush1.msra.mxu0 0.0
    %3405 = vmatprep.subr.mxu0 0.0
    %3406 = vmatpush1.msra.mxu0 0.0
    %3407 = vmatprep.subr.mxu0 0.0
    %3408 = vmatpush1.msra.mxu0 0.0
    %3409 = vmatprep.subr.mxu0 0.0
    %3410 = vmatpush1.msra.mxu0 0.0
    %3411 = vmatprep.subr.mxu0 0.0
    %3412 = vmatpush1.msra.mxu0 0.0
    %3413 = vmatprep.subr.mxu0 0.0
    %3414 = vmatpush1.msra.mxu0 0.0
    %3415 = vmatprep.subr.mxu0 0.0
    %3416 = vmatpush1.msra.mxu0 0.0
    %3417 = vmatprep.subr.mxu0 0.0
    %3418 = vmatpush1.msra.mxu0 0.0
    %3419 = vmatprep.subr.mxu0 0.0
    %3420 = vmatpush1.msra.mxu0 0.0
    %3421 = vmatprep.subr.mxu0 0.0
    %3422 = vmatpush1.msra.mxu0 0.0
    %3423 = vmatprep.subr.mxu0 0.0
    %3424 = vmatpush1.msra.mxu0 0.0
    %3425 = vmatprep.subr.mxu0 0.0
    %3426 = vmatpush1.msra.mxu0 0.0
    %3427 = vmatprep.subr.mxu0 0.0
    %3428 = vmatpush1.msra.mxu0 0.0
    %3429 = vmatprep.subr.mxu0 0.0
    %3430 = vmatpush1.msra.mxu0 0.0
    %3431 = vmatprep.subr.mxu0 0.0
    %3432 = vmatpush1.msra.mxu0 0.0
    %3433 = vmatprep.subr.mxu0 0.0
    %3434 = vmatpush1.msra.mxu0 0.0
    %3435 = vmatprep.subr.mxu0 0.0
    %3436 = vmatpush1.msra.mxu0 0.0
    %3437 = vmatprep.subr.mxu0 0.0
    %3438 = vmatpush1.msra.mxu0 0.0
    %3439 = vmatprep.subr.mxu0 0.0
    %3440 = vmatpush1.msra.mxu0 0.0
    %3441 = vmatprep.subr.mxu0 0.0
    %3442 = vmatpush1.msra.mxu0 0.0
    %3443 = vmatprep.mubr.f32.mxu0 0.0
    %3444 = vmatmul.mubr.f32.gmra.mrb[0].mxu0 %v3374
    %v3445 = vpop.f32.mrb[0].mxu0
    %v3446 = vadd.f32 0.0, %v3445
    %v3447 = vpop.f32.mrb[0].mxu0
    %3448 = vmatprep.mubr.f32.mxu0 0.0
    %3449 = vmatmul.mubr.f32.gmra.mrb[0].mxu0 %v3377
    %v3450 = vpop.f32.mrb[0].mxu0
    %v3451 = vadd.f32 0.0, %v3450
    %v3452 = vpop.f32.mrb[0].mxu0
    %3453 = vdwg.mxu0
    %3454 = vst.msk [vmem:[%s3] sm:$0xff] %vm107, %v2879
    %3455 = vst.msk [vmem:[%s3 + $0x8] sm:$0xff] %vm107, %v2884
    %3456 = vst.msk [vmem:[%s3 + $0x10] sm:$0xff] %vm107, %v2960
    %3457 = vst.msk [vmem:[%s3 + $0x18] sm:$0xff] %vm107, %v2965
    %3458 = vst.msk [vmem:[%s3 + $0x20] sm:$0xff] %vm107, %v3041
    %3459 = vst.msk [vmem:[%s3 + $0x28] sm:$0xff] %vm107, %v3046
    %3460 = vst.msk [vmem:[%s3 + $0x30] sm:$0xff] %vm107, %v3122
    %3461 = vst.msk [vmem:[%s3 + $0x38] sm:$0xff] %vm107, %v3127
    %3462 = vst.msk [vmem:[%s3 + $0x40] sm:$0xff] %vm107, %v3203
    %3463 = vst.msk [vmem:[%s3 + $0x48] sm:$0xff] %vm107, %v3208
    %3464 = vst.msk [vmem:[%s3 + $0x50] sm:$0xff] %vm107, %v3284
    %3465 = vst.msk [vmem:[%s3 + $0x58] sm:$0xff] %vm107, %v3289
    %3466 = vst.msk [vmem:[%s3 + $0x60] sm:$0xff] %vm107, %v3365
    %3467 = vst.msk [vmem:[%s3 + $0x68] sm:$0xff] %vm107, %v3370
    %3468 = vst.msk [vmem:[%s3 + $0x70] sm:$0xff] %vm107, %v3446
    %3469 = vst.msk [vmem:[%s3 + $0x78] sm:$0xff] %vm107, %v3451
    // Predicated region
    $region18: #{dis_forward.2} parent=1 // pred_check
      _
    $region19: #{dis_forward.2} parent=1 // pred_check_branch
      %3471 = sbr.rel (0) target = $region21
    $region20: #{dis_forward.2} parent=1 // pred_region
      _
    $region21: #{dis_forward.2} parent=1 // pred_fallthru
      _
    // Predicated region
    $region22: #{dis_forward.2} parent=1 // pred_check
      _
    $region23: #{dis_forward.2} parent=1 // pred_check_branch
      %3473 = sbr.rel (0) target = $region25
    $region24: #{dis_forward.2} parent=1 // pred_region
      _
    $region25: #{dis_forward.2} parent=1 // pred_fallthru
      _
    // Predicated region
    $region26: #{dis_forward.2} parent=1 // pred_check
      _
    $region27: #{dis_forward.2} parent=1 // pred_check_branch
      %3475 = sbr.rel (0) target = $region29
    $region28: #{dis_forward.2} parent=1 // pred_region
      %s3477 = ssub.s32 16, 16
      %3478 = vsyncadd [#allocation4], %s3477
      %3481 = dma.smem_to_hbm [#allocation7], 16, %s4, [#allocation4]
    $region29: #{dis_forward.2} parent=1 // pred_fallthru
      _
    // Predicated region
    $region30: #{dis_forward.2} parent=1 // pred_check
      _
    $region31: #{dis_forward.2} parent=1 // pred_check_branch
      %3483 = sbr.rel (0) target = $region33
    $region32: #{dis_forward.2} parent=1 // pred_region
      _
    $region33: #{dis_forward.2} parent=1 // pred_fallthru
      _
    // Predicated region
    $region34: #{dis_forward.2} parent=1 // pred_check
      _
    $region35: #{dis_forward.2} parent=1 // pred_check_branch
      %3485 = sbr.rel (0) target = $region37
    $region36: #{dis_forward.2} parent=1 // pred_region
      _
    $region37: #{dis_forward.2} parent=1 // pred_fallthru
      _
    // Predicated region
    $region38: #{dis_forward.2} parent=1 // pred_check
      _
    $region39: #{dis_forward.2} parent=1 // pred_check_branch
      %3487 = sbr.rel (0) target = $region41
    $region40: #{dis_forward.2} parent=1 // pred_region
      %3488 = dma.done [#allocation4], 16
    $region41: #{dis_forward.2} parent=1 // pred_fallthru
      _
    %3489 = sfence
    %3490 = vsyncpa [#allocation3], 1
    %3491 = vsyncpa [#allocation6], 1
    %3492 = vsyncpa [#allocation4], 1

// kernel: dis_forward.3
$region0: #{dis_forward.3}
  #allocation0 [shape = 'u32[]', space=smem, size = 0x4, offset = 0x4, fixed_abs, tag = 'smem constant byte address 0x4 - core index']
  #allocation1 [shape = 'u32[144,128]{1,0:T(1,128)}', space=vmem, size = 0x12000, scoped, tag = 'internal scratch']
  #allocation2 [shape = 'f32[72,256]{1,0:T(8,128)}', space=vmem, size = 0x12000, scoped, tag = 'scratch operand']
  #allocation3 [shape = 'f32[8,256]{1,0:T(8,128)}', space=vmem, size = 0x2000, scoped, tag = 'scratch operand']
  %s0 = inlined_call_operand.vmem [shape: f32[2,4,256], index: 0, kind: input, shape index: {}]
  %s1 = inlined_call_operand.vmem [shape: f32[2,4,256], index: 1, kind: input, shape index: {}]
  %s2 = inlined_call_operand.vmem [shape: f32[4,36], index: 2, kind: input, shape index: {}]
  %s3 = inlined_call_operand.vmem [shape: f32[4,1], index: 3, kind: input, shape index: {}]
  %s4 = inlined_call_operand.vmem [shape: f32[4,36], index: 4, kind: input, shape index: {}]
  %s5 = inlined_call_operand.vmem [shape: f32[4,1], index: 5, kind: input, shape index: {}]
  %s6 = inlined_call_operand.vmem [shape: f32[4,72], index: 6, kind: input, shape index: {}]
  %s7 = inlined_call_operand.vmem [shape: f32[4,1], index: 7, kind: input, shape index: {}]
  %s8 = inlined_call_operand.vmem [shape: f32[4,36], index: 8, kind: input, shape index: {}]
  %s9 = inlined_call_operand.vmem [shape: f32[4,1], index: 9, kind: input, shape index: {}]
  %s10 = inlined_call_operand.hbm [shape: f32[1,1], index: 10, kind: output, shape index: {}]
  %s11 = sld [smem:[#allocation0]]
  $region50: #{dis_forward.3} parent=0
    _
  %s13 = ssub.s32 1, %s11
  %s14 = scalar_select 0, %s13, %s11
  $region1: #{dis_forward.3} parent=0
    #allocation4 [shape = 'u8[512]{0}', space=smem, size = 0x200, scoped, tag = 'output window, operand 0, single buffered']
    #allocation5 [shape = 's32[1]{0}', space=sflag, size = 0x4, scoped, tag = 'scoped memory for dis_forward.3']
    %15 = vsyncpa [#allocation5], 0
    // Predicated region
    $region2: #{dis_forward.3} parent=1 // pred_check
      _
    $region3: #{dis_forward.3} parent=1 // pred_check_branch
      %17 = sbr.rel (0) target = $region5
    $region4: #{dis_forward.3} parent=1 // pred_region
      _
    $region5: #{dis_forward.3} parent=1 // pred_fallthru
      _
    // Predicated region
    $region6: #{dis_forward.3} parent=1 // pred_check
      _
    $region7: #{dis_forward.3} parent=1 // pred_check_branch
      %19 = sbr.rel (0) target = $region9
    $region8: #{dis_forward.3} parent=1 // pred_region
      _
    $region9: #{dis_forward.3} parent=1 // pred_fallthru
      _
    // Predicated region
    $region10: #{dis_forward.3} parent=1 // pred_check
      _
    $region11: #{dis_forward.3} parent=1 // pred_check_branch
      %21 = sbr.rel (0) target = $region13
    $region12: #{dis_forward.3} parent=1 // pred_region
      _
    $region13: #{dis_forward.3} parent=1 // pred_fallthru
      _
    // Predicated region
    $region14: #{dis_forward.3} parent=1 // pred_check
      _
    $region15: #{dis_forward.3} parent=1 // pred_check_branch
      %23 = sbr.rel (0) target = $region17
    $region16: #{dis_forward.3} parent=1 // pred_region
      _
    $region17: #{dis_forward.3} parent=1 // pred_fallthru
      _
    // Predicated region
    $region18: #{dis_forward.3} parent=1 // pred_check
      _
    $region19: #{dis_forward.3} parent=1 // pred_check_branch
      %25 = sbr.rel (0) target = $region21
    $region20: #{dis_forward.3} parent=1 // pred_region
      _
    $region21: #{dis_forward.3} parent=1 // pred_fallthru
      _
    // Predicated region
    $region22: #{dis_forward.3} parent=1 // pred_check
      _
    $region23: #{dis_forward.3} parent=1 // pred_check_branch
      %27 = sbr.rel (0) target = $region25
    $region24: #{dis_forward.3} parent=1 // pred_region
      _
    $region25: #{dis_forward.3} parent=1 // pred_fallthru
      _
    // Predicated region
    $region26: #{dis_forward.3} parent=1 // pred_check
      _
    $region27: #{dis_forward.3} parent=1 // pred_check_branch
      %29 = sbr.rel (0) target = $region29
    $region28: #{dis_forward.3} parent=1 // pred_region
      _
    $region29: #{dis_forward.3} parent=1 // pred_fallthru
      _
    // Predicated region
    $region30: #{dis_forward.3} parent=1 // pred_check
      _
    $region31: #{dis_forward.3} parent=1 // pred_check_branch
      %31 = sbr.rel (0) target = $region33
    $region32: #{dis_forward.3} parent=1 // pred_region
      _
    $region33: #{dis_forward.3} parent=1 // pred_fallthru
      _
    // Predicated region
    $region34: #{dis_forward.3} parent=1 // pred_check
      _
    $region35: #{dis_forward.3} parent=1 // pred_check_branch
      %33 = sbr.rel (0) target = $region37
    $region36: #{dis_forward.3} parent=1 // pred_region
      _
    $region37: #{dis_forward.3} parent=1 // pred_fallthru
      _
    // Predicated region
    $region38: #{dis_forward.3} parent=1 // pred_check
      _
    $region39: #{dis_forward.3} parent=1 // pred_check_branch
      %35 = sbr.rel (0) target = $region41
    $region40: #{dis_forward.3} parent=1 // pred_region
      _
    $region41: #{dis_forward.3} parent=1 // pred_fallthru
      _
    %v36 = vlaneseq
    %v37 = vand.u32 %v36, 127
    %v38 = vadd.s32 %v37, 128
    %v39 = vand.u32 %v37, 15
    %v40 = vand.u32 %v38, 15
    %vm41 = vcmp.ge.s32.totalorder %v39, 1
    %vm42 = vcmp.ge.s32.totalorder %v40, 1
    %v43 = vsel %vm41, 1, 0
    %v44 = vsel %vm42, 1, 0
    %v45 = vcvt.s32.f32 %v43
    %v46 = vcvt.s32.f32 %v44
    %vm47 = vcmp.le.s32.totalorder %v39, 14
    %vm48 = vcmp.le.s32.totalorder %v40, 14
    %v49 = vsel %vm47, 1, 0
    %v50 = vsel %vm48, 1, 0
    %v51 = vcvt.s32.f32 %v49
    %v52 = vcvt.s32.f32 %v50
    %v53 = vld [vmem:[%s2] sm:$0xf]
    %v54 = vld [vmem:[%s3] sm:$0xf]
    %v55 = vld [vmem:[%s4] sm:$0xf]
    %v56 = vld [vmem:[%s5] sm:$0xf]
    %v57 = vld [vmem:[%s6] sm:$0xf]
    %v58 = vld [vmem:[%s7] sm:$0xf]
    %v59 = vld [vmem:[%s8] sm:$0xf]
    %v60 = vld [vmem:[%s9] sm:$0xf]
    %v61 = vld [vmem:[%s0] sm:$0xff]
    %v62 = vld [vmem:[%s1] sm:$0xff]
    %63 = vst [vmem:[#allocation2] sm:$0xff] 0.0
    %64 = vst [vmem:[#allocation2 + $0x8] sm:$0xff] 0.0
    %65 = vst [vmem:[#allocation2 + $0x10] sm:$0xff] 0.0
    %66 = vst [vmem:[#allocation2 + $0x18] sm:$0xff] 0.0
    %67 = vst [vmem:[#allocation2 + $0x20] sm:$0xff] 0.0
    %68 = vst [vmem:[#allocation2 + $0x28] sm:$0xff] 0.0
    %69 = vst [vmem:[#allocation2 + $0x30] sm:$0xff] 0.0
    %70 = vst [vmem:[#allocation2 + $0x38] sm:$0xff] 0.0
    %71 = vst [vmem:[#allocation2 + $0x40] sm:$0xf] 0.0
    %72 = vst [vmem:[#allocation2 + $0x48] sm:$0xf] 0.0
    %v75 = vcombine.low %v45, %v46
    %76 = vrot.lane.b32.xlu0 %v75, 111
    %v77 = vpop.permute.xlu0 %76
    %v78 = vrot.slane %v77, 4
    %vm79 = vcmask 908288
    %v80 = vsel %vm79, %v77, %v78
    %v82 = vmul.f32 %v61, %v80
    %v84 = vcombine.high %v82, %v82
    %85 = vrot.lane.b32.xlu0 %v82, 17
    %v86 = vpop.permute.xlu0 %85
    %87 = vrot.lane.b32.xlu0 %v84, 17
    %v88 = vpop.permute.xlu0 %87
    %vm89 = vcmask 138240
    %v90 = vsel %vm89, %v86, %v88
    %vm93 = vcmask 1043592
    %94 = vst.msk [vmem:[#allocation2] sm:$0xf] %vm93, %v86
    %95 = vst [vmem:[#allocation2 + $0x8] sm:$0xf] %v90
    %v97 = vcombine.low %v61, %v61
    %98 = vrot.lane.b32.xlu0 %v97, 16
    %v99 = vpop.permute.xlu0 %98
    %100 = vrot.lane.b32.xlu0 %v61, 16
    %v101 = vpop.permute.xlu0 %100
    %vm102 = vcmask 130048
    %v103 = vsel %vm102, %v99, %v101
    %vm106 = vcmask 1047684
    %107 = vst.msk [vmem:[#allocation2] sm:$0xf0] %vm106, %v99
    %108 = vst [vmem:[#allocation2 + $0x8] sm:$0xf0] %v103
    %v111 = vcombine.low %v51, %v52
    %112 = vrot.lane.b32.xlu0 %v111, 113
    %v113 = vpop.permute.xlu0 %112
    %v114 = vrot.slane %v113, 4
    %vm115 = vcmask 924672
    %v116 = vsel %vm115, %v113, %v114
    %v118 = vmul.f32 %v61, %v116
    %v120 = vcombine.high %v118, %v118
    %121 = vrot.lane.b32.xlu0 %v118, 15
    %v122 = vpop.permute.xlu0 %121
    %123 = vrot.lane.b32.xlu0 %v120, 15
    %v124 = vpop.permute.xlu0 %123
    %vm125 = vcmask 121856
    %v126 = vsel %vm125, %v122, %v124
    %vm129 = vcmask 1043576
    %130 = vst.msk [vmem:[#allocation2 + $0x10] sm:$0xf] %vm129, %v122
    %131 = vst [vmem:[#allocation2 + $0x18] sm:$0xf] %v126
    %132 = vrot.lane.b32.xlu0 %v75, 127
    %v133 = vpop.permute.xlu0 %132
    %v134 = vrot.slane %v133, 4
    %vm135 = vcmask 1039360
    %v136 = vsel %vm135, %v133, %v134
    %v138 = vmul.f32 %v61, %v136
    %v140 = vcombine.low %v138, %v138
    %141 = vrot.lane.b32.xlu0 %v140, 1
    %v142 = vpop.permute.xlu0 %141
    %143 = vrot.lane.b32.xlu0 %v138, 1
    %v144 = vpop.permute.xlu0 %143
    %vm145 = vcmask 7168
    %v146 = vsel %vm145, %v142, %v144
    %vm149 = vcmask 1047564
    %150 = vst.msk [vmem:[#allocation2 + $0x10] sm:$0xf0] %vm149, %v142
    %151 = vst [vmem:[#allocation2 + $0x18] sm:$0xf0] %v146
    %v152 = vcombine.high %v61, %v61
    %154 = vst [vmem:[#allocation2 + $0x20] sm:$0xf] %v61
    %155 = vst [vmem:[#allocation2 + $0x28] sm:$0xf] %v152
    %156 = vrot.lane.b32.xlu0 %v111, 1
    %v157 = vpop.permute.xlu0 %156
    %v158 = vrot.slane %v157, 4
    %v159 = vsel %vm145, %v158, %v157
    %v161 = vmul.f32 %v61, %v159
    %v163 = vcombine.low %v161, %v161
    %164 = vrot.lane.b32.xlu0 %v163, 127
    %v165 = vpop.permute.xlu0 %164
    %166 = vrot.lane.b32.xlu0 %v161, 127
    %v167 = vpop.permute.xlu0 %166
    %v168 = vsel %vm135, %v165, %v167
    %171 = vst [vmem:[#allocation2 + $0x20] sm:$0xf0] %v168
    %vm172 = vcmask 1039364
    %173 = vst.msk [vmem:[#allocation2 + $0x28] sm:$0xf0] %vm172, %v167
    %174 = vrot.lane.b32.xlu0 %v75, 15
    %v175 = vpop.permute.xlu0 %174
    %v176 = vrot.slane %v175, 4
    %v177 = vsel %vm125, %v176, %v175
    %v179 = vmul.f32 %v61, %v177
    %v181 = vcombine.high %v179, %v179
    %182 = vrot.lane.b32.xlu0 %v179, 113
    %v183 = vpop.permute.xlu0 %182
    %184 = vrot.lane.b32.xlu0 %v181, 113
    %v185 = vpop.permute.xlu0 %184
    %v186 = vsel %vm115, %v183, %v185
    %189 = vst [vmem:[#allocation2 + $0x30] sm:$0xf] %v186
    %vm190 = vcmask 920576
    %191 = vst.msk [vmem:[#allocation2 + $0x38] sm:$0xf] %vm190, %v185
    %192 = vrot.lane.b32.xlu0 %v97, 112
    %v193 = vpop.permute.xlu0 %192
    %194 = vrot.lane.b32.xlu0 %v61, 112
    %v195 = vpop.permute.xlu0 %194
    %vm196 = vcmask 916480
    %v197 = vsel %vm196, %v193, %v195
    %200 = vst [vmem:[#allocation2 + $0x30] sm:$0xf0] %v197
    %vm201 = vcmask 916484
    %202 = vst.msk [vmem:[#allocation2 + $0x38] sm:$0xf0] %vm201, %v195
    %203 = vrot.lane.b32.xlu0 %v111, 17
    %v204 = vpop.permute.xlu0 %203
    %v205 = vrot.slane %v204, 4
    %v206 = vsel %vm89, %v205, %v204
    %v208 = vmul.f32 %v61, %v206
    %v210 = vcombine.high %v208, %v208
    %211 = vrot.lane.b32.xlu0 %v208, 111
    %v212 = vpop.permute.xlu0 %211
    %213 = vrot.lane.b32.xlu0 %v210, 111
    %v214 = vpop.permute.xlu0 %213
    %v215 = vsel %vm79, %v212, %v214
    %218 = vst [vmem:[#allocation2 + $0x40] sm:$0xf] %v215
    %vm219 = vcmask 904192
    %220 = vst.msk [vmem:[#allocation2 + $0x48] sm:$0xf] %vm219, %v214
    %v221 = vld [vmem:[#allocation2] sm:$0xff]
    %v222 = vld [vmem:[#allocation2 + $0x8] sm:$0xff]
    %v223 = vld [vmem:[#allocation2 + $0x10] sm:$0xff]
    %v224 = vld [vmem:[#allocation2 + $0x18] sm:$0xff]
    %v225 = vld [vmem:[#allocation2 + $0x20] sm:$0xff]
    %v226 = vld [vmem:[#allocation2 + $0x28] sm:$0xff]
    %v227 = vld [vmem:[#allocation2 + $0x30] sm:$0xff]
    %v228 = vld [vmem:[#allocation2 + $0x38] sm:$0xff]
    %v229 = vld [vmem:[#allocation2 + $0x40] sm:$0xf]
    %v230 = vld [vmem:[#allocation2 + $0x48] sm:$0xf]
    %232 = vset.pattern.permute.xlu0 0
    %233 = vperm.xlu0 %232, %v54
    %v234 = vpop.permute.xlu0 %233
    %vm236 = vcmask 293888
    %v238 = vsel %vm236, %v53, 0
    %vm240 = vcmask 1043456
    %v242 = vsel %vm240, %v229, 0
    %v245 = vsel %vm240, %v230, 0
    %247 = vmatprep.subr.mxu0 %v222
    %248 = vmatpush1.msra.mxu0 %v221
    %249 = vmatprep.subr.mxu0 %v224
    %250 = vmatpush1.msra.mxu0 %v223
    %251 = vmatprep.subr.mxu0 %v226
    %252 = vmatpush1.msra.mxu0 %v225
    %253 = vmatprep.subr.mxu0 %v228
    %254 = vmatpush1.msra.mxu0 %v227
    %255 = vmatprep.subr.mxu0 %v245
    %256 = vmatpush1.msra.mxu0 %v242
    %257 = vmatprep.subr.mxu0 0.0
    %258 = vmatpush1.msra.mxu0 0.0
    %259 = vmatprep.subr.mxu0 0.0
    %260 = vmatpush1.msra.mxu0 0.0
    %261 = vmatprep.subr.mxu0 0.0
    %262 = vmatpush1.msra.mxu0 0.0
    %263 = vmatprep.subr.mxu0 0.0
    %264 = vmatpush1.msra.mxu0 0.0
    %265 = vmatprep.subr.mxu0 0.0
    %266 = vmatpush1.msra.mxu0 0.0
    %267 = vmatprep.subr.mxu0 0.0
    %268 = vmatpush1.msra.mxu0 0.0
    %269 = vmatprep.subr.mxu0 0.0
    %270 = vmatpush1.msra.mxu0 0.0
    %271 = vmatprep.subr.mxu0 0.0
    %272 = vmatpush1.msra.mxu0 0.0
    %273 = vmatprep.subr.mxu0 0.0
    %274 = vmatpush1.msra.mxu0 0.0
    %275 = vmatprep.subr.mxu0 0.0
    %276 = vmatpush1.msra.mxu0 0.0
    %277 = vmatprep.subr.mxu0 0.0
    %278 = vmatpush1.msra.mxu0 0.0
    %279 = vmatprep.subr.mxu0 0.0
    %280 = vmatpush1.msra.mxu0 0.0
    %281 = vmatprep.subr.mxu0 0.0
    %282 = vmatpush1.msra.mxu0 0.0
    %283 = vmatprep.subr.mxu0 0.0
    %284 = vmatpush1.msra.mxu0 0.0
    %285 = vmatprep.subr.mxu0 0.0
    %286 = vmatpush1.msra.mxu0 0.0
    %287 = vmatprep.subr.mxu0 0.0
    %288 = vmatpush1.msra.mxu0 0.0
    %289 = vmatprep.subr.mxu0 0.0
    %290 = vmatpush1.msra.mxu0 0.0
    %291 = vmatprep.subr.mxu0 0.0
    %292 = vmatpush1.msra.mxu0 0.0
    %293 = vmatprep.subr.mxu0 0.0
    %294 = vmatpush1.msra.mxu0 0.0
    %295 = vmatprep.subr.mxu0 0.0
    %296 = vmatpush1.msra.mxu0 0.0
    %297 = vmatprep.subr.mxu0 0.0
    %298 = vmatpush1.msra.mxu0 0.0
    %299 = vmatprep.subr.mxu0 0.0
    %300 = vmatpush1.msra.mxu0 0.0
    %301 = vmatprep.subr.mxu0 0.0
    %302 = vmatpush1.msra.mxu0 0.0
    %303 = vmatprep.subr.mxu0 0.0
    %304 = vmatpush1.msra.mxu0 0.0
    %305 = vmatprep.subr.mxu0 0.0
    %306 = vmatpush1.msra.mxu0 0.0
    %307 = vmatprep.subr.mxu0 0.0
    %308 = vmatpush1.msra.mxu0 0.0
    %309 = vmatprep.subr.mxu0 0.0
    %310 = vmatpush1.msra.mxu0 0.0
    %311 = vmatprep.mubr.f32.mxu0 0.0
    %312 = vmatmul.mubr.f32.gmra.mrb[0].mxu0 %v238
    %v313 = vpop.f32.mrb[0].mxu0
    %v314 = vadd.f32 %v234, %v313
    %v315 = vpop.f32.mrb[0].mxu0
    %v316 = vadd.f32 %v234, %v315
    %317 = vdwg.mxu0
    %318 = vst [vmem:[#allocation2] sm:$0xff] 0.0
    %319 = vst [vmem:[#allocation2 + $0x8] sm:$0xff] 0.0
    %320 = vst [vmem:[#allocation2 + $0x10] sm:$0xff] 0.0
    %321 = vst [vmem:[#allocation2 + $0x18] sm:$0xff] 0.0
    %322 = vst [vmem:[#allocation2 + $0x20] sm:$0xff] 0.0
    %323 = vst [vmem:[#allocation2 + $0x28] sm:$0xff] 0.0
    %324 = vst [vmem:[#allocation2 + $0x30] sm:$0xff] 0.0
    %325 = vst [vmem:[#allocation2 + $0x38] sm:$0xff] 0.0
    %326 = vst [vmem:[#allocation2 + $0x40] sm:$0xf] 0.0
    %327 = vst [vmem:[#allocation2 + $0x48] sm:$0xf] 0.0
    %v328 = vmul.f32 %v62, %v80
    %v330 = vcombine.high %v328, %v328
    %331 = vrot.lane.b32.xlu0 %v328, 17
    %v332 = vpop.permute.xlu0 %331
    %333 = vrot.lane.b32.xlu0 %v330, 17
    %v334 = vpop.permute.xlu0 %333
    %v335 = vsel %vm89, %v332, %v334
    %338 = vst.msk [vmem:[#allocation2] sm:$0xf] %vm93, %v332
    %339 = vst [vmem:[#allocation2 + $0x8] sm:$0xf] %v335
    %v341 = vcombine.low %v62, %v62
    %342 = vrot.lane.b32.xlu0 %v341, 16
    %v343 = vpop.permute.xlu0 %342
    %344 = vrot.lane.b32.xlu0 %v62, 16
    %v345 = vpop.permute.xlu0 %344
    %v346 = vsel %vm102, %v343, %v345
    %349 = vst.msk [vmem:[#allocation2] sm:$0xf0] %vm106, %v343
    %350 = vst [vmem:[#allocation2 + $0x8] sm:$0xf0] %v346
    %v351 = vmul.f32 %v62, %v116
    %v353 = vcombine.high %v351, %v351
    %354 = vrot.lane.b32.xlu0 %v351, 15
    %v355 = vpop.permute.xlu0 %354
    %356 = vrot.lane.b32.xlu0 %v353, 15
    %v357 = vpop.permute.xlu0 %356
    %v358 = vsel %vm125, %v355, %v357
    %361 = vst.msk [vmem:[#allocation2 + $0x10] sm:$0xf] %vm129, %v355
    %362 = vst [vmem:[#allocation2 + $0x18] sm:$0xf] %v358
    %v363 = vmul.f32 %v62, %v136
    %v365 = vcombine.low %v363, %v363
    %366 = vrot.lane.b32.xlu0 %v365, 1
    %v367 = vpop.permute.xlu0 %366
    %368 = vrot.lane.b32.xlu0 %v363, 1
    %v369 = vpop.permute.xlu0 %368
    %v370 = vsel %vm145, %v367, %v369
    %373 = vst.msk [vmem:[#allocation2 + $0x10] sm:$0xf0] %vm149, %v367
    %374 = vst [vmem:[#allocation2 + $0x18] sm:$0xf0] %v370
    %v375 = vcombine.high %v62, %v62
    %377 = vst [vmem:[#allocation2 + $0x20] sm:$0xf] %v62
    %378 = vst [vmem:[#allocation2 + $0x28] sm:$0xf] %v375
    %v379 = vmul.f32 %v62, %v159
    %v381 = vcombine.low %v379, %v379
    %382 = vrot.lane.b32.xlu0 %v381, 127
    %v383 = vpop.permute.xlu0 %382
    %384 = vrot.lane.b32.xlu0 %v379, 127
    %v385 = vpop.permute.xlu0 %384
    %v386 = vsel %vm135, %v383, %v385
    %389 = vst [vmem:[#allocation2 + $0x20] sm:$0xf0] %v386
    %390 = vst.msk [vmem:[#allocation2 + $0x28] sm:$0xf0] %vm172, %v385
    %v391 = vmul.f32 %v62, %v177
    %v393 = vcombine.high %v391, %v391
    %394 = vrot.lane.b32.xlu0 %v391, 113
    %v395 = vpop.permute.xlu0 %394
    %396 = vrot.lane.b32.xlu0 %v393, 113
    %v397 = vpop.permute.xlu0 %396
    %v398 = vsel %vm115, %v395, %v397
    %401 = vst [vmem:[#allocation2 + $0x30] sm:$0xf] %v398
    %402 = vst.msk [vmem:[#allocation2 + $0x38] sm:$0xf] %vm190, %v397
    %403 = vrot.lane.b32.xlu0 %v341, 112
    %v404 = vpop.permute.xlu0 %403
    %405 = vrot.lane.b32.xlu0 %v62, 112
    %v406 = vpop.permute.xlu0 %405
    %v407 = vsel %vm196, %v404, %v406
    %410 = vst [vmem:[#allocation2 + $0x30] sm:$0xf0] %v407
    %411 = vst.msk [vmem:[#allocation2 + $0x38] sm:$0xf0] %vm201, %v406
    %v412 = vmul.f32 %v62, %v206
    %v414 = vcombine.high %v412, %v412
    %415 = vrot.lane.b32.xlu0 %v412, 111
    %v416 = vpop.permute.xlu0 %415
    %417 = vrot.lane.b32.xlu0 %v414, 111
    %v418 = vpop.permute.xlu0 %417
    %v419 = vsel %vm79, %v416, %v418
    %422 = vst [vmem:[#allocation2 + $0x40] sm:$0xf] %v419
    %423 = vst.msk [vmem:[#allocation2 + $0x48] sm:$0xf] %vm219, %v418
    %v424 = vld [vmem:[#allocation2] sm:$0xff]
    %v425 = vld [vmem:[#allocation2 + $0x8] sm:$0xff]
    %v426 = vld [vmem:[#allocation2 + $0x10] sm:$0xff]
    %v427 = vld [vmem:[#allocation2 + $0x18] sm:$0xff]
    %v428 = vld [vmem:[#allocation2 + $0x20] sm:$0xff]
    %v429 = vld [vmem:[#allocation2 + $0x28] sm:$0xff]
    %v430 = vld [vmem:[#allocation2 + $0x30] sm:$0xff]
    %v431 = vld [vmem:[#allocation2 + $0x38] sm:$0xff]
    %v432 = vld [vmem:[#allocation2 + $0x40] sm:$0xf]
    %v433 = vld [vmem:[#allocation2 + $0x48] sm:$0xf]
    %435 = vset.pattern.permute.xlu0 0
    %436 = vperm.xlu0 %435, %v56
    %v437 = vpop.permute.xlu0 %436
    %v440 = vsel %vm236, %v55, 0
    %v443 = vsel %vm240, %v432, 0
    %v446 = vsel %vm240, %v433, 0
    %448 = vmatprep.subr.mxu0 %v425
    %449 = vmatpush1.msra.mxu0 %v424
    %450 = vmatprep.subr.mxu0 %v427
    %451 = vmatpush1.msra.mxu0 %v426
    %452 = vmatprep.subr.mxu0 %v429
    %453 = vmatpush1.msra.mxu0 %v428
    %454 = vmatprep.subr.mxu0 %v431
    %455 = vmatpush1.msra.mxu0 %v430
    %456 = vmatprep.subr.mxu0 %v446
    %457 = vmatpush1.msra.mxu0 %v443
    %458 = vmatprep.subr.mxu0 0.0
    %459 = vmatpush1.msra.mxu0 0.0
    %460 = vmatprep.subr.mxu0 0.0
    %461 = vmatpush1.msra.mxu0 0.0
    %462 = vmatprep.subr.mxu0 0.0
    %463 = vmatpush1.msra.mxu0 0.0
    %464 = vmatprep.subr.mxu0 0.0
    %465 = vmatpush1.msra.mxu0 0.0
    %466 = vmatprep.subr.mxu0 0.0
    %467 = vmatpush1.msra.mxu0 0.0
    %468 = vmatprep.subr.mxu0 0.0
    %469 = vmatpush1.msra.mxu0 0.0
    %470 = vmatprep.subr.mxu0 0.0
    %471 = vmatpush1.msra.mxu0 0.0
    %472 = vmatprep.subr.mxu0 0.0
    %473 = vmatpush1.msra.mxu0 0.0
    %474 = vmatprep.subr.mxu0 0.0
    %475 = vmatpush1.msra.mxu0 0.0
    %476 = vmatprep.subr.mxu0 0.0
    %477 = vmatpush1.msra.mxu0 0.0
    %478 = vmatprep.subr.mxu0 0.0
    %479 = vmatpush1.msra.mxu0 0.0
    %480 = vmatprep.subr.mxu0 0.0
    %481 = vmatpush1.msra.mxu0 0.0
    %482 = vmatprep.subr.mxu0 0.0
    %483 = vmatpush1.msra.mxu0 0.0
    %484 = vmatprep.subr.mxu0 0.0
    %485 = vmatpush1.msra.mxu0 0.0
    %486 = vmatprep.subr.mxu0 0.0
    %487 = vmatpush1.msra.mxu0 0.0
    %488 = vmatprep.subr.mxu0 0.0
    %489 = vmatpush1.msra.mxu0 0.0
    %490 = vmatprep.subr.mxu0 0.0
    %491 = vmatpush1.msra.mxu0 0.0
    %492 = vmatprep.subr.mxu0 0.0
    %493 = vmatpush1.msra.mxu0 0.0
    %494 = vmatprep.subr.mxu0 0.0
    %495 = vmatpush1.msra.mxu0 0.0
    %496 = vmatprep.subr.mxu0 0.0
    %497 = vmatpush1.msra.mxu0 0.0
    %498 = vmatprep.subr.mxu0 0.0
    %499 = vmatpush1.msra.mxu0 0.0
    %500 = vmatprep.subr.mxu0 0.0
    %501 = vmatpush1.msra.mxu0 0.0
    %502 = vmatprep.subr.mxu0 0.0
    %503 = vmatpush1.msra.mxu0 0.0
    %504 = vmatprep.subr.mxu0 0.0
    %505 = vmatpush1.msra.mxu0 0.0
    %506 = vmatprep.subr.mxu0 0.0
    %507 = vmatpush1.msra.mxu0 0.0
    %508 = vmatprep.subr.mxu0 0.0
    %509 = vmatpush1.msra.mxu0 0.0
    %510 = vmatprep.subr.mxu0 0.0
    %511 = vmatpush1.msra.mxu0 0.0
    %512 = vmatprep.mubr.f32.mxu0 0.0
    %513 = vmatmul.mubr.f32.gmra.mrb[0].mxu0 %v440
    %v514 = vpop.f32.mrb[0].mxu0
    %v515 = vadd.f32 %v437, %v514
    %v516 = vpop.f32.mrb[0].mxu0
    %v517 = vadd.f32 %v437, %v516
    %518 = vdwg.mxu0
    %519 = vst [vmem:[#allocation3] sm:$0xf] %v515
    %520 = vst [vmem:[#allocation3 + $0x8] sm:$0xf] %v517
    %v523 = vrot.slane %v314, 4
    %v524 = vrot.slane %v316, 4
    %527 = vst [vmem:[#allocation3] sm:$0xf0] %v523
    %528 = vst [vmem:[#allocation3 + $0x8] sm:$0xf0] %v524
    %v529 = vld [vmem:[#allocation3] sm:$0xff]
    %v530 = vld [vmem:[#allocation3 + $0x8] sm:$0xff]
    %531 = vst [vmem:[#allocation2] sm:$0xff] 0.0
    %532 = vst [vmem:[#allocation2 + $0x8] sm:$0xff] 0.0
    %533 = vst [vmem:[#allocation2 + $0x10] sm:$0xff] 0.0
    %534 = vst [vmem:[#allocation2 + $0x18] sm:$0xff] 0.0
    %535 = vst [vmem:[#allocation2 + $0x20] sm:$0xff] 0.0
    %536 = vst [vmem:[#allocation2 + $0x28] sm:$0xff] 0.0
    %537 = vst [vmem:[#allocation2 + $0x30] sm:$0xff] 0.0
    %538 = vst [vmem:[#allocation2 + $0x38] sm:$0xff] 0.0
    %539 = vst [vmem:[#allocation2 + $0x40] sm:$0xff] 0.0
    %540 = vst [vmem:[#allocation2 + $0x48] sm:$0xff] 0.0
    %541 = vst [vmem:[#allocation2 + $0x50] sm:$0xff] 0.0
    %542 = vst [vmem:[#allocation2 + $0x58] sm:$0xff] 0.0
    %543 = vst [vmem:[#allocation2 + $0x60] sm:$0xff] 0.0
    %544 = vst [vmem:[#allocation2 + $0x68] sm:$0xff] 0.0
    %545 = vst [vmem:[#allocation2 + $0x70] sm:$0xff] 0.0
    %546 = vst [vmem:[#allocation2 + $0x78] sm:$0xff] 0.0
    %547 = vst [vmem:[#allocation2 + $0x80] sm:$0xff] 0.0
    %548 = vst [vmem:[#allocation2 + $0x88] sm:$0xff] 0.0
    %549 = vrot.lane.b32.xlu0 %v45, 111
    %v550 = vpop.permute.xlu0 %549
    %551 = vrot.lane.b32.xlu0 %v46, 111
    %v552 = vpop.permute.xlu0 %551
    %v553 = vsel %vm79, %v550, %v552
    %v556 = vmul.f32 %v529, %v553
    %v557 = vmul.f32 %v530, %v552
    %560 = vrot.lane.b32.xlu0 %v556, 17
    %v561 = vpop.permute.xlu0 %560
    %562 = vrot.lane.b32.xlu0 %v557, 17
    %v563 = vpop.permute.xlu0 %562
    %v564 = vsel %vm89, %v561, %v563
    %vm567 = vcmask 1047688
    %568 = vst.msk [vmem:[#allocation2] sm:$0xff] %vm567, %v561
    %569 = vst [vmem:[#allocation2 + $0x8] sm:$0xff] %v564
    %572 = vrot.lane.b32.xlu0 %v529, 16
    %v573 = vpop.permute.xlu0 %572
    %574 = vrot.lane.b32.xlu0 %v530, 16
    %v575 = vpop.permute.xlu0 %574
    %v576 = vsel %vm102, %v573, %v575
    %vm579 = vcmask 1047680
    %580 = vst.msk [vmem:[#allocation2 + $0x10] sm:$0xff] %vm579, %v573
    %581 = vst [vmem:[#allocation2 + $0x18] sm:$0xff] %v576
    %582 = vrot.lane.b32.xlu0 %v51, 113
    %v583 = vpop.permute.xlu0 %582
    %584 = vrot.lane.b32.xlu0 %v52, 113
    %v585 = vpop.permute.xlu0 %584
    %v586 = vsel %vm115, %v583, %v585
    %v589 = vmul.f32 %v529, %v586
    %v590 = vmul.f32 %v530, %v585
    %593 = vrot.lane.b32.xlu0 %v589, 15
    %v594 = vpop.permute.xlu0 %593
    %595 = vrot.lane.b32.xlu0 %v590, 15
    %v596 = vpop.permute.xlu0 %595
    %v597 = vsel %vm125, %v594, %v596
    %vm600 = vcmask 1047672
    %601 = vst.msk [vmem:[#allocation2 + $0x20] sm:$0xff] %vm600, %v594
    %602 = vst [vmem:[#allocation2 + $0x28] sm:$0xff] %v597
    %603 = vrot.lane.b32.xlu0 %v45, 127
    %v604 = vpop.permute.xlu0 %603
    %605 = vrot.lane.b32.xlu0 %v46, 127
    %v606 = vpop.permute.xlu0 %605
    %v607 = vsel %vm135, %v604, %v606
    %v610 = vmul.f32 %v529, %v607
    %v611 = vmul.f32 %v530, %v606
    %614 = vrot.lane.b32.xlu0 %v610, 1
    %v615 = vpop.permute.xlu0 %614
    %616 = vrot.lane.b32.xlu0 %v611, 1
    %v617 = vpop.permute.xlu0 %616
    %v618 = vsel %vm145, %v615, %v617
    %vm621 = vcmask 1047560
    %622 = vst.msk [vmem:[#allocation2 + $0x30] sm:$0xff] %vm621, %v615
    %623 = vst [vmem:[#allocation2 + $0x38] sm:$0xff] %v618
    %624 = vst [vmem:[#allocation2 + $0x40] sm:$0xff] %v529
    %625 = vst [vmem:[#allocation2 + $0x48] sm:$0xff] %v530
    %626 = vrot.lane.b32.xlu0 %v51, 1
    %v627 = vpop.permute.xlu0 %626
    %628 = vrot.lane.b32.xlu0 %v52, 1
    %v629 = vpop.permute.xlu0 %628
    %v630 = vsel %vm145, %v627, %v629
    %v633 = vmul.f32 %v529, %v627
    %v634 = vmul.f32 %v530, %v630
    %637 = vrot.lane.b32.xlu0 %v633, 127
    %v638 = vpop.permute.xlu0 %637
    %639 = vrot.lane.b32.xlu0 %v634, 127
    %v640 = vpop.permute.xlu0 %639
    %v641 = vsel %vm135, %v638, %v640
    %644 = vst [vmem:[#allocation2 + $0x50] sm:$0xff] %v641
    %645 = vst.msk [vmem:[#allocation2 + $0x58] sm:$0xff] %vm135, %v640
    %646 = vrot.lane.b32.xlu0 %v45, 15
    %v647 = vpop.permute.xlu0 %646
    %648 = vrot.lane.b32.xlu0 %v46, 15
    %v649 = vpop.permute.xlu0 %648
    %v650 = vsel %vm125, %v647, %v649
    %v653 = vmul.f32 %v529, %v647
    %v654 = vmul.f32 %v530, %v650
    %657 = vrot.lane.b32.xlu0 %v653, 113
    %v658 = vpop.permute.xlu0 %657
    %659 = vrot.lane.b32.xlu0 %v654, 113
    %v660 = vpop.permute.xlu0 %659
    %v661 = vsel %vm115, %v658, %v660
    %664 = vst [vmem:[#allocation2 + $0x60] sm:$0xff] %v661
    %665 = vst.msk [vmem:[#allocation2 + $0x68] sm:$0xff] %vm115, %v660
    %666 = vrot.lane.b32.xlu0 %v529, 112
    %v667 = vpop.permute.xlu0 %666
    %668 = vrot.lane.b32.xlu0 %v530, 112
    %v669 = vpop.permute.xlu0 %668
    %v670 = vsel %vm196, %v667, %v669
    %673 = vst [vmem:[#allocation2 + $0x70] sm:$0xff] %v670
    %674 = vst.msk [vmem:[#allocation2 + $0x78] sm:$0xff] %vm196, %v669
    %675 = vrot.lane.b32.xlu0 %v51, 17
    %v676 = vpop.permute.xlu0 %675
    %677 = vrot.lane.b32.xlu0 %v52, 17
    %v678 = vpop.permute.xlu0 %677
    %v679 = vsel %vm89, %v676, %v678
    %v682 = vmul.f32 %v529, %v676
    %v683 = vmul.f32 %v530, %v679
    %686 = vrot.lane.b32.xlu0 %v682, 111
    %v687 = vpop.permute.xlu0 %686
    %688 = vrot.lane.b32.xlu0 %v683, 111
    %v689 = vpop.permute.xlu0 %688
    %v690 = vsel %vm79, %v687, %v689
    %693 = vst [vmem:[#allocation2 + $0x80] sm:$0xff] %v690
    %694 = vst.msk [vmem:[#allocation2 + $0x88] sm:$0xff] %vm79, %v689
    %v695 = vld [vmem:[#allocation2] sm:$0xff]
    %v696 = vld [vmem:[#allocation2 + $0x8] sm:$0xff]
    %v697 = vld [vmem:[#allocation2 + $0x10] sm:$0xff]
    %v698 = vld [vmem:[#allocation2 + $0x18] sm:$0xff]
    %v699 = vld [vmem:[#allocation2 + $0x20] sm:$0xff]
    %v700 = vld [vmem:[#allocation2 + $0x28] sm:$0xff]
    %v701 = vld [vmem:[#allocation2 + $0x30] sm:$0xff]
    %v702 = vld [vmem:[#allocation2 + $0x38] sm:$0xff]
    %v703 = vld [vmem:[#allocation2 + $0x40] sm:$0xff]
    %v704 = vld [vmem:[#allocation2 + $0x48] sm:$0xff]
    %v705 = vld [vmem:[#allocation2 + $0x50] sm:$0xff]
    %v706 = vld [vmem:[#allocation2 + $0x58] sm:$0xff]
    %v707 = vld [vmem:[#allocation2 + $0x60] sm:$0xff]
    %v708 = vld [vmem:[#allocation2 + $0x68] sm:$0xff]
    %v709 = vld [vmem:[#allocation2 + $0x70] sm:$0xff]
    %v710 = vld [vmem:[#allocation2 + $0x78] sm:$0xff]
    %v711 = vld [vmem:[#allocation2 + $0x80] sm:$0xff]
    %v712 = vld [vmem:[#allocation2 + $0x88] sm:$0xff]
    %714 = vset.pattern.permute.xlu0 0
    %715 = vperm.xlu0 %714, %v58
    %v716 = vpop.permute.xlu0 %715
    %vm718 = vcmask 588800
    %v720 = vsel %vm718, %v57, 0
    %722 = vmatprep.subr.mxu0 %v696
    %723 = vmatpush1.msra.mxu0 %v695
    %724 = vmatprep.subr.mxu0 %v698
    %725 = vmatpush1.msra.mxu0 %v697
    %726 = vmatprep.subr.mxu0 %v700
    %727 = vmatpush1.msra.mxu0 %v699
    %728 = vmatprep.subr.mxu0 %v702
    %729 = vmatpush1.msra.mxu0 %v701
    %730 = vmatprep.subr.mxu0 %v704
    %731 = vmatpush1.msra.mxu0 %v703
    %732 = vmatprep.subr.mxu0 %v706
    %733 = vmatpush1.msra.mxu0 %v705
    %734 = vmatprep.subr.mxu0 %v708
    %735 = vmatpush1.msra.mxu0 %v707
    %736 = vmatprep.subr.mxu0 %v710
    %737 = vmatpush1.msra.mxu0 %v709
    %738 = vmatprep.subr.mxu0 %v712
    %739 = vmatpush1.msra.mxu0 %v711
    %740 = vmatprep.subr.mxu0 0.0
    %741 = vmatpush1.msra.mxu0 0.0
    %742 = vmatprep.subr.mxu0 0.0
    %743 = vmatpush1.msra.mxu0 0.0
    %744 = vmatprep.subr.mxu0 0.0
    %745 = vmatpush1.msra.mxu0 0.0
    %746 = vmatprep.subr.mxu0 0.0
    %747 = vmatpush1.msra.mxu0 0.0
    %748 = vmatprep.subr.mxu0 0.0
    %749 = vmatpush1.msra.mxu0 0.0
    %750 = vmatprep.subr.mxu0 0.0
    %751 = vmatpush1.msra.mxu0 0.0
    %752 = vmatprep.subr.mxu0 0.0
    %753 = vmatpush1.msra.mxu0 0.0
    %754 = vmatprep.subr.mxu0 0.0
    %755 = vmatpush1.msra.mxu0 0.0
    %756 = vmatprep.subr.mxu0 0.0
    %757 = vmatpush1.msra.mxu0 0.0
    %758 = vmatprep.subr.mxu0 0.0
    %759 = vmatpush1.msra.mxu0 0.0
    %760 = vmatprep.subr.mxu0 0.0
    %761 = vmatpush1.msra.mxu0 0.0
    %762 = vmatprep.subr.mxu0 0.0
    %763 = vmatpush1.msra.mxu0 0.0
    %764 = vmatprep.subr.mxu0 0.0
    %765 = vmatpush1.msra.mxu0 0.0
    %766 = vmatprep.subr.mxu0 0.0
    %767 = vmatpush1.msra.mxu0 0.0
    %768 = vmatprep.subr.mxu0 0.0
    %769 = vmatpush1.msra.mxu0 0.0
    %770 = vmatprep.subr.mxu0 0.0
    %771 = vmatpush1.msra.mxu0 0.0
    %772 = vmatprep.subr.mxu0 0.0
    %773 = vmatpush1.msra.mxu0 0.0
    %774 = vmatprep.subr.mxu0 0.0
    %775 = vmatpush1.msra.mxu0 0.0
    %776 = vmatprep.subr.mxu0 0.0
    %777 = vmatpush1.msra.mxu0 0.0
    %778 = vmatprep.subr.mxu0 0.0
    %779 = vmatpush1.msra.mxu0 0.0
    %780 = vmatprep.subr.mxu0 0.0
    %781 = vmatpush1.msra.mxu0 0.0
    %782 = vmatprep.subr.mxu0 0.0
    %783 = vmatpush1.msra.mxu0 0.0
    %784 = vmatprep.subr.mxu0 0.0
    %785 = vmatpush1.msra.mxu0 0.0
    %786 = vmatprep.mubr.f32.mxu0 0.0
    %787 = vmatmul.mubr.f32.gmra.mrb[0].mxu0 %v720
    %v788 = vpop.f32.mrb[0].mxu0
    %v789 = vadd.f32 %v716, %v788
    %v790 = vpop.f32.mrb[0].mxu0
    %v791 = vadd.f32 %v716, %v790
    %792 = vdwg.mxu0
    %793 = vst [vmem:[#allocation2] sm:$0xff] 0.0
    %794 = vst [vmem:[#allocation2 + $0x8] sm:$0xff] 0.0
    %795 = vst [vmem:[#allocation2 + $0x10] sm:$0xff] 0.0
    %796 = vst [vmem:[#allocation2 + $0x18] sm:$0xff] 0.0
    %797 = vst [vmem:[#allocation2 + $0x20] sm:$0xff] 0.0
    %798 = vst [vmem:[#allocation2 + $0x28] sm:$0xff] 0.0
    %799 = vst [vmem:[#allocation2 + $0x30] sm:$0xff] 0.0
    %800 = vst [vmem:[#allocation2 + $0x38] sm:$0xff] 0.0
    %801 = vst [vmem:[#allocation2 + $0x40] sm:$0xf] 0.0
    %802 = vst [vmem:[#allocation2 + $0x48] sm:$0xf] 0.0
    %v803 = vmul.f32 %v789, %v553
    %v804 = vmul.f32 %v791, %v552
    %807 = vrot.lane.b32.xlu0 %v803, 17
    %v808 = vpop.permute.xlu0 %807
    %809 = vrot.lane.b32.xlu0 %v804, 17
    %v810 = vpop.permute.xlu0 %809
    %v811 = vsel %vm89, %v808, %v810
    %814 = vst.msk [vmem:[#allocation2] sm:$0xf] %vm93, %v808
    %815 = vst [vmem:[#allocation2 + $0x8] sm:$0xf] %v811
    %v818 = vrot.slane %v789, 4
    %v819 = vrot.slane %v791, 4
    %820 = vrot.lane.b32.xlu0 %v818, 16
    %v821 = vpop.permute.xlu0 %820
    %822 = vrot.lane.b32.xlu0 %v819, 16
    %v823 = vpop.permute.xlu0 %822
    %v824 = vsel %vm102, %v821, %v823
    %827 = vst.msk [vmem:[#allocation2] sm:$0xf0] %vm106, %v821
    %828 = vst [vmem:[#allocation2 + $0x8] sm:$0xf0] %v824
    %v829 = vmul.f32 %v789, %v586
    %v830 = vmul.f32 %v791, %v585
    %833 = vrot.lane.b32.xlu0 %v829, 15
    %v834 = vpop.permute.xlu0 %833
    %835 = vrot.lane.b32.xlu0 %v830, 15
    %v836 = vpop.permute.xlu0 %835
    %v837 = vsel %vm125, %v834, %v836
    %840 = vst.msk [vmem:[#allocation2 + $0x10] sm:$0xf] %vm129, %v834
    %841 = vst [vmem:[#allocation2 + $0x18] sm:$0xf] %v837
    %v842 = vmul.f32 %v789, %v607
    %v843 = vmul.f32 %v791, %v606
    %v846 = vrot.slane %v842, 4
    %v847 = vrot.slane %v843, 4
    %848 = vrot.lane.b32.xlu0 %v846, 1
    %v849 = vpop.permute.xlu0 %848
    %850 = vrot.lane.b32.xlu0 %v847, 1
    %v851 = vpop.permute.xlu0 %850
    %v852 = vsel %vm145, %v849, %v851
    %855 = vst.msk [vmem:[#allocation2 + $0x10] sm:$0xf0] %vm149, %v849
    %856 = vst [vmem:[#allocation2 + $0x18] sm:$0xf0] %v852
    %857 = vst [vmem:[#allocation2 + $0x20] sm:$0xf] %v789
    %858 = vst [vmem:[#allocation2 + $0x28] sm:$0xf] %v791
    %v859 = vmul.f32 %v789, %v627
    %v860 = vmul.f32 %v791, %v630
    %v863 = vrot.slane %v859, 4
    %v864 = vrot.slane %v860, 4
    %865 = vrot.lane.b32.xlu0 %v863, 127
    %v866 = vpop.permute.xlu0 %865
    %867 = vrot.lane.b32.xlu0 %v864, 127
    %v868 = vpop.permute.xlu0 %867
    %v869 = vsel %vm135, %v866, %v868
    %872 = vst [vmem:[#allocation2 + $0x20] sm:$0xf0] %v869
    %873 = vst.msk [vmem:[#allocation2 + $0x28] sm:$0xf0] %vm172, %v868
    %v874 = vmul.f32 %v789, %v647
    %v875 = vmul.f32 %v791, %v650
    %878 = vrot.lane.b32.xlu0 %v874, 113
    %v879 = vpop.permute.xlu0 %878
    %880 = vrot.lane.b32.xlu0 %v875, 113
    %v881 = vpop.permute.xlu0 %880
    %v882 = vsel %vm115, %v879, %v881
    %885 = vst [vmem:[#allocation2 + $0x30] sm:$0xf] %v882
    %886 = vst.msk [vmem:[#allocation2 + $0x38] sm:$0xf] %vm190, %v881
    %887 = vrot.lane.b32.xlu0 %v818, 112
    %v888 = vpop.permute.xlu0 %887
    %889 = vrot.lane.b32.xlu0 %v819, 112
    %v890 = vpop.permute.xlu0 %889
    %v891 = vsel %vm196, %v888, %v890
    %894 = vst [vmem:[#allocation2 + $0x30] sm:$0xf0] %v891
    %895 = vst.msk [vmem:[#allocation2 + $0x38] sm:$0xf0] %vm201, %v890
    %v896 = vmul.f32 %v789, %v676
    %v897 = vmul.f32 %v791, %v679
    %900 = vrot.lane.b32.xlu0 %v896, 111
    %v901 = vpop.permute.xlu0 %900
    %902 = vrot.lane.b32.xlu0 %v897, 111
    %v903 = vpop.permute.xlu0 %902
    %v904 = vsel %vm79, %v901, %v903
    %907 = vst [vmem:[#allocation2 + $0x40] sm:$0xf] %v904
    %908 = vst.msk [vmem:[#allocation2 + $0x48] sm:$0xf] %vm219, %v903
    %v909 = vld [vmem:[#allocation2] sm:$0xff]
    %v910 = vld [vmem:[#allocation2 + $0x8] sm:$0xff]
    %v911 = vld [vmem:[#allocation2 + $0x10] sm:$0xff]
    %v912 = vld [vmem:[#allocation2 + $0x18] sm:$0xff]
    %v913 = vld [vmem:[#allocation2 + $0x20] sm:$0xff]
    %v914 = vld [vmem:[#allocation2 + $0x28] sm:$0xff]
    %v915 = vld [vmem:[#allocation2 + $0x30] sm:$0xff]
    %v916 = vld [vmem:[#allocation2 + $0x38] sm:$0xff]
    %v917 = vld [vmem:[#allocation2 + $0x40] sm:$0xf]
    %v918 = vld [vmem:[#allocation2 + $0x48] sm:$0xf]
    %920 = vset.pattern.permute.xlu0 0
    %921 = vperm.xlu0 %920, %v60
    %v922 = vpop.permute.xlu0 %921
    %v925 = vsel %vm236, %v59, 0
    %v928 = vsel %vm240, %v917, 0
    %v931 = vsel %vm240, %v918, 0
    %933 = vmatprep.subr.mxu0 %v910
    %934 = vmatpush1.msra.mxu0 %v909
    %935 = vmatprep.subr.mxu0 %v912
    %936 = vmatpush1.msra.mxu0 %v911
    %937 = vmatprep.subr.mxu0 %v914
    %938 = vmatpush1.msra.mxu0 %v913
    %939 = vmatprep.subr.mxu0 %v916
    %940 = vmatpush1.msra.mxu0 %v915
    %941 = vmatprep.subr.mxu0 %v931
    %942 = vmatpush1.msra.mxu0 %v928
    %943 = vmatprep.subr.mxu0 0.0
    %944 = vmatpush1.msra.mxu0 0.0
    %945 = vmatprep.subr.mxu0 0.0
    %946 = vmatpush1.msra.mxu0 0.0
    %947 = vmatprep.subr.mxu0 0.0
    %948 = vmatpush1.msra.mxu0 0.0
    %949 = vmatprep.subr.mxu0 0.0
    %950 = vmatpush1.msra.mxu0 0.0
    %951 = vmatprep.subr.mxu0 0.0
    %952 = vmatpush1.msra.mxu0 0.0
    %953 = vmatprep.subr.mxu0 0.0
    %954 = vmatpush1.msra.mxu0 0.0
    %955 = vmatprep.subr.mxu0 0.0
    %956 = vmatpush1.msra.mxu0 0.0
    %957 = vmatprep.subr.mxu0 0.0
    %958 = vmatpush1.msra.mxu0 0.0
    %959 = vmatprep.subr.mxu0 0.0
    %960 = vmatpush1.msra.mxu0 0.0
    %961 = vmatprep.subr.mxu0 0.0
    %962 = vmatpush1.msra.mxu0 0.0
    %963 = vmatprep.subr.mxu0 0.0
    %964 = vmatpush1.msra.mxu0 0.0
    %965 = vmatprep.subr.mxu0 0.0
    %966 = vmatpush1.msra.mxu0 0.0
    %967 = vmatprep.subr.mxu0 0.0
    %968 = vmatpush1.msra.mxu0 0.0
    %969 = vmatprep.subr.mxu0 0.0
    %970 = vmatpush1.msra.mxu0 0.0
    %971 = vmatprep.subr.mxu0 0.0
    %972 = vmatpush1.msra.mxu0 0.0
    %973 = vmatprep.subr.mxu0 0.0
    %974 = vmatpush1.msra.mxu0 0.0
    %975 = vmatprep.subr.mxu0 0.0
    %976 = vmatpush1.msra.mxu0 0.0
    %977 = vmatprep.subr.mxu0 0.0
    %978 = vmatpush1.msra.mxu0 0.0
    %979 = vmatprep.subr.mxu0 0.0
    %980 = vmatpush1.msra.mxu0 0.0
    %981 = vmatprep.subr.mxu0 0.0
    %982 = vmatpush1.msra.mxu0 0.0
    %983 = vmatprep.subr.mxu0 0.0
    %984 = vmatpush1.msra.mxu0 0.0
    %985 = vmatprep.subr.mxu0 0.0
    %986 = vmatpush1.msra.mxu0 0.0
    %987 = vmatprep.subr.mxu0 0.0
    %988 = vmatpush1.msra.mxu0 0.0
    %989 = vmatprep.subr.mxu0 0.0
    %990 = vmatpush1.msra.mxu0 0.0
    %991 = vmatprep.subr.mxu0 0.0
    %992 = vmatpush1.msra.mxu0 0.0
    %993 = vmatprep.subr.mxu0 0.0
    %994 = vmatpush1.msra.mxu0 0.0
    %995 = vmatprep.subr.mxu0 0.0
    %996 = vmatpush1.msra.mxu0 0.0
    %997 = vmatprep.mubr.f32.mxu0 0.0
    %998 = vmatmul.mubr.f32.gmra.mrb[0].mxu0 %v925
    %v999 = vpop.f32.mrb[0].mxu0
    %v1000 = vadd.f32 %v922, %v999
    %v1001 = vpop.f32.mrb[0].mxu0
    %v1002 = vadd.f32 %v922, %v1001
    %1003 = vdwg.mxu0
    %v1004 = vsub.f32 %v61, %v62
    %v1007 = vcombine.low %v1000, %v1002
    %v1009 = vmul.f32 %v1004, %v1007
    %v1010 = vmul.f32 %v1009, %v1009
    %v1012 = vcombine.high %v1010, %v1010
    %v1014 = vsel %vm240, %v1010, 0.0
    %v1015 = vsel %vm240, %v1012, 0.0
    %v1016 = vadd.f32 %v1014, %v1015
    %1017 = vadd.xlane.f32.xlu0 %v1016
    %v1018 = vpop.xlane.xlu0 %1017
    %v1019 = vrot.slane %v1018, 4
    %v1020 = vadd.f32 %v1018, %v1019
    %v1021 = vrot.slane %v1020, 2
    %v1022 = vadd.f32 %v1020, %v1021
    %v1023 = vrot.slane %v1022, 1
    %v1024 = vadd.f32 %v1022, %v1023
    %s1025 = vtos %v1024
    %s1026 = sadd.f32 %s1025, 0.0
    %s1027 = scalar_lea.vmem %s0, 8
    %v1028 = vld [vmem:[%s1027] sm:$0xff]
    %s1029 = scalar_lea.vmem %s1, 8
    %v1030 = vld [vmem:[%s1029] sm:$0xff]
    %1031 = vst [vmem:[#allocation2] sm:$0xff] 0.0
    %1032 = vst [vmem:[#allocation2 + $0x8] sm:$0xff] 0.0
    %1033 = vst [vmem:[#allocation2 + $0x10] sm:$0xff] 0.0
    %1034 = vst [vmem:[#allocation2 + $0x18] sm:$0xff] 0.0
    %1035 = vst [vmem:[#allocation2 + $0x20] sm:$0xff] 0.0
    %1036 = vst [vmem:[#allocation2 + $0x28] sm:$0xff] 0.0
    %1037 = vst [vmem:[#allocation2 + $0x30] sm:$0xff] 0.0
    %1038 = vst [vmem:[#allocation2 + $0x38] sm:$0xff] 0.0
    %1039 = vst [vmem:[#allocation2 + $0x40] sm:$0xf] 0.0
    %1040 = vst [vmem:[#allocation2 + $0x48] sm:$0xf] 0.0
    %v1041 = vmul.f32 %v1028, %v80
    %v1043 = vcombine.high %v1041, %v1041
    %1044 = vrot.lane.b32.xlu0 %v1041, 17
    %v1045 = vpop.permute.xlu0 %1044
    %1046 = vrot.lane.b32.xlu0 %v1043, 17
    %v1047 = vpop.permute.xlu0 %1046
    %v1048 = vsel %vm89, %v1045, %v1047
    %1051 = vst.msk [vmem:[#allocation2] sm:$0xf] %vm93, %v1045
    %1052 = vst [vmem:[#allocation2 + $0x8] sm:$0xf] %v1048
    %v1054 = vcombine.low %v1028, %v1028
    %1055 = vrot.lane.b32.xlu0 %v1054, 16
    %v1056 = vpop.permute.xlu0 %1055
    %1057 = vrot.lane.b32.xlu0 %v1028, 16
    %v1058 = vpop.permute.xlu0 %1057
    %v1059 = vsel %vm102, %v1056, %v1058
    %1062 = vst.msk [vmem:[#allocation2] sm:$0xf0] %vm106, %v1056
    %1063 = vst [vmem:[#allocation2 + $0x8] sm:$0xf0] %v1059
    %v1064 = vmul.f32 %v1028, %v116
    %v1066 = vcombine.high %v1064, %v1064
    %1067 = vrot.lane.b32.xlu0 %v1064, 15
    %v1068 = vpop.permute.xlu0 %1067
    %1069 = vrot.lane.b32.xlu0 %v1066, 15
    %v1070 = vpop.permute.xlu0 %1069
    %v1071 = vsel %vm125, %v1068, %v1070
    %1074 = vst.msk [vmem:[#allocation2 + $0x10] sm:$0xf] %vm129, %v1068
    %1075 = vst [vmem:[#allocation2 + $0x18] sm:$0xf] %v1071
    %v1076 = vmul.f32 %v1028, %v136
    %v1078 = vcombine.low %v1076, %v1076
    %1079 = vrot.lane.b32.xlu0 %v1078, 1
    %v1080 = vpop.permute.xlu0 %1079
    %1081 = vrot.lane.b32.xlu0 %v1076, 1
    %v1082 = vpop.permute.xlu0 %1081
    %v1083 = vsel %vm145, %v1080, %v1082
    %1086 = vst.msk [vmem:[#allocation2 + $0x10] sm:$0xf0] %vm149, %v1080
    %1087 = vst [vmem:[#allocation2 + $0x18] sm:$0xf0] %v1083
    %v1088 = vcombine.high %v1028, %v1028
    %1090 = vst [vmem:[#allocation2 + $0x20] sm:$0xf] %v1028
    %1091 = vst [vmem:[#allocation2 + $0x28] sm:$0xf] %v1088
    %v1092 = vmul.f32 %v1028, %v159
    %v1094 = vcombine.low %v1092, %v1092
    %1095 = vrot.lane.b32.xlu0 %v1094, 127
    %v1096 = vpop.permute.xlu0 %1095
    %1097 = vrot.lane.b32.xlu0 %v1092, 127
    %v1098 = vpop.permute.xlu0 %1097
    %v1099 = vsel %vm135, %v1096, %v1098
    %1102 = vst [vmem:[#allocation2 + $0x20] sm:$0xf0] %v1099
    %1103 = vst.msk [vmem:[#allocation2 + $0x28] sm:$0xf0] %vm172, %v1098
    %v1104 = vmul.f32 %v1028, %v177
    %v1106 = vcombine.high %v1104, %v1104
    %1107 = vrot.lane.b32.xlu0 %v1104, 113
    %v1108 = vpop.permute.xlu0 %1107
    %1109 = vrot.lane.b32.xlu0 %v1106, 113
    %v1110 = vpop.permute.xlu0 %1109
    %v1111 = vsel %vm115, %v1108, %v1110
    %1114 = vst [vmem:[#allocation2 + $0x30] sm:$0xf] %v1111
    %1115 = vst.msk [vmem:[#allocation2 + $0x38] sm:$0xf] %vm190, %v1110
    %1116 = vrot.lane.b32.xlu0 %v1054, 112
    %v1117 = vpop.permute.xlu0 %1116
    %1118 = vrot.lane.b32.xlu0 %v1028, 112
    %v1119 = vpop.permute.xlu0 %1118
    %v1120 = vsel %vm196, %v1117, %v1119
    %1123 = vst [vmem:[#allocation2 + $0x30] sm:$0xf0] %v1120
    %1124 = vst.msk [vmem:[#allocation2 + $0x38] sm:$0xf0] %vm201, %v1119
    %v1125 = vmul.f32 %v1028, %v206
    %v1127 = vcombine.high %v1125, %v1125
    %1128 = vrot.lane.b32.xlu0 %v1125, 111
    %v1129 = vpop.permute.xlu0 %1128
    %1130 = vrot.lane.b32.xlu0 %v1127, 111
    %v1131 = vpop.permute.xlu0 %1130
    %v1132 = vsel %vm79, %v1129, %v1131
    %1135 = vst [vmem:[#allocation2 + $0x40] sm:$0xf] %v1132
    %1136 = vst.msk [vmem:[#allocation2 + $0x48] sm:$0xf] %vm219, %v1131
    %v1137 = vld [vmem:[#allocation2] sm:$0xff]
    %v1138 = vld [vmem:[#allocation2 + $0x8] sm:$0xff]
    %v1139 = vld [vmem:[#allocation2 + $0x10] sm:$0xff]
    %v1140 = vld [vmem:[#allocation2 + $0x18] sm:$0xff]
    %v1141 = vld [vmem:[#allocation2 + $0x20] sm:$0xff]
    %v1142 = vld [vmem:[#allocation2 + $0x28] sm:$0xff]
    %v1143 = vld [vmem:[#allocation2 + $0x30] sm:$0xff]
    %v1144 = vld [vmem:[#allocation2 + $0x38] sm:$0xff]
    %v1145 = vld [vmem:[#allocation2 + $0x40] sm:$0xf]
    %v1146 = vld [vmem:[#allocation2 + $0x48] sm:$0xf]
    %v1148 = vsel %vm240, %v1145, 0
    %v1151 = vsel %vm240, %v1146, 0
    %1153 = vmatprep.subr.mxu0 %v1138
    %1154 = vmatpush1.msra.mxu0 %v1137
    %1155 = vmatprep.subr.mxu0 %v1140
    %1156 = vmatpush1.msra.mxu0 %v1139
    %1157 = vmatprep.subr.mxu0 %v1142
    %1158 = vmatpush1.msra.mxu0 %v1141
    %1159 = vmatprep.subr.mxu0 %v1144
    %1160 = vmatpush1.msra.mxu0 %v1143
    %1161 = vmatprep.subr.mxu0 %v1151
    %1162 = vmatpush1.msra.mxu0 %v1148
    %1163 = vmatprep.subr.mxu0 0.0
    %1164 = vmatpush1.msra.mxu0 0.0
    %1165 = vmatprep.subr.mxu0 0.0
    %1166 = vmatpush1.msra.mxu0 0.0
    %1167 = vmatprep.subr.mxu0 0.0
    %1168 = vmatpush1.msra.mxu0 0.0
    %1169 = vmatprep.subr.mxu0 0.0
    %1170 = vmatpush1.msra.mxu0 0.0
    %1171 = vmatprep.subr.mxu0 0.0
    %1172 = vmatpush1.msra.mxu0 0.0
    %1173 = vmatprep.subr.mxu0 0.0
    %1174 = vmatpush1.msra.mxu0 0.0
    %1175 = vmatprep.subr.mxu0 0.0
    %1176 = vmatpush1.msra.mxu0 0.0
    %1177 = vmatprep.subr.mxu0 0.0
    %1178 = vmatpush1.msra.mxu0 0.0
    %1179 = vmatprep.subr.mxu0 0.0
    %1180 = vmatpush1.msra.mxu0 0.0
    %1181 = vmatprep.subr.mxu0 0.0
    %1182 = vmatpush1.msra.mxu0 0.0
    %1183 = vmatprep.subr.mxu0 0.0
    %1184 = vmatpush1.msra.mxu0 0.0
    %1185 = vmatprep.subr.mxu0 0.0
    %1186 = vmatpush1.msra.mxu0 0.0
    %1187 = vmatprep.subr.mxu0 0.0
    %1188 = vmatpush1.msra.mxu0 0.0
    %1189 = vmatprep.subr.mxu0 0.0
    %1190 = vmatpush1.msra.mxu0 0.0
    %1191 = vmatprep.subr.mxu0 0.0
    %1192 = vmatpush1.msra.mxu0 0.0
    %1193 = vmatprep.subr.mxu0 0.0
    %1194 = vmatpush1.msra.mxu0 0.0
    %1195 = vmatprep.subr.mxu0 0.0
    %1196 = vmatpush1.msra.mxu0 0.0
    %1197 = vmatprep.subr.mxu0 0.0
    %1198 = vmatpush1.msra.mxu0 0.0
    %1199 = vmatprep.subr.mxu0 0.0
    %1200 = vmatpush1.msra.mxu0 0.0
    %1201 = vmatprep.subr.mxu0 0.0
    %1202 = vmatpush1.msra.mxu0 0.0
    %1203 = vmatprep.subr.mxu0 0.0
    %1204 = vmatpush1.msra.mxu0 0.0
    %1205 = vmatprep.subr.mxu0 0.0
    %1206 = vmatpush1.msra.mxu0 0.0
    %1207 = vmatprep.subr.mxu0 0.0
    %1208 = vmatpush1.msra.mxu0 0.0
    %1209 = vmatprep.subr.mxu0 0.0
    %1210 = vmatpush1.msra.mxu0 0.0
    %1211 = vmatprep.subr.mxu0 0.0
    %1212 = vmatpush1.msra.mxu0 0.0
    %1213 = vmatprep.subr.mxu0 0.0
    %1214 = vmatpush1.msra.mxu0 0.0
    %1215 = vmatprep.subr.mxu0 0.0
    %1216 = vmatpush1.msra.mxu0 0.0
    %1217 = vmatprep.mubr.f32.mxu0 0.0
    %1218 = vmatmul.mubr.f32.gmra.mrb[0].mxu0 %v238
    %v1219 = vpop.f32.mrb[0].mxu0
    %v1220 = vadd.f32 %v234, %v1219
    %v1221 = vpop.f32.mrb[0].mxu0
    %v1222 = vadd.f32 %v234, %v1221
    %1223 = vdwg.mxu0
    %1224 = vst [vmem:[#allocation2] sm:$0xff] 0.0
    %1225 = vst [vmem:[#allocation2 + $0x8] sm:$0xff] 0.0
    %1226 = vst [vmem:[#allocation2 + $0x10] sm:$0xff] 0.0
    %1227 = vst [vmem:[#allocation2 + $0x18] sm:$0xff] 0.0
    %1228 = vst [vmem:[#allocation2 + $0x20] sm:$0xff] 0.0
    %1229 = vst [vmem:[#allocation2 + $0x28] sm:$0xff] 0.0
    %1230 = vst [vmem:[#allocation2 + $0x30] sm:$0xff] 0.0
    %1231 = vst [vmem:[#allocation2 + $0x38] sm:$0xff] 0.0
    %1232 = vst [vmem:[#allocation2 + $0x40] sm:$0xf] 0.0
    %1233 = vst [vmem:[#allocation2 + $0x48] sm:$0xf] 0.0
    %v1234 = vmul.f32 %v1030, %v80
    %v1236 = vcombine.high %v1234, %v1234
    %1237 = vrot.lane.b32.xlu0 %v1234, 17
    %v1238 = vpop.permute.xlu0 %1237
    %1239 = vrot.lane.b32.xlu0 %v1236, 17
    %v1240 = vpop.permute.xlu0 %1239
    %v1241 = vsel %vm89, %v1238, %v1240
    %1244 = vst.msk [vmem:[#allocation2] sm:$0xf] %vm93, %v1238
    %1245 = vst [vmem:[#allocation2 + $0x8] sm:$0xf] %v1241
    %v1247 = vcombine.low %v1030, %v1030
    %1248 = vrot.lane.b32.xlu0 %v1247, 16
    %v1249 = vpop.permute.xlu0 %1248
    %1250 = vrot.lane.b32.xlu0 %v1030, 16
    %v1251 = vpop.permute.xlu0 %1250
    %v1252 = vsel %vm102, %v1249, %v1251
    %1255 = vst.msk [vmem:[#allocation2] sm:$0xf0] %vm106, %v1249
    %1256 = vst [vmem:[#allocation2 + $0x8] sm:$0xf0] %v1252
    %v1257 = vmul.f32 %v1030, %v116
    %v1259 = vcombine.high %v1257, %v1257
    %1260 = vrot.lane.b32.xlu0 %v1257, 15
    %v1261 = vpop.permute.xlu0 %1260
    %1262 = vrot.lane.b32.xlu0 %v1259, 15
    %v1263 = vpop.permute.xlu0 %1262
    %v1264 = vsel %vm125, %v1261, %v1263
    %1267 = vst.msk [vmem:[#allocation2 + $0x10] sm:$0xf] %vm129, %v1261
    %1268 = vst [vmem:[#allocation2 + $0x18] sm:$0xf] %v1264
    %v1269 = vmul.f32 %v1030, %v136
    %v1271 = vcombine.low %v1269, %v1269
    %1272 = vrot.lane.b32.xlu0 %v1271, 1
    %v1273 = vpop.permute.xlu0 %1272
    %1274 = vrot.lane.b32.xlu0 %v1269, 1
    %v1275 = vpop.permute.xlu0 %1274
    %v1276 = vsel %vm145, %v1273, %v1275
    %1279 = vst.msk [vmem:[#allocation2 + $0x10] sm:$0xf0] %vm149, %v1273
    %1280 = vst [vmem:[#allocation2 + $0x18] sm:$0xf0] %v1276
    %v1281 = vcombine.high %v1030, %v1030
    %1283 = vst [vmem:[#allocation2 + $0x20] sm:$0xf] %v1030
    %1284 = vst [vmem:[#allocation2 + $0x28] sm:$0xf] %v1281
    %v1285 = vmul.f32 %v1030, %v159
    %v1287 = vcombine.low %v1285, %v1285
    %1288 = vrot.lane.b32.xlu0 %v1287, 127
    %v1289 = vpop.permute.xlu0 %1288
    %1290 = vrot.lane.b32.xlu0 %v1285, 127
    %v1291 = vpop.permute.xlu0 %1290
    %v1292 = vsel %vm135, %v1289, %v1291
    %1295 = vst [vmem:[#allocation2 + $0x20] sm:$0xf0] %v1292
    %1296 = vst.msk [vmem:[#allocation2 + $0x28] sm:$0xf0] %vm172, %v1291
    %v1297 = vmul.f32 %v1030, %v177
    %v1299 = vcombine.high %v1297, %v1297
    %1300 = vrot.lane.b32.xlu0 %v1297, 113
    %v1301 = vpop.permute.xlu0 %1300
    %1302 = vrot.lane.b32.xlu0 %v1299, 113
    %v1303 = vpop.permute.xlu0 %1302
    %v1304 = vsel %vm115, %v1301, %v1303
    %1307 = vst [vmem:[#allocation2 + $0x30] sm:$0xf] %v1304
    %1308 = vst.msk [vmem:[#allocation2 + $0x38] sm:$0xf] %vm190, %v1303
    %1309 = vrot.lane.b32.xlu0 %v1247, 112
    %v1310 = vpop.permute.xlu0 %1309
    %1311 = vrot.lane.b32.xlu0 %v1030, 112
    %v1312 = vpop.permute.xlu0 %1311
    %v1313 = vsel %vm196, %v1310, %v1312
    %1316 = vst [vmem:[#allocation2 + $0x30] sm:$0xf0] %v1313
    %1317 = vst.msk [vmem:[#allocation2 + $0x38] sm:$0xf0] %vm201, %v1312
    %v1318 = vmul.f32 %v1030, %v206
    %v1320 = vcombine.high %v1318, %v1318
    %1321 = vrot.lane.b32.xlu0 %v1318, 111
    %v1322 = vpop.permute.xlu0 %1321
    %1323 = vrot.lane.b32.xlu0 %v1320, 111
    %v1324 = vpop.permute.xlu0 %1323
    %v1325 = vsel %vm79, %v1322, %v1324
    %1328 = vst [vmem:[#allocation2 + $0x40] sm:$0xf] %v1325
    %1329 = vst.msk [vmem:[#allocation2 + $0x48] sm:$0xf] %vm219, %v1324
    %v1330 = vld [vmem:[#allocation2] sm:$0xff]
    %v1331 = vld [vmem:[#allocation2 + $0x8] sm:$0xff]
    %v1332 = vld [vmem:[#allocation2 + $0x10] sm:$0xff]
    %v1333 = vld [vmem:[#allocation2 + $0x18] sm:$0xff]
    %v1334 = vld [vmem:[#allocation2 + $0x20] sm:$0xff]
    %v1335 = vld [vmem:[#allocation2 + $0x28] sm:$0xff]
    %v1336 = vld [vmem:[#allocation2 + $0x30] sm:$0xff]
    %v1337 = vld [vmem:[#allocation2 + $0x38] sm:$0xff]
    %v1338 = vld [vmem:[#allocation2 + $0x40] sm:$0xf]
    %v1339 = vld [vmem:[#allocation2 + $0x48] sm:$0xf]
    %v1341 = vsel %vm240, %v1338, 0
    %v1344 = vsel %vm240, %v1339, 0
    %1346 = vmatprep.subr.mxu0 %v1331
    %1347 = vmatpush1.msra.mxu0 %v1330
    %1348 = vmatprep.subr.mxu0 %v1333
    %1349 = vmatpush1.msra.mxu0 %v1332
    %1350 = vmatprep.subr.mxu0 %v1335
    %1351 = vmatpush1.msra.mxu0 %v1334
    %1352 = vmatprep.subr.mxu0 %v1337
    %1353 = vmatpush1.msra.mxu0 %v1336
    %1354 = vmatprep.subr.mxu0 %v1344
    %1355 = vmatpush1.msra.mxu0 %v1341
    %1356 = vmatprep.subr.mxu0 0.0
    %1357 = vmatpush1.msra.mxu0 0.0
    %1358 = vmatprep.subr.mxu0 0.0
    %1359 = vmatpush1.msra.mxu0 0.0
    %1360 = vmatprep.subr.mxu0 0.0
    %1361 = vmatpush1.msra.mxu0 0.0
    %1362 = vmatprep.subr.mxu0 0.0
    %1363 = vmatpush1.msra.mxu0 0.0
    %1364 = vmatprep.subr.mxu0 0.0
    %1365 = vmatpush1.msra.mxu0 0.0
    %1366 = vmatprep.subr.mxu0 0.0
    %1367 = vmatpush1.msra.mxu0 0.0
    %1368 = vmatprep.subr.mxu0 0.0
    %1369 = vmatpush1.msra.mxu0 0.0
    %1370 = vmatprep.subr.mxu0 0.0
    %1371 = vmatpush1.msra.mxu0 0.0
    %1372 = vmatprep.subr.mxu0 0.0
    %1373 = vmatpush1.msra.mxu0 0.0
    %1374 = vmatprep.subr.mxu0 0.0
    %1375 = vmatpush1.msra.mxu0 0.0
    %1376 = vmatprep.subr.mxu0 0.0
    %1377 = vmatpush1.msra.mxu0 0.0
    %1378 = vmatprep.subr.mxu0 0.0
    %1379 = vmatpush1.msra.mxu0 0.0
    %1380 = vmatprep.subr.mxu0 0.0
    %1381 = vmatpush1.msra.mxu0 0.0
    %1382 = vmatprep.subr.mxu0 0.0
    %1383 = vmatpush1.msra.mxu0 0.0
    %1384 = vmatprep.subr.mxu0 0.0
    %1385 = vmatpush1.msra.mxu0 0.0
    %1386 = vmatprep.subr.mxu0 0.0
    %1387 = vmatpush1.msra.mxu0 0.0
    %1388 = vmatprep.subr.mxu0 0.0
    %1389 = vmatpush1.msra.mxu0 0.0
    %1390 = vmatprep.subr.mxu0 0.0
    %1391 = vmatpush1.msra.mxu0 0.0
    %1392 = vmatprep.subr.mxu0 0.0
    %1393 = vmatpush1.msra.mxu0 0.0
    %1394 = vmatprep.subr.mxu0 0.0
    %1395 = vmatpush1.msra.mxu0 0.0
    %1396 = vmatprep.subr.mxu0 0.0
    %1397 = vmatpush1.msra.mxu0 0.0
    %1398 = vmatprep.subr.mxu0 0.0
    %1399 = vmatpush1.msra.mxu0 0.0
    %1400 = vmatprep.subr.mxu0 0.0
    %1401 = vmatpush1.msra.mxu0 0.0
    %1402 = vmatprep.subr.mxu0 0.0
    %1403 = vmatpush1.msra.mxu0 0.0
    %1404 = vmatprep.subr.mxu0 0.0
    %1405 = vmatpush1.msra.mxu0 0.0
    %1406 = vmatprep.subr.mxu0 0.0
    %1407 = vmatpush1.msra.mxu0 0.0
    %1408 = vmatprep.subr.mxu0 0.0
    %1409 = vmatpush1.msra.mxu0 0.0
    %1410 = vmatprep.mubr.f32.mxu0 0.0
    %1411 = vmatmul.mubr.f32.gmra.mrb[0].mxu0 %v440
    %v1412 = vpop.f32.mrb[0].mxu0
    %v1413 = vadd.f32 %v437, %v1412
    %v1414 = vpop.f32.mrb[0].mxu0
    %v1415 = vadd.f32 %v437, %v1414
    %1416 = vdwg.mxu0
    %1417 = vst [vmem:[#allocation3] sm:$0xf] %v1413
    %1418 = vst [vmem:[#allocation3 + $0x8] sm:$0xf] %v1415
    %v1421 = vrot.slane %v1220, 4
    %v1422 = vrot.slane %v1222, 4
    %1425 = vst [vmem:[#allocation3] sm:$0xf0] %v1421
    %1426 = vst [vmem:[#allocation3 + $0x8] sm:$0xf0] %v1422
    %v1427 = vld [vmem:[#allocation3] sm:$0xff]
    %v1428 = vld [vmem:[#allocation3 + $0x8] sm:$0xff]
    %1429 = vst [vmem:[#allocation2] sm:$0xff] 0.0
    %1430 = vst [vmem:[#allocation2 + $0x8] sm:$0xff] 0.0
    %1431 = vst [vmem:[#allocation2 + $0x10] sm:$0xff] 0.0
    %1432 = vst [vmem:[#allocation2 + $0x18] sm:$0xff] 0.0
    %1433 = vst [vmem:[#allocation2 + $0x20] sm:$0xff] 0.0
    %1434 = vst [vmem:[#allocation2 + $0x28] sm:$0xff] 0.0
    %1435 = vst [vmem:[#allocation2 + $0x30] sm:$0xff] 0.0
    %1436 = vst [vmem:[#allocation2 + $0x38] sm:$0xff] 0.0
    %1437 = vst [vmem:[#allocation2 + $0x40] sm:$0xff] 0.0
    %1438 = vst [vmem:[#allocation2 + $0x48] sm:$0xff] 0.0
    %1439 = vst [vmem:[#allocation2 + $0x50] sm:$0xff] 0.0
    %1440 = vst [vmem:[#allocation2 + $0x58] sm:$0xff] 0.0
    %1441 = vst [vmem:[#allocation2 + $0x60] sm:$0xff] 0.0
    %1442 = vst [vmem:[#allocation2 + $0x68] sm:$0xff] 0.0
    %1443 = vst [vmem:[#allocation2 + $0x70] sm:$0xff] 0.0
    %1444 = vst [vmem:[#allocation2 + $0x78] sm:$0xff] 0.0
    %1445 = vst [vmem:[#allocation2 + $0x80] sm:$0xff] 0.0
    %1446 = vst [vmem:[#allocation2 + $0x88] sm:$0xff] 0.0
    %v1447 = vmul.f32 %v1427, %v553
    %v1448 = vmul.f32 %v1428, %v552
    %1451 = vrot.lane.b32.xlu0 %v1447, 17
    %v1452 = vpop.permute.xlu0 %1451
    %1453 = vrot.lane.b32.xlu0 %v1448, 17
    %v1454 = vpop.permute.xlu0 %1453
    %v1455 = vsel %vm89, %v1452, %v1454
    %1458 = vst.msk [vmem:[#allocation2] sm:$0xff] %vm567, %v1452
    %1459 = vst [vmem:[#allocation2 + $0x8] sm:$0xff] %v1455
    %1462 = vrot.lane.b32.xlu0 %v1427, 16
    %v1463 = vpop.permute.xlu0 %1462
    %1464 = vrot.lane.b32.xlu0 %v1428, 16
    %v1465 = vpop.permute.xlu0 %1464
    %v1466 = vsel %vm102, %v1463, %v1465
    %1469 = vst.msk [vmem:[#allocation2 + $0x10] sm:$0xff] %vm579, %v1463
    %1470 = vst [vmem:[#allocation2 + $0x18] sm:$0xff] %v1466
    %v1471 = vmul.f32 %v1427, %v586
    %v1472 = vmul.f32 %v1428, %v585
    %1475 = vrot.lane.b32.xlu0 %v1471, 15
    %v1476 = vpop.permute.xlu0 %1475
    %1477 = vrot.lane.b32.xlu0 %v1472, 15
    %v1478 = vpop.permute.xlu0 %1477
    %v1479 = vsel %vm125, %v1476, %v1478
    %1482 = vst.msk [vmem:[#allocation2 + $0x20] sm:$0xff] %vm600, %v1476
    %1483 = vst [vmem:[#allocation2 + $0x28] sm:$0xff] %v1479
    %v1484 = vmul.f32 %v1427, %v607
    %v1485 = vmul.f32 %v1428, %v606
    %1488 = vrot.lane.b32.xlu0 %v1484, 1
    %v1489 = vpop.permute.xlu0 %1488
    %1490 = vrot.lane.b32.xlu0 %v1485, 1
    %v1491 = vpop.permute.xlu0 %1490
    %v1492 = vsel %vm145, %v1489, %v1491
    %1495 = vst.msk [vmem:[#allocation2 + $0x30] sm:$0xff] %vm621, %v1489
    %1496 = vst [vmem:[#allocation2 + $0x38] sm:$0xff] %v1492
    %1497 = vst [vmem:[#allocation2 + $0x40] sm:$0xff] %v1427
    %1498 = vst [vmem:[#allocation2 + $0x48] sm:$0xff] %v1428
    %v1499 = vmul.f32 %v1427, %v627
    %v1500 = vmul.f32 %v1428, %v630
    %1503 = vrot.lane.b32.xlu0 %v1499, 127
    %v1504 = vpop.permute.xlu0 %1503
    %1505 = vrot.lane.b32.xlu0 %v1500, 127
    %v1506 = vpop.permute.xlu0 %1505
    %v1507 = vsel %vm135, %v1504, %v1506
    %1510 = vst [vmem:[#allocation2 + $0x50] sm:$0xff] %v1507
    %1511 = vst.msk [vmem:[#allocation2 + $0x58] sm:$0xff] %vm135, %v1506
    %v1512 = vmul.f32 %v1427, %v647
    %v1513 = vmul.f32 %v1428, %v650
    %1516 = vrot.lane.b32.xlu0 %v1512, 113
    %v1517 = vpop.permute.xlu0 %1516
    %1518 = vrot.lane.b32.xlu0 %v1513, 113
    %v1519 = vpop.permute.xlu0 %1518
    %v1520 = vsel %vm115, %v1517, %v1519
    %1523 = vst [vmem:[#allocation2 + $0x60] sm:$0xff] %v1520
    %1524 = vst.msk [vmem:[#allocation2 + $0x68] sm:$0xff] %vm115, %v1519
    %1525 = vrot.lane.b32.xlu0 %v1427, 112
    %v1526 = vpop.permute.xlu0 %1525
    %1527 = vrot.lane.b32.xlu0 %v1428, 112
    %v1528 = vpop.permute.xlu0 %1527
    %v1529 = vsel %vm196, %v1526, %v1528
    %1532 = vst [vmem:[#allocation2 + $0x70] sm:$0xff] %v1529
    %1533 = vst.msk [vmem:[#allocation2 + $0x78] sm:$0xff] %vm196, %v1528
    %v1534 = vmul.f32 %v1427, %v676
    %v1535 = vmul.f32 %v1428, %v679
    %1538 = vrot.lane.b32.xlu0 %v1534, 111
    %v1539 = vpop.permute.xlu0 %1538
    %1540 = vrot.lane.b32.xlu0 %v1535, 111
    %v1541 = vpop.permute.xlu0 %1540
    %v1542 = vsel %vm79, %v1539, %v1541
    %1545 = vst [vmem:[#allocation2 + $0x80] sm:$0xff] %v1542
    %1546 = vst.msk [vmem:[#allocation2 + $0x88] sm:$0xff] %vm79, %v1541
    %v1547 = vld [vmem:[#allocation2] sm:$0xff]
    %v1548 = vld [vmem:[#allocation2 + $0x8] sm:$0xff]
    %v1549 = vld [vmem:[#allocation2 + $0x10] sm:$0xff]
    %v1550 = vld [vmem:[#allocation2 + $0x18] sm:$0xff]
    %v1551 = vld [vmem:[#allocation2 + $0x20] sm:$0xff]
    %v1552 = vld [vmem:[#allocation2 + $0x28] sm:$0xff]
    %v1553 = vld [vmem:[#allocation2 + $0x30] sm:$0xff]
    %v1554 = vld [vmem:[#allocation2 + $0x38] sm:$0xff]
    %v1555 = vld [vmem:[#allocation2 + $0x40] sm:$0xff]
    %v1556 = vld [vmem:[#allocation2 + $0x48] sm:$0xff]
    %v1557 = vld [vmem:[#allocation2 + $0x50] sm:$0xff]
    %v1558 = vld [vmem:[#allocation2 + $0x58] sm:$0xff]
    %v1559 = vld [vmem:[#allocation2 + $0x60] sm:$0xff]
    %v1560 = vld [vmem:[#allocation2 + $0x68] sm:$0xff]
    %v1561 = vld [vmem:[#allocation2 + $0x70] sm:$0xff]
    %v1562 = vld [vmem:[#allocation2 + $0x78] sm:$0xff]
    %v1563 = vld [vmem:[#allocation2 + $0x80] sm:$0xff]
    %v1564 = vld [vmem:[#allocation2 + $0x88] sm:$0xff]
    %1565 = vmatprep.subr.mxu0 %v1548
    %1566 = vmatpush1.msra.mxu0 %v1547
    %1567 = vmatprep.subr.mxu0 %v1550
    %1568 = vmatpush1.msra.mxu0 %v1549
    %1569 = vmatprep.subr.mxu0 %v1552
    %1570 = vmatpush1.msra.mxu0 %v1551
    %1571 = vmatprep.subr.mxu0 %v1554
    %1572 = vmatpush1.msra.mxu0 %v1553
    %1573 = vmatprep.subr.mxu0 %v1556
    %1574 = vmatpush1.msra.mxu0 %v1555
    %1575 = vmatprep.subr.mxu0 %v1558
    %1576 = vmatpush1.msra.mxu0 %v1557
    %1577 = vmatprep.subr.mxu0 %v1560
    %1578 = vmatpush1.msra.mxu0 %v1559
    %1579 = vmatprep.subr.mxu0 %v1562
    %1580 = vmatpush1.msra.mxu0 %v1561
    %1581 = vmatprep.subr.mxu0 %v1564
    %1582 = vmatpush1.msra.mxu0 %v1563
    %1583 = vmatprep.subr.mxu0 0.0
    %1584 = vmatpush1.msra.mxu0 0.0
    %1585 = vmatprep.subr.mxu0 0.0
    %1586 = vmatpush1.msra.mxu0 0.0
    %1587 = vmatprep.subr.mxu0 0.0
    %1588 = vmatpush1.msra.mxu0 0.0
    %1589 = vmatprep.subr.mxu0 0.0
    %1590 = vmatpush1.msra.mxu0 0.0
    %1591 = vmatprep.subr.mxu0 0.0
    %1592 = vmatpush1.msra.mxu0 0.0
    %1593 = vmatprep.subr.mxu0 0.0
    %1594 = vmatpush1.msra.mxu0 0.0
    %1595 = vmatprep.subr.mxu0 0.0
    %1596 = vmatpush1.msra.mxu0 0.0
    %1597 = vmatprep.subr.mxu0 0.0
    %1598 = vmatpush1.msra.mxu0 0.0
    %1599 = vmatprep.subr.mxu0 0.0
    %1600 = vmatpush1.msra.mxu0 0.0
    %1601 = vmatprep.subr.mxu0 0.0
    %1602 = vmatpush1.msra.mxu0 0.0
    %1603 = vmatprep.subr.mxu0 0.0
    %1604 = vmatpush1.msra.mxu0 0.0
    %1605 = vmatprep.subr.mxu0 0.0
    %1606 = vmatpush1.msra.mxu0 0.0
    %1607 = vmatprep.subr.mxu0 0.0
    %1608 = vmatpush1.msra.mxu0 0.0
    %1609 = vmatprep.subr.mxu0 0.0
    %1610 = vmatpush1.msra.mxu0 0.0
    %1611 = vmatprep.subr.mxu0 0.0
    %1612 = vmatpush1.msra.mxu0 0.0
    %1613 = vmatprep.subr.mxu0 0.0
    %1614 = vmatpush1.msra.mxu0 0.0
    %1615 = vmatprep.subr.mxu0 0.0
    %1616 = vmatpush1.msra.mxu0 0.0
    %1617 = vmatprep.subr.mxu0 0.0
    %1618 = vmatpush1.msra.mxu0 0.0
    %1619 = vmatprep.subr.mxu0 0.0
    %1620 = vmatpush1.msra.mxu0 0.0
    %1621 = vmatprep.subr.mxu0 0.0
    %1622 = vmatpush1.msra.mxu0 0.0
    %1623 = vmatprep.subr.mxu0 0.0
    %1624 = vmatpush1.msra.mxu0 0.0
    %1625 = vmatprep.subr.mxu0 0.0
    %1626 = vmatpush1.msra.mxu0 0.0
    %1627 = vmatprep.subr.mxu0 0.0
    %1628 = vmatpush1.msra.mxu0 0.0
    %1629 = vmatprep.mubr.f32.mxu0 0.0
    %1630 = vmatmul.mubr.f32.gmra.mrb[0].mxu0 %v720
    %v1631 = vpop.f32.mrb[0].mxu0
    %v1632 = vadd.f32 %v716, %v1631
    %v1633 = vpop.f32.mrb[0].mxu0
    %v1634 = vadd.f32 %v716, %v1633
    %1635 = vdwg.mxu0
    %1636 = vst [vmem:[#allocation2] sm:$0xff] 0.0
    %1637 = vst [vmem:[#allocation2 + $0x8] sm:$0xff] 0.0
    %1638 = vst [vmem:[#allocation2 + $0x10] sm:$0xff] 0.0
    %1639 = vst [vmem:[#allocation2 + $0x18] sm:$0xff] 0.0
    %1640 = vst [vmem:[#allocation2 + $0x20] sm:$0xff] 0.0
    %1641 = vst [vmem:[#allocation2 + $0x28] sm:$0xff] 0.0
    %1642 = vst [vmem:[#allocation2 + $0x30] sm:$0xff] 0.0
    %1643 = vst [vmem:[#allocation2 + $0x38] sm:$0xff] 0.0
    %1644 = vst [vmem:[#allocation2 + $0x40] sm:$0xf] 0.0
    %1645 = vst [vmem:[#allocation2 + $0x48] sm:$0xf] 0.0
    %v1646 = vmul.f32 %v1632, %v553
    %v1647 = vmul.f32 %v1634, %v552
    %1650 = vrot.lane.b32.xlu0 %v1646, 17
    %v1651 = vpop.permute.xlu0 %1650
    %1652 = vrot.lane.b32.xlu0 %v1647, 17
    %v1653 = vpop.permute.xlu0 %1652
    %v1654 = vsel %vm89, %v1651, %v1653
    %1657 = vst.msk [vmem:[#allocation2] sm:$0xf] %vm93, %v1651
    %1658 = vst [vmem:[#allocation2 + $0x8] sm:$0xf] %v1654
    %v1661 = vrot.slane %v1632, 4
    %v1662 = vrot.slane %v1634, 4
    %1663 = vrot.lane.b32.xlu0 %v1661, 16
    %v1664 = vpop.permute.xlu0 %1663
    %1665 = vrot.lane.b32.xlu0 %v1662, 16
    %v1666 = vpop.permute.xlu0 %1665
    %v1667 = vsel %vm102, %v1664, %v1666
    %1670 = vst.msk [vmem:[#allocation2] sm:$0xf0] %vm106, %v1664
    %1671 = vst [vmem:[#allocation2 + $0x8] sm:$0xf0] %v1667
    %v1672 = vmul.f32 %v1632, %v586
    %v1673 = vmul.f32 %v1634, %v585
    %1676 = vrot.lane.b32.xlu0 %v1672, 15
    %v1677 = vpop.permute.xlu0 %1676
    %1678 = vrot.lane.b32.xlu0 %v1673, 15
    %v1679 = vpop.permute.xlu0 %1678
    %v1680 = vsel %vm125, %v1677, %v1679
    %1683 = vst.msk [vmem:[#allocation2 + $0x10] sm:$0xf] %vm129, %v1677
    %1684 = vst [vmem:[#allocation2 + $0x18] sm:$0xf] %v1680
    %v1685 = vmul.f32 %v1632, %v607
    %v1686 = vmul.f32 %v1634, %v606
    %v1689 = vrot.slane %v1685, 4
    %v1690 = vrot.slane %v1686, 4
    %1691 = vrot.lane.b32.xlu0 %v1689, 1
    %v1692 = vpop.permute.xlu0 %1691
    %1693 = vrot.lane.b32.xlu0 %v1690, 1
    %v1694 = vpop.permute.xlu0 %1693
    %v1695 = vsel %vm145, %v1692, %v1694
    %1698 = vst.msk [vmem:[#allocation2 + $0x10] sm:$0xf0] %vm149, %v1692
    %1699 = vst [vmem:[#allocation2 + $0x18] sm:$0xf0] %v1695
    %1700 = vst [vmem:[#allocation2 + $0x20] sm:$0xf] %v1632
    %1701 = vst [vmem:[#allocation2 + $0x28] sm:$0xf] %v1634
    %v1702 = vmul.f32 %v1632, %v627
    %v1703 = vmul.f32 %v1634, %v630
    %v1706 = vrot.slane %v1702, 4
    %v1707 = vrot.slane %v1703, 4
    %1708 = vrot.lane.b32.xlu0 %v1706, 127
    %v1709 = vpop.permute.xlu0 %1708
    %1710 = vrot.lane.b32.xlu0 %v1707, 127
    %v1711 = vpop.permute.xlu0 %1710
    %v1712 = vsel %vm135, %v1709, %v1711
    %1715 = vst [vmem:[#allocation2 + $0x20] sm:$0xf0] %v1712
    %1716 = vst.msk [vmem:[#allocation2 + $0x28] sm:$0xf0] %vm172, %v1711
    %v1717 = vmul.f32 %v1632, %v647
    %v1718 = vmul.f32 %v1634, %v650
    %1721 = vrot.lane.b32.xlu0 %v1717, 113
    %v1722 = vpop.permute.xlu0 %1721
    %1723 = vrot.lane.b32.xlu0 %v1718, 113
    %v1724 = vpop.permute.xlu0 %1723
    %v1725 = vsel %vm115, %v1722, %v1724
    %1728 = vst [vmem:[#allocation2 + $0x30] sm:$0xf] %v1725
    %1729 = vst.msk [vmem:[#allocation2 + $0x38] sm:$0xf] %vm190, %v1724
    %1730 = vrot.lane.b32.xlu0 %v1661, 112
    %v1731 = vpop.permute.xlu0 %1730
    %1732 = vrot.lane.b32.xlu0 %v1662, 112
    %v1733 = vpop.permute.xlu0 %1732
    %v1734 = vsel %vm196, %v1731, %v1733
    %1737 = vst [vmem:[#allocation2 + $0x30] sm:$0xf0] %v1734
    %1738 = vst.msk [vmem:[#allocation2 + $0x38] sm:$0xf0] %vm201, %v1733
    %v1739 = vmul.f32 %v1632, %v676
    %v1740 = vmul.f32 %v1634, %v679
    %1743 = vrot.lane.b32.xlu0 %v1739, 111
    %v1744 = vpop.permute.xlu0 %1743
    %1745 = vrot.lane.b32.xlu0 %v1740, 111
    %v1746 = vpop.permute.xlu0 %1745
    %v1747 = vsel %vm79, %v1744, %v1746
    %1750 = vst [vmem:[#allocation2 + $0x40] sm:$0xf] %v1747
    %1751 = vst.msk [vmem:[#allocation2 + $0x48] sm:$0xf] %vm219, %v1746
    %v1752 = vld [vmem:[#allocation2] sm:$0xff]
    %v1753 = vld [vmem:[#allocation2 + $0x8] sm:$0xff]
    %v1754 = vld [vmem:[#allocation2 + $0x10] sm:$0xff]
    %v1755 = vld [vmem:[#allocation2 + $0x18] sm:$0xff]
    %v1756 = vld [vmem:[#allocation2 + $0x20] sm:$0xff]
    %v1757 = vld [vmem:[#allocation2 + $0x28] sm:$0xff]
    %v1758 = vld [vmem:[#allocation2 + $0x30] sm:$0xff]
    %v1759 = vld [vmem:[#allocation2 + $0x38] sm:$0xff]
    %v1760 = vld [vmem:[#allocation2 + $0x40] sm:$0xf]
    %v1761 = vld [vmem:[#allocation2 + $0x48] sm:$0xf]
    %v1763 = vsel %vm240, %v1760, 0
    %v1766 = vsel %vm240, %v1761, 0
    %1768 = vmatprep.subr.mxu0 %v1753
    %1769 = vmatpush1.msra.mxu0 %v1752
    %1770 = vmatprep.subr.mxu0 %v1755
    %1771 = vmatpush1.msra.mxu0 %v1754
    %1772 = vmatprep.subr.mxu0 %v1757
    %1773 = vmatpush1.msra.mxu0 %v1756
    %1774 = vmatprep.subr.mxu0 %v1759
    %1775 = vmatpush1.msra.mxu0 %v1758
    %1776 = vmatprep.subr.mxu0 %v1766
    %1777 = vmatpush1.msra.mxu0 %v1763
    %1778 = vmatprep.subr.mxu0 0.0
    %1779 = vmatpush1.msra.mxu0 0.0
    %1780 = vmatprep.subr.mxu0 0.0
    %1781 = vmatpush1.msra.mxu0 0.0
    %1782 = vmatprep.subr.mxu0 0.0
    %1783 = vmatpush1.msra.mxu0 0.0
    %1784 = vmatprep.subr.mxu0 0.0
    %1785 = vmatpush1.msra.mxu0 0.0
    %1786 = vmatprep.subr.mxu0 0.0
    %1787 = vmatpush1.msra.mxu0 0.0
    %1788 = vmatprep.subr.mxu0 0.0
    %1789 = vmatpush1.msra.mxu0 0.0
    %1790 = vmatprep.subr.mxu0 0.0
    %1791 = vmatpush1.msra.mxu0 0.0
    %1792 = vmatprep.subr.mxu0 0.0
    %1793 = vmatpush1.msra.mxu0 0.0
    %1794 = vmatprep.subr.mxu0 0.0
    %1795 = vmatpush1.msra.mxu0 0.0
    %1796 = vmatprep.subr.mxu0 0.0
    %1797 = vmatpush1.msra.mxu0 0.0
    %1798 = vmatprep.subr.mxu0 0.0
    %1799 = vmatpush1.msra.mxu0 0.0
    %1800 = vmatprep.subr.mxu0 0.0
    %1801 = vmatpush1.msra.mxu0 0.0
    %1802 = vmatprep.subr.mxu0 0.0
    %1803 = vmatpush1.msra.mxu0 0.0
    %1804 = vmatprep.subr.mxu0 0.0
    %1805 = vmatpush1.msra.mxu0 0.0
    %1806 = vmatprep.subr.mxu0 0.0
    %1807 = vmatpush1.msra.mxu0 0.0
    %1808 = vmatprep.subr.mxu0 0.0
    %1809 = vmatpush1.msra.mxu0 0.0
    %1810 = vmatprep.subr.mxu0 0.0
    %1811 = vmatpush1.msra.mxu0 0.0
    %1812 = vmatprep.subr.mxu0 0.0
    %1813 = vmatpush1.msra.mxu0 0.0
    %1814 = vmatprep.subr.mxu0 0.0
    %1815 = vmatpush1.msra.mxu0 0.0
    %1816 = vmatprep.subr.mxu0 0.0
    %1817 = vmatpush1.msra.mxu0 0.0
    %1818 = vmatprep.subr.mxu0 0.0
    %1819 = vmatpush1.msra.mxu0 0.0
    %1820 = vmatprep.subr.mxu0 0.0
    %1821 = vmatpush1.msra.mxu0 0.0
    %1822 = vmatprep.subr.mxu0 0.0
    %1823 = vmatpush1.msra.mxu0 0.0
    %1824 = vmatprep.subr.mxu0 0.0
    %1825 = vmatpush1.msra.mxu0 0.0
    %1826 = vmatprep.subr.mxu0 0.0
    %1827 = vmatpush1.msra.mxu0 0.0
    %1828 = vmatprep.subr.mxu0 0.0
    %1829 = vmatpush1.msra.mxu0 0.0
    %1830 = vmatprep.subr.mxu0 0.0
    %1831 = vmatpush1.msra.mxu0 0.0
    %1832 = vmatprep.mubr.f32.mxu0 0.0
    %1833 = vmatmul.mubr.f32.gmra.mrb[0].mxu0 %v925
    %v1834 = vpop.f32.mrb[0].mxu0
    %v1835 = vadd.f32 %v922, %v1834
    %v1836 = vpop.f32.mrb[0].mxu0
    %v1837 = vadd.f32 %v922, %v1836
    %1838 = vdwg.mxu0
    %v1839 = vsub.f32 %v1028, %v1030
    %v1842 = vcombine.low %v1835, %v1837
    %v1844 = vmul.f32 %v1839, %v1842
    %v1845 = vmul.f32 %v1844, %v1844
    %v1847 = vcombine.high %v1845, %v1845
    %v1849 = vsel %vm240, %v1845, 0.0
    %v1850 = vsel %vm240, %v1847, 0.0
    %v1851 = vadd.f32 %v1849, %v1850
    %1852 = vadd.xlane.f32.xlu0 %v1851
    %v1853 = vpop.xlane.xlu0 %1852
    %v1854 = vrot.slane %v1853, 4
    %v1855 = vadd.f32 %v1853, %v1854
    %v1856 = vrot.slane %v1855, 2
    %v1857 = vadd.f32 %v1855, %v1856
    %v1858 = vrot.slane %v1857, 1
    %v1859 = vadd.f32 %v1857, %v1858
    %s1860 = vtos %v1859
    %s1861 = sadd.f32 %s1026, %s1860
    %s1862 = scalar_lea.smem [#allocation4], 0
    %1863 = sst [smem:[%s1862]] %s1861
    // Predicated region
    $region42: #{dis_forward.3} parent=1 // pred_check
      _
    $region43: #{dis_forward.3} parent=1 // pred_check_branch
      %1865 = sbr.rel (0) target = $region45
    $region44: #{dis_forward.3} parent=1 // pred_region
      %s1867 = ssub.s32 16, 16
      %1868 = vsyncadd [#allocation5], %s1867
      %1871 = dma.smem_to_hbm [#allocation4], 16, %s10, [#allocation5]
    $region45: #{dis_forward.3} parent=1 // pred_fallthru
      _
    // Predicated region
    $region46: #{dis_forward.3} parent=1 // pred_check
      _
    $region47: #{dis_forward.3} parent=1 // pred_check_branch
      %1873 = sbr.rel (0) target = $region49
    $region48: #{dis_forward.3} parent=1 // pred_region
      %1874 = dma.done [#allocation5], 16
    $region49: #{dis_forward.3} parent=1 // pred_fallthru
      _
    %1875 = sfence
    %1876 = vsyncpa [#allocation5], 1

</llo_original>
